<compile_context>
chip_gen: v7x
topology: tpu7x:2x2x1
jax: 0.10.0
libtpu: 0.0.40
codegen_flags: <defaults>
</compile_context>

<pallas_src>
import jax
import jax.numpy as jnp
import numpy as np
from jax.experimental import pallas as pl
from jax.experimental.pallas import tpu as pltpu

# ---- small, deterministic configuration (scaled-down module constants) ----
BATCH = 2
SEQ = 8
EMBEDDED = 32          # embedded_size
LATENT = 16            # latent_size
HIDDEN = 32            # decoder_hidden_size
LAYERS = 4             # decoder_layers
VOCAB = 64             # vocabulary_size

BP = 8                 # batch padded to one full sublane group
VPAD = 128             # vocab padded to one full lane group (lane-dense store)

_VMEM = pl.BlockSpec(memory_space=pltpu.MemorySpace.VMEM)


# --------------------------- fused Pallas kernel -----------------------------
def decoder_kernel(x_ref, wih0_ref, wih_ref, whh_ref, b_ref,
                   h0_ref, c0_ref, fcw_ref, fcb_ref,
                   logits_ref, hf_ref, cf_ref,
                   gx0_sc, y_sc):
    """Fused decoder forward (wavefront LSTM + FC).

    Refs:
      x_ref      (S*BP, Din0)    time-major, batch-padded input (x ++ z)
      wih0_ref   (Din0, 4H)      layer-0 input weights, transposed, gate-major lanes
      wih_ref    (L-1, H, 4H)    layers 1..L-1 input weights (transposed)
      whh_ref    (L, H, 4H)      recurrent weights (transposed)
      b_ref      (L, 1, 4H)      fused b_ih + b_hh
      h0_ref     (L, BP, H)      initial hidden
      c0_ref     (L, BP, H)      initial cell
      fcw_ref    (H, VPAD)       FC weight, transposed + lane-padded
      fcb_ref    (1, VPAD)       FC bias, lane-padded
      logits_ref (S*BP, VPAD)    output (lane-dense)
      hf_ref     (L, BP, H)      final hidden
      cf_ref     (L, BP, H)      final cell
      gx0_sc     (S*BP, 4H)      hoisted layer-0 input projection (+ bias)
      y_sc       (S*BP, H)       last-layer outputs (FC input)
    """
    H = HIDDEN
    S = SEQ

    # ---- hoisted, time-independent layer-0 input projection (+ fused bias):
    # one (S*BP, Din0) x (Din0, 4H) matmul, gates packed along lanes.
    gx0_sc[...] = (
        jnp.dot(x_ref[...], wih0_ref[...], preferred_element_type=jnp.float32)
        + b_ref[0]
    )

    # ---- per-layer recurrent state (kept as values, fully unrolled).
    h = [h0_ref[l] for l in range(LAYERS)]      # each (BP, H)
    c = [c0_ref[l] for l in range(LAYERS)]

    # y_prev[l] holds layer l's output from the previous wavefront step.
    y_prev = [None] * LAYERS

    # ---- wavefront schedule: cell (l, t) runs at wavefront step w = l + t.
    # Serial depth S + L - 1 = 11 instead of L * S = 32; up to 4 independent
    # cells per step, so MXU / EUP / VALU work from different layers overlaps.
    for w in range(SEQ + LAYERS - 1):
        y_new = list(y_prev)
        for l in range(LAYERS):
            t = w - l
            if t < 0 or t >= SEQ:
                continue
            if l == 0:
                # Hoisted projection (bias already folded) + one fused
                # recurrent matmul; g is a single lane-dense (BP, 4H) vreg.
                g = gx0_sc[pl.ds(t * BP, BP), :] + jnp.dot(
                    h[0], whh_ref[0], preferred_element_type=jnp.float32)
            else:
                g = (jnp.dot(y_prev[l - 1], wih_ref[l - 1],
                             preferred_element_type=jnp.float32)
                     + jnp.dot(h[l], whh_ref[l],
                               preferred_element_type=jnp.float32)
                     + b_ref[l])
            # Static lane slices of the packed gate vreg (gate order i,f,g,o).
            i_g = jax.nn.sigmoid(g[:, 0 * H:1 * H])
            f_g = jax.nn.sigmoid(g[:, 1 * H:2 * H])
            g_g = jnp.tanh(g[:, 2 * H:3 * H])
            o_g = jax.nn.sigmoid(g[:, 3 * H:4 * H])
            c[l] = f_g * c[l] + i_g * g_g
            h[l] = o_g * jnp.tanh(c[l])
            y_new[l] = h[l]
            if l == LAYERS - 1:
                # Sublane-aligned (8, H) store of the FC input for timestep t.
                y_sc[pl.ds(t * BP, BP), :] = h[l]
        y_prev = y_new

    for l in range(LAYERS):
        hf_ref[l] = h[l]
        cf_ref[l] = c[l]

    # dropout(p=0.3) in eval mode -> identity.
    # Lane-dense FC: (S*BP, H) x (H, 128) -> (S*BP, 128), unmasked stores.
    logits_ref[...] = (
        jnp.dot(y_sc[...], fcw_ref[...], preferred_element_type=jnp.float32)
        + fcb_ref[...])


# --------------------------- wrapper -----------------------------------------
def decoder_forward(x, z, params, decoder_hidden=None):
    """x: (B, S, E) f32, z: (B, latent) f32 -> (logits (B,S,V), (h_n, c_n))."""
    B, S, E = x.shape
    d_in0 = E + LATENT

    # torch.cat([z]*S, 1).view(B, S, latent) == broadcast z over time.
    z_rep = jnp.broadcast_to(z[:, None, :], (B, S, LATENT))
    xz = jnp.concatenate([x, z_rep], axis=2)                  # (B, S, Din0)
    xz_t = jnp.transpose(xz, (1, 0, 2))                       # (S, B, Din0)
    xz_p = jnp.pad(xz_t, ((0, 0), (0, BP - B), (0, 0)))       # (S, BP, Din0)
    x_flat = xz_p.reshape(S * BP, d_in0)                      # (S*BP, Din0)

    if decoder_hidden is None:
        h0 = jnp.zeros((LAYERS, BP, HIDDEN), jnp.float32)
        c0 = jnp.zeros((LAYERS, BP, HIDDEN), jnp.float32)
    else:
        h0_in, c0_in = decoder_hidden                         # (L, B, H)
        h0 = jnp.pad(h0_in, ((0, 0), (0, BP - B), (0, 0)))
        c0 = jnp.pad(c0_in, ((0, 0), (0, BP - B), (0, 0)))

    # One-time weight rearrangement (plain JAX glue): transposed so gate
    # blocks [i|f|g|o] are packed along lanes (each matmul RHS is (*, 4H)).
    wih0_t = params["lstm"][0][0].T                           # (Din0, 4H)
    wih_rest = jnp.stack(
        [params["lstm"][l][0].T for l in range(1, LAYERS)])   # (L-1, H, 4H)
    whh_all = jnp.stack(
        [params["lstm"][l][1].T for l in range(LAYERS)])      # (L, H, 4H)
    b_all = jnp.stack(
        [(params["lstm"][l][2] + params["lstm"][l][3]).reshape(1, 4 * HIDDEN)
         for l in range(LAYERS)])                             # (L, 1, 4H)

    # FC, transposed and lane-padded to 128 for unmasked full-vreg stores.
    fc_wt = jnp.pad(params["fc_w"].T, ((0, 0), (0, VPAD - VOCAB)))  # (H, VPAD)
    fc_b = jnp.pad(params["fc_b"], (0, VPAD - VOCAB)).reshape(1, VPAD)

    logits_pad, h_n_pad, c_n_pad = pl.pallas_call(
        decoder_kernel,
        out_shape=(jax.ShapeDtypeStruct((S * BP, VPAD), jnp.float32),
                   jax.ShapeDtypeStruct((LAYERS, BP, HIDDEN), jnp.float32),
                   jax.ShapeDtypeStruct((LAYERS, BP, HIDDEN), jnp.float32)),
        in_specs=[_VMEM] * 9,
        out_specs=(_VMEM, _VMEM, _VMEM),
        scratch_shapes=[pltpu.VMEM((S * BP, 4 * HIDDEN), jnp.float32),  # gx0
                        pltpu.VMEM((S * BP, HIDDEN), jnp.float32)],     # y
    )(x_flat, wih0_t, wih_rest, whh_all, b_all, h0, c0, fc_wt, fc_b)

    # Undo batch padding / vocab lane padding in plain JAX.
    logits = jnp.transpose(
        logits_pad.reshape(S, BP, VPAD)[:, :B, :VOCAB], (1, 0, 2))  # (B,S,V)
    h_n = h_n_pad[:, :B]
    c_n = c_n_pad[:, :B]
    return logits, (h_n, c_n)


# --------------------------- param init (deterministic) ----------------------
def init_params(key):
    k = 1.0 / np.sqrt(HIDDEN)

    def u(key, shape):
        return jax.random.uniform(key, shape, jnp.float32, -k, k)

    params = {"lstm": []}
    keys = jax.random.split(key, LAYERS * 4 + 2)
    for layer in range(LAYERS):
        d_in = EMBEDDED + LATENT if layer == 0 else HIDDEN
        kw = keys[layer * 4:(layer + 1) * 4]
        params["lstm"].append((u(kw[0], (4 * HIDDEN, d_in)),    # w_ih
                               u(kw[1], (4 * HIDDEN, HIDDEN)),  # w_hh
                               u(kw[2], (4 * HIDDEN,)),         # b_ih
                               u(kw[3], (4 * HIDDEN,))))        # b_hh
    params["fc_w"] = u(keys[-2], (VOCAB, HIDDEN))
    params["fc_b"] = u(keys[-1], (VOCAB,))
    return params


# --------------------------- pure-JAX reference -------------------------------
def decoder_ref(x, z, params):
    B, S, E = x.shape
    z_rep = jnp.broadcast_to(z[:, None, :], (B, S, LATENT))
    cur = jnp.concatenate([x, z_rep], axis=2)
    h_fin, c_fin = [], []
    for layer in range(LAYERS):
        w_ih, w_hh, b_ih, b_hh = params["lstm"][layer]
        h = jnp.zeros((B, HIDDEN), jnp.float32)
        c = jnp.zeros((B, HIDDEN), jnp.float32)
        ys = []
        for t in range(S):
            g = cur[:, t, :] @ w_ih.T + h @ w_hh.T + b_ih + b_hh
            i = jax.nn.sigmoid(g[:, 0 * HIDDEN:1 * HIDDEN])
            f = jax.nn.sigmoid(g[:, 1 * HIDDEN:2 * HIDDEN])
            gg = jnp.tanh(g[:, 2 * HIDDEN:3 * HIDDEN])
            o = jax.nn.sigmoid(g[:, 3 * HIDDEN:4 * HIDDEN])
            c = f * c + i * gg
            h = o * jnp.tanh(c)
            ys.append(h)
        cur = jnp.stack(ys, axis=1)
        h_fin.append(h)
        c_fin.append(c)
    logits = cur @ params["fc_w"].T + params["fc_b"]
    return logits, (jnp.stack(h_fin), jnp.stack(c_fin))


# --------------------------- main ---------------------------------------------
if __name__ == "__main__":
    key = jax.random.PRNGKey(0)
    kp, kx, kz = jax.random.split(key, 3)
    params = init_params(kp)
    x = jax.random.normal(kx, (BATCH, SEQ, EMBEDDED), jnp.float32)
    z = jax.random.normal(kz, (BATCH, LATENT), jnp.float32)

    logits, (h_n, c_n) = decoder_forward(x, z, params)
    jax.block_until_ready(logits)
    jax.block_until_ready(h_n)
    jax.block_until_ready(c_n)

    ref_logits, (ref_h, ref_c) = decoder_ref(x, z, params)
    assert logits.shape == (BATCH, SEQ, VOCAB)
    assert h_n.shape == (LAYERS, BATCH, HIDDEN)
    assert c_n.shape == (LAYERS, BATCH, HIDDEN)
    np.testing.assert_allclose(np.asarray(logits), np.asarray(ref_logits),
                               atol=1e-4, rtol=1e-4)
    np.testing.assert_allclose(np.asarray(h_n), np.asarray(ref_h),
                               atol=1e-4, rtol=1e-4)
    np.testing.assert_allclose(np.asarray(c_n), np.asarray(ref_c),
                               atol=1e-4, rtol=1e-4)
    print("KERNEL_OK")
</pallas_src>

<mosaic_0001>
module attributes {stable_mosaic.version = 11 : i64} {
  func.func @decoder_kernel(%arg0: memref<64x48xf32, #tpu.memory_space<vmem>>, %arg1: memref<48x128xf32, #tpu.memory_space<vmem>>, %arg2: memref<3x32x128xf32, #tpu.memory_space<vmem>>, %arg3: memref<4x32x128xf32, #tpu.memory_space<vmem>>, %arg4: memref<4x1x128xf32, #tpu.memory_space<vmem>>, %arg5: memref<4x8x32xf32, #tpu.memory_space<vmem>>, %arg6: memref<4x8x32xf32, #tpu.memory_space<vmem>>, %arg7: memref<32x128xf32, #tpu.memory_space<vmem>>, %arg8: memref<1x128xf32, #tpu.memory_space<vmem>>, %arg9: memref<64x128xf32, #tpu.memory_space<vmem>>, %arg10: memref<4x8x32xf32, #tpu.memory_space<vmem>>, %arg11: memref<4x8x32xf32, #tpu.memory_space<vmem>>, %arg12: memref<64x128xf32, #tpu.memory_space<vmem>>, %arg13: memref<64x32xf32, #tpu.memory_space<vmem>>) attributes {dimension_semantics = [], scalar_prefetch = 0 : i64, scratch_operands = 2 : i64, tpu.core_type = #tpu.core_type<tc>} {
    %c0 = arith.constant 0 : index
    %c0_0 = arith.constant 0 : index
    %0 = vector.load %arg0[%c0, %c0_0] : memref<64x48xf32, #tpu.memory_space<vmem>>, vector<64x48xf32>
    %c0_1 = arith.constant 0 : index
    %c0_2 = arith.constant 0 : index
    %1 = vector.load %arg1[%c0_1, %c0_2] : memref<48x128xf32, #tpu.memory_space<vmem>>, vector<48x128xf32>
    %cst = arith.constant dense<0.000000e+00> : vector<64x128xf32>
    %2 = tpu.matmul %0, %1, %cst {dimension_numbers = #tpu.dot_dimension_numbers<[1], [0], [0], [1], [0, 0, 1, 1], [], []>} : vector<64x48xf32>, vector<48x128xf32>, vector<64x128xf32> -> vector<64x128xf32>
    %c0_3 = arith.constant 0 : index
    %c0_4 = arith.constant 0 : index
    %c0_5 = arith.constant 0 : index
    %3 = vector.load %arg4[%c0_3, %c0_4, %c0_5] : memref<4x1x128xf32, #tpu.memory_space<vmem>>, vector<1x1x128xf32>
    %4 = vector.shape_cast %3 : vector<1x1x128xf32> to vector<1x128xf32>
    %5 = vector.broadcast %4 : vector<1x128xf32> to vector<64x128xf32>
    %6 = arith.addf %2, %5 : vector<64x128xf32>
    %c0_6 = arith.constant 0 : index
    %c0_7 = arith.constant 0 : index
    %7 = vector.load %arg12[%c0_6, %c0_7] : memref<64x128xf32, #tpu.memory_space<vmem>>, vector<64x128xf32>
    tpu.vector_store %arg12[%c0_6, %c0_7], %6 {strides = array<i32>} : memref<64x128xf32, #tpu.memory_space<vmem>>, vector<64x128xf32>,
    %c0_8 = arith.constant 0 : index
    %c0_9 = arith.constant 0 : index
    %c0_10 = arith.constant 0 : index
    %8 = vector.load %arg5[%c0_8, %c0_9, %c0_10] : memref<4x8x32xf32, #tpu.memory_space<vmem>>, vector<1x8x32xf32>
    %9 = vector.shape_cast %8 : vector<1x8x32xf32> to vector<8x32xf32>
    %c1 = arith.constant 1 : index
    %c0_11 = arith.constant 0 : index
    %c0_12 = arith.constant 0 : index
    %10 = vector.load %arg5[%c1, %c0_11, %c0_12] : memref<4x8x32xf32, #tpu.memory_space<vmem>>, vector<1x8x32xf32>
    %11 = vector.shape_cast %10 : vector<1x8x32xf32> to vector<8x32xf32>
    %c2 = arith.constant 2 : index
    %c0_13 = arith.constant 0 : index
    %c0_14 = arith.constant 0 : index
    %12 = vector.load %arg5[%c2, %c0_13, %c0_14] : memref<4x8x32xf32, #tpu.memory_space<vmem>>, vector<1x8x32xf32>
    %13 = vector.shape_cast %12 : vector<1x8x32xf32> to vector<8x32xf32>
    %c3 = arith.constant 3 : index
    %c0_15 = arith.constant 0 : index
    %c0_16 = arith.constant 0 : index
    %14 = vector.load %arg5[%c3, %c0_15, %c0_16] : memref<4x8x32xf32, #tpu.memory_space<vmem>>, vector<1x8x32xf32>
    %15 = vector.shape_cast %14 : vector<1x8x32xf32> to vector<8x32xf32>
    %c0_17 = arith.constant 0 : index
    %c0_18 = arith.constant 0 : index
    %c0_19 = arith.constant 0 : index
    %16 = vector.load %arg6[%c0_17, %c0_18, %c0_19] : memref<4x8x32xf32, #tpu.memory_space<vmem>>, vector<1x8x32xf32>
    %17 = vector.shape_cast %16 : vector<1x8x32xf32> to vector<8x32xf32>
    %c1_20 = arith.constant 1 : index
    %c0_21 = arith.constant 0 : index
    %c0_22 = arith.constant 0 : index
    %18 = vector.load %arg6[%c1_20, %c0_21, %c0_22] : memref<4x8x32xf32, #tpu.memory_space<vmem>>, vector<1x8x32xf32>
    %19 = vector.shape_cast %18 : vector<1x8x32xf32> to vector<8x32xf32>
    %c2_23 = arith.constant 2 : index
    %c0_24 = arith.constant 0 : index
    %c0_25 = arith.constant 0 : index
    %20 = vector.load %arg6[%c2_23, %c0_24, %c0_25] : memref<4x8x32xf32, #tpu.memory_space<vmem>>, vector<1x8x32xf32>
    %21 = vector.shape_cast %20 : vector<1x8x32xf32> to vector<8x32xf32>
    %c3_26 = arith.constant 3 : index
    %c0_27 = arith.constant 0 : index
    %c0_28 = arith.constant 0 : index
    %22 = vector.load %arg6[%c3_26, %c0_27, %c0_28] : memref<4x8x32xf32, #tpu.memory_space<vmem>>, vector<1x8x32xf32>
    %23 = vector.shape_cast %22 : vector<1x8x32xf32> to vector<8x32xf32>
    %c0_29 = arith.constant 0 : index
    %c0_30 = arith.constant 0 : index
    %24 = vector.load %arg12[%c0_29, %c0_30] : memref<64x128xf32, #tpu.memory_space<vmem>>, vector<8x128xf32>
    %c0_31 = arith.constant 0 : index
    %c0_32 = arith.constant 0 : index
    %c0_33 = arith.constant 0 : index
    %25 = vector.load %arg3[%c0_31, %c0_32, %c0_33] : memref<4x32x128xf32, #tpu.memory_space<vmem>>, vector<1x32x128xf32>
    %26 = vector.shape_cast %25 : vector<1x32x128xf32> to vector<32x128xf32>
    %cst_34 = arith.constant dense<0.000000e+00> : vector<8x128xf32>
    %27 = tpu.matmul %9, %26, %cst_34 {dimension_numbers = #tpu.dot_dimension_numbers<[1], [0], [0], [1], [0, 0, 1, 1], [], []>} : vector<8x32xf32>, vector<32x128xf32>, vector<8x128xf32> -> vector<8x128xf32>
    %28 = arith.addf %24, %27 : vector<8x128xf32>
    %29 = vector.extract_strided_slice %28 {offsets = [0, 0], sizes = [8, 32], strides = [1, 1]} : vector<8x128xf32> to vector<8x32xf32>
    %30 = arith.negf %29 : vector<8x32xf32>
    %31 = math.exp %30 : vector<8x32xf32>
    %cst_35 = arith.constant 1.000000e+00 : f32
    %32 = vector.broadcast %cst_35 : f32 to vector<8x32xf32>
    %33 = arith.addf %32, %31 : vector<8x32xf32>
    %34 = arith.divf %32, %33 : vector<8x32xf32>
    %35 = vector.extract_strided_slice %28 {offsets = [0, 32], sizes = [8, 32], strides = [1, 1]} : vector<8x128xf32> to vector<8x32xf32>
    %36 = arith.negf %35 : vector<8x32xf32>
    %37 = math.exp %36 : vector<8x32xf32>
    %cst_36 = arith.constant 1.000000e+00 : f32
    %38 = vector.broadcast %cst_36 : f32 to vector<8x32xf32>
    %39 = arith.addf %38, %37 : vector<8x32xf32>
    %40 = arith.divf %38, %39 : vector<8x32xf32>
    %41 = vector.extract_strided_slice %28 {offsets = [0, 64], sizes = [8, 32], strides = [1, 1]} : vector<8x128xf32> to vector<8x32xf32>
    %42 = math.tanh %41 : vector<8x32xf32>
    %43 = vector.extract_strided_slice %28 {offsets = [0, 96], sizes = [8, 32], strides = [1, 1]} : vector<8x128xf32> to vector<8x32xf32>
    %44 = arith.negf %43 : vector<8x32xf32>
    %45 = math.exp %44 : vector<8x32xf32>
    %cst_37 = arith.constant 1.000000e+00 : f32
    %46 = vector.broadcast %cst_37 : f32 to vector<8x32xf32>
    %47 = arith.addf %46, %45 : vector<8x32xf32>
    %48 = arith.divf %46, %47 : vector<8x32xf32>
    %49 = arith.mulf %40, %17 : vector<8x32xf32>
    %50 = arith.mulf %34, %42 : vector<8x32xf32>
    %51 = arith.addf %49, %50 : vector<8x32xf32>
    %52 = math.tanh %51 : vector<8x32xf32>
    %53 = arith.mulf %48, %52 : vector<8x32xf32>
    %c8 = arith.constant 8 : index
    %c0_38 = arith.constant 0 : index
    %54 = vector.load %arg12[%c8, %c0_38] : memref<64x128xf32, #tpu.memory_space<vmem>>, vector<8x128xf32>
    %c0_39 = arith.constant 0 : index
    %c0_40 = arith.constant 0 : index
    %c0_41 = arith.constant 0 : index
    %55 = vector.load %arg3[%c0_39, %c0_40, %c0_41] : memref<4x32x128xf32, #tpu.memory_space<vmem>>, vector<1x32x128xf32>
    %56 = vector.shape_cast %55 : vector<1x32x128xf32> to vector<32x128xf32>
    %cst_42 = arith.constant dense<0.000000e+00> : vector<8x128xf32>
    %57 = tpu.matmul %53, %56, %cst_42 {dimension_numbers = #tpu.dot_dimension_numbers<[1], [0], [0], [1], [0, 0, 1, 1], [], []>} : vector<8x32xf32>, vector<32x128xf32>, vector<8x128xf32> -> vector<8x128xf32>
    %58 = arith.addf %54, %57 : vector<8x128xf32>
    %59 = vector.extract_strided_slice %58 {offsets = [0, 0], sizes = [8, 32], strides = [1, 1]} : vector<8x128xf32> to vector<8x32xf32>
    %60 = arith.negf %59 : vector<8x32xf32>
    %61 = math.exp %60 : vector<8x32xf32>
    %cst_43 = arith.constant 1.000000e+00 : f32
    %62 = vector.broadcast %cst_43 : f32 to vector<8x32xf32>
    %63 = arith.addf %62, %61 : vector<8x32xf32>
    %64 = arith.divf %62, %63 : vector<8x32xf32>
    %65 = vector.extract_strided_slice %58 {offsets = [0, 32], sizes = [8, 32], strides = [1, 1]} : vector<8x128xf32> to vector<8x32xf32>
    %66 = arith.negf %65 : vector<8x32xf32>
    %67 = math.exp %66 : vector<8x32xf32>
    %cst_44 = arith.constant 1.000000e+00 : f32
    %68 = vector.broadcast %cst_44 : f32 to vector<8x32xf32>
    %69 = arith.addf %68, %67 : vector<8x32xf32>
    %70 = arith.divf %68, %69 : vector<8x32xf32>
    %71 = vector.extract_strided_slice %58 {offsets = [0, 64], sizes = [8, 32], strides = [1, 1]} : vector<8x128xf32> to vector<8x32xf32>
    %72 = math.tanh %71 : vector<8x32xf32>
    %73 = vector.extract_strided_slice %58 {offsets = [0, 96], sizes = [8, 32], strides = [1, 1]} : vector<8x128xf32> to vector<8x32xf32>
    %74 = arith.negf %73 : vector<8x32xf32>
    %75 = math.exp %74 : vector<8x32xf32>
    %cst_45 = arith.constant 1.000000e+00 : f32
    %76 = vector.broadcast %cst_45 : f32 to vector<8x32xf32>
    %77 = arith.addf %76, %75 : vector<8x32xf32>
    %78 = arith.divf %76, %77 : vector<8x32xf32>
    %79 = arith.mulf %70, %51 : vector<8x32xf32>
    %80 = arith.mulf %64, %72 : vector<8x32xf32>
    %81 = arith.addf %79, %80 : vector<8x32xf32>
    %82 = math.tanh %81 : vector<8x32xf32>
    %83 = arith.mulf %78, %82 : vector<8x32xf32>
    %c0_46 = arith.constant 0 : index
    %c0_47 = arith.constant 0 : index
    %c0_48 = arith.constant 0 : index
    %84 = vector.load %arg2[%c0_46, %c0_47, %c0_48] : memref<3x32x128xf32, #tpu.memory_space<vmem>>, vector<1x32x128xf32>
    %85 = vector.shape_cast %84 : vector<1x32x128xf32> to vector<32x128xf32>
    %cst_49 = arith.constant dense<0.000000e+00> : vector<8x128xf32>
    %86 = tpu.matmul %53, %85, %cst_49 {dimension_numbers = #tpu.dot_dimension_numbers<[1], [0], [0], [1], [0, 0, 1, 1], [], []>} : vector<8x32xf32>, vector<32x128xf32>, vector<8x128xf32> -> vector<8x128xf32>
    %c1_50 = arith.constant 1 : index
    %c0_51 = arith.constant 0 : index
    %c0_52 = arith.constant 0 : index
    %87 = vector.load %arg3[%c1_50, %c0_51, %c0_52] : memref<4x32x128xf32, #tpu.memory_space<vmem>>, vector<1x32x128xf32>
    %88 = vector.shape_cast %87 : vector<1x32x128xf32> to vector<32x128xf32>
    %cst_53 = arith.constant dense<0.000000e+00> : vector<8x128xf32>
    %89 = tpu.matmul %11, %88, %cst_53 {dimension_numbers = #tpu.dot_dimension_numbers<[1], [0], [0], [1], [0, 0, 1, 1], [], []>} : vector<8x32xf32>, vector<32x128xf32>, vector<8x128xf32> -> vector<8x128xf32>
    %90 = arith.addf %86, %89 : vector<8x128xf32>
    %c1_54 = arith.constant 1 : index
    %c0_55 = arith.constant 0 : index
    %c0_56 = arith.constant 0 : index
    %91 = vector.load %arg4[%c1_54, %c0_55, %c0_56] : memref<4x1x128xf32, #tpu.memory_space<vmem>>, vector<1x1x128xf32>
    %92 = vector.shape_cast %91 : vector<1x1x128xf32> to vector<1x128xf32>
    %93 = vector.broadcast %92 : vector<1x128xf32> to vector<8x128xf32>
    %94 = arith.addf %90, %93 : vector<8x128xf32>
    %95 = vector.extract_strided_slice %94 {offsets = [0, 0], sizes = [8, 32], strides = [1, 1]} : vector<8x128xf32> to vector<8x32xf32>
    %96 = arith.negf %95 : vector<8x32xf32>
    %97 = math.exp %96 : vector<8x32xf32>
    %cst_57 = arith.constant 1.000000e+00 : f32
    %98 = vector.broadcast %cst_57 : f32 to vector<8x32xf32>
    %99 = arith.addf %98, %97 : vector<8x32xf32>
    %100 = arith.divf %98, %99 : vector<8x32xf32>
    %101 = vector.extract_strided_slice %94 {offsets = [0, 32], sizes = [8, 32], strides = [1, 1]} : vector<8x128xf32> to vector<8x32xf32>
    %102 = arith.negf %101 : vector<8x32xf32>
    %103 = math.exp %102 : vector<8x32xf32>
    %cst_58 = arith.constant 1.000000e+00 : f32
    %104 = vector.broadcast %cst_58 : f32 to vector<8x32xf32>
    %105 = arith.addf %104, %103 : vector<8x32xf32>
    %106 = arith.divf %104, %105 : vector<8x32xf32>
    %107 = vector.extract_strided_slice %94 {offsets = [0, 64], sizes = [8, 32], strides = [1, 1]} : vector<8x128xf32> to vector<8x32xf32>
    %108 = math.tanh %107 : vector<8x32xf32>
    %109 = vector.extract_strided_slice %94 {offsets = [0, 96], sizes = [8, 32], strides = [1, 1]} : vector<8x128xf32> to vector<8x32xf32>
    %110 = arith.negf %109 : vector<8x32xf32>
    %111 = math.exp %110 : vector<8x32xf32>
    %cst_59 = arith.constant 1.000000e+00 : f32
    %112 = vector.broadcast %cst_59 : f32 to vector<8x32xf32>
    %113 = arith.addf %112, %111 : vector<8x32xf32>
    %114 = arith.divf %112, %113 : vector<8x32xf32>
    %115 = arith.mulf %106, %19 : vector<8x32xf32>
    %116 = arith.mulf %100, %108 : vector<8x32xf32>
    %117 = arith.addf %115, %116 : vector<8x32xf32>
    %118 = math.tanh %117 : vector<8x32xf32>
    %119 = arith.mulf %114, %118 : vector<8x32xf32>
    %c16 = arith.constant 16 : index
    %c0_60 = arith.constant 0 : index
    %120 = vector.load %arg12[%c16, %c0_60] : memref<64x128xf32, #tpu.memory_space<vmem>>, vector<8x128xf32>
    %c0_61 = arith.constant 0 : index
    %c0_62 = arith.constant 0 : index
    %c0_63 = arith.constant 0 : index
    %121 = vector.load %arg3[%c0_61, %c0_62, %c0_63] : memref<4x32x128xf32, #tpu.memory_space<vmem>>, vector<1x32x128xf32>
    %122 = vector.shape_cast %121 : vector<1x32x128xf32> to vector<32x128xf32>
    %cst_64 = arith.constant dense<0.000000e+00> : vector<8x128xf32>
    %123 = tpu.matmul %83, %122, %cst_64 {dimension_numbers = #tpu.dot_dimension_numbers<[1], [0], [0], [1], [0, 0, 1, 1], [], []>} : vector<8x32xf32>, vector<32x128xf32>, vector<8x128xf32> -> vector<8x128xf32>
    %124 = arith.addf %120, %123 : vector<8x128xf32>
    %125 = vector.extract_strided_slice %124 {offsets = [0, 0], sizes = [8, 32], strides = [1, 1]} : vector<8x128xf32> to vector<8x32xf32>
    %126 = arith.negf %125 : vector<8x32xf32>
    %127 = math.exp %126 : vector<8x32xf32>
    %cst_65 = arith.constant 1.000000e+00 : f32
    %128 = vector.broadcast %cst_65 : f32 to vector<8x32xf32>
    %129 = arith.addf %128, %127 : vector<8x32xf32>
    %130 = arith.divf %128, %129 : vector<8x32xf32>
    %131 = vector.extract_strided_slice %124 {offsets = [0, 32], sizes = [8, 32], strides = [1, 1]} : vector<8x128xf32> to vector<8x32xf32>
    %132 = arith.negf %131 : vector<8x32xf32>
    %133 = math.exp %132 : vector<8x32xf32>
    %cst_66 = arith.constant 1.000000e+00 : f32
    %134 = vector.broadcast %cst_66 : f32 to vector<8x32xf32>
    %135 = arith.addf %134, %133 : vector<8x32xf32>
    %136 = arith.divf %134, %135 : vector<8x32xf32>
    %137 = vector.extract_strided_slice %124 {offsets = [0, 64], sizes = [8, 32], strides = [1, 1]} : vector<8x128xf32> to vector<8x32xf32>
    %138 = math.tanh %137 : vector<8x32xf32>
    %139 = vector.extract_strided_slice %124 {offsets = [0, 96], sizes = [8, 32], strides = [1, 1]} : vector<8x128xf32> to vector<8x32xf32>
    %140 = arith.negf %139 : vector<8x32xf32>
    %141 = math.exp %140 : vector<8x32xf32>
    %cst_67 = arith.constant 1.000000e+00 : f32
    %142 = vector.broadcast %cst_67 : f32 to vector<8x32xf32>
    %143 = arith.addf %142, %141 : vector<8x32xf32>
    %144 = arith.divf %142, %143 : vector<8x32xf32>
    %145 = arith.mulf %136, %81 : vector<8x32xf32>
    %146 = arith.mulf %130, %138 : vector<8x32xf32>
    %147 = arith.addf %145, %146 : vector<8x32xf32>
    %148 = math.tanh %147 : vector<8x32xf32>
    %149 = arith.mulf %144, %148 : vector<8x32xf32>
    %c0_68 = arith.constant 0 : index
    %c0_69 = arith.constant 0 : index
    %c0_70 = arith.constant 0 : index
    %150 = vector.load %arg2[%c0_68, %c0_69, %c0_70] : memref<3x32x128xf32, #tpu.memory_space<vmem>>, vector<1x32x128xf32>
    %151 = vector.shape_cast %150 : vector<1x32x128xf32> to vector<32x128xf32>
    %cst_71 = arith.constant dense<0.000000e+00> : vector<8x128xf32>
    %152 = tpu.matmul %83, %151, %cst_71 {dimension_numbers = #tpu.dot_dimension_numbers<[1], [0], [0], [1], [0, 0, 1, 1], [], []>} : vector<8x32xf32>, vector<32x128xf32>, vector<8x128xf32> -> vector<8x128xf32>
    %c1_72 = arith.constant 1 : index
    %c0_73 = arith.constant 0 : index
    %c0_74 = arith.constant 0 : index
    %153 = vector.load %arg3[%c1_72, %c0_73, %c0_74] : memref<4x32x128xf32, #tpu.memory_space<vmem>>, vector<1x32x128xf32>
    %154 = vector.shape_cast %153 : vector<1x32x128xf32> to vector<32x128xf32>
    %cst_75 = arith.constant dense<0.000000e+00> : vector<8x128xf32>
    %155 = tpu.matmul %119, %154, %cst_75 {dimension_numbers = #tpu.dot_dimension_numbers<[1], [0], [0], [1], [0, 0, 1, 1], [], []>} : vector<8x32xf32>, vector<32x128xf32>, vector<8x128xf32> -> vector<8x128xf32>
    %156 = arith.addf %152, %155 : vector<8x128xf32>
    %c1_76 = arith.constant 1 : index
    %c0_77 = arith.constant 0 : index
    %c0_78 = arith.constant 0 : index
    %157 = vector.load %arg4[%c1_76, %c0_77, %c0_78] : memref<4x1x128xf32, #tpu.memory_space<vmem>>, vector<1x1x128xf32>
    %158 = vector.shape_cast %157 : vector<1x1x128xf32> to vector<1x128xf32>
    %159 = vector.broadcast %158 : vector<1x128xf32> to vector<8x128xf32>
    %160 = arith.addf %156, %159 : vector<8x128xf32>
    %161 = vector.extract_strided_slice %160 {offsets = [0, 0], sizes = [8, 32], strides = [1, 1]} : vector<8x128xf32> to vector<8x32xf32>
    %162 = arith.negf %161 : vector<8x32xf32>
    %163 = math.exp %162 : vector<8x32xf32>
    %cst_79 = arith.constant 1.000000e+00 : f32
    %164 = vector.broadcast %cst_79 : f32 to vector<8x32xf32>
    %165 = arith.addf %164, %163 : vector<8x32xf32>
    %166 = arith.divf %164, %165 : vector<8x32xf32>
    %167 = vector.extract_strided_slice %160 {offsets = [0, 32], sizes = [8, 32], strides = [1, 1]} : vector<8x128xf32> to vector<8x32xf32>
    %168 = arith.negf %167 : vector<8x32xf32>
    %169 = math.exp %168 : vector<8x32xf32>
    %cst_80 = arith.constant 1.000000e+00 : f32
    %170 = vector.broadcast %cst_80 : f32 to vector<8x32xf32>
    %171 = arith.addf %170, %169 : vector<8x32xf32>
    %172 = arith.divf %170, %171 : vector<8x32xf32>
    %173 = vector.extract_strided_slice %160 {offsets = [0, 64], sizes = [8, 32], strides = [1, 1]} : vector<8x128xf32> to vector<8x32xf32>
    %174 = math.tanh %173 : vector<8x32xf32>
    %175 = vector.extract_strided_slice %160 {offsets = [0, 96], sizes = [8, 32], strides = [1, 1]} : vector<8x128xf32> to vector<8x32xf32>
    %176 = arith.negf %175 : vector<8x32xf32>
    %177 = math.exp %176 : vector<8x32xf32>
    %cst_81 = arith.constant 1.000000e+00 : f32
    %178 = vector.broadcast %cst_81 : f32 to vector<8x32xf32>
    %179 = arith.addf %178, %177 : vector<8x32xf32>
    %180 = arith.divf %178, %179 : vector<8x32xf32>
    %181 = arith.mulf %172, %117 : vector<8x32xf32>
    %182 = arith.mulf %166, %174 : vector<8x32xf32>
    %183 = arith.addf %181, %182 : vector<8x32xf32>
    %184 = math.tanh %183 : vector<8x32xf32>
    %185 = arith.mulf %180, %184 : vector<8x32xf32>
    %c1_82 = arith.constant 1 : index
    %c0_83 = arith.constant 0 : index
    %c0_84 = arith.constant 0 : index
    %186 = vector.load %arg2[%c1_82, %c0_83, %c0_84] : memref<3x32x128xf32, #tpu.memory_space<vmem>>, vector<1x32x128xf32>
    %187 = vector.shape_cast %186 : vector<1x32x128xf32> to vector<32x128xf32>
    %cst_85 = arith.constant dense<0.000000e+00> : vector<8x128xf32>
    %188 = tpu.matmul %119, %187, %cst_85 {dimension_numbers = #tpu.dot_dimension_numbers<[1], [0], [0], [1], [0, 0, 1, 1], [], []>} : vector<8x32xf32>, vector<32x128xf32>, vector<8x128xf32> -> vector<8x128xf32>
    %c2_86 = arith.constant 2 : index
    %c0_87 = arith.constant 0 : index
    %c0_88 = arith.constant 0 : index
    %189 = vector.load %arg3[%c2_86, %c0_87, %c0_88] : memref<4x32x128xf32, #tpu.memory_space<vmem>>, vector<1x32x128xf32>
    %190 = vector.shape_cast %189 : vector<1x32x128xf32> to vector<32x128xf32>
    %cst_89 = arith.constant dense<0.000000e+00> : vector<8x128xf32>
    %191 = tpu.matmul %13, %190, %cst_89 {dimension_numbers = #tpu.dot_dimension_numbers<[1], [0], [0], [1], [0, 0, 1, 1], [], []>} : vector<8x32xf32>, vector<32x128xf32>, vector<8x128xf32> -> vector<8x128xf32>
    %192 = arith.addf %188, %191 : vector<8x128xf32>
    %c2_90 = arith.constant 2 : index
    %c0_91 = arith.constant 0 : index
    %c0_92 = arith.constant 0 : index
    %193 = vector.load %arg4[%c2_90, %c0_91, %c0_92] : memref<4x1x128xf32, #tpu.memory_space<vmem>>, vector<1x1x128xf32>
    %194 = vector.shape_cast %193 : vector<1x1x128xf32> to vector<1x128xf32>
    %195 = vector.broadcast %194 : vector<1x128xf32> to vector<8x128xf32>
    %196 = arith.addf %192, %195 : vector<8x128xf32>
    %197 = vector.extract_strided_slice %196 {offsets = [0, 0], sizes = [8, 32], strides = [1, 1]} : vector<8x128xf32> to vector<8x32xf32>
    %198 = arith.negf %197 : vector<8x32xf32>
    %199 = math.exp %198 : vector<8x32xf32>
    %cst_93 = arith.constant 1.000000e+00 : f32
    %200 = vector.broadcast %cst_93 : f32 to vector<8x32xf32>
    %201 = arith.addf %200, %199 : vector<8x32xf32>
    %202 = arith.divf %200, %201 : vector<8x32xf32>
    %203 = vector.extract_strided_slice %196 {offsets = [0, 32], sizes = [8, 32], strides = [1, 1]} : vector<8x128xf32> to vector<8x32xf32>
    %204 = arith.negf %203 : vector<8x32xf32>
    %205 = math.exp %204 : vector<8x32xf32>
    %cst_94 = arith.constant 1.000000e+00 : f32
    %206 = vector.broadcast %cst_94 : f32 to vector<8x32xf32>
    %207 = arith.addf %206, %205 : vector<8x32xf32>
    %208 = arith.divf %206, %207 : vector<8x32xf32>
    %209 = vector.extract_strided_slice %196 {offsets = [0, 64], sizes = [8, 32], strides = [1, 1]} : vector<8x128xf32> to vector<8x32xf32>
    %210 = math.tanh %209 : vector<8x32xf32>
    %211 = vector.extract_strided_slice %196 {offsets = [0, 96], sizes = [8, 32], strides = [1, 1]} : vector<8x128xf32> to vector<8x32xf32>
    %212 = arith.negf %211 : vector<8x32xf32>
    %213 = math.exp %212 : vector<8x32xf32>
    %cst_95 = arith.constant 1.000000e+00 : f32
    %214 = vector.broadcast %cst_95 : f32 to vector<8x32xf32>
    %215 = arith.addf %214, %213 : vector<8x32xf32>
    %216 = arith.divf %214, %215 : vector<8x32xf32>
    %217 = arith.mulf %208, %21 : vector<8x32xf32>
    %218 = arith.mulf %202, %210 : vector<8x32xf32>
    %219 = arith.addf %217, %218 : vector<8x32xf32>
    %220 = math.tanh %219 : vector<8x32xf32>
    %221 = arith.mulf %216, %220 : vector<8x32xf32>
    %c24 = arith.constant 24 : index
    %c0_96 = arith.constant 0 : index
    %222 = vector.load %arg12[%c24, %c0_96] : memref<64x128xf32, #tpu.memory_space<vmem>>, vector<8x128xf32>
    %c0_97 = arith.constant 0 : index
    %c0_98 = arith.constant 0 : index
    %c0_99 = arith.constant 0 : index
    %223 = vector.load %arg3[%c0_97, %c0_98, %c0_99] : memref<4x32x128xf32, #tpu.memory_space<vmem>>, vector<1x32x128xf32>
    %224 = vector.shape_cast %223 : vector<1x32x128xf32> to vector<32x128xf32>
    %cst_100 = arith.constant dense<0.000000e+00> : vector<8x128xf32>
    %225 = tpu.matmul %149, %224, %cst_100 {dimension_numbers = #tpu.dot_dimension_numbers<[1], [0], [0], [1], [0, 0, 1, 1], [], []>} : vector<8x32xf32>, vector<32x128xf32>, vector<8x128xf32> -> vector<8x128xf32>
    %226 = arith.addf %222, %225 : vector<8x128xf32>
    %227 = vector.extract_strided_slice %226 {offsets = [0, 0], sizes = [8, 32], strides = [1, 1]} : vector<8x128xf32> to vector<8x32xf32>
    %228 = arith.negf %227 : vector<8x32xf32>
    %229 = math.exp %228 : vector<8x32xf32>
    %cst_101 = arith.constant 1.000000e+00 : f32
    %230 = vector.broadcast %cst_101 : f32 to vector<8x32xf32>
    %231 = arith.addf %230, %229 : vector<8x32xf32>
    %232 = arith.divf %230, %231 : vector<8x32xf32>
    %233 = vector.extract_strided_slice %226 {offsets = [0, 32], sizes = [8, 32], strides = [1, 1]} : vector<8x128xf32> to vector<8x32xf32>
    %234 = arith.negf %233 : vector<8x32xf32>
    %235 = math.exp %234 : vector<8x32xf32>
    %cst_102 = arith.constant 1.000000e+00 : f32
    %236 = vector.broadcast %cst_102 : f32 to vector<8x32xf32>
    %237 = arith.addf %236, %235 : vector<8x32xf32>
    %238 = arith.divf %236, %237 : vector<8x32xf32>
    %239 = vector.extract_strided_slice %226 {offsets = [0, 64], sizes = [8, 32], strides = [1, 1]} : vector<8x128xf32> to vector<8x32xf32>
    %240 = math.tanh %239 : vector<8x32xf32>
    %241 = vector.extract_strided_slice %226 {offsets = [0, 96], sizes = [8, 32], strides = [1, 1]} : vector<8x128xf32> to vector<8x32xf32>
    %242 = arith.negf %241 : vector<8x32xf32>
    %243 = math.exp %242 : vector<8x32xf32>
    %cst_103 = arith.constant 1.000000e+00 : f32
    %244 = vector.broadcast %cst_103 : f32 to vector<8x32xf32>
    %245 = arith.addf %244, %243 : vector<8x32xf32>
    %246 = arith.divf %244, %245 : vector<8x32xf32>
    %247 = arith.mulf %238, %147 : vector<8x32xf32>
    %248 = arith.mulf %232, %240 : vector<8x32xf32>
    %249 = arith.addf %247, %248 : vector<8x32xf32>
    %250 = math.tanh %249 : vector<8x32xf32>
    %251 = arith.mulf %246, %250 : vector<8x32xf32>
    %c0_104 = arith.constant 0 : index
    %c0_105 = arith.constant 0 : index
    %c0_106 = arith.constant 0 : index
    %252 = vector.load %arg2[%c0_104, %c0_105, %c0_106] : memref<3x32x128xf32, #tpu.memory_space<vmem>>, vector<1x32x128xf32>
    %253 = vector.shape_cast %252 : vector<1x32x128xf32> to vector<32x128xf32>
    %cst_107 = arith.constant dense<0.000000e+00> : vector<8x128xf32>
    %254 = tpu.matmul %149, %253, %cst_107 {dimension_numbers = #tpu.dot_dimension_numbers<[1], [0], [0], [1], [0, 0, 1, 1], [], []>} : vector<8x32xf32>, vector<32x128xf32>, vector<8x128xf32> -> vector<8x128xf32>
    %c1_108 = arith.constant 1 : index
    %c0_109 = arith.constant 0 : index
    %c0_110 = arith.constant 0 : index
    %255 = vector.load %arg3[%c1_108, %c0_109, %c0_110] : memref<4x32x128xf32, #tpu.memory_space<vmem>>, vector<1x32x128xf32>
    %256 = vector.shape_cast %255 : vector<1x32x128xf32> to vector<32x128xf32>
    %cst_111 = arith.constant dense<0.000000e+00> : vector<8x128xf32>
    %257 = tpu.matmul %185, %256, %cst_111 {dimension_numbers = #tpu.dot_dimension_numbers<[1], [0], [0], [1], [0, 0, 1, 1], [], []>} : vector<8x32xf32>, vector<32x128xf32>, vector<8x128xf32> -> vector<8x128xf32>
    %258 = arith.addf %254, %257 : vector<8x128xf32>
    %c1_112 = arith.constant 1 : index
    %c0_113 = arith.constant 0 : index
    %c0_114 = arith.constant 0 : index
    %259 = vector.load %arg4[%c1_112, %c0_113, %c0_114] : memref<4x1x128xf32, #tpu.memory_space<vmem>>, vector<1x1x128xf32>
    %260 = vector.shape_cast %259 : vector<1x1x128xf32> to vector<1x128xf32>
    %261 = vector.broadcast %260 : vector<1x128xf32> to vector<8x128xf32>
    %262 = arith.addf %258, %261 : vector<8x128xf32>
    %263 = vector.extract_strided_slice %262 {offsets = [0, 0], sizes = [8, 32], strides = [1, 1]} : vector<8x128xf32> to vector<8x32xf32>
    %264 = arith.negf %263 : vector<8x32xf32>
    %265 = math.exp %264 : vector<8x32xf32>
    %cst_115 = arith.constant 1.000000e+00 : f32
    %266 = vector.broadcast %cst_115 : f32 to vector<8x32xf32>
    %267 = arith.addf %266, %265 : vector<8x32xf32>
    %268 = arith.divf %266, %267 : vector<8x32xf32>
    %269 = vector.extract_strided_slice %262 {offsets = [0, 32], sizes = [8, 32], strides = [1, 1]} : vector<8x128xf32> to vector<8x32xf32>
    %270 = arith.negf %269 : vector<8x32xf32>
    %271 = math.exp %270 : vector<8x32xf32>
    %cst_116 = arith.constant 1.000000e+00 : f32
    %272 = vector.broadcast %cst_116 : f32 to vector<8x32xf32>
    %273 = arith.addf %272, %271 : vector<8x32xf32>
    %274 = arith.divf %272, %273 : vector<8x32xf32>
    %275 = vector.extract_strided_slice %262 {offsets = [0, 64], sizes = [8, 32], strides = [1, 1]} : vector<8x128xf32> to vector<8x32xf32>
    %276 = math.tanh %275 : vector<8x32xf32>
    %277 = vector.extract_strided_slice %262 {offsets = [0, 96], sizes = [8, 32], strides = [1, 1]} : vector<8x128xf32> to vector<8x32xf32>
    %278 = arith.negf %277 : vector<8x32xf32>
    %279 = math.exp %278 : vector<8x32xf32>
    %cst_117 = arith.constant 1.000000e+00 : f32
    %280 = vector.broadcast %cst_117 : f32 to vector<8x32xf32>
    %281 = arith.addf %280, %279 : vector<8x32xf32>
    %282 = arith.divf %280, %281 : vector<8x32xf32>
    %283 = arith.mulf %274, %183 : vector<8x32xf32>
    %284 = arith.mulf %268, %276 : vector<8x32xf32>
    %285 = arith.addf %283, %284 : vector<8x32xf32>
    %286 = math.tanh %285 : vector<8x32xf32>
    %287 = arith.mulf %282, %286 : vector<8x32xf32>
    %c1_118 = arith.constant 1 : index
    %c0_119 = arith.constant 0 : index
    %c0_120 = arith.constant 0 : index
    %288 = vector.load %arg2[%c1_118, %c0_119, %c0_120] : memref<3x32x128xf32, #tpu.memory_space<vmem>>, vector<1x32x128xf32>
    %289 = vector.shape_cast %288 : vector<1x32x128xf32> to vector<32x128xf32>
    %cst_121 = arith.constant dense<0.000000e+00> : vector<8x128xf32>
    %290 = tpu.matmul %185, %289, %cst_121 {dimension_numbers = #tpu.dot_dimension_numbers<[1], [0], [0], [1], [0, 0, 1, 1], [], []>} : vector<8x32xf32>, vector<32x128xf32>, vector<8x128xf32> -> vector<8x128xf32>
    %c2_122 = arith.constant 2 : index
    %c0_123 = arith.constant 0 : index
    %c0_124 = arith.constant 0 : index
    %291 = vector.load %arg3[%c2_122, %c0_123, %c0_124] : memref<4x32x128xf32, #tpu.memory_space<vmem>>, vector<1x32x128xf32>
    %292 = vector.shape_cast %291 : vector<1x32x128xf32> to vector<32x128xf32>
    %cst_125 = arith.constant dense<0.000000e+00> : vector<8x128xf32>
    %293 = tpu.matmul %221, %292, %cst_125 {dimension_numbers = #tpu.dot_dimension_numbers<[1], [0], [0], [1], [0, 0, 1, 1], [], []>} : vector<8x32xf32>, vector<32x128xf32>, vector<8x128xf32> -> vector<8x128xf32>
    %294 = arith.addf %290, %293 : vector<8x128xf32>
    %c2_126 = arith.constant 2 : index
    %c0_127 = arith.constant 0 : index
    %c0_128 = arith.constant 0 : index
    %295 = vector.load %arg4[%c2_126, %c0_127, %c0_128] : memref<4x1x128xf32, #tpu.memory_space<vmem>>, vector<1x1x128xf32>
    %296 = vector.shape_cast %295 : vector<1x1x128xf32> to vector<1x128xf32>
    %297 = vector.broadcast %296 : vector<1x128xf32> to vector<8x128xf32>
    %298 = arith.addf %294, %297 : vector<8x128xf32>
    %299 = vector.extract_strided_slice %298 {offsets = [0, 0], sizes = [8, 32], strides = [1, 1]} : vector<8x128xf32> to vector<8x32xf32>
    %300 = arith.negf %299 : vector<8x32xf32>
    %301 = math.exp %300 : vector<8x32xf32>
    %cst_129 = arith.constant 1.000000e+00 : f32
    %302 = vector.broadcast %cst_129 : f32 to vector<8x32xf32>
    %303 = arith.addf %302, %301 : vector<8x32xf32>
    %304 = arith.divf %302, %303 : vector<8x32xf32>
    %305 = vector.extract_strided_slice %298 {offsets = [0, 32], sizes = [8, 32], strides = [1, 1]} : vector<8x128xf32> to vector<8x32xf32>
    %306 = arith.negf %305 : vector<8x32xf32>
    %307 = math.exp %306 : vector<8x32xf32>
    %cst_130 = arith.constant 1.000000e+00 : f32
    %308 = vector.broadcast %cst_130 : f32 to vector<8x32xf32>
    %309 = arith.addf %308, %307 : vector<8x32xf32>
    %310 = arith.divf %308, %309 : vector<8x32xf32>
    %311 = vector.extract_strided_slice %298 {offsets = [0, 64], sizes = [8, 32], strides = [1, 1]} : vector<8x128xf32> to vector<8x32xf32>
    %312 = math.tanh %311 : vector<8x32xf32>
    %313 = vector.extract_strided_slice %298 {offsets = [0, 96], sizes = [8, 32], strides = [1, 1]} : vector<8x128xf32> to vector<8x32xf32>
    %314 = arith.negf %313 : vector<8x32xf32>
    %315 = math.exp %314 : vector<8x32xf32>
    %cst_131 = arith.constant 1.000000e+00 : f32
    %316 = vector.broadcast %cst_131 : f32 to vector<8x32xf32>
    %317 = arith.addf %316, %315 : vector<8x32xf32>
    %318 = arith.divf %316, %317 : vector<8x32xf32>
    %319 = arith.mulf %310, %219 : vector<8x32xf32>
    %320 = arith.mulf %304, %312 : vector<8x32xf32>
    %321 = arith.addf %319, %320 : vector<8x32xf32>
    %322 = math.tanh %321 : vector<8x32xf32>
    %323 = arith.mulf %318, %322 : vector<8x32xf32>
    %c2_132 = arith.constant 2 : index
    %c0_133 = arith.constant 0 : index
    %c0_134 = arith.constant 0 : index
    %324 = vector.load %arg2[%c2_132, %c0_133, %c0_134] : memref<3x32x128xf32, #tpu.memory_space<vmem>>, vector<1x32x128xf32>
    %325 = vector.shape_cast %324 : vector<1x32x128xf32> to vector<32x128xf32>
    %cst_135 = arith.constant dense<0.000000e+00> : vector<8x128xf32>
    %326 = tpu.matmul %221, %325, %cst_135 {dimension_numbers = #tpu.dot_dimension_numbers<[1], [0], [0], [1], [0, 0, 1, 1], [], []>} : vector<8x32xf32>, vector<32x128xf32>, vector<8x128xf32> -> vector<8x128xf32>
    %c3_136 = arith.constant 3 : index
    %c0_137 = arith.constant 0 : index
    %c0_138 = arith.constant 0 : index
    %327 = vector.load %arg3[%c3_136, %c0_137, %c0_138] : memref<4x32x128xf32, #tpu.memory_space<vmem>>, vector<1x32x128xf32>
    %328 = vector.shape_cast %327 : vector<1x32x128xf32> to vector<32x128xf32>
    %cst_139 = arith.constant dense<0.000000e+00> : vector<8x128xf32>
    %329 = tpu.matmul %15, %328, %cst_139 {dimension_numbers = #tpu.dot_dimension_numbers<[1], [0], [0], [1], [0, 0, 1, 1], [], []>} : vector<8x32xf32>, vector<32x128xf32>, vector<8x128xf32> -> vector<8x128xf32>
    %330 = arith.addf %326, %329 : vector<8x128xf32>
    %c3_140 = arith.constant 3 : index
    %c0_141 = arith.constant 0 : index
    %c0_142 = arith.constant 0 : index
    %331 = vector.load %arg4[%c3_140, %c0_141, %c0_142] : memref<4x1x128xf32, #tpu.memory_space<vmem>>, vector<1x1x128xf32>
    %332 = vector.shape_cast %331 : vector<1x1x128xf32> to vector<1x128xf32>
    %333 = vector.broadcast %332 : vector<1x128xf32> to vector<8x128xf32>
    %334 = arith.addf %330, %333 : vector<8x128xf32>
    %335 = vector.extract_strided_slice %334 {offsets = [0, 0], sizes = [8, 32], strides = [1, 1]} : vector<8x128xf32> to vector<8x32xf32>
    %336 = arith.negf %335 : vector<8x32xf32>
    %337 = math.exp %336 : vector<8x32xf32>
    %cst_143 = arith.constant 1.000000e+00 : f32
    %338 = vector.broadcast %cst_143 : f32 to vector<8x32xf32>
    %339 = arith.addf %338, %337 : vector<8x32xf32>
    %340 = arith.divf %338, %339 : vector<8x32xf32>
    %341 = vector.extract_strided_slice %334 {offsets = [0, 32], sizes = [8, 32], strides = [1, 1]} : vector<8x128xf32> to vector<8x32xf32>
    %342 = arith.negf %341 : vector<8x32xf32>
    %343 = math.exp %342 : vector<8x32xf32>
    %cst_144 = arith.constant 1.000000e+00 : f32
    %344 = vector.broadcast %cst_144 : f32 to vector<8x32xf32>
    %345 = arith.addf %344, %343 : vector<8x32xf32>
    %346 = arith.divf %344, %345 : vector<8x32xf32>
    %347 = vector.extract_strided_slice %334 {offsets = [0, 64], sizes = [8, 32], strides = [1, 1]} : vector<8x128xf32> to vector<8x32xf32>
    %348 = math.tanh %347 : vector<8x32xf32>
    %349 = vector.extract_strided_slice %334 {offsets = [0, 96], sizes = [8, 32], strides = [1, 1]} : vector<8x128xf32> to vector<8x32xf32>
    %350 = arith.negf %349 : vector<8x32xf32>
    %351 = math.exp %350 : vector<8x32xf32>
    %cst_145 = arith.constant 1.000000e+00 : f32
    %352 = vector.broadcast %cst_145 : f32 to vector<8x32xf32>
    %353 = arith.addf %352, %351 : vector<8x32xf32>
    %354 = arith.divf %352, %353 : vector<8x32xf32>
    %355 = arith.mulf %346, %23 : vector<8x32xf32>
    %356 = arith.mulf %340, %348 : vector<8x32xf32>
    %357 = arith.addf %355, %356 : vector<8x32xf32>
    %358 = math.tanh %357 : vector<8x32xf32>
    %359 = arith.mulf %354, %358 : vector<8x32xf32>
    %c0_146 = arith.constant 0 : index
    %c0_147 = arith.constant 0 : index
    %360 = vector.load %arg13[%c0_146, %c0_147] : memref<64x32xf32, #tpu.memory_space<vmem>>, vector<8x32xf32>
    tpu.vector_store %arg13[%c0_146, %c0_147], %359 {strides = array<i32>} : memref<64x32xf32, #tpu.memory_space<vmem>>, vector<8x32xf32>,
    %c32 = arith.constant 32 : index
    %c0_148 = arith.constant 0 : index
    %361 = vector.load %arg12[%c32, %c0_148] : memref<64x128xf32, #tpu.memory_space<vmem>>, vector<8x128xf32>
    %c0_149 = arith.constant 0 : index
    %c0_150 = arith.constant 0 : index
    %c0_151 = arith.constant 0 : index
    %362 = vector.load %arg3[%c0_149, %c0_150, %c0_151] : memref<4x32x128xf32, #tpu.memory_space<vmem>>, vector<1x32x128xf32>
    %363 = vector.shape_cast %362 : vector<1x32x128xf32> to vector<32x128xf32>
    %cst_152 = arith.constant dense<0.000000e+00> : vector<8x128xf32>
    %364 = tpu.matmul %251, %363, %cst_152 {dimension_numbers = #tpu.dot_dimension_numbers<[1], [0], [0], [1], [0, 0, 1, 1], [], []>} : vector<8x32xf32>, vector<32x128xf32>, vector<8x128xf32> -> vector<8x128xf32>
    %365 = arith.addf %361, %364 : vector<8x128xf32>
    %366 = vector.extract_strided_slice %365 {offsets = [0, 0], sizes = [8, 32], strides = [1, 1]} : vector<8x128xf32> to vector<8x32xf32>
    %367 = arith.negf %366 : vector<8x32xf32>
    %368 = math.exp %367 : vector<8x32xf32>
    %cst_153 = arith.constant 1.000000e+00 : f32
    %369 = vector.broadcast %cst_153 : f32 to vector<8x32xf32>
    %370 = arith.addf %369, %368 : vector<8x32xf32>
    %371 = arith.divf %369, %370 : vector<8x32xf32>
    %372 = vector.extract_strided_slice %365 {offsets = [0, 32], sizes = [8, 32], strides = [1, 1]} : vector<8x128xf32> to vector<8x32xf32>
    %373 = arith.negf %372 : vector<8x32xf32>
    %374 = math.exp %373 : vector<8x32xf32>
    %cst_154 = arith.constant 1.000000e+00 : f32
    %375 = vector.broadcast %cst_154 : f32 to vector<8x32xf32>
    %376 = arith.addf %375, %374 : vector<8x32xf32>
    %377 = arith.divf %375, %376 : vector<8x32xf32>
    %378 = vector.extract_strided_slice %365 {offsets = [0, 64], sizes = [8, 32], strides = [1, 1]} : vector<8x128xf32> to vector<8x32xf32>
    %379 = math.tanh %378 : vector<8x32xf32>
    %380 = vector.extract_strided_slice %365 {offsets = [0, 96], sizes = [8, 32], strides = [1, 1]} : vector<8x128xf32> to vector<8x32xf32>
    %381 = arith.negf %380 : vector<8x32xf32>
    %382 = math.exp %381 : vector<8x32xf32>
    %cst_155 = arith.constant 1.000000e+00 : f32
    %383 = vector.broadcast %cst_155 : f32 to vector<8x32xf32>
    %384 = arith.addf %383, %382 : vector<8x32xf32>
    %385 = arith.divf %383, %384 : vector<8x32xf32>
    %386 = arith.mulf %377, %249 : vector<8x32xf32>
    %387 = arith.mulf %371, %379 : vector<8x32xf32>
    %388 = arith.addf %386, %387 : vector<8x32xf32>
    %389 = math.tanh %388 : vector<8x32xf32>
    %390 = arith.mulf %385, %389 : vector<8x32xf32>
    %c0_156 = arith.constant 0 : index
    %c0_157 = arith.constant 0 : index
    %c0_158 = arith.constant 0 : index
    %391 = vector.load %arg2[%c0_156, %c0_157, %c0_158] : memref<3x32x128xf32, #tpu.memory_space<vmem>>, vector<1x32x128xf32>
    %392 = vector.shape_cast %391 : vector<1x32x128xf32> to vector<32x128xf32>
    %cst_159 = arith.constant dense<0.000000e+00> : vector<8x128xf32>
    %393 = tpu.matmul %251, %392, %cst_159 {dimension_numbers = #tpu.dot_dimension_numbers<[1], [0], [0], [1], [0, 0, 1, 1], [], []>} : vector<8x32xf32>, vector<32x128xf32>, vector<8x128xf32> -> vector<8x128xf32>
    %c1_160 = arith.constant 1 : index
    %c0_161 = arith.constant 0 : index
    %c0_162 = arith.constant 0 : index
    %394 = vector.load %arg3[%c1_160, %c0_161, %c0_162] : memref<4x32x128xf32, #tpu.memory_space<vmem>>, vector<1x32x128xf32>
    %395 = vector.shape_cast %394 : vector<1x32x128xf32> to vector<32x128xf32>
    %cst_163 = arith.constant dense<0.000000e+00> : vector<8x128xf32>
    %396 = tpu.matmul %287, %395, %cst_163 {dimension_numbers = #tpu.dot_dimension_numbers<[1], [0], [0], [1], [0, 0, 1, 1], [], []>} : vector<8x32xf32>, vector<32x128xf32>, vector<8x128xf32> -> vector<8x128xf32>
    %397 = arith.addf %393, %396 : vector<8x128xf32>
    %c1_164 = arith.constant 1 : index
    %c0_165 = arith.constant 0 : index
    %c0_166 = arith.constant 0 : index
    %398 = vector.load %arg4[%c1_164, %c0_165, %c0_166] : memref<4x1x128xf32, #tpu.memory_space<vmem>>, vector<1x1x128xf32>
    %399 = vector.shape_cast %398 : vector<1x1x128xf32> to vector<1x128xf32>
    %400 = vector.broadcast %399 : vector<1x128xf32> to vector<8x128xf32>
    %401 = arith.addf %397, %400 : vector<8x128xf32>
    %402 = vector.extract_strided_slice %401 {offsets = [0, 0], sizes = [8, 32], strides = [1, 1]} : vector<8x128xf32> to vector<8x32xf32>
    %403 = arith.negf %402 : vector<8x32xf32>
    %404 = math.exp %403 : vector<8x32xf32>
    %cst_167 = arith.constant 1.000000e+00 : f32
    %405 = vector.broadcast %cst_167 : f32 to vector<8x32xf32>
    %406 = arith.addf %405, %404 : vector<8x32xf32>
    %407 = arith.divf %405, %406 : vector<8x32xf32>
    %408 = vector.extract_strided_slice %401 {offsets = [0, 32], sizes = [8, 32], strides = [1, 1]} : vector<8x128xf32> to vector<8x32xf32>
    %409 = arith.negf %408 : vector<8x32xf32>
    %410 = math.exp %409 : vector<8x32xf32>
    %cst_168 = arith.constant 1.000000e+00 : f32
    %411 = vector.broadcast %cst_168 : f32 to vector<8x32xf32>
    %412 = arith.addf %411, %410 : vector<8x32xf32>
    %413 = arith.divf %411, %412 : vector<8x32xf32>
    %414 = vector.extract_strided_slice %401 {offsets = [0, 64], sizes = [8, 32], strides = [1, 1]} : vector<8x128xf32> to vector<8x32xf32>
    %415 = math.tanh %414 : vector<8x32xf32>
    %416 = vector.extract_strided_slice %401 {offsets = [0, 96], sizes = [8, 32], strides = [1, 1]} : vector<8x128xf32> to vector<8x32xf32>
    %417 = arith.negf %416 : vector<8x32xf32>
    %418 = math.exp %417 : vector<8x32xf32>
    %cst_169 = arith.constant 1.000000e+00 : f32
    %419 = vector.broadcast %cst_169 : f32 to vector<8x32xf32>
    %420 = arith.addf %419, %418 : vector<8x32xf32>
    %421 = arith.divf %419, %420 : vector<8x32xf32>
    %422 = arith.mulf %413, %285 : vector<8x32xf32>
    %423 = arith.mulf %407, %415 : vector<8x32xf32>
    %424 = arith.addf %422, %423 : vector<8x32xf32>
    %425 = math.tanh %424 : vector<8x32xf32>
    %426 = arith.mulf %421, %425 : vector<8x32xf32>
    %c1_170 = arith.constant 1 : index
    %c0_171 = arith.constant 0 : index
    %c0_172 = arith.constant 0 : index
    %427 = vector.load %arg2[%c1_170, %c0_171, %c0_172] : memref<3x32x128xf32, #tpu.memory_space<vmem>>, vector<1x32x128xf32>
    %428 = vector.shape_cast %427 : vector<1x32x128xf32> to vector<32x128xf32>
    %cst_173 = arith.constant dense<0.000000e+00> : vector<8x128xf32>
    %429 = tpu.matmul %287, %428, %cst_173 {dimension_numbers = #tpu.dot_dimension_numbers<[1], [0], [0], [1], [0, 0, 1, 1], [], []>} : vector<8x32xf32>, vector<32x128xf32>, vector<8x128xf32> -> vector<8x128xf32>
    %c2_174 = arith.constant 2 : index
    %c0_175 = arith.constant 0 : index
    %c0_176 = arith.constant 0 : index
    %430 = vector.load %arg3[%c2_174, %c0_175, %c0_176] : memref<4x32x128xf32, #tpu.memory_space<vmem>>, vector<1x32x128xf32>
    %431 = vector.shape_cast %430 : vector<1x32x128xf32> to vector<32x128xf32>
    %cst_177 = arith.constant dense<0.000000e+00> : vector<8x128xf32>
    %432 = tpu.matmul %323, %431, %cst_177 {dimension_numbers = #tpu.dot_dimension_numbers<[1], [0], [0], [1], [0, 0, 1, 1], [], []>} : vector<8x32xf32>, vector<32x128xf32>, vector<8x128xf32> -> vector<8x128xf32>
    %433 = arith.addf %429, %432 : vector<8x128xf32>
    %c2_178 = arith.constant 2 : index
    %c0_179 = arith.constant 0 : index
    %c0_180 = arith.constant 0 : index
    %434 = vector.load %arg4[%c2_178, %c0_179, %c0_180] : memref<4x1x128xf32, #tpu.memory_space<vmem>>, vector<1x1x128xf32>
    %435 = vector.shape_cast %434 : vector<1x1x128xf32> to vector<1x128xf32>
    %436 = vector.broadcast %435 : vector<1x128xf32> to vector<8x128xf32>
    %437 = arith.addf %433, %436 : vector<8x128xf32>
    %438 = vector.extract_strided_slice %437 {offsets = [0, 0], sizes = [8, 32], strides = [1, 1]} : vector<8x128xf32> to vector<8x32xf32>
    %439 = arith.negf %438 : vector<8x32xf32>
    %440 = math.exp %439 : vector<8x32xf32>
    %cst_181 = arith.constant 1.000000e+00 : f32
    %441 = vector.broadcast %cst_181 : f32 to vector<8x32xf32>
    %442 = arith.addf %441, %440 : vector<8x32xf32>
    %443 = arith.divf %441, %442 : vector<8x32xf32>
    %444 = vector.extract_strided_slice %437 {offsets = [0, 32], sizes = [8, 32], strides = [1, 1]} : vector<8x128xf32> to vector<8x32xf32>
    %445 = arith.negf %444 : vector<8x32xf32>
    %446 = math.exp %445 : vector<8x32xf32>
    %cst_182 = arith.constant 1.000000e+00 : f32
    %447 = vector.broadcast %cst_182 : f32 to vector<8x32xf32>
    %448 = arith.addf %447, %446 : vector<8x32xf32>
    %449 = arith.divf %447, %448 : vector<8x32xf32>
    %450 = vector.extract_strided_slice %437 {offsets = [0, 64], sizes = [8, 32], strides = [1, 1]} : vector<8x128xf32> to vector<8x32xf32>
    %451 = math.tanh %450 : vector<8x32xf32>
    %452 = vector.extract_strided_slice %437 {offsets = [0, 96], sizes = [8, 32], strides = [1, 1]} : vector<8x128xf32> to vector<8x32xf32>
    %453 = arith.negf %452 : vector<8x32xf32>
    %454 = math.exp %453 : vector<8x32xf32>
    %cst_183 = arith.constant 1.000000e+00 : f32
    %455 = vector.broadcast %cst_183 : f32 to vector<8x32xf32>
    %456 = arith.addf %455, %454 : vector<8x32xf32>
    %457 = arith.divf %455, %456 : vector<8x32xf32>
    %458 = arith.mulf %449, %321 : vector<8x32xf32>
    %459 = arith.mulf %443, %451 : vector<8x32xf32>
    %460 = arith.addf %458, %459 : vector<8x32xf32>
    %461 = math.tanh %460 : vector<8x32xf32>
    %462 = arith.mulf %457, %461 : vector<8x32xf32>
    %c2_184 = arith.constant 2 : index
    %c0_185 = arith.constant 0 : index
    %c0_186 = arith.constant 0 : index
    %463 = vector.load %arg2[%c2_184, %c0_185, %c0_186] : memref<3x32x128xf32, #tpu.memory_space<vmem>>, vector<1x32x128xf32>
    %464 = vector.shape_cast %463 : vector<1x32x128xf32> to vector<32x128xf32>
    %cst_187 = arith.constant dense<0.000000e+00> : vector<8x128xf32>
    %465 = tpu.matmul %323, %464, %cst_187 {dimension_numbers = #tpu.dot_dimension_numbers<[1], [0], [0], [1], [0, 0, 1, 1], [], []>} : vector<8x32xf32>, vector<32x128xf32>, vector<8x128xf32> -> vector<8x128xf32>
    %c3_188 = arith.constant 3 : index
    %c0_189 = arith.constant 0 : index
    %c0_190 = arith.constant 0 : index
    %466 = vector.load %arg3[%c3_188, %c0_189, %c0_190] : memref<4x32x128xf32, #tpu.memory_space<vmem>>, vector<1x32x128xf32>
    %467 = vector.shape_cast %466 : vector<1x32x128xf32> to vector<32x128xf32>
    %cst_191 = arith.constant dense<0.000000e+00> : vector<8x128xf32>
    %468 = tpu.matmul %359, %467, %cst_191 {dimension_numbers = #tpu.dot_dimension_numbers<[1], [0], [0], [1], [0, 0, 1, 1], [], []>} : vector<8x32xf32>, vector<32x128xf32>, vector<8x128xf32> -> vector<8x128xf32>
    %469 = arith.addf %465, %468 : vector<8x128xf32>
    %c3_192 = arith.constant 3 : index
    %c0_193 = arith.constant 0 : index
    %c0_194 = arith.constant 0 : index
    %470 = vector.load %arg4[%c3_192, %c0_193, %c0_194] : memref<4x1x128xf32, #tpu.memory_space<vmem>>, vector<1x1x128xf32>
    %471 = vector.shape_cast %470 : vector<1x1x128xf32> to vector<1x128xf32>
    %472 = vector.broadcast %471 : vector<1x128xf32> to vector<8x128xf32>
    %473 = arith.addf %469, %472 : vector<8x128xf32>
    %474 = vector.extract_strided_slice %473 {offsets = [0, 0], sizes = [8, 32], strides = [1, 1]} : vector<8x128xf32> to vector<8x32xf32>
    %475 = arith.negf %474 : vector<8x32xf32>
    %476 = math.exp %475 : vector<8x32xf32>
    %cst_195 = arith.constant 1.000000e+00 : f32
    %477 = vector.broadcast %cst_195 : f32 to vector<8x32xf32>
    %478 = arith.addf %477, %476 : vector<8x32xf32>
    %479 = arith.divf %477, %478 : vector<8x32xf32>
    %480 = vector.extract_strided_slice %473 {offsets = [0, 32], sizes = [8, 32], strides = [1, 1]} : vector<8x128xf32> to vector<8x32xf32>
    %481 = arith.negf %480 : vector<8x32xf32>
    %482 = math.exp %481 : vector<8x32xf32>
    %cst_196 = arith.constant 1.000000e+00 : f32
    %483 = vector.broadcast %cst_196 : f32 to vector<8x32xf32>
    %484 = arith.addf %483, %482 : vector<8x32xf32>
    %485 = arith.divf %483, %484 : vector<8x32xf32>
    %486 = vector.extract_strided_slice %473 {offsets = [0, 64], sizes = [8, 32], strides = [1, 1]} : vector<8x128xf32> to vector<8x32xf32>
    %487 = math.tanh %486 : vector<8x32xf32>
    %488 = vector.extract_strided_slice %473 {offsets = [0, 96], sizes = [8, 32], strides = [1, 1]} : vector<8x128xf32> to vector<8x32xf32>
    %489 = arith.negf %488 : vector<8x32xf32>
    %490 = math.exp %489 : vector<8x32xf32>
    %cst_197 = arith.constant 1.000000e+00 : f32
    %491 = vector.broadcast %cst_197 : f32 to vector<8x32xf32>
    %492 = arith.addf %491, %490 : vector<8x32xf32>
    %493 = arith.divf %491, %492 : vector<8x32xf32>
    %494 = arith.mulf %485, %357 : vector<8x32xf32>
    %495 = arith.mulf %479, %487 : vector<8x32xf32>
    %496 = arith.addf %494, %495 : vector<8x32xf32>
    %497 = math.tanh %496 : vector<8x32xf32>
    %498 = arith.mulf %493, %497 : vector<8x32xf32>
    %c8_198 = arith.constant 8 : index
    %c0_199 = arith.constant 0 : index
    %499 = vector.load %arg13[%c8_198, %c0_199] : memref<64x32xf32, #tpu.memory_space<vmem>>, vector<8x32xf32>
    tpu.vector_store %arg13[%c8_198, %c0_199], %498 {strides = array<i32>} : memref<64x32xf32, #tpu.memory_space<vmem>>, vector<8x32xf32>,
    %c40 = arith.constant 40 : index
    %c0_200 = arith.constant 0 : index
    %500 = vector.load %arg12[%c40, %c0_200] : memref<64x128xf32, #tpu.memory_space<vmem>>, vector<8x128xf32>
    %c0_201 = arith.constant 0 : index
    %c0_202 = arith.constant 0 : index
    %c0_203 = arith.constant 0 : index
    %501 = vector.load %arg3[%c0_201, %c0_202, %c0_203] : memref<4x32x128xf32, #tpu.memory_space<vmem>>, vector<1x32x128xf32>
    %502 = vector.shape_cast %501 : vector<1x32x128xf32> to vector<32x128xf32>
    %cst_204 = arith.constant dense<0.000000e+00> : vector<8x128xf32>
    %503 = tpu.matmul %390, %502, %cst_204 {dimension_numbers = #tpu.dot_dimension_numbers<[1], [0], [0], [1], [0, 0, 1, 1], [], []>} : vector<8x32xf32>, vector<32x128xf32>, vector<8x128xf32> -> vector<8x128xf32>
    %504 = arith.addf %500, %503 : vector<8x128xf32>
    %505 = vector.extract_strided_slice %504 {offsets = [0, 0], sizes = [8, 32], strides = [1, 1]} : vector<8x128xf32> to vector<8x32xf32>
    %506 = arith.negf %505 : vector<8x32xf32>
    %507 = math.exp %506 : vector<8x32xf32>
    %cst_205 = arith.constant 1.000000e+00 : f32
    %508 = vector.broadcast %cst_205 : f32 to vector<8x32xf32>
    %509 = arith.addf %508, %507 : vector<8x32xf32>
    %510 = arith.divf %508, %509 : vector<8x32xf32>
    %511 = vector.extract_strided_slice %504 {offsets = [0, 32], sizes = [8, 32], strides = [1, 1]} : vector<8x128xf32> to vector<8x32xf32>
    %512 = arith.negf %511 : vector<8x32xf32>
    %513 = math.exp %512 : vector<8x32xf32>
    %cst_206 = arith.constant 1.000000e+00 : f32
    %514 = vector.broadcast %cst_206 : f32 to vector<8x32xf32>
    %515 = arith.addf %514, %513 : vector<8x32xf32>
    %516 = arith.divf %514, %515 : vector<8x32xf32>
    %517 = vector.extract_strided_slice %504 {offsets = [0, 64], sizes = [8, 32], strides = [1, 1]} : vector<8x128xf32> to vector<8x32xf32>
    %518 = math.tanh %517 : vector<8x32xf32>
    %519 = vector.extract_strided_slice %504 {offsets = [0, 96], sizes = [8, 32], strides = [1, 1]} : vector<8x128xf32> to vector<8x32xf32>
    %520 = arith.negf %519 : vector<8x32xf32>
    %521 = math.exp %520 : vector<8x32xf32>
    %cst_207 = arith.constant 1.000000e+00 : f32
    %522 = vector.broadcast %cst_207 : f32 to vector<8x32xf32>
    %523 = arith.addf %522, %521 : vector<8x32xf32>
    %524 = arith.divf %522, %523 : vector<8x32xf32>
    %525 = arith.mulf %516, %388 : vector<8x32xf32>
    %526 = arith.mulf %510, %518 : vector<8x32xf32>
    %527 = arith.addf %525, %526 : vector<8x32xf32>
    %528 = math.tanh %527 : vector<8x32xf32>
    %529 = arith.mulf %524, %528 : vector<8x32xf32>
    %c0_208 = arith.constant 0 : index
    %c0_209 = arith.constant 0 : index
    %c0_210 = arith.constant 0 : index
    %530 = vector.load %arg2[%c0_208, %c0_209, %c0_210] : memref<3x32x128xf32, #tpu.memory_space<vmem>>, vector<1x32x128xf32>
    %531 = vector.shape_cast %530 : vector<1x32x128xf32> to vector<32x128xf32>
    %cst_211 = arith.constant dense<0.000000e+00> : vector<8x128xf32>
    %532 = tpu.matmul %390, %531, %cst_211 {dimension_numbers = #tpu.dot_dimension_numbers<[1], [0], [0], [1], [0, 0, 1, 1], [], []>} : vector<8x32xf32>, vector<32x128xf32>, vector<8x128xf32> -> vector<8x128xf32>
    %c1_212 = arith.constant 1 : index
    %c0_213 = arith.constant 0 : index
    %c0_214 = arith.constant 0 : index
    %533 = vector.load %arg3[%c1_212, %c0_213, %c0_214] : memref<4x32x128xf32, #tpu.memory_space<vmem>>, vector<1x32x128xf32>
    %534 = vector.shape_cast %533 : vector<1x32x128xf32> to vector<32x128xf32>
    %cst_215 = arith.constant dense<0.000000e+00> : vector<8x128xf32>
    %535 = tpu.matmul %426, %534, %cst_215 {dimension_numbers = #tpu.dot_dimension_numbers<[1], [0], [0], [1], [0, 0, 1, 1], [], []>} : vector<8x32xf32>, vector<32x128xf32>, vector<8x128xf32> -> vector<8x128xf32>
    %536 = arith.addf %532, %535 : vector<8x128xf32>
    %c1_216 = arith.constant 1 : index
    %c0_217 = arith.constant 0 : index
    %c0_218 = arith.constant 0 : index
    %537 = vector.load %arg4[%c1_216, %c0_217, %c0_218] : memref<4x1x128xf32, #tpu.memory_space<vmem>>, vector<1x1x128xf32>
    %538 = vector.shape_cast %537 : vector<1x1x128xf32> to vector<1x128xf32>
    %539 = vector.broadcast %538 : vector<1x128xf32> to vector<8x128xf32>
    %540 = arith.addf %536, %539 : vector<8x128xf32>
    %541 = vector.extract_strided_slice %540 {offsets = [0, 0], sizes = [8, 32], strides = [1, 1]} : vector<8x128xf32> to vector<8x32xf32>
    %542 = arith.negf %541 : vector<8x32xf32>
    %543 = math.exp %542 : vector<8x32xf32>
    %cst_219 = arith.constant 1.000000e+00 : f32
    %544 = vector.broadcast %cst_219 : f32 to vector<8x32xf32>
    %545 = arith.addf %544, %543 : vector<8x32xf32>
    %546 = arith.divf %544, %545 : vector<8x32xf32>
    %547 = vector.extract_strided_slice %540 {offsets = [0, 32], sizes = [8, 32], strides = [1, 1]} : vector<8x128xf32> to vector<8x32xf32>
    %548 = arith.negf %547 : vector<8x32xf32>
    %549 = math.exp %548 : vector<8x32xf32>
    %cst_220 = arith.constant 1.000000e+00 : f32
    %550 = vector.broadcast %cst_220 : f32 to vector<8x32xf32>
    %551 = arith.addf %550, %549 : vector<8x32xf32>
    %552 = arith.divf %550, %551 : vector<8x32xf32>
    %553 = vector.extract_strided_slice %540 {offsets = [0, 64], sizes = [8, 32], strides = [1, 1]} : vector<8x128xf32> to vector<8x32xf32>
    %554 = math.tanh %553 : vector<8x32xf32>
    %555 = vector.extract_strided_slice %540 {offsets = [0, 96], sizes = [8, 32], strides = [1, 1]} : vector<8x128xf32> to vector<8x32xf32>
    %556 = arith.negf %555 : vector<8x32xf32>
    %557 = math.exp %556 : vector<8x32xf32>
    %cst_221 = arith.constant 1.000000e+00 : f32
    %558 = vector.broadcast %cst_221 : f32 to vector<8x32xf32>
    %559 = arith.addf %558, %557 : vector<8x32xf32>
    %560 = arith.divf %558, %559 : vector<8x32xf32>
    %561 = arith.mulf %552, %424 : vector<8x32xf32>
    %562 = arith.mulf %546, %554 : vector<8x32xf32>
    %563 = arith.addf %561, %562 : vector<8x32xf32>
    %564 = math.tanh %563 : vector<8x32xf32>
    %565 = arith.mulf %560, %564 : vector<8x32xf32>
    %c1_222 = arith.constant 1 : index
    %c0_223 = arith.constant 0 : index
    %c0_224 = arith.constant 0 : index
    %566 = vector.load %arg2[%c1_222, %c0_223, %c0_224] : memref<3x32x128xf32, #tpu.memory_space<vmem>>, vector<1x32x128xf32>
    %567 = vector.shape_cast %566 : vector<1x32x128xf32> to vector<32x128xf32>
    %cst_225 = arith.constant dense<0.000000e+00> : vector<8x128xf32>
    %568 = tpu.matmul %426, %567, %cst_225 {dimension_numbers = #tpu.dot_dimension_numbers<[1], [0], [0], [1], [0, 0, 1, 1], [], []>} : vector<8x32xf32>, vector<32x128xf32>, vector<8x128xf32> -> vector<8x128xf32>
    %c2_226 = arith.constant 2 : index
    %c0_227 = arith.constant 0 : index
    %c0_228 = arith.constant 0 : index
    %569 = vector.load %arg3[%c2_226, %c0_227, %c0_228] : memref<4x32x128xf32, #tpu.memory_space<vmem>>, vector<1x32x128xf32>
    %570 = vector.shape_cast %569 : vector<1x32x128xf32> to vector<32x128xf32>
    %cst_229 = arith.constant dense<0.000000e+00> : vector<8x128xf32>
    %571 = tpu.matmul %462, %570, %cst_229 {dimension_numbers = #tpu.dot_dimension_numbers<[1], [0], [0], [1], [0, 0, 1, 1], [], []>} : vector<8x32xf32>, vector<32x128xf32>, vector<8x128xf32> -> vector<8x128xf32>
    %572 = arith.addf %568, %571 : vector<8x128xf32>
    %c2_230 = arith.constant 2 : index
    %c0_231 = arith.constant 0 : index
    %c0_232 = arith.constant 0 : index
    %573 = vector.load %arg4[%c2_230, %c0_231, %c0_232] : memref<4x1x128xf32, #tpu.memory_space<vmem>>, vector<1x1x128xf32>
    %574 = vector.shape_cast %573 : vector<1x1x128xf32> to vector<1x128xf32>
    %575 = vector.broadcast %574 : vector<1x128xf32> to vector<8x128xf32>
    %576 = arith.addf %572, %575 : vector<8x128xf32>
    %577 = vector.extract_strided_slice %576 {offsets = [0, 0], sizes = [8, 32], strides = [1, 1]} : vector<8x128xf32> to vector<8x32xf32>
    %578 = arith.negf %577 : vector<8x32xf32>
    %579 = math.exp %578 : vector<8x32xf32>
    %cst_233 = arith.constant 1.000000e+00 : f32
    %580 = vector.broadcast %cst_233 : f32 to vector<8x32xf32>
    %581 = arith.addf %580, %579 : vector<8x32xf32>
    %582 = arith.divf %580, %581 : vector<8x32xf32>
    %583 = vector.extract_strided_slice %576 {offsets = [0, 32], sizes = [8, 32], strides = [1, 1]} : vector<8x128xf32> to vector<8x32xf32>
    %584 = arith.negf %583 : vector<8x32xf32>
    %585 = math.exp %584 : vector<8x32xf32>
    %cst_234 = arith.constant 1.000000e+00 : f32
    %586 = vector.broadcast %cst_234 : f32 to vector<8x32xf32>
    %587 = arith.addf %586, %585 : vector<8x32xf32>
    %588 = arith.divf %586, %587 : vector<8x32xf32>
    %589 = vector.extract_strided_slice %576 {offsets = [0, 64], sizes = [8, 32], strides = [1, 1]} : vector<8x128xf32> to vector<8x32xf32>
    %590 = math.tanh %589 : vector<8x32xf32>
    %591 = vector.extract_strided_slice %576 {offsets = [0, 96], sizes = [8, 32], strides = [1, 1]} : vector<8x128xf32> to vector<8x32xf32>
    %592 = arith.negf %591 : vector<8x32xf32>
    %593 = math.exp %592 : vector<8x32xf32>
    %cst_235 = arith.constant 1.000000e+00 : f32
    %594 = vector.broadcast %cst_235 : f32 to vector<8x32xf32>
    %595 = arith.addf %594, %593 : vector<8x32xf32>
    %596 = arith.divf %594, %595 : vector<8x32xf32>
    %597 = arith.mulf %588, %460 : vector<8x32xf32>
    %598 = arith.mulf %582, %590 : vector<8x32xf32>
    %599 = arith.addf %597, %598 : vector<8x32xf32>
    %600 = math.tanh %599 : vector<8x32xf32>
    %601 = arith.mulf %596, %600 : vector<8x32xf32>
    %c2_236 = arith.constant 2 : index
    %c0_237 = arith.constant 0 : index
    %c0_238 = arith.constant 0 : index
    %602 = vector.load %arg2[%c2_236, %c0_237, %c0_238] : memref<3x32x128xf32, #tpu.memory_space<vmem>>, vector<1x32x128xf32>
    %603 = vector.shape_cast %602 : vector<1x32x128xf32> to vector<32x128xf32>
    %cst_239 = arith.constant dense<0.000000e+00> : vector<8x128xf32>
    %604 = tpu.matmul %462, %603, %cst_239 {dimension_numbers = #tpu.dot_dimension_numbers<[1], [0], [0], [1], [0, 0, 1, 1], [], []>} : vector<8x32xf32>, vector<32x128xf32>, vector<8x128xf32> -> vector<8x128xf32>
    %c3_240 = arith.constant 3 : index
    %c0_241 = arith.constant 0 : index
    %c0_242 = arith.constant 0 : index
    %605 = vector.load %arg3[%c3_240, %c0_241, %c0_242] : memref<4x32x128xf32, #tpu.memory_space<vmem>>, vector<1x32x128xf32>
    %606 = vector.shape_cast %605 : vector<1x32x128xf32> to vector<32x128xf32>
    %cst_243 = arith.constant dense<0.000000e+00> : vector<8x128xf32>
    %607 = tpu.matmul %498, %606, %cst_243 {dimension_numbers = #tpu.dot_dimension_numbers<[1], [0], [0], [1], [0, 0, 1, 1], [], []>} : vector<8x32xf32>, vector<32x128xf32>, vector<8x128xf32> -> vector<8x128xf32>
    %608 = arith.addf %604, %607 : vector<8x128xf32>
    %c3_244 = arith.constant 3 : index
    %c0_245 = arith.constant 0 : index
    %c0_246 = arith.constant 0 : index
    %609 = vector.load %arg4[%c3_244, %c0_245, %c0_246] : memref<4x1x128xf32, #tpu.memory_space<vmem>>, vector<1x1x128xf32>
    %610 = vector.shape_cast %609 : vector<1x1x128xf32> to vector<1x128xf32>
    %611 = vector.broadcast %610 : vector<1x128xf32> to vector<8x128xf32>
    %612 = arith.addf %608, %611 : vector<8x128xf32>
    %613 = vector.extract_strided_slice %612 {offsets = [0, 0], sizes = [8, 32], strides = [1, 1]} : vector<8x128xf32> to vector<8x32xf32>
    %614 = arith.negf %613 : vector<8x32xf32>
    %615 = math.exp %614 : vector<8x32xf32>
    %cst_247 = arith.constant 1.000000e+00 : f32
    %616 = vector.broadcast %cst_247 : f32 to vector<8x32xf32>
    %617 = arith.addf %616, %615 : vector<8x32xf32>
    %618 = arith.divf %616, %617 : vector<8x32xf32>
    %619 = vector.extract_strided_slice %612 {offsets = [0, 32], sizes = [8, 32], strides = [1, 1]} : vector<8x128xf32> to vector<8x32xf32>
    %620 = arith.negf %619 : vector<8x32xf32>
    %621 = math.exp %620 : vector<8x32xf32>
    %cst_248 = arith.constant 1.000000e+00 : f32
    %622 = vector.broadcast %cst_248 : f32 to vector<8x32xf32>
    %623 = arith.addf %622, %621 : vector<8x32xf32>
    %624 = arith.divf %622, %623 : vector<8x32xf32>
    %625 = vector.extract_strided_slice %612 {offsets = [0, 64], sizes = [8, 32], strides = [1, 1]} : vector<8x128xf32> to vector<8x32xf32>
    %626 = math.tanh %625 : vector<8x32xf32>
    %627 = vector.extract_strided_slice %612 {offsets = [0, 96], sizes = [8, 32], strides = [1, 1]} : vector<8x128xf32> to vector<8x32xf32>
    %628 = arith.negf %627 : vector<8x32xf32>
    %629 = math.exp %628 : vector<8x32xf32>
    %cst_249 = arith.constant 1.000000e+00 : f32
    %630 = vector.broadcast %cst_249 : f32 to vector<8x32xf32>
    %631 = arith.addf %630, %629 : vector<8x32xf32>
    %632 = arith.divf %630, %631 : vector<8x32xf32>
    %633 = arith.mulf %624, %496 : vector<8x32xf32>
    %634 = arith.mulf %618, %626 : vector<8x32xf32>
    %635 = arith.addf %633, %634 : vector<8x32xf32>
    %636 = math.tanh %635 : vector<8x32xf32>
    %637 = arith.mulf %632, %636 : vector<8x32xf32>
    %c16_250 = arith.constant 16 : index
    %c0_251 = arith.constant 0 : index
    %638 = vector.load %arg13[%c16_250, %c0_251] : memref<64x32xf32, #tpu.memory_space<vmem>>, vector<8x32xf32>
    tpu.vector_store %arg13[%c16_250, %c0_251], %637 {strides = array<i32>} : memref<64x32xf32, #tpu.memory_space<vmem>>, vector<8x32xf32>,
    %c48 = arith.constant 48 : index
    %c0_252 = arith.constant 0 : index
    %639 = vector.load %arg12[%c48, %c0_252] : memref<64x128xf32, #tpu.memory_space<vmem>>, vector<8x128xf32>
    %c0_253 = arith.constant 0 : index
    %c0_254 = arith.constant 0 : index
    %c0_255 = arith.constant 0 : index
    %640 = vector.load %arg3[%c0_253, %c0_254, %c0_255] : memref<4x32x128xf32, #tpu.memory_space<vmem>>, vector<1x32x128xf32>
    %641 = vector.shape_cast %640 : vector<1x32x128xf32> to vector<32x128xf32>
    %cst_256 = arith.constant dense<0.000000e+00> : vector<8x128xf32>
    %642 = tpu.matmul %529, %641, %cst_256 {dimension_numbers = #tpu.dot_dimension_numbers<[1], [0], [0], [1], [0, 0, 1, 1], [], []>} : vector<8x32xf32>, vector<32x128xf32>, vector<8x128xf32> -> vector<8x128xf32>
    %643 = arith.addf %639, %642 : vector<8x128xf32>
    %644 = vector.extract_strided_slice %643 {offsets = [0, 0], sizes = [8, 32], strides = [1, 1]} : vector<8x128xf32> to vector<8x32xf32>
    %645 = arith.negf %644 : vector<8x32xf32>
    %646 = math.exp %645 : vector<8x32xf32>
    %cst_257 = arith.constant 1.000000e+00 : f32
    %647 = vector.broadcast %cst_257 : f32 to vector<8x32xf32>
    %648 = arith.addf %647, %646 : vector<8x32xf32>
    %649 = arith.divf %647, %648 : vector<8x32xf32>
    %650 = vector.extract_strided_slice %643 {offsets = [0, 32], sizes = [8, 32], strides = [1, 1]} : vector<8x128xf32> to vector<8x32xf32>
    %651 = arith.negf %650 : vector<8x32xf32>
    %652 = math.exp %651 : vector<8x32xf32>
    %cst_258 = arith.constant 1.000000e+00 : f32
    %653 = vector.broadcast %cst_258 : f32 to vector<8x32xf32>
    %654 = arith.addf %653, %652 : vector<8x32xf32>
    %655 = arith.divf %653, %654 : vector<8x32xf32>
    %656 = vector.extract_strided_slice %643 {offsets = [0, 64], sizes = [8, 32], strides = [1, 1]} : vector<8x128xf32> to vector<8x32xf32>
    %657 = math.tanh %656 : vector<8x32xf32>
    %658 = vector.extract_strided_slice %643 {offsets = [0, 96], sizes = [8, 32], strides = [1, 1]} : vector<8x128xf32> to vector<8x32xf32>
    %659 = arith.negf %658 : vector<8x32xf32>
    %660 = math.exp %659 : vector<8x32xf32>
    %cst_259 = arith.constant 1.000000e+00 : f32
    %661 = vector.broadcast %cst_259 : f32 to vector<8x32xf32>
    %662 = arith.addf %661, %660 : vector<8x32xf32>
    %663 = arith.divf %661, %662 : vector<8x32xf32>
    %664 = arith.mulf %655, %527 : vector<8x32xf32>
    %665 = arith.mulf %649, %657 : vector<8x32xf32>
    %666 = arith.addf %664, %665 : vector<8x32xf32>
    %667 = math.tanh %666 : vector<8x32xf32>
    %668 = arith.mulf %663, %667 : vector<8x32xf32>
    %c0_260 = arith.constant 0 : index
    %c0_261 = arith.constant 0 : index
    %c0_262 = arith.constant 0 : index
    %669 = vector.load %arg2[%c0_260, %c0_261, %c0_262] : memref<3x32x128xf32, #tpu.memory_space<vmem>>, vector<1x32x128xf32>
    %670 = vector.shape_cast %669 : vector<1x32x128xf32> to vector<32x128xf32>
    %cst_263 = arith.constant dense<0.000000e+00> : vector<8x128xf32>
    %671 = tpu.matmul %529, %670, %cst_263 {dimension_numbers = #tpu.dot_dimension_numbers<[1], [0], [0], [1], [0, 0, 1, 1], [], []>} : vector<8x32xf32>, vector<32x128xf32>, vector<8x128xf32> -> vector<8x128xf32>
    %c1_264 = arith.constant 1 : index
    %c0_265 = arith.constant 0 : index
    %c0_266 = arith.constant 0 : index
    %672 = vector.load %arg3[%c1_264, %c0_265, %c0_266] : memref<4x32x128xf32, #tpu.memory_space<vmem>>, vector<1x32x128xf32>
    %673 = vector.shape_cast %672 : vector<1x32x128xf32> to vector<32x128xf32>
    %cst_267 = arith.constant dense<0.000000e+00> : vector<8x128xf32>
    %674 = tpu.matmul %565, %673, %cst_267 {dimension_numbers = #tpu.dot_dimension_numbers<[1], [0], [0], [1], [0, 0, 1, 1], [], []>} : vector<8x32xf32>, vector<32x128xf32>, vector<8x128xf32> -> vector<8x128xf32>
    %675 = arith.addf %671, %674 : vector<8x128xf32>
    %c1_268 = arith.constant 1 : index
    %c0_269 = arith.constant 0 : index
    %c0_270 = arith.constant 0 : index
    %676 = vector.load %arg4[%c1_268, %c0_269, %c0_270] : memref<4x1x128xf32, #tpu.memory_space<vmem>>, vector<1x1x128xf32>
    %677 = vector.shape_cast %676 : vector<1x1x128xf32> to vector<1x128xf32>
    %678 = vector.broadcast %677 : vector<1x128xf32> to vector<8x128xf32>
    %679 = arith.addf %675, %678 : vector<8x128xf32>
    %680 = vector.extract_strided_slice %679 {offsets = [0, 0], sizes = [8, 32], strides = [1, 1]} : vector<8x128xf32> to vector<8x32xf32>
    %681 = arith.negf %680 : vector<8x32xf32>
    %682 = math.exp %681 : vector<8x32xf32>
    %cst_271 = arith.constant 1.000000e+00 : f32
    %683 = vector.broadcast %cst_271 : f32 to vector<8x32xf32>
    %684 = arith.addf %683, %682 : vector<8x32xf32>
    %685 = arith.divf %683, %684 : vector<8x32xf32>
    %686 = vector.extract_strided_slice %679 {offsets = [0, 32], sizes = [8, 32], strides = [1, 1]} : vector<8x128xf32> to vector<8x32xf32>
    %687 = arith.negf %686 : vector<8x32xf32>
    %688 = math.exp %687 : vector<8x32xf32>
    %cst_272 = arith.constant 1.000000e+00 : f32
    %689 = vector.broadcast %cst_272 : f32 to vector<8x32xf32>
    %690 = arith.addf %689, %688 : vector<8x32xf32>
    %691 = arith.divf %689, %690 : vector<8x32xf32>
    %692 = vector.extract_strided_slice %679 {offsets = [0, 64], sizes = [8, 32], strides = [1, 1]} : vector<8x128xf32> to vector<8x32xf32>
    %693 = math.tanh %692 : vector<8x32xf32>
    %694 = vector.extract_strided_slice %679 {offsets = [0, 96], sizes = [8, 32], strides = [1, 1]} : vector<8x128xf32> to vector<8x32xf32>
    %695 = arith.negf %694 : vector<8x32xf32>
    %696 = math.exp %695 : vector<8x32xf32>
    %cst_273 = arith.constant 1.000000e+00 : f32
    %697 = vector.broadcast %cst_273 : f32 to vector<8x32xf32>
    %698 = arith.addf %697, %696 : vector<8x32xf32>
    %699 = arith.divf %697, %698 : vector<8x32xf32>
    %700 = arith.mulf %691, %563 : vector<8x32xf32>
    %701 = arith.mulf %685, %693 : vector<8x32xf32>
    %702 = arith.addf %700, %701 : vector<8x32xf32>
    %703 = math.tanh %702 : vector<8x32xf32>
    %704 = arith.mulf %699, %703 : vector<8x32xf32>
    %c1_274 = arith.constant 1 : index
    %c0_275 = arith.constant 0 : index
    %c0_276 = arith.constant 0 : index
    %705 = vector.load %arg2[%c1_274, %c0_275, %c0_276] : memref<3x32x128xf32, #tpu.memory_space<vmem>>, vector<1x32x128xf32>
    %706 = vector.shape_cast %705 : vector<1x32x128xf32> to vector<32x128xf32>
    %cst_277 = arith.constant dense<0.000000e+00> : vector<8x128xf32>
    %707 = tpu.matmul %565, %706, %cst_277 {dimension_numbers = #tpu.dot_dimension_numbers<[1], [0], [0], [1], [0, 0, 1, 1], [], []>} : vector<8x32xf32>, vector<32x128xf32>, vector<8x128xf32> -> vector<8x128xf32>
    %c2_278 = arith.constant 2 : index
    %c0_279 = arith.constant 0 : index
    %c0_280 = arith.constant 0 : index
    %708 = vector.load %arg3[%c2_278, %c0_279, %c0_280] : memref<4x32x128xf32, #tpu.memory_space<vmem>>, vector<1x32x128xf32>
    %709 = vector.shape_cast %708 : vector<1x32x128xf32> to vector<32x128xf32>
    %cst_281 = arith.constant dense<0.000000e+00> : vector<8x128xf32>
    %710 = tpu.matmul %601, %709, %cst_281 {dimension_numbers = #tpu.dot_dimension_numbers<[1], [0], [0], [1], [0, 0, 1, 1], [], []>} : vector<8x32xf32>, vector<32x128xf32>, vector<8x128xf32> -> vector<8x128xf32>
    %711 = arith.addf %707, %710 : vector<8x128xf32>
    %c2_282 = arith.constant 2 : index
    %c0_283 = arith.constant 0 : index
    %c0_284 = arith.constant 0 : index
    %712 = vector.load %arg4[%c2_282, %c0_283, %c0_284] : memref<4x1x128xf32, #tpu.memory_space<vmem>>, vector<1x1x128xf32>
    %713 = vector.shape_cast %712 : vector<1x1x128xf32> to vector<1x128xf32>
    %714 = vector.broadcast %713 : vector<1x128xf32> to vector<8x128xf32>
    %715 = arith.addf %711, %714 : vector<8x128xf32>
    %716 = vector.extract_strided_slice %715 {offsets = [0, 0], sizes = [8, 32], strides = [1, 1]} : vector<8x128xf32> to vector<8x32xf32>
    %717 = arith.negf %716 : vector<8x32xf32>
    %718 = math.exp %717 : vector<8x32xf32>
    %cst_285 = arith.constant 1.000000e+00 : f32
    %719 = vector.broadcast %cst_285 : f32 to vector<8x32xf32>
    %720 = arith.addf %719, %718 : vector<8x32xf32>
    %721 = arith.divf %719, %720 : vector<8x32xf32>
    %722 = vector.extract_strided_slice %715 {offsets = [0, 32], sizes = [8, 32], strides = [1, 1]} : vector<8x128xf32> to vector<8x32xf32>
    %723 = arith.negf %722 : vector<8x32xf32>
    %724 = math.exp %723 : vector<8x32xf32>
    %cst_286 = arith.constant 1.000000e+00 : f32
    %725 = vector.broadcast %cst_286 : f32 to vector<8x32xf32>
    %726 = arith.addf %725, %724 : vector<8x32xf32>
    %727 = arith.divf %725, %726 : vector<8x32xf32>
    %728 = vector.extract_strided_slice %715 {offsets = [0, 64], sizes = [8, 32], strides = [1, 1]} : vector<8x128xf32> to vector<8x32xf32>
    %729 = math.tanh %728 : vector<8x32xf32>
    %730 = vector.extract_strided_slice %715 {offsets = [0, 96], sizes = [8, 32], strides = [1, 1]} : vector<8x128xf32> to vector<8x32xf32>
    %731 = arith.negf %730 : vector<8x32xf32>
    %732 = math.exp %731 : vector<8x32xf32>
    %cst_287 = arith.constant 1.000000e+00 : f32
    %733 = vector.broadcast %cst_287 : f32 to vector<8x32xf32>
    %734 = arith.addf %733, %732 : vector<8x32xf32>
    %735 = arith.divf %733, %734 : vector<8x32xf32>
    %736 = arith.mulf %727, %599 : vector<8x32xf32>
    %737 = arith.mulf %721, %729 : vector<8x32xf32>
    %738 = arith.addf %736, %737 : vector<8x32xf32>
    %739 = math.tanh %738 : vector<8x32xf32>
    %740 = arith.mulf %735, %739 : vector<8x32xf32>
    %c2_288 = arith.constant 2 : index
    %c0_289 = arith.constant 0 : index
    %c0_290 = arith.constant 0 : index
    %741 = vector.load %arg2[%c2_288, %c0_289, %c0_290] : memref<3x32x128xf32, #tpu.memory_space<vmem>>, vector<1x32x128xf32>
    %742 = vector.shape_cast %741 : vector<1x32x128xf32> to vector<32x128xf32>
    %cst_291 = arith.constant dense<0.000000e+00> : vector<8x128xf32>
    %743 = tpu.matmul %601, %742, %cst_291 {dimension_numbers = #tpu.dot_dimension_numbers<[1], [0], [0], [1], [0, 0, 1, 1], [], []>} : vector<8x32xf32>, vector<32x128xf32>, vector<8x128xf32> -> vector<8x128xf32>
    %c3_292 = arith.constant 3 : index
    %c0_293 = arith.constant 0 : index
    %c0_294 = arith.constant 0 : index
    %744 = vector.load %arg3[%c3_292, %c0_293, %c0_294] : memref<4x32x128xf32, #tpu.memory_space<vmem>>, vector<1x32x128xf32>
    %745 = vector.shape_cast %744 : vector<1x32x128xf32> to vector<32x128xf32>
    %cst_295 = arith.constant dense<0.000000e+00> : vector<8x128xf32>
    %746 = tpu.matmul %637, %745, %cst_295 {dimension_numbers = #tpu.dot_dimension_numbers<[1], [0], [0], [1], [0, 0, 1, 1], [], []>} : vector<8x32xf32>, vector<32x128xf32>, vector<8x128xf32> -> vector<8x128xf32>
    %747 = arith.addf %743, %746 : vector<8x128xf32>
    %c3_296 = arith.constant 3 : index
    %c0_297 = arith.constant 0 : index
    %c0_298 = arith.constant 0 : index
    %748 = vector.load %arg4[%c3_296, %c0_297, %c0_298] : memref<4x1x128xf32, #tpu.memory_space<vmem>>, vector<1x1x128xf32>
    %749 = vector.shape_cast %748 : vector<1x1x128xf32> to vector<1x128xf32>
    %750 = vector.broadcast %749 : vector<1x128xf32> to vector<8x128xf32>
    %751 = arith.addf %747, %750 : vector<8x128xf32>
    %752 = vector.extract_strided_slice %751 {offsets = [0, 0], sizes = [8, 32], strides = [1, 1]} : vector<8x128xf32> to vector<8x32xf32>
    %753 = arith.negf %752 : vector<8x32xf32>
    %754 = math.exp %753 : vector<8x32xf32>
    %cst_299 = arith.constant 1.000000e+00 : f32
    %755 = vector.broadcast %cst_299 : f32 to vector<8x32xf32>
    %756 = arith.addf %755, %754 : vector<8x32xf32>
    %757 = arith.divf %755, %756 : vector<8x32xf32>
    %758 = vector.extract_strided_slice %751 {offsets = [0, 32], sizes = [8, 32], strides = [1, 1]} : vector<8x128xf32> to vector<8x32xf32>
    %759 = arith.negf %758 : vector<8x32xf32>
    %760 = math.exp %759 : vector<8x32xf32>
    %cst_300 = arith.constant 1.000000e+00 : f32
    %761 = vector.broadcast %cst_300 : f32 to vector<8x32xf32>
    %762 = arith.addf %761, %760 : vector<8x32xf32>
    %763 = arith.divf %761, %762 : vector<8x32xf32>
    %764 = vector.extract_strided_slice %751 {offsets = [0, 64], sizes = [8, 32], strides = [1, 1]} : vector<8x128xf32> to vector<8x32xf32>
    %765 = math.tanh %764 : vector<8x32xf32>
    %766 = vector.extract_strided_slice %751 {offsets = [0, 96], sizes = [8, 32], strides = [1, 1]} : vector<8x128xf32> to vector<8x32xf32>
    %767 = arith.negf %766 : vector<8x32xf32>
    %768 = math.exp %767 : vector<8x32xf32>
    %cst_301 = arith.constant 1.000000e+00 : f32
    %769 = vector.broadcast %cst_301 : f32 to vector<8x32xf32>
    %770 = arith.addf %769, %768 : vector<8x32xf32>
    %771 = arith.divf %769, %770 : vector<8x32xf32>
    %772 = arith.mulf %763, %635 : vector<8x32xf32>
    %773 = arith.mulf %757, %765 : vector<8x32xf32>
    %774 = arith.addf %772, %773 : vector<8x32xf32>
    %775 = math.tanh %774 : vector<8x32xf32>
    %776 = arith.mulf %771, %775 : vector<8x32xf32>
    %c24_302 = arith.constant 24 : index
    %c0_303 = arith.constant 0 : index
    %777 = vector.load %arg13[%c24_302, %c0_303] : memref<64x32xf32, #tpu.memory_space<vmem>>, vector<8x32xf32>
    tpu.vector_store %arg13[%c24_302, %c0_303], %776 {strides = array<i32>} : memref<64x32xf32, #tpu.memory_space<vmem>>, vector<8x32xf32>,
    %c56 = arith.constant 56 : index
    %c0_304 = arith.constant 0 : index
    %778 = vector.load %arg12[%c56, %c0_304] : memref<64x128xf32, #tpu.memory_space<vmem>>, vector<8x128xf32>
    %c0_305 = arith.constant 0 : index
    %c0_306 = arith.constant 0 : index
    %c0_307 = arith.constant 0 : index
    %779 = vector.load %arg3[%c0_305, %c0_306, %c0_307] : memref<4x32x128xf32, #tpu.memory_space<vmem>>, vector<1x32x128xf32>
    %780 = vector.shape_cast %779 : vector<1x32x128xf32> to vector<32x128xf32>
    %cst_308 = arith.constant dense<0.000000e+00> : vector<8x128xf32>
    %781 = tpu.matmul %668, %780, %cst_308 {dimension_numbers = #tpu.dot_dimension_numbers<[1], [0], [0], [1], [0, 0, 1, 1], [], []>} : vector<8x32xf32>, vector<32x128xf32>, vector<8x128xf32> -> vector<8x128xf32>
    %782 = arith.addf %778, %781 : vector<8x128xf32>
    %783 = vector.extract_strided_slice %782 {offsets = [0, 0], sizes = [8, 32], strides = [1, 1]} : vector<8x128xf32> to vector<8x32xf32>
    %784 = arith.negf %783 : vector<8x32xf32>
    %785 = math.exp %784 : vector<8x32xf32>
    %cst_309 = arith.constant 1.000000e+00 : f32
    %786 = vector.broadcast %cst_309 : f32 to vector<8x32xf32>
    %787 = arith.addf %786, %785 : vector<8x32xf32>
    %788 = arith.divf %786, %787 : vector<8x32xf32>
    %789 = vector.extract_strided_slice %782 {offsets = [0, 32], sizes = [8, 32], strides = [1, 1]} : vector<8x128xf32> to vector<8x32xf32>
    %790 = arith.negf %789 : vector<8x32xf32>
    %791 = math.exp %790 : vector<8x32xf32>
    %cst_310 = arith.constant 1.000000e+00 : f32
    %792 = vector.broadcast %cst_310 : f32 to vector<8x32xf32>
    %793 = arith.addf %792, %791 : vector<8x32xf32>
    %794 = arith.divf %792, %793 : vector<8x32xf32>
    %795 = vector.extract_strided_slice %782 {offsets = [0, 64], sizes = [8, 32], strides = [1, 1]} : vector<8x128xf32> to vector<8x32xf32>
    %796 = math.tanh %795 : vector<8x32xf32>
    %797 = vector.extract_strided_slice %782 {offsets = [0, 96], sizes = [8, 32], strides = [1, 1]} : vector<8x128xf32> to vector<8x32xf32>
    %798 = arith.negf %797 : vector<8x32xf32>
    %799 = math.exp %798 : vector<8x32xf32>
    %cst_311 = arith.constant 1.000000e+00 : f32
    %800 = vector.broadcast %cst_311 : f32 to vector<8x32xf32>
    %801 = arith.addf %800, %799 : vector<8x32xf32>
    %802 = arith.divf %800, %801 : vector<8x32xf32>
    %803 = arith.mulf %794, %666 : vector<8x32xf32>
    %804 = arith.mulf %788, %796 : vector<8x32xf32>
    %805 = arith.addf %803, %804 : vector<8x32xf32>
    %806 = math.tanh %805 : vector<8x32xf32>
    %807 = arith.mulf %802, %806 : vector<8x32xf32>
    %c0_312 = arith.constant 0 : index
    %c0_313 = arith.constant 0 : index
    %c0_314 = arith.constant 0 : index
    %808 = vector.load %arg2[%c0_312, %c0_313, %c0_314] : memref<3x32x128xf32, #tpu.memory_space<vmem>>, vector<1x32x128xf32>
    %809 = vector.shape_cast %808 : vector<1x32x128xf32> to vector<32x128xf32>
    %cst_315 = arith.constant dense<0.000000e+00> : vector<8x128xf32>
    %810 = tpu.matmul %668, %809, %cst_315 {dimension_numbers = #tpu.dot_dimension_numbers<[1], [0], [0], [1], [0, 0, 1, 1], [], []>} : vector<8x32xf32>, vector<32x128xf32>, vector<8x128xf32> -> vector<8x128xf32>
    %c1_316 = arith.constant 1 : index
    %c0_317 = arith.constant 0 : index
    %c0_318 = arith.constant 0 : index
    %811 = vector.load %arg3[%c1_316, %c0_317, %c0_318] : memref<4x32x128xf32, #tpu.memory_space<vmem>>, vector<1x32x128xf32>
    %812 = vector.shape_cast %811 : vector<1x32x128xf32> to vector<32x128xf32>
    %cst_319 = arith.constant dense<0.000000e+00> : vector<8x128xf32>
    %813 = tpu.matmul %704, %812, %cst_319 {dimension_numbers = #tpu.dot_dimension_numbers<[1], [0], [0], [1], [0, 0, 1, 1], [], []>} : vector<8x32xf32>, vector<32x128xf32>, vector<8x128xf32> -> vector<8x128xf32>
    %814 = arith.addf %810, %813 : vector<8x128xf32>
    %c1_320 = arith.constant 1 : index
    %c0_321 = arith.constant 0 : index
    %c0_322 = arith.constant 0 : index
    %815 = vector.load %arg4[%c1_320, %c0_321, %c0_322] : memref<4x1x128xf32, #tpu.memory_space<vmem>>, vector<1x1x128xf32>
    %816 = vector.shape_cast %815 : vector<1x1x128xf32> to vector<1x128xf32>
    %817 = vector.broadcast %816 : vector<1x128xf32> to vector<8x128xf32>
    %818 = arith.addf %814, %817 : vector<8x128xf32>
    %819 = vector.extract_strided_slice %818 {offsets = [0, 0], sizes = [8, 32], strides = [1, 1]} : vector<8x128xf32> to vector<8x32xf32>
    %820 = arith.negf %819 : vector<8x32xf32>
    %821 = math.exp %820 : vector<8x32xf32>
    %cst_323 = arith.constant 1.000000e+00 : f32
    %822 = vector.broadcast %cst_323 : f32 to vector<8x32xf32>
    %823 = arith.addf %822, %821 : vector<8x32xf32>
    %824 = arith.divf %822, %823 : vector<8x32xf32>
    %825 = vector.extract_strided_slice %818 {offsets = [0, 32], sizes = [8, 32], strides = [1, 1]} : vector<8x128xf32> to vector<8x32xf32>
    %826 = arith.negf %825 : vector<8x32xf32>
    %827 = math.exp %826 : vector<8x32xf32>
    %cst_324 = arith.constant 1.000000e+00 : f32
    %828 = vector.broadcast %cst_324 : f32 to vector<8x32xf32>
    %829 = arith.addf %828, %827 : vector<8x32xf32>
    %830 = arith.divf %828, %829 : vector<8x32xf32>
    %831 = vector.extract_strided_slice %818 {offsets = [0, 64], sizes = [8, 32], strides = [1, 1]} : vector<8x128xf32> to vector<8x32xf32>
    %832 = math.tanh %831 : vector<8x32xf32>
    %833 = vector.extract_strided_slice %818 {offsets = [0, 96], sizes = [8, 32], strides = [1, 1]} : vector<8x128xf32> to vector<8x32xf32>
    %834 = arith.negf %833 : vector<8x32xf32>
    %835 = math.exp %834 : vector<8x32xf32>
    %cst_325 = arith.constant 1.000000e+00 : f32
    %836 = vector.broadcast %cst_325 : f32 to vector<8x32xf32>
    %837 = arith.addf %836, %835 : vector<8x32xf32>
    %838 = arith.divf %836, %837 : vector<8x32xf32>
    %839 = arith.mulf %830, %702 : vector<8x32xf32>
    %840 = arith.mulf %824, %832 : vector<8x32xf32>
    %841 = arith.addf %839, %840 : vector<8x32xf32>
    %842 = math.tanh %841 : vector<8x32xf32>
    %843 = arith.mulf %838, %842 : vector<8x32xf32>
    %c1_326 = arith.constant 1 : index
    %c0_327 = arith.constant 0 : index
    %c0_328 = arith.constant 0 : index
    %844 = vector.load %arg2[%c1_326, %c0_327, %c0_328] : memref<3x32x128xf32, #tpu.memory_space<vmem>>, vector<1x32x128xf32>
    %845 = vector.shape_cast %844 : vector<1x32x128xf32> to vector<32x128xf32>
    %cst_329 = arith.constant dense<0.000000e+00> : vector<8x128xf32>
    %846 = tpu.matmul %704, %845, %cst_329 {dimension_numbers = #tpu.dot_dimension_numbers<[1], [0], [0], [1], [0, 0, 1, 1], [], []>} : vector<8x32xf32>, vector<32x128xf32>, vector<8x128xf32> -> vector<8x128xf32>
    %c2_330 = arith.constant 2 : index
    %c0_331 = arith.constant 0 : index
    %c0_332 = arith.constant 0 : index
    %847 = vector.load %arg3[%c2_330, %c0_331, %c0_332] : memref<4x32x128xf32, #tpu.memory_space<vmem>>, vector<1x32x128xf32>
    %848 = vector.shape_cast %847 : vector<1x32x128xf32> to vector<32x128xf32>
    %cst_333 = arith.constant dense<0.000000e+00> : vector<8x128xf32>
    %849 = tpu.matmul %740, %848, %cst_333 {dimension_numbers = #tpu.dot_dimension_numbers<[1], [0], [0], [1], [0, 0, 1, 1], [], []>} : vector<8x32xf32>, vector<32x128xf32>, vector<8x128xf32> -> vector<8x128xf32>
    %850 = arith.addf %846, %849 : vector<8x128xf32>
    %c2_334 = arith.constant 2 : index
    %c0_335 = arith.constant 0 : index
    %c0_336 = arith.constant 0 : index
    %851 = vector.load %arg4[%c2_334, %c0_335, %c0_336] : memref<4x1x128xf32, #tpu.memory_space<vmem>>, vector<1x1x128xf32>
    %852 = vector.shape_cast %851 : vector<1x1x128xf32> to vector<1x128xf32>
    %853 = vector.broadcast %852 : vector<1x128xf32> to vector<8x128xf32>
    %854 = arith.addf %850, %853 : vector<8x128xf32>
    %855 = vector.extract_strided_slice %854 {offsets = [0, 0], sizes = [8, 32], strides = [1, 1]} : vector<8x128xf32> to vector<8x32xf32>
    %856 = arith.negf %855 : vector<8x32xf32>
    %857 = math.exp %856 : vector<8x32xf32>
    %cst_337 = arith.constant 1.000000e+00 : f32
    %858 = vector.broadcast %cst_337 : f32 to vector<8x32xf32>
    %859 = arith.addf %858, %857 : vector<8x32xf32>
    %860 = arith.divf %858, %859 : vector<8x32xf32>
    %861 = vector.extract_strided_slice %854 {offsets = [0, 32], sizes = [8, 32], strides = [1, 1]} : vector<8x128xf32> to vector<8x32xf32>
    %862 = arith.negf %861 : vector<8x32xf32>
    %863 = math.exp %862 : vector<8x32xf32>
    %cst_338 = arith.constant 1.000000e+00 : f32
    %864 = vector.broadcast %cst_338 : f32 to vector<8x32xf32>
    %865 = arith.addf %864, %863 : vector<8x32xf32>
    %866 = arith.divf %864, %865 : vector<8x32xf32>
    %867 = vector.extract_strided_slice %854 {offsets = [0, 64], sizes = [8, 32], strides = [1, 1]} : vector<8x128xf32> to vector<8x32xf32>
    %868 = math.tanh %867 : vector<8x32xf32>
    %869 = vector.extract_strided_slice %854 {offsets = [0, 96], sizes = [8, 32], strides = [1, 1]} : vector<8x128xf32> to vector<8x32xf32>
    %870 = arith.negf %869 : vector<8x32xf32>
    %871 = math.exp %870 : vector<8x32xf32>
    %cst_339 = arith.constant 1.000000e+00 : f32
    %872 = vector.broadcast %cst_339 : f32 to vector<8x32xf32>
    %873 = arith.addf %872, %871 : vector<8x32xf32>
    %874 = arith.divf %872, %873 : vector<8x32xf32>
    %875 = arith.mulf %866, %738 : vector<8x32xf32>
    %876 = arith.mulf %860, %868 : vector<8x32xf32>
    %877 = arith.addf %875, %876 : vector<8x32xf32>
    %878 = math.tanh %877 : vector<8x32xf32>
    %879 = arith.mulf %874, %878 : vector<8x32xf32>
    %c2_340 = arith.constant 2 : index
    %c0_341 = arith.constant 0 : index
    %c0_342 = arith.constant 0 : index
    %880 = vector.load %arg2[%c2_340, %c0_341, %c0_342] : memref<3x32x128xf32, #tpu.memory_space<vmem>>, vector<1x32x128xf32>
    %881 = vector.shape_cast %880 : vector<1x32x128xf32> to vector<32x128xf32>
    %cst_343 = arith.constant dense<0.000000e+00> : vector<8x128xf32>
    %882 = tpu.matmul %740, %881, %cst_343 {dimension_numbers = #tpu.dot_dimension_numbers<[1], [0], [0], [1], [0, 0, 1, 1], [], []>} : vector<8x32xf32>, vector<32x128xf32>, vector<8x128xf32> -> vector<8x128xf32>
    %c3_344 = arith.constant 3 : index
    %c0_345 = arith.constant 0 : index
    %c0_346 = arith.constant 0 : index
    %883 = vector.load %arg3[%c3_344, %c0_345, %c0_346] : memref<4x32x128xf32, #tpu.memory_space<vmem>>, vector<1x32x128xf32>
    %884 = vector.shape_cast %883 : vector<1x32x128xf32> to vector<32x128xf32>
    %cst_347 = arith.constant dense<0.000000e+00> : vector<8x128xf32>
    %885 = tpu.matmul %776, %884, %cst_347 {dimension_numbers = #tpu.dot_dimension_numbers<[1], [0], [0], [1], [0, 0, 1, 1], [], []>} : vector<8x32xf32>, vector<32x128xf32>, vector<8x128xf32> -> vector<8x128xf32>
    %886 = arith.addf %882, %885 : vector<8x128xf32>
    %c3_348 = arith.constant 3 : index
    %c0_349 = arith.constant 0 : index
    %c0_350 = arith.constant 0 : index
    %887 = vector.load %arg4[%c3_348, %c0_349, %c0_350] : memref<4x1x128xf32, #tpu.memory_space<vmem>>, vector<1x1x128xf32>
    %888 = vector.shape_cast %887 : vector<1x1x128xf32> to vector<1x128xf32>
    %889 = vector.broadcast %888 : vector<1x128xf32> to vector<8x128xf32>
    %890 = arith.addf %886, %889 : vector<8x128xf32>
    %891 = vector.extract_strided_slice %890 {offsets = [0, 0], sizes = [8, 32], strides = [1, 1]} : vector<8x128xf32> to vector<8x32xf32>
    %892 = arith.negf %891 : vector<8x32xf32>
    %893 = math.exp %892 : vector<8x32xf32>
    %cst_351 = arith.constant 1.000000e+00 : f32
    %894 = vector.broadcast %cst_351 : f32 to vector<8x32xf32>
    %895 = arith.addf %894, %893 : vector<8x32xf32>
    %896 = arith.divf %894, %895 : vector<8x32xf32>
    %897 = vector.extract_strided_slice %890 {offsets = [0, 32], sizes = [8, 32], strides = [1, 1]} : vector<8x128xf32> to vector<8x32xf32>
    %898 = arith.negf %897 : vector<8x32xf32>
    %899 = math.exp %898 : vector<8x32xf32>
    %cst_352 = arith.constant 1.000000e+00 : f32
    %900 = vector.broadcast %cst_352 : f32 to vector<8x32xf32>
    %901 = arith.addf %900, %899 : vector<8x32xf32>
    %902 = arith.divf %900, %901 : vector<8x32xf32>
    %903 = vector.extract_strided_slice %890 {offsets = [0, 64], sizes = [8, 32], strides = [1, 1]} : vector<8x128xf32> to vector<8x32xf32>
    %904 = math.tanh %903 : vector<8x32xf32>
    %905 = vector.extract_strided_slice %890 {offsets = [0, 96], sizes = [8, 32], strides = [1, 1]} : vector<8x128xf32> to vector<8x32xf32>
    %906 = arith.negf %905 : vector<8x32xf32>
    %907 = math.exp %906 : vector<8x32xf32>
    %cst_353 = arith.constant 1.000000e+00 : f32
    %908 = vector.broadcast %cst_353 : f32 to vector<8x32xf32>
    %909 = arith.addf %908, %907 : vector<8x32xf32>
    %910 = arith.divf %908, %909 : vector<8x32xf32>
    %911 = arith.mulf %902, %774 : vector<8x32xf32>
    %912 = arith.mulf %896, %904 : vector<8x32xf32>
    %913 = arith.addf %911, %912 : vector<8x32xf32>
    %914 = math.tanh %913 : vector<8x32xf32>
    %915 = arith.mulf %910, %914 : vector<8x32xf32>
    %c32_354 = arith.constant 32 : index
    %c0_355 = arith.constant 0 : index
    %916 = vector.load %arg13[%c32_354, %c0_355] : memref<64x32xf32, #tpu.memory_space<vmem>>, vector<8x32xf32>
    tpu.vector_store %arg13[%c32_354, %c0_355], %915 {strides = array<i32>} : memref<64x32xf32, #tpu.memory_space<vmem>>, vector<8x32xf32>,
    %c0_356 = arith.constant 0 : index
    %c0_357 = arith.constant 0 : index
    %c0_358 = arith.constant 0 : index
    %917 = vector.load %arg2[%c0_356, %c0_357, %c0_358] : memref<3x32x128xf32, #tpu.memory_space<vmem>>, vector<1x32x128xf32>
    %918 = vector.shape_cast %917 : vector<1x32x128xf32> to vector<32x128xf32>
    %cst_359 = arith.constant dense<0.000000e+00> : vector<8x128xf32>
    %919 = tpu.matmul %807, %918, %cst_359 {dimension_numbers = #tpu.dot_dimension_numbers<[1], [0], [0], [1], [0, 0, 1, 1], [], []>} : vector<8x32xf32>, vector<32x128xf32>, vector<8x128xf32> -> vector<8x128xf32>
    %c1_360 = arith.constant 1 : index
    %c0_361 = arith.constant 0 : index
    %c0_362 = arith.constant 0 : index
    %920 = vector.load %arg3[%c1_360, %c0_361, %c0_362] : memref<4x32x128xf32, #tpu.memory_space<vmem>>, vector<1x32x128xf32>
    %921 = vector.shape_cast %920 : vector<1x32x128xf32> to vector<32x128xf32>
    %cst_363 = arith.constant dense<0.000000e+00> : vector<8x128xf32>
    %922 = tpu.matmul %843, %921, %cst_363 {dimension_numbers = #tpu.dot_dimension_numbers<[1], [0], [0], [1], [0, 0, 1, 1], [], []>} : vector<8x32xf32>, vector<32x128xf32>, vector<8x128xf32> -> vector<8x128xf32>
    %923 = arith.addf %919, %922 : vector<8x128xf32>
    %c1_364 = arith.constant 1 : index
    %c0_365 = arith.constant 0 : index
    %c0_366 = arith.constant 0 : index
    %924 = vector.load %arg4[%c1_364, %c0_365, %c0_366] : memref<4x1x128xf32, #tpu.memory_space<vmem>>, vector<1x1x128xf32>
    %925 = vector.shape_cast %924 : vector<1x1x128xf32> to vector<1x128xf32>
    %926 = vector.broadcast %925 : vector<1x128xf32> to vector<8x128xf32>
    %927 = arith.addf %923, %926 : vector<8x128xf32>
    %928 = vector.extract_strided_slice %927 {offsets = [0, 0], sizes = [8, 32], strides = [1, 1]} : vector<8x128xf32> to vector<8x32xf32>
    %929 = arith.negf %928 : vector<8x32xf32>
    %930 = math.exp %929 : vector<8x32xf32>
    %cst_367 = arith.constant 1.000000e+00 : f32
    %931 = vector.broadcast %cst_367 : f32 to vector<8x32xf32>
    %932 = arith.addf %931, %930 : vector<8x32xf32>
    %933 = arith.divf %931, %932 : vector<8x32xf32>
    %934 = vector.extract_strided_slice %927 {offsets = [0, 32], sizes = [8, 32], strides = [1, 1]} : vector<8x128xf32> to vector<8x32xf32>
    %935 = arith.negf %934 : vector<8x32xf32>
    %936 = math.exp %935 : vector<8x32xf32>
    %cst_368 = arith.constant 1.000000e+00 : f32
    %937 = vector.broadcast %cst_368 : f32 to vector<8x32xf32>
    %938 = arith.addf %937, %936 : vector<8x32xf32>
    %939 = arith.divf %937, %938 : vector<8x32xf32>
    %940 = vector.extract_strided_slice %927 {offsets = [0, 64], sizes = [8, 32], strides = [1, 1]} : vector<8x128xf32> to vector<8x32xf32>
    %941 = math.tanh %940 : vector<8x32xf32>
    %942 = vector.extract_strided_slice %927 {offsets = [0, 96], sizes = [8, 32], strides = [1, 1]} : vector<8x128xf32> to vector<8x32xf32>
    %943 = arith.negf %942 : vector<8x32xf32>
    %944 = math.exp %943 : vector<8x32xf32>
    %cst_369 = arith.constant 1.000000e+00 : f32
    %945 = vector.broadcast %cst_369 : f32 to vector<8x32xf32>
    %946 = arith.addf %945, %944 : vector<8x32xf32>
    %947 = arith.divf %945, %946 : vector<8x32xf32>
    %948 = arith.mulf %939, %841 : vector<8x32xf32>
    %949 = arith.mulf %933, %941 : vector<8x32xf32>
    %950 = arith.addf %948, %949 : vector<8x32xf32>
    %951 = math.tanh %950 : vector<8x32xf32>
    %952 = arith.mulf %947, %951 : vector<8x32xf32>
    %c1_370 = arith.constant 1 : index
    %c0_371 = arith.constant 0 : index
    %c0_372 = arith.constant 0 : index
    %953 = vector.load %arg2[%c1_370, %c0_371, %c0_372] : memref<3x32x128xf32, #tpu.memory_space<vmem>>, vector<1x32x128xf32>
    %954 = vector.shape_cast %953 : vector<1x32x128xf32> to vector<32x128xf32>
    %cst_373 = arith.constant dense<0.000000e+00> : vector<8x128xf32>
    %955 = tpu.matmul %843, %954, %cst_373 {dimension_numbers = #tpu.dot_dimension_numbers<[1], [0], [0], [1], [0, 0, 1, 1], [], []>} : vector<8x32xf32>, vector<32x128xf32>, vector<8x128xf32> -> vector<8x128xf32>
    %c2_374 = arith.constant 2 : index
    %c0_375 = arith.constant 0 : index
    %c0_376 = arith.constant 0 : index
    %956 = vector.load %arg3[%c2_374, %c0_375, %c0_376] : memref<4x32x128xf32, #tpu.memory_space<vmem>>, vector<1x32x128xf32>
    %957 = vector.shape_cast %956 : vector<1x32x128xf32> to vector<32x128xf32>
    %cst_377 = arith.constant dense<0.000000e+00> : vector<8x128xf32>
    %958 = tpu.matmul %879, %957, %cst_377 {dimension_numbers = #tpu.dot_dimension_numbers<[1], [0], [0], [1], [0, 0, 1, 1], [], []>} : vector<8x32xf32>, vector<32x128xf32>, vector<8x128xf32> -> vector<8x128xf32>
    %959 = arith.addf %955, %958 : vector<8x128xf32>
    %c2_378 = arith.constant 2 : index
    %c0_379 = arith.constant 0 : index
    %c0_380 = arith.constant 0 : index
    %960 = vector.load %arg4[%c2_378, %c0_379, %c0_380] : memref<4x1x128xf32, #tpu.memory_space<vmem>>, vector<1x1x128xf32>
    %961 = vector.shape_cast %960 : vector<1x1x128xf32> to vector<1x128xf32>
    %962 = vector.broadcast %961 : vector<1x128xf32> to vector<8x128xf32>
    %963 = arith.addf %959, %962 : vector<8x128xf32>
    %964 = vector.extract_strided_slice %963 {offsets = [0, 0], sizes = [8, 32], strides = [1, 1]} : vector<8x128xf32> to vector<8x32xf32>
    %965 = arith.negf %964 : vector<8x32xf32>
    %966 = math.exp %965 : vector<8x32xf32>
    %cst_381 = arith.constant 1.000000e+00 : f32
    %967 = vector.broadcast %cst_381 : f32 to vector<8x32xf32>
    %968 = arith.addf %967, %966 : vector<8x32xf32>
    %969 = arith.divf %967, %968 : vector<8x32xf32>
    %970 = vector.extract_strided_slice %963 {offsets = [0, 32], sizes = [8, 32], strides = [1, 1]} : vector<8x128xf32> to vector<8x32xf32>
    %971 = arith.negf %970 : vector<8x32xf32>
    %972 = math.exp %971 : vector<8x32xf32>
    %cst_382 = arith.constant 1.000000e+00 : f32
    %973 = vector.broadcast %cst_382 : f32 to vector<8x32xf32>
    %974 = arith.addf %973, %972 : vector<8x32xf32>
    %975 = arith.divf %973, %974 : vector<8x32xf32>
    %976 = vector.extract_strided_slice %963 {offsets = [0, 64], sizes = [8, 32], strides = [1, 1]} : vector<8x128xf32> to vector<8x32xf32>
    %977 = math.tanh %976 : vector<8x32xf32>
    %978 = vector.extract_strided_slice %963 {offsets = [0, 96], sizes = [8, 32], strides = [1, 1]} : vector<8x128xf32> to vector<8x32xf32>
    %979 = arith.negf %978 : vector<8x32xf32>
    %980 = math.exp %979 : vector<8x32xf32>
    %cst_383 = arith.constant 1.000000e+00 : f32
    %981 = vector.broadcast %cst_383 : f32 to vector<8x32xf32>
    %982 = arith.addf %981, %980 : vector<8x32xf32>
    %983 = arith.divf %981, %982 : vector<8x32xf32>
    %984 = arith.mulf %975, %877 : vector<8x32xf32>
    %985 = arith.mulf %969, %977 : vector<8x32xf32>
    %986 = arith.addf %984, %985 : vector<8x32xf32>
    %987 = math.tanh %986 : vector<8x32xf32>
    %988 = arith.mulf %983, %987 : vector<8x32xf32>
    %c2_384 = arith.constant 2 : index
    %c0_385 = arith.constant 0 : index
    %c0_386 = arith.constant 0 : index
    %989 = vector.load %arg2[%c2_384, %c0_385, %c0_386] : memref<3x32x128xf32, #tpu.memory_space<vmem>>, vector<1x32x128xf32>
    %990 = vector.shape_cast %989 : vector<1x32x128xf32> to vector<32x128xf32>
    %cst_387 = arith.constant dense<0.000000e+00> : vector<8x128xf32>
    %991 = tpu.matmul %879, %990, %cst_387 {dimension_numbers = #tpu.dot_dimension_numbers<[1], [0], [0], [1], [0, 0, 1, 1], [], []>} : vector<8x32xf32>, vector<32x128xf32>, vector<8x128xf32> -> vector<8x128xf32>
    %c3_388 = arith.constant 3 : index
    %c0_389 = arith.constant 0 : index
    %c0_390 = arith.constant 0 : index
    %992 = vector.load %arg3[%c3_388, %c0_389, %c0_390] : memref<4x32x128xf32, #tpu.memory_space<vmem>>, vector<1x32x128xf32>
    %993 = vector.shape_cast %992 : vector<1x32x128xf32> to vector<32x128xf32>
    %cst_391 = arith.constant dense<0.000000e+00> : vector<8x128xf32>
    %994 = tpu.matmul %915, %993, %cst_391 {dimension_numbers = #tpu.dot_dimension_numbers<[1], [0], [0], [1], [0, 0, 1, 1], [], []>} : vector<8x32xf32>, vector<32x128xf32>, vector<8x128xf32> -> vector<8x128xf32>
    %995 = arith.addf %991, %994 : vector<8x128xf32>
    %c3_392 = arith.constant 3 : index
    %c0_393 = arith.constant 0 : index
    %c0_394 = arith.constant 0 : index
    %996 = vector.load %arg4[%c3_392, %c0_393, %c0_394] : memref<4x1x128xf32, #tpu.memory_space<vmem>>, vector<1x1x128xf32>
    %997 = vector.shape_cast %996 : vector<1x1x128xf32> to vector<1x128xf32>
    %998 = vector.broadcast %997 : vector<1x128xf32> to vector<8x128xf32>
    %999 = arith.addf %995, %998 : vector<8x128xf32>
    %1000 = vector.extract_strided_slice %999 {offsets = [0, 0], sizes = [8, 32], strides = [1, 1]} : vector<8x128xf32> to vector<8x32xf32>
    %1001 = arith.negf %1000 : vector<8x32xf32>
    %1002 = math.exp %1001 : vector<8x32xf32>
    %cst_395 = arith.constant 1.000000e+00 : f32
    %1003 = vector.broadcast %cst_395 : f32 to vector<8x32xf32>
    %1004 = arith.addf %1003, %1002 : vector<8x32xf32>
    %1005 = arith.divf %1003, %1004 : vector<8x32xf32>
    %1006 = vector.extract_strided_slice %999 {offsets = [0, 32], sizes = [8, 32], strides = [1, 1]} : vector<8x128xf32> to vector<8x32xf32>
    %1007 = arith.negf %1006 : vector<8x32xf32>
    %1008 = math.exp %1007 : vector<8x32xf32>
    %cst_396 = arith.constant 1.000000e+00 : f32
    %1009 = vector.broadcast %cst_396 : f32 to vector<8x32xf32>
    %1010 = arith.addf %1009, %1008 : vector<8x32xf32>
    %1011 = arith.divf %1009, %1010 : vector<8x32xf32>
    %1012 = vector.extract_strided_slice %999 {offsets = [0, 64], sizes = [8, 32], strides = [1, 1]} : vector<8x128xf32> to vector<8x32xf32>
    %1013 = math.tanh %1012 : vector<8x32xf32>
    %1014 = vector.extract_strided_slice %999 {offsets = [0, 96], sizes = [8, 32], strides = [1, 1]} : vector<8x128xf32> to vector<8x32xf32>
    %1015 = arith.negf %1014 : vector<8x32xf32>
    %1016 = math.exp %1015 : vector<8x32xf32>
    %cst_397 = arith.constant 1.000000e+00 : f32
    %1017 = vector.broadcast %cst_397 : f32 to vector<8x32xf32>
    %1018 = arith.addf %1017, %1016 : vector<8x32xf32>
    %1019 = arith.divf %1017, %1018 : vector<8x32xf32>
    %1020 = arith.mulf %1011, %913 : vector<8x32xf32>
    %1021 = arith.mulf %1005, %1013 : vector<8x32xf32>
    %1022 = arith.addf %1020, %1021 : vector<8x32xf32>
    %1023 = math.tanh %1022 : vector<8x32xf32>
    %1024 = arith.mulf %1019, %1023 : vector<8x32xf32>
    %c40_398 = arith.constant 40 : index
    %c0_399 = arith.constant 0 : index
    %1025 = vector.load %arg13[%c40_398, %c0_399] : memref<64x32xf32, #tpu.memory_space<vmem>>, vector<8x32xf32>
    tpu.vector_store %arg13[%c40_398, %c0_399], %1024 {strides = array<i32>} : memref<64x32xf32, #tpu.memory_space<vmem>>, vector<8x32xf32>,
    %c1_400 = arith.constant 1 : index
    %c0_401 = arith.constant 0 : index
    %c0_402 = arith.constant 0 : index
    %1026 = vector.load %arg2[%c1_400, %c0_401, %c0_402] : memref<3x32x128xf32, #tpu.memory_space<vmem>>, vector<1x32x128xf32>
    %1027 = vector.shape_cast %1026 : vector<1x32x128xf32> to vector<32x128xf32>
    %cst_403 = arith.constant dense<0.000000e+00> : vector<8x128xf32>
    %1028 = tpu.matmul %952, %1027, %cst_403 {dimension_numbers = #tpu.dot_dimension_numbers<[1], [0], [0], [1], [0, 0, 1, 1], [], []>} : vector<8x32xf32>, vector<32x128xf32>, vector<8x128xf32> -> vector<8x128xf32>
    %c2_404 = arith.constant 2 : index
    %c0_405 = arith.constant 0 : index
    %c0_406 = arith.constant 0 : index
    %1029 = vector.load %arg3[%c2_404, %c0_405, %c0_406] : memref<4x32x128xf32, #tpu.memory_space<vmem>>, vector<1x32x128xf32>
    %1030 = vector.shape_cast %1029 : vector<1x32x128xf32> to vector<32x128xf32>
    %cst_407 = arith.constant dense<0.000000e+00> : vector<8x128xf32>
    %1031 = tpu.matmul %988, %1030, %cst_407 {dimension_numbers = #tpu.dot_dimension_numbers<[1], [0], [0], [1], [0, 0, 1, 1], [], []>} : vector<8x32xf32>, vector<32x128xf32>, vector<8x128xf32> -> vector<8x128xf32>
    %1032 = arith.addf %1028, %1031 : vector<8x128xf32>
    %c2_408 = arith.constant 2 : index
    %c0_409 = arith.constant 0 : index
    %c0_410 = arith.constant 0 : index
    %1033 = vector.load %arg4[%c2_408, %c0_409, %c0_410] : memref<4x1x128xf32, #tpu.memory_space<vmem>>, vector<1x1x128xf32>
    %1034 = vector.shape_cast %1033 : vector<1x1x128xf32> to vector<1x128xf32>
    %1035 = vector.broadcast %1034 : vector<1x128xf32> to vector<8x128xf32>
    %1036 = arith.addf %1032, %1035 : vector<8x128xf32>
    %1037 = vector.extract_strided_slice %1036 {offsets = [0, 0], sizes = [8, 32], strides = [1, 1]} : vector<8x128xf32> to vector<8x32xf32>
    %1038 = arith.negf %1037 : vector<8x32xf32>
    %1039 = math.exp %1038 : vector<8x32xf32>
    %cst_411 = arith.constant 1.000000e+00 : f32
    %1040 = vector.broadcast %cst_411 : f32 to vector<8x32xf32>
    %1041 = arith.addf %1040, %1039 : vector<8x32xf32>
    %1042 = arith.divf %1040, %1041 : vector<8x32xf32>
    %1043 = vector.extract_strided_slice %1036 {offsets = [0, 32], sizes = [8, 32], strides = [1, 1]} : vector<8x128xf32> to vector<8x32xf32>
    %1044 = arith.negf %1043 : vector<8x32xf32>
    %1045 = math.exp %1044 : vector<8x32xf32>
    %cst_412 = arith.constant 1.000000e+00 : f32
    %1046 = vector.broadcast %cst_412 : f32 to vector<8x32xf32>
    %1047 = arith.addf %1046, %1045 : vector<8x32xf32>
    %1048 = arith.divf %1046, %1047 : vector<8x32xf32>
    %1049 = vector.extract_strided_slice %1036 {offsets = [0, 64], sizes = [8, 32], strides = [1, 1]} : vector<8x128xf32> to vector<8x32xf32>
    %1050 = math.tanh %1049 : vector<8x32xf32>
    %1051 = vector.extract_strided_slice %1036 {offsets = [0, 96], sizes = [8, 32], strides = [1, 1]} : vector<8x128xf32> to vector<8x32xf32>
    %1052 = arith.negf %1051 : vector<8x32xf32>
    %1053 = math.exp %1052 : vector<8x32xf32>
    %cst_413 = arith.constant 1.000000e+00 : f32
    %1054 = vector.broadcast %cst_413 : f32 to vector<8x32xf32>
    %1055 = arith.addf %1054, %1053 : vector<8x32xf32>
    %1056 = arith.divf %1054, %1055 : vector<8x32xf32>
    %1057 = arith.mulf %1048, %986 : vector<8x32xf32>
    %1058 = arith.mulf %1042, %1050 : vector<8x32xf32>
    %1059 = arith.addf %1057, %1058 : vector<8x32xf32>
    %1060 = math.tanh %1059 : vector<8x32xf32>
    %1061 = arith.mulf %1056, %1060 : vector<8x32xf32>
    %c2_414 = arith.constant 2 : index
    %c0_415 = arith.constant 0 : index
    %c0_416 = arith.constant 0 : index
    %1062 = vector.load %arg2[%c2_414, %c0_415, %c0_416] : memref<3x32x128xf32, #tpu.memory_space<vmem>>, vector<1x32x128xf32>
    %1063 = vector.shape_cast %1062 : vector<1x32x128xf32> to vector<32x128xf32>
    %cst_417 = arith.constant dense<0.000000e+00> : vector<8x128xf32>
    %1064 = tpu.matmul %988, %1063, %cst_417 {dimension_numbers = #tpu.dot_dimension_numbers<[1], [0], [0], [1], [0, 0, 1, 1], [], []>} : vector<8x32xf32>, vector<32x128xf32>, vector<8x128xf32> -> vector<8x128xf32>
    %c3_418 = arith.constant 3 : index
    %c0_419 = arith.constant 0 : index
    %c0_420 = arith.constant 0 : index
    %1065 = vector.load %arg3[%c3_418, %c0_419, %c0_420] : memref<4x32x128xf32, #tpu.memory_space<vmem>>, vector<1x32x128xf32>
    %1066 = vector.shape_cast %1065 : vector<1x32x128xf32> to vector<32x128xf32>
    %cst_421 = arith.constant dense<0.000000e+00> : vector<8x128xf32>
    %1067 = tpu.matmul %1024, %1066, %cst_421 {dimension_numbers = #tpu.dot_dimension_numbers<[1], [0], [0], [1], [0, 0, 1, 1], [], []>} : vector<8x32xf32>, vector<32x128xf32>, vector<8x128xf32> -> vector<8x128xf32>
    %1068 = arith.addf %1064, %1067 : vector<8x128xf32>
    %c3_422 = arith.constant 3 : index
    %c0_423 = arith.constant 0 : index
    %c0_424 = arith.constant 0 : index
    %1069 = vector.load %arg4[%c3_422, %c0_423, %c0_424] : memref<4x1x128xf32, #tpu.memory_space<vmem>>, vector<1x1x128xf32>
    %1070 = vector.shape_cast %1069 : vector<1x1x128xf32> to vector<1x128xf32>
    %1071 = vector.broadcast %1070 : vector<1x128xf32> to vector<8x128xf32>
    %1072 = arith.addf %1068, %1071 : vector<8x128xf32>
    %1073 = vector.extract_strided_slice %1072 {offsets = [0, 0], sizes = [8, 32], strides = [1, 1]} : vector<8x128xf32> to vector<8x32xf32>
    %1074 = arith.negf %1073 : vector<8x32xf32>
    %1075 = math.exp %1074 : vector<8x32xf32>
    %cst_425 = arith.constant 1.000000e+00 : f32
    %1076 = vector.broadcast %cst_425 : f32 to vector<8x32xf32>
    %1077 = arith.addf %1076, %1075 : vector<8x32xf32>
    %1078 = arith.divf %1076, %1077 : vector<8x32xf32>
    %1079 = vector.extract_strided_slice %1072 {offsets = [0, 32], sizes = [8, 32], strides = [1, 1]} : vector<8x128xf32> to vector<8x32xf32>
    %1080 = arith.negf %1079 : vector<8x32xf32>
    %1081 = math.exp %1080 : vector<8x32xf32>
    %cst_426 = arith.constant 1.000000e+00 : f32
    %1082 = vector.broadcast %cst_426 : f32 to vector<8x32xf32>
    %1083 = arith.addf %1082, %1081 : vector<8x32xf32>
    %1084 = arith.divf %1082, %1083 : vector<8x32xf32>
    %1085 = vector.extract_strided_slice %1072 {offsets = [0, 64], sizes = [8, 32], strides = [1, 1]} : vector<8x128xf32> to vector<8x32xf32>
    %1086 = math.tanh %1085 : vector<8x32xf32>
    %1087 = vector.extract_strided_slice %1072 {offsets = [0, 96], sizes = [8, 32], strides = [1, 1]} : vector<8x128xf32> to vector<8x32xf32>
    %1088 = arith.negf %1087 : vector<8x32xf32>
    %1089 = math.exp %1088 : vector<8x32xf32>
    %cst_427 = arith.constant 1.000000e+00 : f32
    %1090 = vector.broadcast %cst_427 : f32 to vector<8x32xf32>
    %1091 = arith.addf %1090, %1089 : vector<8x32xf32>
    %1092 = arith.divf %1090, %1091 : vector<8x32xf32>
    %1093 = arith.mulf %1084, %1022 : vector<8x32xf32>
    %1094 = arith.mulf %1078, %1086 : vector<8x32xf32>
    %1095 = arith.addf %1093, %1094 : vector<8x32xf32>
    %1096 = math.tanh %1095 : vector<8x32xf32>
    %1097 = arith.mulf %1092, %1096 : vector<8x32xf32>
    %c48_428 = arith.constant 48 : index
    %c0_429 = arith.constant 0 : index
    %1098 = vector.load %arg13[%c48_428, %c0_429] : memref<64x32xf32, #tpu.memory_space<vmem>>, vector<8x32xf32>
    tpu.vector_store %arg13[%c48_428, %c0_429], %1097 {strides = array<i32>} : memref<64x32xf32, #tpu.memory_space<vmem>>, vector<8x32xf32>,
    %c2_430 = arith.constant 2 : index
    %c0_431 = arith.constant 0 : index
    %c0_432 = arith.constant 0 : index
    %1099 = vector.load %arg2[%c2_430, %c0_431, %c0_432] : memref<3x32x128xf32, #tpu.memory_space<vmem>>, vector<1x32x128xf32>
    %1100 = vector.shape_cast %1099 : vector<1x32x128xf32> to vector<32x128xf32>
    %cst_433 = arith.constant dense<0.000000e+00> : vector<8x128xf32>
    %1101 = tpu.matmul %1061, %1100, %cst_433 {dimension_numbers = #tpu.dot_dimension_numbers<[1], [0], [0], [1], [0, 0, 1, 1], [], []>} : vector<8x32xf32>, vector<32x128xf32>, vector<8x128xf32> -> vector<8x128xf32>
    %c3_434 = arith.constant 3 : index
    %c0_435 = arith.constant 0 : index
    %c0_436 = arith.constant 0 : index
    %1102 = vector.load %arg3[%c3_434, %c0_435, %c0_436] : memref<4x32x128xf32, #tpu.memory_space<vmem>>, vector<1x32x128xf32>
    %1103 = vector.shape_cast %1102 : vector<1x32x128xf32> to vector<32x128xf32>
    %cst_437 = arith.constant dense<0.000000e+00> : vector<8x128xf32>
    %1104 = tpu.matmul %1097, %1103, %cst_437 {dimension_numbers = #tpu.dot_dimension_numbers<[1], [0], [0], [1], [0, 0, 1, 1], [], []>} : vector<8x32xf32>, vector<32x128xf32>, vector<8x128xf32> -> vector<8x128xf32>
    %1105 = arith.addf %1101, %1104 : vector<8x128xf32>
    %c3_438 = arith.constant 3 : index
    %c0_439 = arith.constant 0 : index
    %c0_440 = arith.constant 0 : index
    %1106 = vector.load %arg4[%c3_438, %c0_439, %c0_440] : memref<4x1x128xf32, #tpu.memory_space<vmem>>, vector<1x1x128xf32>
    %1107 = vector.shape_cast %1106 : vector<1x1x128xf32> to vector<1x128xf32>
    %1108 = vector.broadcast %1107 : vector<1x128xf32> to vector<8x128xf32>
    %1109 = arith.addf %1105, %1108 : vector<8x128xf32>
    %1110 = vector.extract_strided_slice %1109 {offsets = [0, 0], sizes = [8, 32], strides = [1, 1]} : vector<8x128xf32> to vector<8x32xf32>
    %1111 = arith.negf %1110 : vector<8x32xf32>
    %1112 = math.exp %1111 : vector<8x32xf32>
    %cst_441 = arith.constant 1.000000e+00 : f32
    %1113 = vector.broadcast %cst_441 : f32 to vector<8x32xf32>
    %1114 = arith.addf %1113, %1112 : vector<8x32xf32>
    %1115 = arith.divf %1113, %1114 : vector<8x32xf32>
    %1116 = vector.extract_strided_slice %1109 {offsets = [0, 32], sizes = [8, 32], strides = [1, 1]} : vector<8x128xf32> to vector<8x32xf32>
    %1117 = arith.negf %1116 : vector<8x32xf32>
    %1118 = math.exp %1117 : vector<8x32xf32>
    %cst_442 = arith.constant 1.000000e+00 : f32
    %1119 = vector.broadcast %cst_442 : f32 to vector<8x32xf32>
    %1120 = arith.addf %1119, %1118 : vector<8x32xf32>
    %1121 = arith.divf %1119, %1120 : vector<8x32xf32>
    %1122 = vector.extract_strided_slice %1109 {offsets = [0, 64], sizes = [8, 32], strides = [1, 1]} : vector<8x128xf32> to vector<8x32xf32>
    %1123 = math.tanh %1122 : vector<8x32xf32>
    %1124 = vector.extract_strided_slice %1109 {offsets = [0, 96], sizes = [8, 32], strides = [1, 1]} : vector<8x128xf32> to vector<8x32xf32>
    %1125 = arith.negf %1124 : vector<8x32xf32>
    %1126 = math.exp %1125 : vector<8x32xf32>
    %cst_443 = arith.constant 1.000000e+00 : f32
    %1127 = vector.broadcast %cst_443 : f32 to vector<8x32xf32>
    %1128 = arith.addf %1127, %1126 : vector<8x32xf32>
    %1129 = arith.divf %1127, %1128 : vector<8x32xf32>
    %1130 = arith.mulf %1121, %1095 : vector<8x32xf32>
    %1131 = arith.mulf %1115, %1123 : vector<8x32xf32>
    %1132 = arith.addf %1130, %1131 : vector<8x32xf32>
    %1133 = math.tanh %1132 : vector<8x32xf32>
    %1134 = arith.mulf %1129, %1133 : vector<8x32xf32>
    %c56_444 = arith.constant 56 : index
    %c0_445 = arith.constant 0 : index
    %1135 = vector.load %arg13[%c56_444, %c0_445] : memref<64x32xf32, #tpu.memory_space<vmem>>, vector<8x32xf32>
    tpu.vector_store %arg13[%c56_444, %c0_445], %1134 {strides = array<i32>} : memref<64x32xf32, #tpu.memory_space<vmem>>, vector<8x32xf32>,
    %c0_446 = arith.constant 0 : index
    %c0_447 = arith.constant 0 : index
    %c0_448 = arith.constant 0 : index
    %1136 = vector.load %arg10[%c0_446, %c0_447, %c0_448] : memref<4x8x32xf32, #tpu.memory_space<vmem>>, vector<1x8x32xf32>
    %1137 = vector.shape_cast %1136 : vector<1x8x32xf32> to vector<8x32xf32>
    %1138 = vector.shape_cast %807 : vector<8x32xf32> to vector<1x8x32xf32>
    tpu.vector_store %arg10[%c0_446, %c0_447, %c0_448], %1138 {strides = array<i32>} : memref<4x8x32xf32, #tpu.memory_space<vmem>>, vector<1x8x32xf32>,
    %c0_449 = arith.constant 0 : index
    %c0_450 = arith.constant 0 : index
    %c0_451 = arith.constant 0 : index
    %1139 = vector.load %arg11[%c0_449, %c0_450, %c0_451] : memref<4x8x32xf32, #tpu.memory_space<vmem>>, vector<1x8x32xf32>
    %1140 = vector.shape_cast %1139 : vector<1x8x32xf32> to vector<8x32xf32>
    %1141 = vector.shape_cast %805 : vector<8x32xf32> to vector<1x8x32xf32>
    tpu.vector_store %arg11[%c0_449, %c0_450, %c0_451], %1141 {strides = array<i32>} : memref<4x8x32xf32, #tpu.memory_space<vmem>>, vector<1x8x32xf32>,
    %c1_452 = arith.constant 1 : index
    %c0_453 = arith.constant 0 : index
    %c0_454 = arith.constant 0 : index
    %1142 = vector.load %arg10[%c1_452, %c0_453, %c0_454] : memref<4x8x32xf32, #tpu.memory_space<vmem>>, vector<1x8x32xf32>
    %1143 = vector.shape_cast %1142 : vector<1x8x32xf32> to vector<8x32xf32>
    %1144 = vector.shape_cast %952 : vector<8x32xf32> to vector<1x8x32xf32>
    tpu.vector_store %arg10[%c1_452, %c0_453, %c0_454], %1144 {strides = array<i32>} : memref<4x8x32xf32, #tpu.memory_space<vmem>>, vector<1x8x32xf32>,
    %c1_455 = arith.constant 1 : index
    %c0_456 = arith.constant 0 : index
    %c0_457 = arith.constant 0 : index
    %1145 = vector.load %arg11[%c1_455, %c0_456, %c0_457] : memref<4x8x32xf32, #tpu.memory_space<vmem>>, vector<1x8x32xf32>
    %1146 = vector.shape_cast %1145 : vector<1x8x32xf32> to vector<8x32xf32>
    %1147 = vector.shape_cast %950 : vector<8x32xf32> to vector<1x8x32xf32>
    tpu.vector_store %arg11[%c1_455, %c0_456, %c0_457], %1147 {strides = array<i32>} : memref<4x8x32xf32, #tpu.memory_space<vmem>>, vector<1x8x32xf32>,
    %c2_458 = arith.constant 2 : index
    %c0_459 = arith.constant 0 : index
    %c0_460 = arith.constant 0 : index
    %1148 = vector.load %arg10[%c2_458, %c0_459, %c0_460] : memref<4x8x32xf32, #tpu.memory_space<vmem>>, vector<1x8x32xf32>
    %1149 = vector.shape_cast %1148 : vector<1x8x32xf32> to vector<8x32xf32>
    %1150 = vector.shape_cast %1061 : vector<8x32xf32> to vector<1x8x32xf32>
    tpu.vector_store %arg10[%c2_458, %c0_459, %c0_460], %1150 {strides = array<i32>} : memref<4x8x32xf32, #tpu.memory_space<vmem>>, vector<1x8x32xf32>,
    %c2_461 = arith.constant 2 : index
    %c0_462 = arith.constant 0 : index
    %c0_463 = arith.constant 0 : index
    %1151 = vector.load %arg11[%c2_461, %c0_462, %c0_463] : memref<4x8x32xf32, #tpu.memory_space<vmem>>, vector<1x8x32xf32>
    %1152 = vector.shape_cast %1151 : vector<1x8x32xf32> to vector<8x32xf32>
    %1153 = vector.shape_cast %1059 : vector<8x32xf32> to vector<1x8x32xf32>
    tpu.vector_store %arg11[%c2_461, %c0_462, %c0_463], %1153 {strides = array<i32>} : memref<4x8x32xf32, #tpu.memory_space<vmem>>, vector<1x8x32xf32>,
    %c3_464 = arith.constant 3 : index
    %c0_465 = arith.constant 0 : index
    %c0_466 = arith.constant 0 : index
    %1154 = vector.load %arg10[%c3_464, %c0_465, %c0_466] : memref<4x8x32xf32, #tpu.memory_space<vmem>>, vector<1x8x32xf32>
    %1155 = vector.shape_cast %1154 : vector<1x8x32xf32> to vector<8x32xf32>
    %1156 = vector.shape_cast %1134 : vector<8x32xf32> to vector<1x8x32xf32>
    tpu.vector_store %arg10[%c3_464, %c0_465, %c0_466], %1156 {strides = array<i32>} : memref<4x8x32xf32, #tpu.memory_space<vmem>>, vector<1x8x32xf32>,
    %c3_467 = arith.constant 3 : index
    %c0_468 = arith.constant 0 : index
    %c0_469 = arith.constant 0 : index
    %1157 = vector.load %arg11[%c3_467, %c0_468, %c0_469] : memref<4x8x32xf32, #tpu.memory_space<vmem>>, vector<1x8x32xf32>
    %1158 = vector.shape_cast %1157 : vector<1x8x32xf32> to vector<8x32xf32>
    %1159 = vector.shape_cast %1132 : vector<8x32xf32> to vector<1x8x32xf32>
    tpu.vector_store %arg11[%c3_467, %c0_468, %c0_469], %1159 {strides = array<i32>} : memref<4x8x32xf32, #tpu.memory_space<vmem>>, vector<1x8x32xf32>,
    %c0_470 = arith.constant 0 : index
    %c0_471 = arith.constant 0 : index
    %1160 = vector.load %arg13[%c0_470, %c0_471] : memref<64x32xf32, #tpu.memory_space<vmem>>, vector<64x32xf32>
    %c0_472 = arith.constant 0 : index
    %c0_473 = arith.constant 0 : index
    %1161 = vector.load %arg7[%c0_472, %c0_473] : memref<32x128xf32, #tpu.memory_space<vmem>>, vector<32x128xf32>
    %cst_474 = arith.constant dense<0.000000e+00> : vector<64x128xf32>
    %1162 = tpu.matmul %1160, %1161, %cst_474 {dimension_numbers = #tpu.dot_dimension_numbers<[1], [0], [0], [1], [0, 0, 1, 1], [], []>} : vector<64x32xf32>, vector<32x128xf32>, vector<64x128xf32> -> vector<64x128xf32>
    %c0_475 = arith.constant 0 : index
    %c0_476 = arith.constant 0 : index
    %1163 = vector.load %arg8[%c0_475, %c0_476] : memref<1x128xf32, #tpu.memory_space<vmem>>, vector<1x128xf32>
    %1164 = vector.broadcast %1163 : vector<1x128xf32> to vector<64x128xf32>
    %1165 = arith.addf %1162, %1164 : vector<64x128xf32>
    %c0_477 = arith.constant 0 : index
    %c0_478 = arith.constant 0 : index
    %1166 = vector.load %arg9[%c0_477, %c0_478] : memref<64x128xf32, #tpu.memory_space<vmem>>, vector<64x128xf32>
    tpu.vector_store %arg9[%c0_477, %c0_478], %1165 {strides = array<i32>} : memref<64x128xf32, #tpu.memory_space<vmem>>, vector<64x128xf32>,
    return
  }
}

</mosaic_0001>

<llo_original>
// kernel: tpu_custom_call.1
$region0: #{tpu_custom_call.1}
  #allocation0 [shape = 'u32[]', space=smem, size = 0x4, offset = 0x4, fixed_abs, tag = 'smem constant byte address 0x4 - core index']
  #allocation1 [shape = 'u32[144,128]{1,0:T(1,128)}', space=vmem, size = 0x12000, scoped, tag = 'internal scratch']
  #allocation2 [shape = 'f32[64,128]{1,0:T(8,128)}', space=vmem, size = 0x8000, scoped, tag = 'scratch operand']
  #allocation3 [shape = 'f32[64,32]{1,0:T(8,128)}', space=vmem, size = 0x8000, scoped, tag = 'scratch operand']
  %s0 = inlined_call_operand.vmem [shape: f32[64,48], index: 0, kind: input, shape index: {}]
  %s1 = inlined_call_operand.hbm [shape: f32[48,128], index: 1, kind: input, shape index: {}]
  %s2 = inlined_call_operand.vmem [shape: f32[3,32,128], index: 2, kind: input, shape index: {}]
  %s3 = inlined_call_operand.hbm [shape: f32[4,32,128], index: 3, kind: input, shape index: {}]
  %s4 = inlined_call_operand.hbm [shape: f32[4,1,128], index: 4, kind: input, shape index: {}]
  %s5 = inlined_call_operand.vmem [shape: f32[4,8,32], index: 5, kind: input, shape index: {}]
  %s6 = inlined_call_operand.hbm [shape: f32[4,8,32], index: 6, kind: input, shape index: {}]
  %s7 = inlined_call_operand.hbm [shape: f32[32,128], index: 7, kind: input, shape index: {}]
  %s8 = inlined_call_operand.vmem [shape: f32[1,128], index: 8, kind: input, shape index: {}]
  %s9 = inlined_call_operand.hbm [shape: f32[64,128], index: 9, kind: output, shape index: {0}]
  %s10 = inlined_call_operand.hbm [shape: f32[4,8,32], index: 10, kind: output, shape index: {1}]
  %s11 = inlined_call_operand.hbm [shape: f32[4,8,32], index: 11, kind: output, shape index: {2}]
  %12 = xla_tuple %s9, %s10, %s11
  %s13 = sld [smem:[#allocation0]]
  $region82: #{tpu_custom_call.1} parent=0
    _
  %s15 = ssub.s32 1, %s13
  %s16 = scalar_select 0, %s15, %s13
  $region1: #{tpu_custom_call.1} parent=0
    #allocation4 [shape = 'u8[24576]{0}', space=vmem, size = 0x6000, scoped, tag = 'input window, operand 1, single buffered']
    #allocation5 [shape = 's32[1]{0}', space=sflag, size = 0x4, scoped, tag = 'scoped memory for tpu_custom_call.1']
    #allocation6 [shape = 's32[1]{0}', space=sflag, size = 0x4, scoped, tag = 'scoped memory for tpu_custom_call.1']
    #allocation7 [shape = 'u8[65536]{0}', space=vmem, size = 0x10000, scoped, tag = 'input window, operand 3, single buffered']
    #allocation8 [shape = 's32[1]{0}', space=sflag, size = 0x4, scoped, tag = 'scoped memory for tpu_custom_call.1']
    #allocation9 [shape = 'u8[2048]{0}', space=vmem, size = 0x800, scoped, tag = 'input window, operand 4, single buffered']
    #allocation10 [shape = 'u8[16384]{0}', space=vmem, size = 0x4000, scoped, tag = 'input window, operand 6, single buffered']
    #allocation11 [shape = 's32[1]{0}', space=sflag, size = 0x4, scoped, tag = 'scoped memory for tpu_custom_call.1']
    #allocation12 [shape = 'u8[16384]{0}', space=vmem, size = 0x4000, scoped, tag = 'input window, operand 7, single buffered']
    #allocation13 [shape = 'u8[32768]{0}', space=vmem, size = 0x8000, scoped, tag = 'output window, operand 0, single buffered']
    #allocation14 [shape = 'u8[16384]{0}', space=vmem, size = 0x4000, scoped, tag = 'output window, operand 1, single buffered']
    #allocation15 [shape = 's32[1]{0}', space=sflag, size = 0x4, scoped, tag = 'scoped memory for tpu_custom_call.1']
    #allocation16 [shape = 'u8[16384]{0}', space=vmem, size = 0x4000, scoped, tag = 'output window, operand 2, single buffered']
    %17 = vsyncpa [#allocation5], 0
    %18 = vsyncpa [#allocation8], 0
    %19 = vsyncpa [#allocation11], 0
    %20 = vsyncpa [#allocation6], 0
    %21 = vsyncpa [#allocation15], 0
    // Predicated region
    $region2: #{tpu_custom_call.1} parent=1 // pred_check
      _
    $region3: #{tpu_custom_call.1} parent=1 // pred_check_branch
      %23 = sbr.rel (0) target = $region5
    $region4: #{tpu_custom_call.1} parent=1 // pred_region
      _
    $region5: #{tpu_custom_call.1} parent=1 // pred_fallthru
      _
    // Predicated region
    $region6: #{tpu_custom_call.1} parent=1 // pred_check
      _
    $region7: #{tpu_custom_call.1} parent=1 // pred_check_branch
      %25 = sbr.rel (0) target = $region9
    $region8: #{tpu_custom_call.1} parent=1 // pred_region
      %s27 = ssub.s32 768, 768
      %28 = vsyncadd [#allocation5], %s27
      %s29 = sshll.u32 [#allocation4], 4
      %s30 = int_to_ptr.vmem [resolvable:$true] %s29
      %35 = dma.hbm_to_vmem [thread:$0]  %s1, 768, %s30, [#allocation5], 128, 128, 8
    $region9: #{tpu_custom_call.1} parent=1 // pred_fallthru
      _
    // Predicated region
    $region10: #{tpu_custom_call.1} parent=1 // pred_check
      _
    $region11: #{tpu_custom_call.1} parent=1 // pred_check_branch
      %37 = sbr.rel (0) target = $region13
    $region12: #{tpu_custom_call.1} parent=1 // pred_region
      _
    $region13: #{tpu_custom_call.1} parent=1 // pred_fallthru
      _
    // Predicated region
    $region14: #{tpu_custom_call.1} parent=1 // pred_check
      _
    $region15: #{tpu_custom_call.1} parent=1 // pred_check_branch
      %39 = sbr.rel (0) target = $region17
    $region16: #{tpu_custom_call.1} parent=1 // pred_region
      %s41 = ssub.s32 2048, 2048
      %42 = vsyncadd [#allocation8], %s41
      %s43 = sshll.u32 [#allocation7], 4
      %s44 = int_to_ptr.vmem [resolvable:$true] %s43
      %49 = dma.hbm_to_vmem [thread:$0]  %s3, 2048, %s44, [#allocation8], 128, 128, 8
    $region17: #{tpu_custom_call.1} parent=1 // pred_fallthru
      _
    // Predicated region
    $region18: #{tpu_custom_call.1} parent=1 // pred_check
      _
    $region19: #{tpu_custom_call.1} parent=1 // pred_check_branch
      %51 = sbr.rel (0) target = $region21
    $region20: #{tpu_custom_call.1} parent=1 // pred_region
      %s53 = ssub.s32 64, 64
      %54 = vsyncadd [#allocation8], %s53
      %s55 = sshll.u32 [#allocation9], 4
      %s56 = int_to_ptr.vmem [resolvable:$true] %s55
      %61 = dma.hbm_to_vmem [thread:$0]  %s4, 64, %s56, [#allocation8], 16, 16, 1
    $region21: #{tpu_custom_call.1} parent=1 // pred_fallthru
      _
    // Predicated region
    $region22: #{tpu_custom_call.1} parent=1 // pred_check
      _
    $region23: #{tpu_custom_call.1} parent=1 // pred_check_branch
      %63 = sbr.rel (0) target = $region25
    $region24: #{tpu_custom_call.1} parent=1 // pred_region
      _
    $region25: #{tpu_custom_call.1} parent=1 // pred_fallthru
      _
    // Predicated region
    $region26: #{tpu_custom_call.1} parent=1 // pred_check
      _
    $region27: #{tpu_custom_call.1} parent=1 // pred_check_branch
      %65 = sbr.rel (0) target = $region29
    $region28: #{tpu_custom_call.1} parent=1 // pred_region
      %s67 = ssub.s32 512, 512
      %68 = vsyncadd [#allocation11], %s67
      %s69 = sshll.u32 [#allocation10], 4
      %s70 = int_to_ptr.vmem [resolvable:$true] %s69
      %75 = dma.hbm_to_vmem [thread:$0]  %s6, 512, %s70, [#allocation11], 128, 128, 8
    $region29: #{tpu_custom_call.1} parent=1 // pred_fallthru
      _
    // Predicated region
    $region30: #{tpu_custom_call.1} parent=1 // pred_check
      _
    $region31: #{tpu_custom_call.1} parent=1 // pred_check_branch
      %77 = sbr.rel (0) target = $region33
    $region32: #{tpu_custom_call.1} parent=1 // pred_region
      %s79 = ssub.s32 512, 512
      %80 = vsyncadd [#allocation11], %s79
      %s81 = sshll.u32 [#allocation12], 4
      %s82 = int_to_ptr.vmem [resolvable:$true] %s81
      %87 = dma.hbm_to_vmem [thread:$0]  %s7, 512, %s82, [#allocation11], 128, 128, 8
    $region33: #{tpu_custom_call.1} parent=1 // pred_fallthru
      _
    // Predicated region
    $region34: #{tpu_custom_call.1} parent=1 // pred_check
      _
    $region35: #{tpu_custom_call.1} parent=1 // pred_check_branch
      %89 = sbr.rel (0) target = $region37
    $region36: #{tpu_custom_call.1} parent=1 // pred_region
      _
    $region37: #{tpu_custom_call.1} parent=1 // pred_fallthru
      _
    // Predicated region
    $region38: #{tpu_custom_call.1} parent=1 // pred_check
      _
    $region39: #{tpu_custom_call.1} parent=1 // pred_check_branch
      %91 = sbr.rel (0) target = $region41
    $region40: #{tpu_custom_call.1} parent=1 // pred_region
      %92 = dma.done [#allocation5], 768
    $region41: #{tpu_custom_call.1} parent=1 // pred_fallthru
      _
    // Predicated region
    $region42: #{tpu_custom_call.1} parent=1 // pred_check
      _
    $region43: #{tpu_custom_call.1} parent=1 // pred_check_branch
      %94 = sbr.rel (0) target = $region45
    $region44: #{tpu_custom_call.1} parent=1 // pred_region
      %95 = dma.done [#allocation8], 2048
    $region45: #{tpu_custom_call.1} parent=1 // pred_fallthru
      _
    // Predicated region
    $region46: #{tpu_custom_call.1} parent=1 // pred_check
      _
    $region47: #{tpu_custom_call.1} parent=1 // pred_check_branch
      %97 = sbr.rel (0) target = $region49
    $region48: #{tpu_custom_call.1} parent=1 // pred_region
      %98 = dma.done [#allocation8], 64
    $region49: #{tpu_custom_call.1} parent=1 // pred_fallthru
      _
    // Predicated region
    $region50: #{tpu_custom_call.1} parent=1 // pred_check
      _
    $region51: #{tpu_custom_call.1} parent=1 // pred_check_branch
      %100 = sbr.rel (0) target = $region53
    $region52: #{tpu_custom_call.1} parent=1 // pred_region
      %101 = dma.done [#allocation11], 512
    $region53: #{tpu_custom_call.1} parent=1 // pred_fallthru
      _
    // Predicated region
    $region54: #{tpu_custom_call.1} parent=1 // pred_check
      _
    $region55: #{tpu_custom_call.1} parent=1 // pred_check_branch
      %103 = sbr.rel (0) target = $region57
    $region56: #{tpu_custom_call.1} parent=1 // pred_region
      %104 = dma.done [#allocation11], 512
    $region57: #{tpu_custom_call.1} parent=1 // pred_fallthru
      _
    %v105 = vld [vmem:[%s0] sm:$0xff]
    %v106 = vld [vmem:[%s0 + $0x8] sm:$0xff]
    %v107 = vld [vmem:[%s0 + $0x10] sm:$0xff]
    %v108 = vld [vmem:[%s0 + $0x18] sm:$0xff]
    %v109 = vld [vmem:[%s0 + $0x20] sm:$0xff]
    %v110 = vld [vmem:[%s0 + $0x28] sm:$0xff]
    %v111 = vld [vmem:[%s0 + $0x30] sm:$0xff]
    %v112 = vld [vmem:[%s0 + $0x38] sm:$0xff]
    %v113 = vld [vmem:[#allocation4] sm:$0xff]
    %v114 = vld [vmem:[#allocation4 + $0x8] sm:$0xff]
    %v115 = vld [vmem:[#allocation4 + $0x10] sm:$0xff]
    %v116 = vld [vmem:[#allocation4 + $0x18] sm:$0xff]
    %v117 = vld [vmem:[#allocation4 + $0x20] sm:$0xff]
    %v118 = vld [vmem:[#allocation4 + $0x28] sm:$0xff]
    %v119 = vld [vmem:[#allocation9] sm:$0x1]
    %v121 = vlaneseq
    %v122 = vshrl.u32 %v121, 7
    %v123 = vsub.s32 0, %v122
    %v124 = vrot.slane %v119, %v123
    %vm126 = vcmask 392192
    %v128 = vsel %vm126, %v105, 0
    %v131 = vsel %vm126, %v106, 0
    %v134 = vsel %vm126, %v107, 0
    %v137 = vsel %vm126, %v108, 0
    %v140 = vsel %vm126, %v109, 0
    %v143 = vsel %vm126, %v110, 0
    %v146 = vsel %vm126, %v111, 0
    %v149 = vsel %vm126, %v112, 0
    %151 = vmatprep.subr.mxu0 0.0
    %152 = vmatpush1.msra.mxu0 %v113
    %153 = vmatprep.subr.mxu0 0.0
    %154 = vmatpush1.msra.mxu0 %v114
    %155 = vmatprep.subr.mxu0 0.0
    %156 = vmatpush1.msra.mxu0 %v115
    %157 = vmatprep.subr.mxu0 0.0
    %158 = vmatpush1.msra.mxu0 %v116
    %159 = vmatprep.subr.mxu0 0.0
    %160 = vmatpush1.msra.mxu0 %v117
    %161 = vmatprep.subr.mxu0 0.0
    %162 = vmatpush1.msra.mxu0 %v118
    %163 = vmatprep.subr.mxu0 0.0
    %164 = vmatpush1.msra.mxu0 0.0
    %165 = vmatprep.subr.mxu0 0.0
    %166 = vmatpush1.msra.mxu0 0.0
    %167 = vmatprep.subr.mxu0 0.0
    %168 = vmatpush1.msra.mxu0 0.0
    %169 = vmatprep.subr.mxu0 0.0
    %170 = vmatpush1.msra.mxu0 0.0
    %171 = vmatprep.subr.mxu0 0.0
    %172 = vmatpush1.msra.mxu0 0.0
    %173 = vmatprep.subr.mxu0 0.0
    %174 = vmatpush1.msra.mxu0 0.0
    %175 = vmatprep.subr.mxu0 0.0
    %176 = vmatpush1.msra.mxu0 0.0
    %177 = vmatprep.subr.mxu0 0.0
    %178 = vmatpush1.msra.mxu0 0.0
    %179 = vmatprep.subr.mxu0 0.0
    %180 = vmatpush1.msra.mxu0 0.0
    %181 = vmatprep.subr.mxu0 0.0
    %182 = vmatpush1.msra.mxu0 0.0
    %183 = vmatprep.subr.mxu0 0.0
    %184 = vmatpush1.msra.mxu0 0.0
    %185 = vmatprep.subr.mxu0 0.0
    %186 = vmatpush1.msra.mxu0 0.0
    %187 = vmatprep.subr.mxu0 0.0
    %188 = vmatpush1.msra.mxu0 0.0
    %189 = vmatprep.subr.mxu0 0.0
    %190 = vmatpush1.msra.mxu0 0.0
    %191 = vmatprep.subr.mxu0 0.0
    %192 = vmatpush1.msra.mxu0 0.0
    %193 = vmatprep.subr.mxu0 0.0
    %194 = vmatpush1.msra.mxu0 0.0
    %195 = vmatprep.subr.mxu0 0.0
    %196 = vmatpush1.msra.mxu0 0.0
    %197 = vmatprep.subr.mxu0 0.0
    %198 = vmatpush1.msra.mxu0 0.0
    %199 = vmatprep.subr.mxu0 0.0
    %200 = vmatpush1.msra.mxu0 0.0
    %201 = vmatprep.subr.mxu0 0.0
    %202 = vmatpush1.msra.mxu0 0.0
    %203 = vmatprep.subr.mxu0 0.0
    %204 = vmatpush1.msra.mxu0 0.0
    %205 = vmatprep.subr.mxu0 0.0
    %206 = vmatpush1.msra.mxu0 0.0
    %207 = vmatprep.subr.mxu0 0.0
    %208 = vmatpush1.msra.mxu0 0.0
    %209 = vmatprep.subr.mxu0 0.0
    %210 = vmatpush1.msra.mxu0 0.0
    %211 = vmatprep.subr.mxu0 0.0
    %212 = vmatpush1.msra.mxu0 0.0
    %213 = vmatprep.subr.mxu0 0.0
    %214 = vmatpush1.msra.mxu0 0.0
    %215 = vmatprep.mubr.f32.mxu0 0.0
    %216 = vmatmul.mubr.f32.gmra.mrb[0].mxu0 %v128
    %v217 = vpop.f32.mrb[0].mxu0
    %v218 = vadd.f32 %v124, %v217
    %v219 = vpop.f32.mrb[0].mxu0
    %220 = vmatprep.mubr.f32.mxu0 0.0
    %221 = vmatmul.mubr.f32.gmra.mrb[0].mxu0 %v131
    %v222 = vpop.f32.mrb[0].mxu0
    %v223 = vadd.f32 %v124, %v222
    %v224 = vpop.f32.mrb[0].mxu0
    %225 = vmatprep.mubr.f32.mxu0 0.0
    %226 = vmatmul.mubr.f32.gmra.mrb[0].mxu0 %v134
    %v227 = vpop.f32.mrb[0].mxu0
    %v228 = vadd.f32 %v124, %v227
    %v229 = vpop.f32.mrb[0].mxu0
    %230 = vmatprep.mubr.f32.mxu0 0.0
    %231 = vmatmul.mubr.f32.gmra.mrb[0].mxu0 %v137
    %v232 = vpop.f32.mrb[0].mxu0
    %v233 = vadd.f32 %v124, %v232
    %v234 = vpop.f32.mrb[0].mxu0
    %235 = vmatprep.mubr.f32.mxu0 0.0
    %236 = vmatmul.mubr.f32.gmra.mrb[0].mxu0 %v140
    %v237 = vpop.f32.mrb[0].mxu0
    %v238 = vadd.f32 %v124, %v237
    %v239 = vpop.f32.mrb[0].mxu0
    %240 = vmatprep.mubr.f32.mxu0 0.0
    %241 = vmatmul.mubr.f32.gmra.mrb[0].mxu0 %v143
    %v242 = vpop.f32.mrb[0].mxu0
    %v243 = vadd.f32 %v124, %v242
    %v244 = vpop.f32.mrb[0].mxu0
    %245 = vmatprep.mubr.f32.mxu0 0.0
    %246 = vmatmul.mubr.f32.gmra.mrb[0].mxu0 %v146
    %v247 = vpop.f32.mrb[0].mxu0
    %v248 = vadd.f32 %v124, %v247
    %v249 = vpop.f32.mrb[0].mxu0
    %250 = vmatprep.mubr.f32.mxu0 0.0
    %251 = vmatmul.mubr.f32.gmra.mrb[0].mxu0 %v149
    %v252 = vpop.f32.mrb[0].mxu0
    %v253 = vadd.f32 %v124, %v252
    %v254 = vpop.f32.mrb[0].mxu0
    %255 = vdwg.mxu0
    %256 = vst [vmem:[#allocation2] sm:$0xff] %v218
    %257 = vst [vmem:[#allocation2 + $0x8] sm:$0xff] %v223
    %258 = vst [vmem:[#allocation2 + $0x10] sm:$0xff] %v228
    %259 = vst [vmem:[#allocation2 + $0x18] sm:$0xff] %v233
    %260 = vst [vmem:[#allocation2 + $0x20] sm:$0xff] %v238
    %261 = vst [vmem:[#allocation2 + $0x28] sm:$0xff] %v243
    %262 = vst [vmem:[#allocation2 + $0x30] sm:$0xff] %v248
    %263 = vst [vmem:[#allocation2 + $0x38] sm:$0xff] %v253
    %v264 = vld [vmem:[%s5] sm:$0xff]
    %s265 = scalar_lea.vmem %s5, 8
    %v266 = vld [vmem:[%s265] sm:$0xff]
    %s267 = scalar_lea.vmem %s5, 16
    %v268 = vld [vmem:[%s267] sm:$0xff]
    %s269 = scalar_lea.vmem %s5, 24
    %v270 = vld [vmem:[%s269] sm:$0xff]
    %v271 = vld [vmem:[#allocation10] sm:$0xff]
    %s272 = scalar_lea.vmem [#allocation10], 8
    %v273 = vld [vmem:[%s272] sm:$0xff]
    %s274 = scalar_lea.vmem [#allocation10], 16
    %v275 = vld [vmem:[%s274] sm:$0xff]
    %s276 = scalar_lea.vmem [#allocation10], 24
    %v277 = vld [vmem:[%s276] sm:$0xff]
    %v278 = vld [vmem:[#allocation2] sm:$0xff]
    %v279 = vld [vmem:[#allocation7] sm:$0xff]
    %v280 = vld [vmem:[#allocation7 + $0x8] sm:$0xff]
    %v281 = vld [vmem:[#allocation7 + $0x10] sm:$0xff]
    %v282 = vld [vmem:[#allocation7 + $0x18] sm:$0xff]
    %vm283 = vcmask 261120
    %v285 = vsel %vm283, %v264, 0
    %287 = vmatprep.subr.mxu0 0.0
    %288 = vmatpush1.msra.mxu0 %v279
    %289 = vmatprep.subr.mxu0 0.0
    %290 = vmatpush1.msra.mxu0 %v280
    %291 = vmatprep.subr.mxu0 0.0
    %292 = vmatpush1.msra.mxu0 %v281
    %293 = vmatprep.subr.mxu0 0.0
    %294 = vmatpush1.msra.mxu0 %v282
    %295 = vmatprep.subr.mxu0 0.0
    %296 = vmatpush1.msra.mxu0 0.0
    %297 = vmatprep.subr.mxu0 0.0
    %298 = vmatpush1.msra.mxu0 0.0
    %299 = vmatprep.subr.mxu0 0.0
    %300 = vmatpush1.msra.mxu0 0.0
    %301 = vmatprep.subr.mxu0 0.0
    %302 = vmatpush1.msra.mxu0 0.0
    %303 = vmatprep.subr.mxu0 0.0
    %304 = vmatpush1.msra.mxu0 0.0
    %305 = vmatprep.subr.mxu0 0.0
    %306 = vmatpush1.msra.mxu0 0.0
    %307 = vmatprep.subr.mxu0 0.0
    %308 = vmatpush1.msra.mxu0 0.0
    %309 = vmatprep.subr.mxu0 0.0
    %310 = vmatpush1.msra.mxu0 0.0
    %311 = vmatprep.subr.mxu0 0.0
    %312 = vmatpush1.msra.mxu0 0.0
    %313 = vmatprep.subr.mxu0 0.0
    %314 = vmatpush1.msra.mxu0 0.0
    %315 = vmatprep.subr.mxu0 0.0
    %316 = vmatpush1.msra.mxu0 0.0
    %317 = vmatprep.subr.mxu0 0.0
    %318 = vmatpush1.msra.mxu0 0.0
    %319 = vmatprep.subr.mxu0 0.0
    %320 = vmatpush1.msra.mxu0 0.0
    %321 = vmatprep.subr.mxu0 0.0
    %322 = vmatpush1.msra.mxu0 0.0
    %323 = vmatprep.subr.mxu0 0.0
    %324 = vmatpush1.msra.mxu0 0.0
    %325 = vmatprep.subr.mxu0 0.0
    %326 = vmatpush1.msra.mxu0 0.0
    %327 = vmatprep.subr.mxu0 0.0
    %328 = vmatpush1.msra.mxu0 0.0
    %329 = vmatprep.subr.mxu0 0.0
    %330 = vmatpush1.msra.mxu0 0.0
    %331 = vmatprep.subr.mxu0 0.0
    %332 = vmatpush1.msra.mxu0 0.0
    %333 = vmatprep.subr.mxu0 0.0
    %334 = vmatpush1.msra.mxu0 0.0
    %335 = vmatprep.subr.mxu0 0.0
    %336 = vmatpush1.msra.mxu0 0.0
    %337 = vmatprep.subr.mxu0 0.0
    %338 = vmatpush1.msra.mxu0 0.0
    %339 = vmatprep.subr.mxu0 0.0
    %340 = vmatpush1.msra.mxu0 0.0
    %341 = vmatprep.subr.mxu0 0.0
    %342 = vmatpush1.msra.mxu0 0.0
    %343 = vmatprep.subr.mxu0 0.0
    %344 = vmatpush1.msra.mxu0 0.0
    %345 = vmatprep.subr.mxu0 0.0
    %346 = vmatpush1.msra.mxu0 0.0
    %347 = vmatprep.subr.mxu0 0.0
    %348 = vmatpush1.msra.mxu0 0.0
    %349 = vmatprep.subr.mxu0 0.0
    %350 = vmatpush1.msra.mxu0 0.0
    %351 = vmatprep.mubr.f32.mxu0 0.0
    %352 = vmatmul.mubr.f32.gmra.mrb[0].mxu0 %v285
    %v353 = vpop.f32.mrb[0].mxu0
    %v354 = vadd.f32 0.0, %v353
    %v355 = vpop.f32.mrb[0].mxu0
    %356 = vdwg.mxu0
    %v357 = vadd.f32 %v278, %v354
    %v358 = vxor.u32 %v357, 2147483648
    %v359 = vmul.f32 %v358, 1.442695
    %v360 = vpow.pop %v359
    %v361 = vadd.f32 %v360, 1.0
    %v362 = vrcp.pop %v361
    %v363 = vmul.f32 1.0, %v362
    %v364 = vtanh.pop %v357
    %366 = vrot.lane.b32.xlu0 %v271, 32
    %v367 = vpop.permute.xlu0 %366
    %v369 = vmul.f32 %v363, %v367
    %371 = vrot.lane.b32.xlu0 %v364, 64
    %v372 = vpop.permute.xlu0 %371
    %v374 = vmul.f32 %v363, %v372
    %376 = vrot.lane.b32.xlu0 %v374, 32
    %v377 = vpop.permute.xlu0 %376
    %v379 = vadd.f32 %v369, %v377
    %v380 = vtanh.pop %v379
    %382 = vrot.lane.b32.xlu0 %v380, 64
    %v383 = vpop.permute.xlu0 %382
    %v385 = vmul.f32 %v363, %v383
    %v386 = vld [vmem:[#allocation2 + $0x8] sm:$0xff]
    %388 = vrot.lane.b32.xlu0 %v385, 32
    %v389 = vpop.permute.xlu0 %388
    %v390 = vsel %vm283, %v389, 0
    %392 = vmatprep.subr.mxu0 0.0
    %393 = vmatpush1.msra.mxu0 %v279
    %394 = vmatprep.subr.mxu0 0.0
    %395 = vmatpush1.msra.mxu0 %v280
    %396 = vmatprep.subr.mxu0 0.0
    %397 = vmatpush1.msra.mxu0 %v281
    %398 = vmatprep.subr.mxu0 0.0
    %399 = vmatpush1.msra.mxu0 %v282
    %400 = vmatprep.subr.mxu0 0.0
    %401 = vmatpush1.msra.mxu0 0.0
    %402 = vmatprep.subr.mxu0 0.0
    %403 = vmatpush1.msra.mxu0 0.0
    %404 = vmatprep.subr.mxu0 0.0
    %405 = vmatpush1.msra.mxu0 0.0
    %406 = vmatprep.subr.mxu0 0.0
    %407 = vmatpush1.msra.mxu0 0.0
    %408 = vmatprep.subr.mxu0 0.0
    %409 = vmatpush1.msra.mxu0 0.0
    %410 = vmatprep.subr.mxu0 0.0
    %411 = vmatpush1.msra.mxu0 0.0
    %412 = vmatprep.subr.mxu0 0.0
    %413 = vmatpush1.msra.mxu0 0.0
    %414 = vmatprep.subr.mxu0 0.0
    %415 = vmatpush1.msra.mxu0 0.0
    %416 = vmatprep.subr.mxu0 0.0
    %417 = vmatpush1.msra.mxu0 0.0
    %418 = vmatprep.subr.mxu0 0.0
    %419 = vmatpush1.msra.mxu0 0.0
    %420 = vmatprep.subr.mxu0 0.0
    %421 = vmatpush1.msra.mxu0 0.0
    %422 = vmatprep.subr.mxu0 0.0
    %423 = vmatpush1.msra.mxu0 0.0
    %424 = vmatprep.subr.mxu0 0.0
    %425 = vmatpush1.msra.mxu0 0.0
    %426 = vmatprep.subr.mxu0 0.0
    %427 = vmatpush1.msra.mxu0 0.0
    %428 = vmatprep.subr.mxu0 0.0
    %429 = vmatpush1.msra.mxu0 0.0
    %430 = vmatprep.subr.mxu0 0.0
    %431 = vmatpush1.msra.mxu0 0.0
    %432 = vmatprep.subr.mxu0 0.0
    %433 = vmatpush1.msra.mxu0 0.0
    %434 = vmatprep.subr.mxu0 0.0
    %435 = vmatpush1.msra.mxu0 0.0
    %436 = vmatprep.subr.mxu0 0.0
    %437 = vmatpush1.msra.mxu0 0.0
    %438 = vmatprep.subr.mxu0 0.0
    %439 = vmatpush1.msra.mxu0 0.0
    %440 = vmatprep.subr.mxu0 0.0
    %441 = vmatpush1.msra.mxu0 0.0
    %442 = vmatprep.subr.mxu0 0.0
    %443 = vmatpush1.msra.mxu0 0.0
    %444 = vmatprep.subr.mxu0 0.0
    %445 = vmatpush1.msra.mxu0 0.0
    %446 = vmatprep.subr.mxu0 0.0
    %447 = vmatpush1.msra.mxu0 0.0
    %448 = vmatprep.subr.mxu0 0.0
    %449 = vmatpush1.msra.mxu0 0.0
    %450 = vmatprep.subr.mxu0 0.0
    %451 = vmatpush1.msra.mxu0 0.0
    %452 = vmatprep.subr.mxu0 0.0
    %453 = vmatpush1.msra.mxu0 0.0
    %454 = vmatprep.subr.mxu0 0.0
    %455 = vmatpush1.msra.mxu0 0.0
    %456 = vmatprep.mubr.f32.mxu0 0.0
    %457 = vmatmul.mubr.f32.gmra.mrb[0].mxu0 %v390
    %v458 = vpop.f32.mrb[0].mxu0
    %v459 = vadd.f32 0.0, %v458
    %v460 = vpop.f32.mrb[0].mxu0
    %461 = vdwg.mxu0
    %v462 = vadd.f32 %v386, %v459
    %v463 = vxor.u32 %v462, 2147483648
    %v464 = vmul.f32 %v463, 1.442695
    %v465 = vpow.pop %v464
    %v466 = vadd.f32 %v465, 1.0
    %v467 = vrcp.pop %v466
    %v468 = vmul.f32 1.0, %v467
    %v469 = vtanh.pop %v462
    %v470 = vmul.f32 %v468, %v379
    %472 = vrot.lane.b32.xlu0 %v469, 64
    %v473 = vpop.permute.xlu0 %472
    %v475 = vmul.f32 %v468, %v473
    %477 = vrot.lane.b32.xlu0 %v475, 32
    %v478 = vpop.permute.xlu0 %477
    %v480 = vadd.f32 %v470, %v478
    %v481 = vtanh.pop %v480
    %483 = vrot.lane.b32.xlu0 %v481, 64
    %v484 = vpop.permute.xlu0 %483
    %v486 = vmul.f32 %v468, %v484
    %v487 = vld [vmem:[%s2] sm:$0xff]
    %v488 = vld [vmem:[%s2 + $0x8] sm:$0xff]
    %v489 = vld [vmem:[%s2 + $0x10] sm:$0xff]
    %v490 = vld [vmem:[%s2 + $0x18] sm:$0xff]
    %s491 = scalar_lea.vmem [#allocation7], 32
    %v492 = vld [vmem:[%s491] sm:$0xff]
    %v493 = vld [vmem:[%s491 + $0x8] sm:$0xff]
    %v494 = vld [vmem:[%s491 + $0x10] sm:$0xff]
    %v495 = vld [vmem:[%s491 + $0x18] sm:$0xff]
    %v497 = vsel %vm283, %v266, 0
    %499 = vmatprep.subr.mxu0 0.0
    %500 = vmatpush1.msra.mxu0 %v492
    %501 = vmatprep.subr.mxu0 0.0
    %502 = vmatpush1.msra.mxu0 %v493
    %503 = vmatprep.subr.mxu0 0.0
    %504 = vmatpush1.msra.mxu0 %v494
    %505 = vmatprep.subr.mxu0 0.0
    %506 = vmatpush1.msra.mxu0 %v495
    %507 = vmatprep.subr.mxu0 0.0
    %508 = vmatpush1.msra.mxu0 0.0
    %509 = vmatprep.subr.mxu0 0.0
    %510 = vmatpush1.msra.mxu0 0.0
    %511 = vmatprep.subr.mxu0 0.0
    %512 = vmatpush1.msra.mxu0 0.0
    %513 = vmatprep.subr.mxu0 0.0
    %514 = vmatpush1.msra.mxu0 0.0
    %515 = vmatprep.subr.mxu0 0.0
    %516 = vmatpush1.msra.mxu0 0.0
    %517 = vmatprep.subr.mxu0 0.0
    %518 = vmatpush1.msra.mxu0 0.0
    %519 = vmatprep.subr.mxu0 0.0
    %520 = vmatpush1.msra.mxu0 0.0
    %521 = vmatprep.subr.mxu0 0.0
    %522 = vmatpush1.msra.mxu0 0.0
    %523 = vmatprep.subr.mxu0 0.0
    %524 = vmatpush1.msra.mxu0 0.0
    %525 = vmatprep.subr.mxu0 0.0
    %526 = vmatpush1.msra.mxu0 0.0
    %527 = vmatprep.subr.mxu0 0.0
    %528 = vmatpush1.msra.mxu0 0.0
    %529 = vmatprep.subr.mxu0 0.0
    %530 = vmatpush1.msra.mxu0 0.0
    %531 = vmatprep.subr.mxu0 0.0
    %532 = vmatpush1.msra.mxu0 0.0
    %533 = vmatprep.subr.mxu0 0.0
    %534 = vmatpush1.msra.mxu0 0.0
    %535 = vmatprep.subr.mxu0 0.0
    %536 = vmatpush1.msra.mxu0 0.0
    %537 = vmatprep.subr.mxu0 0.0
    %538 = vmatpush1.msra.mxu0 0.0
    %539 = vmatprep.subr.mxu0 0.0
    %540 = vmatpush1.msra.mxu0 0.0
    %541 = vmatprep.subr.mxu0 0.0
    %542 = vmatpush1.msra.mxu0 0.0
    %543 = vmatprep.subr.mxu0 0.0
    %544 = vmatpush1.msra.mxu0 0.0
    %545 = vmatprep.subr.mxu0 0.0
    %546 = vmatpush1.msra.mxu0 0.0
    %547 = vmatprep.subr.mxu0 0.0
    %548 = vmatpush1.msra.mxu0 0.0
    %549 = vmatprep.subr.mxu0 0.0
    %550 = vmatpush1.msra.mxu0 0.0
    %551 = vmatprep.subr.mxu0 0.0
    %552 = vmatpush1.msra.mxu0 0.0
    %553 = vmatprep.subr.mxu0 0.0
    %554 = vmatpush1.msra.mxu0 0.0
    %555 = vmatprep.subr.mxu0 0.0
    %556 = vmatpush1.msra.mxu0 0.0
    %557 = vmatprep.subr.mxu0 0.0
    %558 = vmatpush1.msra.mxu0 0.0
    %559 = vmatprep.subr.mxu0 0.0
    %560 = vmatpush1.msra.mxu0 0.0
    %561 = vmatprep.subr.mxu0 0.0
    %562 = vmatpush1.msra.mxu0 0.0
    %563 = vmatprep.mubr.f32.mxu0 0.0
    %564 = vmatmul.mubr.f32.gmra.mrb[0].mxu0 %v497
    %v565 = vpop.f32.mrb[0].mxu0
    %v566 = vadd.f32 0.0, %v565
    %v567 = vpop.f32.mrb[0].mxu0
    %568 = vdwg.mxu0
    %569 = vmatprep.subr.mxu0 0.0
    %570 = vmatpush1.msra.mxu0 %v487
    %571 = vmatprep.subr.mxu0 0.0
    %572 = vmatpush1.msra.mxu0 %v488
    %573 = vmatprep.subr.mxu0 0.0
    %574 = vmatpush1.msra.mxu0 %v489
    %575 = vmatprep.subr.mxu0 0.0
    %576 = vmatpush1.msra.mxu0 %v490
    %577 = vmatprep.subr.mxu0 0.0
    %578 = vmatpush1.msra.mxu0 0.0
    %579 = vmatprep.subr.mxu0 0.0
    %580 = vmatpush1.msra.mxu0 0.0
    %581 = vmatprep.subr.mxu0 0.0
    %582 = vmatpush1.msra.mxu0 0.0
    %583 = vmatprep.subr.mxu0 0.0
    %584 = vmatpush1.msra.mxu0 0.0
    %585 = vmatprep.subr.mxu0 0.0
    %586 = vmatpush1.msra.mxu0 0.0
    %587 = vmatprep.subr.mxu0 0.0
    %588 = vmatpush1.msra.mxu0 0.0
    %589 = vmatprep.subr.mxu0 0.0
    %590 = vmatpush1.msra.mxu0 0.0
    %591 = vmatprep.subr.mxu0 0.0
    %592 = vmatpush1.msra.mxu0 0.0
    %593 = vmatprep.subr.mxu0 0.0
    %594 = vmatpush1.msra.mxu0 0.0
    %595 = vmatprep.subr.mxu0 0.0
    %596 = vmatpush1.msra.mxu0 0.0
    %597 = vmatprep.subr.mxu0 0.0
    %598 = vmatpush1.msra.mxu0 0.0
    %599 = vmatprep.subr.mxu0 0.0
    %600 = vmatpush1.msra.mxu0 0.0
    %601 = vmatprep.subr.mxu0 0.0
    %602 = vmatpush1.msra.mxu0 0.0
    %603 = vmatprep.subr.mxu0 0.0
    %604 = vmatpush1.msra.mxu0 0.0
    %605 = vmatprep.subr.mxu0 0.0
    %606 = vmatpush1.msra.mxu0 0.0
    %607 = vmatprep.subr.mxu0 0.0
    %608 = vmatpush1.msra.mxu0 0.0
    %609 = vmatprep.subr.mxu0 0.0
    %610 = vmatpush1.msra.mxu0 0.0
    %611 = vmatprep.subr.mxu0 0.0
    %612 = vmatpush1.msra.mxu0 0.0
    %613 = vmatprep.subr.mxu0 0.0
    %614 = vmatpush1.msra.mxu0 0.0
    %615 = vmatprep.subr.mxu0 0.0
    %616 = vmatpush1.msra.mxu0 0.0
    %617 = vmatprep.subr.mxu0 0.0
    %618 = vmatpush1.msra.mxu0 0.0
    %619 = vmatprep.subr.mxu0 0.0
    %620 = vmatpush1.msra.mxu0 0.0
    %621 = vmatprep.subr.mxu0 0.0
    %622 = vmatpush1.msra.mxu0 0.0
    %623 = vmatprep.subr.mxu0 0.0
    %624 = vmatpush1.msra.mxu0 0.0
    %625 = vmatprep.subr.mxu0 0.0
    %626 = vmatpush1.msra.mxu0 0.0
    %627 = vmatprep.subr.mxu0 0.0
    %628 = vmatpush1.msra.mxu0 0.0
    %629 = vmatprep.subr.mxu0 0.0
    %630 = vmatpush1.msra.mxu0 0.0
    %631 = vmatprep.subr.mxu0 0.0
    %632 = vmatpush1.msra.mxu0 0.0
    %633 = vmatprep.mubr.f32.mxu0 0.0
    %634 = vmatmul.mubr.f32.gmra.mrb[0].mxu0 %v390
    %v635 = vpop.f32.mrb[0].mxu0
    %v636 = vadd.f32 %v566, %v635
    %v637 = vpop.f32.mrb[0].mxu0
    %638 = vdwg.mxu0
    %s639 = scalar_lea.vmem [#allocation9], 1
    %v640 = vld [vmem:[%s639] sm:$0x1]
    %v642 = vlaneseq
    %v643 = vshrl.u32 %v642, 7
    %v644 = vsub.s32 0, %v643
    %v645 = vrot.slane %v640, %v644
    %v647 = vadd.f32 %v636, %v645
    %v648 = vxor.u32 %v647, 2147483648
    %v649 = vmul.f32 %v648, 1.442695
    %v650 = vpow.pop %v649
    %v651 = vadd.f32 %v650, 1.0
    %v652 = vrcp.pop %v651
    %v653 = vmul.f32 1.0, %v652
    %v654 = vtanh.pop %v647
    %656 = vrot.lane.b32.xlu0 %v273, 32
    %v657 = vpop.permute.xlu0 %656
    %v659 = vmul.f32 %v653, %v657
    %661 = vrot.lane.b32.xlu0 %v654, 64
    %v662 = vpop.permute.xlu0 %661
    %v664 = vmul.f32 %v653, %v662
    %666 = vrot.lane.b32.xlu0 %v664, 32
    %v667 = vpop.permute.xlu0 %666
    %v669 = vadd.f32 %v659, %v667
    %v670 = vtanh.pop %v669
    %672 = vrot.lane.b32.xlu0 %v670, 64
    %v673 = vpop.permute.xlu0 %672
    %v675 = vmul.f32 %v653, %v673
    %v676 = vld [vmem:[#allocation2 + $0x10] sm:$0xff]
    %678 = vrot.lane.b32.xlu0 %v486, 32
    %v679 = vpop.permute.xlu0 %678
    %v680 = vsel %vm283, %v679, 0
    %682 = vmatprep.subr.mxu0 0.0
    %683 = vmatpush1.msra.mxu0 %v279
    %684 = vmatprep.subr.mxu0 0.0
    %685 = vmatpush1.msra.mxu0 %v280
    %686 = vmatprep.subr.mxu0 0.0
    %687 = vmatpush1.msra.mxu0 %v281
    %688 = vmatprep.subr.mxu0 0.0
    %689 = vmatpush1.msra.mxu0 %v282
    %690 = vmatprep.subr.mxu0 0.0
    %691 = vmatpush1.msra.mxu0 0.0
    %692 = vmatprep.subr.mxu0 0.0
    %693 = vmatpush1.msra.mxu0 0.0
    %694 = vmatprep.subr.mxu0 0.0
    %695 = vmatpush1.msra.mxu0 0.0
    %696 = vmatprep.subr.mxu0 0.0
    %697 = vmatpush1.msra.mxu0 0.0
    %698 = vmatprep.subr.mxu0 0.0
    %699 = vmatpush1.msra.mxu0 0.0
    %700 = vmatprep.subr.mxu0 0.0
    %701 = vmatpush1.msra.mxu0 0.0
    %702 = vmatprep.subr.mxu0 0.0
    %703 = vmatpush1.msra.mxu0 0.0
    %704 = vmatprep.subr.mxu0 0.0
    %705 = vmatpush1.msra.mxu0 0.0
    %706 = vmatprep.subr.mxu0 0.0
    %707 = vmatpush1.msra.mxu0 0.0
    %708 = vmatprep.subr.mxu0 0.0
    %709 = vmatpush1.msra.mxu0 0.0
    %710 = vmatprep.subr.mxu0 0.0
    %711 = vmatpush1.msra.mxu0 0.0
    %712 = vmatprep.subr.mxu0 0.0
    %713 = vmatpush1.msra.mxu0 0.0
    %714 = vmatprep.subr.mxu0 0.0
    %715 = vmatpush1.msra.mxu0 0.0
    %716 = vmatprep.subr.mxu0 0.0
    %717 = vmatpush1.msra.mxu0 0.0
    %718 = vmatprep.subr.mxu0 0.0
    %719 = vmatpush1.msra.mxu0 0.0
    %720 = vmatprep.subr.mxu0 0.0
    %721 = vmatpush1.msra.mxu0 0.0
    %722 = vmatprep.subr.mxu0 0.0
    %723 = vmatpush1.msra.mxu0 0.0
    %724 = vmatprep.subr.mxu0 0.0
    %725 = vmatpush1.msra.mxu0 0.0
    %726 = vmatprep.subr.mxu0 0.0
    %727 = vmatpush1.msra.mxu0 0.0
    %728 = vmatprep.subr.mxu0 0.0
    %729 = vmatpush1.msra.mxu0 0.0
    %730 = vmatprep.subr.mxu0 0.0
    %731 = vmatpush1.msra.mxu0 0.0
    %732 = vmatprep.subr.mxu0 0.0
    %733 = vmatpush1.msra.mxu0 0.0
    %734 = vmatprep.subr.mxu0 0.0
    %735 = vmatpush1.msra.mxu0 0.0
    %736 = vmatprep.subr.mxu0 0.0
    %737 = vmatpush1.msra.mxu0 0.0
    %738 = vmatprep.subr.mxu0 0.0
    %739 = vmatpush1.msra.mxu0 0.0
    %740 = vmatprep.subr.mxu0 0.0
    %741 = vmatpush1.msra.mxu0 0.0
    %742 = vmatprep.subr.mxu0 0.0
    %743 = vmatpush1.msra.mxu0 0.0
    %744 = vmatprep.subr.mxu0 0.0
    %745 = vmatpush1.msra.mxu0 0.0
    %746 = vmatprep.mubr.f32.mxu0 0.0
    %747 = vmatmul.mubr.f32.gmra.mrb[0].mxu0 %v680
    %v748 = vpop.f32.mrb[0].mxu0
    %v749 = vadd.f32 0.0, %v748
    %v750 = vpop.f32.mrb[0].mxu0
    %751 = vdwg.mxu0
    %v752 = vadd.f32 %v676, %v749
    %v753 = vxor.u32 %v752, 2147483648
    %v754 = vmul.f32 %v753, 1.442695
    %v755 = vpow.pop %v754
    %v756 = vadd.f32 %v755, 1.0
    %v757 = vrcp.pop %v756
    %v758 = vmul.f32 1.0, %v757
    %v759 = vtanh.pop %v752
    %v760 = vmul.f32 %v758, %v480
    %762 = vrot.lane.b32.xlu0 %v759, 64
    %v763 = vpop.permute.xlu0 %762
    %v765 = vmul.f32 %v758, %v763
    %767 = vrot.lane.b32.xlu0 %v765, 32
    %v768 = vpop.permute.xlu0 %767
    %v770 = vadd.f32 %v760, %v768
    %v771 = vtanh.pop %v770
    %773 = vrot.lane.b32.xlu0 %v771, 64
    %v774 = vpop.permute.xlu0 %773
    %v776 = vmul.f32 %v758, %v774
    %778 = vrot.lane.b32.xlu0 %v675, 32
    %v779 = vpop.permute.xlu0 %778
    %v780 = vsel %vm283, %v779, 0
    %782 = vmatprep.subr.mxu0 0.0
    %783 = vmatpush1.msra.mxu0 %v492
    %784 = vmatprep.subr.mxu0 0.0
    %785 = vmatpush1.msra.mxu0 %v493
    %786 = vmatprep.subr.mxu0 0.0
    %787 = vmatpush1.msra.mxu0 %v494
    %788 = vmatprep.subr.mxu0 0.0
    %789 = vmatpush1.msra.mxu0 %v495
    %790 = vmatprep.subr.mxu0 0.0
    %791 = vmatpush1.msra.mxu0 0.0
    %792 = vmatprep.subr.mxu0 0.0
    %793 = vmatpush1.msra.mxu0 0.0
    %794 = vmatprep.subr.mxu0 0.0
    %795 = vmatpush1.msra.mxu0 0.0
    %796 = vmatprep.subr.mxu0 0.0
    %797 = vmatpush1.msra.mxu0 0.0
    %798 = vmatprep.subr.mxu0 0.0
    %799 = vmatpush1.msra.mxu0 0.0
    %800 = vmatprep.subr.mxu0 0.0
    %801 = vmatpush1.msra.mxu0 0.0
    %802 = vmatprep.subr.mxu0 0.0
    %803 = vmatpush1.msra.mxu0 0.0
    %804 = vmatprep.subr.mxu0 0.0
    %805 = vmatpush1.msra.mxu0 0.0
    %806 = vmatprep.subr.mxu0 0.0
    %807 = vmatpush1.msra.mxu0 0.0
    %808 = vmatprep.subr.mxu0 0.0
    %809 = vmatpush1.msra.mxu0 0.0
    %810 = vmatprep.subr.mxu0 0.0
    %811 = vmatpush1.msra.mxu0 0.0
    %812 = vmatprep.subr.mxu0 0.0
    %813 = vmatpush1.msra.mxu0 0.0
    %814 = vmatprep.subr.mxu0 0.0
    %815 = vmatpush1.msra.mxu0 0.0
    %816 = vmatprep.subr.mxu0 0.0
    %817 = vmatpush1.msra.mxu0 0.0
    %818 = vmatprep.subr.mxu0 0.0
    %819 = vmatpush1.msra.mxu0 0.0
    %820 = vmatprep.subr.mxu0 0.0
    %821 = vmatpush1.msra.mxu0 0.0
    %822 = vmatprep.subr.mxu0 0.0
    %823 = vmatpush1.msra.mxu0 0.0
    %824 = vmatprep.subr.mxu0 0.0
    %825 = vmatpush1.msra.mxu0 0.0
    %826 = vmatprep.subr.mxu0 0.0
    %827 = vmatpush1.msra.mxu0 0.0
    %828 = vmatprep.subr.mxu0 0.0
    %829 = vmatpush1.msra.mxu0 0.0
    %830 = vmatprep.subr.mxu0 0.0
    %831 = vmatpush1.msra.mxu0 0.0
    %832 = vmatprep.subr.mxu0 0.0
    %833 = vmatpush1.msra.mxu0 0.0
    %834 = vmatprep.subr.mxu0 0.0
    %835 = vmatpush1.msra.mxu0 0.0
    %836 = vmatprep.subr.mxu0 0.0
    %837 = vmatpush1.msra.mxu0 0.0
    %838 = vmatprep.subr.mxu0 0.0
    %839 = vmatpush1.msra.mxu0 0.0
    %840 = vmatprep.subr.mxu0 0.0
    %841 = vmatpush1.msra.mxu0 0.0
    %842 = vmatprep.subr.mxu0 0.0
    %843 = vmatpush1.msra.mxu0 0.0
    %844 = vmatprep.subr.mxu0 0.0
    %845 = vmatpush1.msra.mxu0 0.0
    %846 = vmatprep.mubr.f32.mxu0 0.0
    %847 = vmatmul.mubr.f32.gmra.mrb[0].mxu0 %v780
    %v848 = vpop.f32.mrb[0].mxu0
    %v849 = vadd.f32 0.0, %v848
    %v850 = vpop.f32.mrb[0].mxu0
    %851 = vdwg.mxu0
    %852 = vmatprep.subr.mxu0 0.0
    %853 = vmatpush1.msra.mxu0 %v487
    %854 = vmatprep.subr.mxu0 0.0
    %855 = vmatpush1.msra.mxu0 %v488
    %856 = vmatprep.subr.mxu0 0.0
    %857 = vmatpush1.msra.mxu0 %v489
    %858 = vmatprep.subr.mxu0 0.0
    %859 = vmatpush1.msra.mxu0 %v490
    %860 = vmatprep.subr.mxu0 0.0
    %861 = vmatpush1.msra.mxu0 0.0
    %862 = vmatprep.subr.mxu0 0.0
    %863 = vmatpush1.msra.mxu0 0.0
    %864 = vmatprep.subr.mxu0 0.0
    %865 = vmatpush1.msra.mxu0 0.0
    %866 = vmatprep.subr.mxu0 0.0
    %867 = vmatpush1.msra.mxu0 0.0
    %868 = vmatprep.subr.mxu0 0.0
    %869 = vmatpush1.msra.mxu0 0.0
    %870 = vmatprep.subr.mxu0 0.0
    %871 = vmatpush1.msra.mxu0 0.0
    %872 = vmatprep.subr.mxu0 0.0
    %873 = vmatpush1.msra.mxu0 0.0
    %874 = vmatprep.subr.mxu0 0.0
    %875 = vmatpush1.msra.mxu0 0.0
    %876 = vmatprep.subr.mxu0 0.0
    %877 = vmatpush1.msra.mxu0 0.0
    %878 = vmatprep.subr.mxu0 0.0
    %879 = vmatpush1.msra.mxu0 0.0
    %880 = vmatprep.subr.mxu0 0.0
    %881 = vmatpush1.msra.mxu0 0.0
    %882 = vmatprep.subr.mxu0 0.0
    %883 = vmatpush1.msra.mxu0 0.0
    %884 = vmatprep.subr.mxu0 0.0
    %885 = vmatpush1.msra.mxu0 0.0
    %886 = vmatprep.subr.mxu0 0.0
    %887 = vmatpush1.msra.mxu0 0.0
    %888 = vmatprep.subr.mxu0 0.0
    %889 = vmatpush1.msra.mxu0 0.0
    %890 = vmatprep.subr.mxu0 0.0
    %891 = vmatpush1.msra.mxu0 0.0
    %892 = vmatprep.subr.mxu0 0.0
    %893 = vmatpush1.msra.mxu0 0.0
    %894 = vmatprep.subr.mxu0 0.0
    %895 = vmatpush1.msra.mxu0 0.0
    %896 = vmatprep.subr.mxu0 0.0
    %897 = vmatpush1.msra.mxu0 0.0
    %898 = vmatprep.subr.mxu0 0.0
    %899 = vmatpush1.msra.mxu0 0.0
    %900 = vmatprep.subr.mxu0 0.0
    %901 = vmatpush1.msra.mxu0 0.0
    %902 = vmatprep.subr.mxu0 0.0
    %903 = vmatpush1.msra.mxu0 0.0
    %904 = vmatprep.subr.mxu0 0.0
    %905 = vmatpush1.msra.mxu0 0.0
    %906 = vmatprep.subr.mxu0 0.0
    %907 = vmatpush1.msra.mxu0 0.0
    %908 = vmatprep.subr.mxu0 0.0
    %909 = vmatpush1.msra.mxu0 0.0
    %910 = vmatprep.subr.mxu0 0.0
    %911 = vmatpush1.msra.mxu0 0.0
    %912 = vmatprep.subr.mxu0 0.0
    %913 = vmatpush1.msra.mxu0 0.0
    %914 = vmatprep.subr.mxu0 0.0
    %915 = vmatpush1.msra.mxu0 0.0
    %916 = vmatprep.mubr.f32.mxu0 0.0
    %917 = vmatmul.mubr.f32.gmra.mrb[0].mxu0 %v680
    %v918 = vpop.f32.mrb[0].mxu0
    %v919 = vadd.f32 %v849, %v918
    %v920 = vpop.f32.mrb[0].mxu0
    %921 = vdwg.mxu0
    %v922 = vadd.f32 %v919, %v645
    %v923 = vxor.u32 %v922, 2147483648
    %v924 = vmul.f32 %v923, 1.442695
    %v925 = vpow.pop %v924
    %v926 = vadd.f32 %v925, 1.0
    %v927 = vrcp.pop %v926
    %v928 = vmul.f32 1.0, %v927
    %v929 = vtanh.pop %v922
    %v930 = vmul.f32 %v928, %v669
    %932 = vrot.lane.b32.xlu0 %v929, 64
    %v933 = vpop.permute.xlu0 %932
    %v935 = vmul.f32 %v928, %v933
    %937 = vrot.lane.b32.xlu0 %v935, 32
    %v938 = vpop.permute.xlu0 %937
    %v940 = vadd.f32 %v930, %v938
    %v941 = vtanh.pop %v940
    %943 = vrot.lane.b32.xlu0 %v941, 64
    %v944 = vpop.permute.xlu0 %943
    %v946 = vmul.f32 %v928, %v944
    %s947 = scalar_lea.vmem %s2, 32
    %v948 = vld [vmem:[%s947] sm:$0xff]
    %v949 = vld [vmem:[%s947 + $0x8] sm:$0xff]
    %v950 = vld [vmem:[%s947 + $0x10] sm:$0xff]
    %v951 = vld [vmem:[%s947 + $0x18] sm:$0xff]
    %s952 = scalar_lea.vmem [#allocation7], 64
    %v953 = vld [vmem:[%s952] sm:$0xff]
    %v954 = vld [vmem:[%s952 + $0x8] sm:$0xff]
    %v955 = vld [vmem:[%s952 + $0x10] sm:$0xff]
    %v956 = vld [vmem:[%s952 + $0x18] sm:$0xff]
    %v958 = vsel %vm283, %v268, 0
    %960 = vmatprep.subr.mxu0 0.0
    %961 = vmatpush1.msra.mxu0 %v953
    %962 = vmatprep.subr.mxu0 0.0
    %963 = vmatpush1.msra.mxu0 %v954
    %964 = vmatprep.subr.mxu0 0.0
    %965 = vmatpush1.msra.mxu0 %v955
    %966 = vmatprep.subr.mxu0 0.0
    %967 = vmatpush1.msra.mxu0 %v956
    %968 = vmatprep.subr.mxu0 0.0
    %969 = vmatpush1.msra.mxu0 0.0
    %970 = vmatprep.subr.mxu0 0.0
    %971 = vmatpush1.msra.mxu0 0.0
    %972 = vmatprep.subr.mxu0 0.0
    %973 = vmatpush1.msra.mxu0 0.0
    %974 = vmatprep.subr.mxu0 0.0
    %975 = vmatpush1.msra.mxu0 0.0
    %976 = vmatprep.subr.mxu0 0.0
    %977 = vmatpush1.msra.mxu0 0.0
    %978 = vmatprep.subr.mxu0 0.0
    %979 = vmatpush1.msra.mxu0 0.0
    %980 = vmatprep.subr.mxu0 0.0
    %981 = vmatpush1.msra.mxu0 0.0
    %982 = vmatprep.subr.mxu0 0.0
    %983 = vmatpush1.msra.mxu0 0.0
    %984 = vmatprep.subr.mxu0 0.0
    %985 = vmatpush1.msra.mxu0 0.0
    %986 = vmatprep.subr.mxu0 0.0
    %987 = vmatpush1.msra.mxu0 0.0
    %988 = vmatprep.subr.mxu0 0.0
    %989 = vmatpush1.msra.mxu0 0.0
    %990 = vmatprep.subr.mxu0 0.0
    %991 = vmatpush1.msra.mxu0 0.0
    %992 = vmatprep.subr.mxu0 0.0
    %993 = vmatpush1.msra.mxu0 0.0
    %994 = vmatprep.subr.mxu0 0.0
    %995 = vmatpush1.msra.mxu0 0.0
    %996 = vmatprep.subr.mxu0 0.0
    %997 = vmatpush1.msra.mxu0 0.0
    %998 = vmatprep.subr.mxu0 0.0
    %999 = vmatpush1.msra.mxu0 0.0
    %1000 = vmatprep.subr.mxu0 0.0
    %1001 = vmatpush1.msra.mxu0 0.0
    %1002 = vmatprep.subr.mxu0 0.0
    %1003 = vmatpush1.msra.mxu0 0.0
    %1004 = vmatprep.subr.mxu0 0.0
    %1005 = vmatpush1.msra.mxu0 0.0
    %1006 = vmatprep.subr.mxu0 0.0
    %1007 = vmatpush1.msra.mxu0 0.0
    %1008 = vmatprep.subr.mxu0 0.0
    %1009 = vmatpush1.msra.mxu0 0.0
    %1010 = vmatprep.subr.mxu0 0.0
    %1011 = vmatpush1.msra.mxu0 0.0
    %1012 = vmatprep.subr.mxu0 0.0
    %1013 = vmatpush1.msra.mxu0 0.0
    %1014 = vmatprep.subr.mxu0 0.0
    %1015 = vmatpush1.msra.mxu0 0.0
    %1016 = vmatprep.subr.mxu0 0.0
    %1017 = vmatpush1.msra.mxu0 0.0
    %1018 = vmatprep.subr.mxu0 0.0
    %1019 = vmatpush1.msra.mxu0 0.0
    %1020 = vmatprep.subr.mxu0 0.0
    %1021 = vmatpush1.msra.mxu0 0.0
    %1022 = vmatprep.subr.mxu0 0.0
    %1023 = vmatpush1.msra.mxu0 0.0
    %1024 = vmatprep.mubr.f32.mxu0 0.0
    %1025 = vmatmul.mubr.f32.gmra.mrb[0].mxu0 %v958
    %v1026 = vpop.f32.mrb[0].mxu0
    %v1027 = vadd.f32 0.0, %v1026
    %v1028 = vpop.f32.mrb[0].mxu0
    %1029 = vdwg.mxu0
    %1030 = vmatprep.subr.mxu0 0.0
    %1031 = vmatpush1.msra.mxu0 %v948
    %1032 = vmatprep.subr.mxu0 0.0
    %1033 = vmatpush1.msra.mxu0 %v949
    %1034 = vmatprep.subr.mxu0 0.0
    %1035 = vmatpush1.msra.mxu0 %v950
    %1036 = vmatprep.subr.mxu0 0.0
    %1037 = vmatpush1.msra.mxu0 %v951
    %1038 = vmatprep.subr.mxu0 0.0
    %1039 = vmatpush1.msra.mxu0 0.0
    %1040 = vmatprep.subr.mxu0 0.0
    %1041 = vmatpush1.msra.mxu0 0.0
    %1042 = vmatprep.subr.mxu0 0.0
    %1043 = vmatpush1.msra.mxu0 0.0
    %1044 = vmatprep.subr.mxu0 0.0
    %1045 = vmatpush1.msra.mxu0 0.0
    %1046 = vmatprep.subr.mxu0 0.0
    %1047 = vmatpush1.msra.mxu0 0.0
    %1048 = vmatprep.subr.mxu0 0.0
    %1049 = vmatpush1.msra.mxu0 0.0
    %1050 = vmatprep.subr.mxu0 0.0
    %1051 = vmatpush1.msra.mxu0 0.0
    %1052 = vmatprep.subr.mxu0 0.0
    %1053 = vmatpush1.msra.mxu0 0.0
    %1054 = vmatprep.subr.mxu0 0.0
    %1055 = vmatpush1.msra.mxu0 0.0
    %1056 = vmatprep.subr.mxu0 0.0
    %1057 = vmatpush1.msra.mxu0 0.0
    %1058 = vmatprep.subr.mxu0 0.0
    %1059 = vmatpush1.msra.mxu0 0.0
    %1060 = vmatprep.subr.mxu0 0.0
    %1061 = vmatpush1.msra.mxu0 0.0
    %1062 = vmatprep.subr.mxu0 0.0
    %1063 = vmatpush1.msra.mxu0 0.0
    %1064 = vmatprep.subr.mxu0 0.0
    %1065 = vmatpush1.msra.mxu0 0.0
    %1066 = vmatprep.subr.mxu0 0.0
    %1067 = vmatpush1.msra.mxu0 0.0
    %1068 = vmatprep.subr.mxu0 0.0
    %1069 = vmatpush1.msra.mxu0 0.0
    %1070 = vmatprep.subr.mxu0 0.0
    %1071 = vmatpush1.msra.mxu0 0.0
    %1072 = vmatprep.subr.mxu0 0.0
    %1073 = vmatpush1.msra.mxu0 0.0
    %1074 = vmatprep.subr.mxu0 0.0
    %1075 = vmatpush1.msra.mxu0 0.0
    %1076 = vmatprep.subr.mxu0 0.0
    %1077 = vmatpush1.msra.mxu0 0.0
    %1078 = vmatprep.subr.mxu0 0.0
    %1079 = vmatpush1.msra.mxu0 0.0
    %1080 = vmatprep.subr.mxu0 0.0
    %1081 = vmatpush1.msra.mxu0 0.0
    %1082 = vmatprep.subr.mxu0 0.0
    %1083 = vmatpush1.msra.mxu0 0.0
    %1084 = vmatprep.subr.mxu0 0.0
    %1085 = vmatpush1.msra.mxu0 0.0
    %1086 = vmatprep.subr.mxu0 0.0
    %1087 = vmatpush1.msra.mxu0 0.0
    %1088 = vmatprep.subr.mxu0 0.0
    %1089 = vmatpush1.msra.mxu0 0.0
    %1090 = vmatprep.subr.mxu0 0.0
    %1091 = vmatpush1.msra.mxu0 0.0
    %1092 = vmatprep.subr.mxu0 0.0
    %1093 = vmatpush1.msra.mxu0 0.0
    %1094 = vmatprep.mubr.f32.mxu0 0.0
    %1095 = vmatmul.mubr.f32.gmra.mrb[0].mxu0 %v780
    %v1096 = vpop.f32.mrb[0].mxu0
    %v1097 = vadd.f32 %v1027, %v1096
    %v1098 = vpop.f32.mrb[0].mxu0
    %1099 = vdwg.mxu0
    %s1100 = scalar_lea.vmem [#allocation9], 2
    %v1101 = vld [vmem:[%s1100] sm:$0x1]
    %v1103 = vlaneseq
    %v1104 = vshrl.u32 %v1103, 7
    %v1105 = vsub.s32 0, %v1104
    %v1106 = vrot.slane %v1101, %v1105
    %v1108 = vadd.f32 %v1097, %v1106
    %v1109 = vxor.u32 %v1108, 2147483648
    %v1110 = vmul.f32 %v1109, 1.442695
    %v1111 = vpow.pop %v1110
    %v1112 = vadd.f32 %v1111, 1.0
    %v1113 = vrcp.pop %v1112
    %v1114 = vmul.f32 1.0, %v1113
    %v1115 = vtanh.pop %v1108
    %1117 = vrot.lane.b32.xlu0 %v275, 32
    %v1118 = vpop.permute.xlu0 %1117
    %v1120 = vmul.f32 %v1114, %v1118
    %1122 = vrot.lane.b32.xlu0 %v1115, 64
    %v1123 = vpop.permute.xlu0 %1122
    %v1125 = vmul.f32 %v1114, %v1123
    %1127 = vrot.lane.b32.xlu0 %v1125, 32
    %v1128 = vpop.permute.xlu0 %1127
    %v1130 = vadd.f32 %v1120, %v1128
    %v1131 = vtanh.pop %v1130
    %1133 = vrot.lane.b32.xlu0 %v1131, 64
    %v1134 = vpop.permute.xlu0 %1133
    %v1136 = vmul.f32 %v1114, %v1134
    %v1137 = vld [vmem:[#allocation2 + $0x18] sm:$0xff]
    %1139 = vrot.lane.b32.xlu0 %v776, 32
    %v1140 = vpop.permute.xlu0 %1139
    %v1141 = vsel %vm283, %v1140, 0
    %1143 = vmatprep.subr.mxu0 0.0
    %1144 = vmatpush1.msra.mxu0 %v279
    %1145 = vmatprep.subr.mxu0 0.0
    %1146 = vmatpush1.msra.mxu0 %v280
    %1147 = vmatprep.subr.mxu0 0.0
    %1148 = vmatpush1.msra.mxu0 %v281
    %1149 = vmatprep.subr.mxu0 0.0
    %1150 = vmatpush1.msra.mxu0 %v282
    %1151 = vmatprep.subr.mxu0 0.0
    %1152 = vmatpush1.msra.mxu0 0.0
    %1153 = vmatprep.subr.mxu0 0.0
    %1154 = vmatpush1.msra.mxu0 0.0
    %1155 = vmatprep.subr.mxu0 0.0
    %1156 = vmatpush1.msra.mxu0 0.0
    %1157 = vmatprep.subr.mxu0 0.0
    %1158 = vmatpush1.msra.mxu0 0.0
    %1159 = vmatprep.subr.mxu0 0.0
    %1160 = vmatpush1.msra.mxu0 0.0
    %1161 = vmatprep.subr.mxu0 0.0
    %1162 = vmatpush1.msra.mxu0 0.0
    %1163 = vmatprep.subr.mxu0 0.0
    %1164 = vmatpush1.msra.mxu0 0.0
    %1165 = vmatprep.subr.mxu0 0.0
    %1166 = vmatpush1.msra.mxu0 0.0
    %1167 = vmatprep.subr.mxu0 0.0
    %1168 = vmatpush1.msra.mxu0 0.0
    %1169 = vmatprep.subr.mxu0 0.0
    %1170 = vmatpush1.msra.mxu0 0.0
    %1171 = vmatprep.subr.mxu0 0.0
    %1172 = vmatpush1.msra.mxu0 0.0
    %1173 = vmatprep.subr.mxu0 0.0
    %1174 = vmatpush1.msra.mxu0 0.0
    %1175 = vmatprep.subr.mxu0 0.0
    %1176 = vmatpush1.msra.mxu0 0.0
    %1177 = vmatprep.subr.mxu0 0.0
    %1178 = vmatpush1.msra.mxu0 0.0
    %1179 = vmatprep.subr.mxu0 0.0
    %1180 = vmatpush1.msra.mxu0 0.0
    %1181 = vmatprep.subr.mxu0 0.0
    %1182 = vmatpush1.msra.mxu0 0.0
    %1183 = vmatprep.subr.mxu0 0.0
    %1184 = vmatpush1.msra.mxu0 0.0
    %1185 = vmatprep.subr.mxu0 0.0
    %1186 = vmatpush1.msra.mxu0 0.0
    %1187 = vmatprep.subr.mxu0 0.0
    %1188 = vmatpush1.msra.mxu0 0.0
    %1189 = vmatprep.subr.mxu0 0.0
    %1190 = vmatpush1.msra.mxu0 0.0
    %1191 = vmatprep.subr.mxu0 0.0
    %1192 = vmatpush1.msra.mxu0 0.0
    %1193 = vmatprep.subr.mxu0 0.0
    %1194 = vmatpush1.msra.mxu0 0.0
    %1195 = vmatprep.subr.mxu0 0.0
    %1196 = vmatpush1.msra.mxu0 0.0
    %1197 = vmatprep.subr.mxu0 0.0
    %1198 = vmatpush1.msra.mxu0 0.0
    %1199 = vmatprep.subr.mxu0 0.0
    %1200 = vmatpush1.msra.mxu0 0.0
    %1201 = vmatprep.subr.mxu0 0.0
    %1202 = vmatpush1.msra.mxu0 0.0
    %1203 = vmatprep.subr.mxu0 0.0
    %1204 = vmatpush1.msra.mxu0 0.0
    %1205 = vmatprep.subr.mxu0 0.0
    %1206 = vmatpush1.msra.mxu0 0.0
    %1207 = vmatprep.mubr.f32.mxu0 0.0
    %1208 = vmatmul.mubr.f32.gmra.mrb[0].mxu0 %v1141
    %v1209 = vpop.f32.mrb[0].mxu0
    %v1210 = vadd.f32 0.0, %v1209
    %v1211 = vpop.f32.mrb[0].mxu0
    %1212 = vdwg.mxu0
    %v1213 = vadd.f32 %v1137, %v1210
    %v1214 = vxor.u32 %v1213, 2147483648
    %v1215 = vmul.f32 %v1214, 1.442695
    %v1216 = vpow.pop %v1215
    %v1217 = vadd.f32 %v1216, 1.0
    %v1218 = vrcp.pop %v1217
    %v1219 = vmul.f32 1.0, %v1218
    %v1220 = vtanh.pop %v1213
    %v1221 = vmul.f32 %v1219, %v770
    %1223 = vrot.lane.b32.xlu0 %v1220, 64
    %v1224 = vpop.permute.xlu0 %1223
    %v1226 = vmul.f32 %v1219, %v1224
    %1228 = vrot.lane.b32.xlu0 %v1226, 32
    %v1229 = vpop.permute.xlu0 %1228
    %v1231 = vadd.f32 %v1221, %v1229
    %v1232 = vtanh.pop %v1231
    %1234 = vrot.lane.b32.xlu0 %v1232, 64
    %v1235 = vpop.permute.xlu0 %1234
    %v1237 = vmul.f32 %v1219, %v1235
    %1239 = vrot.lane.b32.xlu0 %v946, 32
    %v1240 = vpop.permute.xlu0 %1239
    %v1241 = vsel %vm283, %v1240, 0
    %1243 = vmatprep.subr.mxu0 0.0
    %1244 = vmatpush1.msra.mxu0 %v492
    %1245 = vmatprep.subr.mxu0 0.0
    %1246 = vmatpush1.msra.mxu0 %v493
    %1247 = vmatprep.subr.mxu0 0.0
    %1248 = vmatpush1.msra.mxu0 %v494
    %1249 = vmatprep.subr.mxu0 0.0
    %1250 = vmatpush1.msra.mxu0 %v495
    %1251 = vmatprep.subr.mxu0 0.0
    %1252 = vmatpush1.msra.mxu0 0.0
    %1253 = vmatprep.subr.mxu0 0.0
    %1254 = vmatpush1.msra.mxu0 0.0
    %1255 = vmatprep.subr.mxu0 0.0
    %1256 = vmatpush1.msra.mxu0 0.0
    %1257 = vmatprep.subr.mxu0 0.0
    %1258 = vmatpush1.msra.mxu0 0.0
    %1259 = vmatprep.subr.mxu0 0.0
    %1260 = vmatpush1.msra.mxu0 0.0
    %1261 = vmatprep.subr.mxu0 0.0
    %1262 = vmatpush1.msra.mxu0 0.0
    %1263 = vmatprep.subr.mxu0 0.0
    %1264 = vmatpush1.msra.mxu0 0.0
    %1265 = vmatprep.subr.mxu0 0.0
    %1266 = vmatpush1.msra.mxu0 0.0
    %1267 = vmatprep.subr.mxu0 0.0
    %1268 = vmatpush1.msra.mxu0 0.0
    %1269 = vmatprep.subr.mxu0 0.0
    %1270 = vmatpush1.msra.mxu0 0.0
    %1271 = vmatprep.subr.mxu0 0.0
    %1272 = vmatpush1.msra.mxu0 0.0
    %1273 = vmatprep.subr.mxu0 0.0
    %1274 = vmatpush1.msra.mxu0 0.0
    %1275 = vmatprep.subr.mxu0 0.0
    %1276 = vmatpush1.msra.mxu0 0.0
    %1277 = vmatprep.subr.mxu0 0.0
    %1278 = vmatpush1.msra.mxu0 0.0
    %1279 = vmatprep.subr.mxu0 0.0
    %1280 = vmatpush1.msra.mxu0 0.0
    %1281 = vmatprep.subr.mxu0 0.0
    %1282 = vmatpush1.msra.mxu0 0.0
    %1283 = vmatprep.subr.mxu0 0.0
    %1284 = vmatpush1.msra.mxu0 0.0
    %1285 = vmatprep.subr.mxu0 0.0
    %1286 = vmatpush1.msra.mxu0 0.0
    %1287 = vmatprep.subr.mxu0 0.0
    %1288 = vmatpush1.msra.mxu0 0.0
    %1289 = vmatprep.subr.mxu0 0.0
    %1290 = vmatpush1.msra.mxu0 0.0
    %1291 = vmatprep.subr.mxu0 0.0
    %1292 = vmatpush1.msra.mxu0 0.0
    %1293 = vmatprep.subr.mxu0 0.0
    %1294 = vmatpush1.msra.mxu0 0.0
    %1295 = vmatprep.subr.mxu0 0.0
    %1296 = vmatpush1.msra.mxu0 0.0
    %1297 = vmatprep.subr.mxu0 0.0
    %1298 = vmatpush1.msra.mxu0 0.0
    %1299 = vmatprep.subr.mxu0 0.0
    %1300 = vmatpush1.msra.mxu0 0.0
    %1301 = vmatprep.subr.mxu0 0.0
    %1302 = vmatpush1.msra.mxu0 0.0
    %1303 = vmatprep.subr.mxu0 0.0
    %1304 = vmatpush1.msra.mxu0 0.0
    %1305 = vmatprep.subr.mxu0 0.0
    %1306 = vmatpush1.msra.mxu0 0.0
    %1307 = vmatprep.mubr.f32.mxu0 0.0
    %1308 = vmatmul.mubr.f32.gmra.mrb[0].mxu0 %v1241
    %v1309 = vpop.f32.mrb[0].mxu0
    %v1310 = vadd.f32 0.0, %v1309
    %v1311 = vpop.f32.mrb[0].mxu0
    %1312 = vdwg.mxu0
    %1313 = vmatprep.subr.mxu0 0.0
    %1314 = vmatpush1.msra.mxu0 %v487
    %1315 = vmatprep.subr.mxu0 0.0
    %1316 = vmatpush1.msra.mxu0 %v488
    %1317 = vmatprep.subr.mxu0 0.0
    %1318 = vmatpush1.msra.mxu0 %v489
    %1319 = vmatprep.subr.mxu0 0.0
    %1320 = vmatpush1.msra.mxu0 %v490
    %1321 = vmatprep.subr.mxu0 0.0
    %1322 = vmatpush1.msra.mxu0 0.0
    %1323 = vmatprep.subr.mxu0 0.0
    %1324 = vmatpush1.msra.mxu0 0.0
    %1325 = vmatprep.subr.mxu0 0.0
    %1326 = vmatpush1.msra.mxu0 0.0
    %1327 = vmatprep.subr.mxu0 0.0
    %1328 = vmatpush1.msra.mxu0 0.0
    %1329 = vmatprep.subr.mxu0 0.0
    %1330 = vmatpush1.msra.mxu0 0.0
    %1331 = vmatprep.subr.mxu0 0.0
    %1332 = vmatpush1.msra.mxu0 0.0
    %1333 = vmatprep.subr.mxu0 0.0
    %1334 = vmatpush1.msra.mxu0 0.0
    %1335 = vmatprep.subr.mxu0 0.0
    %1336 = vmatpush1.msra.mxu0 0.0
    %1337 = vmatprep.subr.mxu0 0.0
    %1338 = vmatpush1.msra.mxu0 0.0
    %1339 = vmatprep.subr.mxu0 0.0
    %1340 = vmatpush1.msra.mxu0 0.0
    %1341 = vmatprep.subr.mxu0 0.0
    %1342 = vmatpush1.msra.mxu0 0.0
    %1343 = vmatprep.subr.mxu0 0.0
    %1344 = vmatpush1.msra.mxu0 0.0
    %1345 = vmatprep.subr.mxu0 0.0
    %1346 = vmatpush1.msra.mxu0 0.0
    %1347 = vmatprep.subr.mxu0 0.0
    %1348 = vmatpush1.msra.mxu0 0.0
    %1349 = vmatprep.subr.mxu0 0.0
    %1350 = vmatpush1.msra.mxu0 0.0
    %1351 = vmatprep.subr.mxu0 0.0
    %1352 = vmatpush1.msra.mxu0 0.0
    %1353 = vmatprep.subr.mxu0 0.0
    %1354 = vmatpush1.msra.mxu0 0.0
    %1355 = vmatprep.subr.mxu0 0.0
    %1356 = vmatpush1.msra.mxu0 0.0
    %1357 = vmatprep.subr.mxu0 0.0
    %1358 = vmatpush1.msra.mxu0 0.0
    %1359 = vmatprep.subr.mxu0 0.0
    %1360 = vmatpush1.msra.mxu0 0.0
    %1361 = vmatprep.subr.mxu0 0.0
    %1362 = vmatpush1.msra.mxu0 0.0
    %1363 = vmatprep.subr.mxu0 0.0
    %1364 = vmatpush1.msra.mxu0 0.0
    %1365 = vmatprep.subr.mxu0 0.0
    %1366 = vmatpush1.msra.mxu0 0.0
    %1367 = vmatprep.subr.mxu0 0.0
    %1368 = vmatpush1.msra.mxu0 0.0
    %1369 = vmatprep.subr.mxu0 0.0
    %1370 = vmatpush1.msra.mxu0 0.0
    %1371 = vmatprep.subr.mxu0 0.0
    %1372 = vmatpush1.msra.mxu0 0.0
    %1373 = vmatprep.subr.mxu0 0.0
    %1374 = vmatpush1.msra.mxu0 0.0
    %1375 = vmatprep.subr.mxu0 0.0
    %1376 = vmatpush1.msra.mxu0 0.0
    %1377 = vmatprep.mubr.f32.mxu0 0.0
    %1378 = vmatmul.mubr.f32.gmra.mrb[0].mxu0 %v1141
    %v1379 = vpop.f32.mrb[0].mxu0
    %v1380 = vadd.f32 %v1310, %v1379
    %v1381 = vpop.f32.mrb[0].mxu0
    %1382 = vdwg.mxu0
    %v1383 = vadd.f32 %v1380, %v645
    %v1384 = vxor.u32 %v1383, 2147483648
    %v1385 = vmul.f32 %v1384, 1.442695
    %v1386 = vpow.pop %v1385
    %v1387 = vadd.f32 %v1386, 1.0
    %v1388 = vrcp.pop %v1387
    %v1389 = vmul.f32 1.0, %v1388
    %v1390 = vtanh.pop %v1383
    %v1391 = vmul.f32 %v1389, %v940
    %1393 = vrot.lane.b32.xlu0 %v1390, 64
    %v1394 = vpop.permute.xlu0 %1393
    %v1396 = vmul.f32 %v1389, %v1394
    %1398 = vrot.lane.b32.xlu0 %v1396, 32
    %v1399 = vpop.permute.xlu0 %1398
    %v1401 = vadd.f32 %v1391, %v1399
    %v1402 = vtanh.pop %v1401
    %1404 = vrot.lane.b32.xlu0 %v1402, 64
    %v1405 = vpop.permute.xlu0 %1404
    %v1407 = vmul.f32 %v1389, %v1405
    %1409 = vrot.lane.b32.xlu0 %v1136, 32
    %v1410 = vpop.permute.xlu0 %1409
    %v1411 = vsel %vm283, %v1410, 0
    %1413 = vmatprep.subr.mxu0 0.0
    %1414 = vmatpush1.msra.mxu0 %v953
    %1415 = vmatprep.subr.mxu0 0.0
    %1416 = vmatpush1.msra.mxu0 %v954
    %1417 = vmatprep.subr.mxu0 0.0
    %1418 = vmatpush1.msra.mxu0 %v955
    %1419 = vmatprep.subr.mxu0 0.0
    %1420 = vmatpush1.msra.mxu0 %v956
    %1421 = vmatprep.subr.mxu0 0.0
    %1422 = vmatpush1.msra.mxu0 0.0
    %1423 = vmatprep.subr.mxu0 0.0
    %1424 = vmatpush1.msra.mxu0 0.0
    %1425 = vmatprep.subr.mxu0 0.0
    %1426 = vmatpush1.msra.mxu0 0.0
    %1427 = vmatprep.subr.mxu0 0.0
    %1428 = vmatpush1.msra.mxu0 0.0
    %1429 = vmatprep.subr.mxu0 0.0
    %1430 = vmatpush1.msra.mxu0 0.0
    %1431 = vmatprep.subr.mxu0 0.0
    %1432 = vmatpush1.msra.mxu0 0.0
    %1433 = vmatprep.subr.mxu0 0.0
    %1434 = vmatpush1.msra.mxu0 0.0
    %1435 = vmatprep.subr.mxu0 0.0
    %1436 = vmatpush1.msra.mxu0 0.0
    %1437 = vmatprep.subr.mxu0 0.0
    %1438 = vmatpush1.msra.mxu0 0.0
    %1439 = vmatprep.subr.mxu0 0.0
    %1440 = vmatpush1.msra.mxu0 0.0
    %1441 = vmatprep.subr.mxu0 0.0
    %1442 = vmatpush1.msra.mxu0 0.0
    %1443 = vmatprep.subr.mxu0 0.0
    %1444 = vmatpush1.msra.mxu0 0.0
    %1445 = vmatprep.subr.mxu0 0.0
    %1446 = vmatpush1.msra.mxu0 0.0
    %1447 = vmatprep.subr.mxu0 0.0
    %1448 = vmatpush1.msra.mxu0 0.0
    %1449 = vmatprep.subr.mxu0 0.0
    %1450 = vmatpush1.msra.mxu0 0.0
    %1451 = vmatprep.subr.mxu0 0.0
    %1452 = vmatpush1.msra.mxu0 0.0
    %1453 = vmatprep.subr.mxu0 0.0
    %1454 = vmatpush1.msra.mxu0 0.0
    %1455 = vmatprep.subr.mxu0 0.0
    %1456 = vmatpush1.msra.mxu0 0.0
    %1457 = vmatprep.subr.mxu0 0.0
    %1458 = vmatpush1.msra.mxu0 0.0
    %1459 = vmatprep.subr.mxu0 0.0
    %1460 = vmatpush1.msra.mxu0 0.0
    %1461 = vmatprep.subr.mxu0 0.0
    %1462 = vmatpush1.msra.mxu0 0.0
    %1463 = vmatprep.subr.mxu0 0.0
    %1464 = vmatpush1.msra.mxu0 0.0
    %1465 = vmatprep.subr.mxu0 0.0
    %1466 = vmatpush1.msra.mxu0 0.0
    %1467 = vmatprep.subr.mxu0 0.0
    %1468 = vmatpush1.msra.mxu0 0.0
    %1469 = vmatprep.subr.mxu0 0.0
    %1470 = vmatpush1.msra.mxu0 0.0
    %1471 = vmatprep.subr.mxu0 0.0
    %1472 = vmatpush1.msra.mxu0 0.0
    %1473 = vmatprep.subr.mxu0 0.0
    %1474 = vmatpush1.msra.mxu0 0.0
    %1475 = vmatprep.subr.mxu0 0.0
    %1476 = vmatpush1.msra.mxu0 0.0
    %1477 = vmatprep.mubr.f32.mxu0 0.0
    %1478 = vmatmul.mubr.f32.gmra.mrb[0].mxu0 %v1411
    %v1479 = vpop.f32.mrb[0].mxu0
    %v1480 = vadd.f32 0.0, %v1479
    %v1481 = vpop.f32.mrb[0].mxu0
    %1482 = vdwg.mxu0
    %1483 = vmatprep.subr.mxu0 0.0
    %1484 = vmatpush1.msra.mxu0 %v948
    %1485 = vmatprep.subr.mxu0 0.0
    %1486 = vmatpush1.msra.mxu0 %v949
    %1487 = vmatprep.subr.mxu0 0.0
    %1488 = vmatpush1.msra.mxu0 %v950
    %1489 = vmatprep.subr.mxu0 0.0
    %1490 = vmatpush1.msra.mxu0 %v951
    %1491 = vmatprep.subr.mxu0 0.0
    %1492 = vmatpush1.msra.mxu0 0.0
    %1493 = vmatprep.subr.mxu0 0.0
    %1494 = vmatpush1.msra.mxu0 0.0
    %1495 = vmatprep.subr.mxu0 0.0
    %1496 = vmatpush1.msra.mxu0 0.0
    %1497 = vmatprep.subr.mxu0 0.0
    %1498 = vmatpush1.msra.mxu0 0.0
    %1499 = vmatprep.subr.mxu0 0.0
    %1500 = vmatpush1.msra.mxu0 0.0
    %1501 = vmatprep.subr.mxu0 0.0
    %1502 = vmatpush1.msra.mxu0 0.0
    %1503 = vmatprep.subr.mxu0 0.0
    %1504 = vmatpush1.msra.mxu0 0.0
    %1505 = vmatprep.subr.mxu0 0.0
    %1506 = vmatpush1.msra.mxu0 0.0
    %1507 = vmatprep.subr.mxu0 0.0
    %1508 = vmatpush1.msra.mxu0 0.0
    %1509 = vmatprep.subr.mxu0 0.0
    %1510 = vmatpush1.msra.mxu0 0.0
    %1511 = vmatprep.subr.mxu0 0.0
    %1512 = vmatpush1.msra.mxu0 0.0
    %1513 = vmatprep.subr.mxu0 0.0
    %1514 = vmatpush1.msra.mxu0 0.0
    %1515 = vmatprep.subr.mxu0 0.0
    %1516 = vmatpush1.msra.mxu0 0.0
    %1517 = vmatprep.subr.mxu0 0.0
    %1518 = vmatpush1.msra.mxu0 0.0
    %1519 = vmatprep.subr.mxu0 0.0
    %1520 = vmatpush1.msra.mxu0 0.0
    %1521 = vmatprep.subr.mxu0 0.0
    %1522 = vmatpush1.msra.mxu0 0.0
    %1523 = vmatprep.subr.mxu0 0.0
    %1524 = vmatpush1.msra.mxu0 0.0
    %1525 = vmatprep.subr.mxu0 0.0
    %1526 = vmatpush1.msra.mxu0 0.0
    %1527 = vmatprep.subr.mxu0 0.0
    %1528 = vmatpush1.msra.mxu0 0.0
    %1529 = vmatprep.subr.mxu0 0.0
    %1530 = vmatpush1.msra.mxu0 0.0
    %1531 = vmatprep.subr.mxu0 0.0
    %1532 = vmatpush1.msra.mxu0 0.0
    %1533 = vmatprep.subr.mxu0 0.0
    %1534 = vmatpush1.msra.mxu0 0.0
    %1535 = vmatprep.subr.mxu0 0.0
    %1536 = vmatpush1.msra.mxu0 0.0
    %1537 = vmatprep.subr.mxu0 0.0
    %1538 = vmatpush1.msra.mxu0 0.0
    %1539 = vmatprep.subr.mxu0 0.0
    %1540 = vmatpush1.msra.mxu0 0.0
    %1541 = vmatprep.subr.mxu0 0.0
    %1542 = vmatpush1.msra.mxu0 0.0
    %1543 = vmatprep.subr.mxu0 0.0
    %1544 = vmatpush1.msra.mxu0 0.0
    %1545 = vmatprep.subr.mxu0 0.0
    %1546 = vmatpush1.msra.mxu0 0.0
    %1547 = vmatprep.mubr.f32.mxu0 0.0
    %1548 = vmatmul.mubr.f32.gmra.mrb[0].mxu0 %v1241
    %v1549 = vpop.f32.mrb[0].mxu0
    %v1550 = vadd.f32 %v1480, %v1549
    %v1551 = vpop.f32.mrb[0].mxu0
    %1552 = vdwg.mxu0
    %v1553 = vadd.f32 %v1550, %v1106
    %v1554 = vxor.u32 %v1553, 2147483648
    %v1555 = vmul.f32 %v1554, 1.442695
    %v1556 = vpow.pop %v1555
    %v1557 = vadd.f32 %v1556, 1.0
    %v1558 = vrcp.pop %v1557
    %v1559 = vmul.f32 1.0, %v1558
    %v1560 = vtanh.pop %v1553
    %v1561 = vmul.f32 %v1559, %v1130
    %1563 = vrot.lane.b32.xlu0 %v1560, 64
    %v1564 = vpop.permute.xlu0 %1563
    %v1566 = vmul.f32 %v1559, %v1564
    %1568 = vrot.lane.b32.xlu0 %v1566, 32
    %v1569 = vpop.permute.xlu0 %1568
    %v1571 = vadd.f32 %v1561, %v1569
    %v1572 = vtanh.pop %v1571
    %1574 = vrot.lane.b32.xlu0 %v1572, 64
    %v1575 = vpop.permute.xlu0 %1574
    %v1577 = vmul.f32 %v1559, %v1575
    %s1578 = scalar_lea.vmem %s2, 64
    %v1579 = vld [vmem:[%s1578] sm:$0xff]
    %v1580 = vld [vmem:[%s1578 + $0x8] sm:$0xff]
    %v1581 = vld [vmem:[%s1578 + $0x10] sm:$0xff]
    %v1582 = vld [vmem:[%s1578 + $0x18] sm:$0xff]
    %s1583 = scalar_lea.vmem [#allocation7], 96
    %v1584 = vld [vmem:[%s1583] sm:$0xff]
    %v1585 = vld [vmem:[%s1583 + $0x8] sm:$0xff]
    %v1586 = vld [vmem:[%s1583 + $0x10] sm:$0xff]
    %v1587 = vld [vmem:[%s1583 + $0x18] sm:$0xff]
    %v1589 = vsel %vm283, %v270, 0
    %1591 = vmatprep.subr.mxu0 0.0
    %1592 = vmatpush1.msra.mxu0 %v1584
    %1593 = vmatprep.subr.mxu0 0.0
    %1594 = vmatpush1.msra.mxu0 %v1585
    %1595 = vmatprep.subr.mxu0 0.0
    %1596 = vmatpush1.msra.mxu0 %v1586
    %1597 = vmatprep.subr.mxu0 0.0
    %1598 = vmatpush1.msra.mxu0 %v1587
    %1599 = vmatprep.subr.mxu0 0.0
    %1600 = vmatpush1.msra.mxu0 0.0
    %1601 = vmatprep.subr.mxu0 0.0
    %1602 = vmatpush1.msra.mxu0 0.0
    %1603 = vmatprep.subr.mxu0 0.0
    %1604 = vmatpush1.msra.mxu0 0.0
    %1605 = vmatprep.subr.mxu0 0.0
    %1606 = vmatpush1.msra.mxu0 0.0
    %1607 = vmatprep.subr.mxu0 0.0
    %1608 = vmatpush1.msra.mxu0 0.0
    %1609 = vmatprep.subr.mxu0 0.0
    %1610 = vmatpush1.msra.mxu0 0.0
    %1611 = vmatprep.subr.mxu0 0.0
    %1612 = vmatpush1.msra.mxu0 0.0
    %1613 = vmatprep.subr.mxu0 0.0
    %1614 = vmatpush1.msra.mxu0 0.0
    %1615 = vmatprep.subr.mxu0 0.0
    %1616 = vmatpush1.msra.mxu0 0.0
    %1617 = vmatprep.subr.mxu0 0.0
    %1618 = vmatpush1.msra.mxu0 0.0
    %1619 = vmatprep.subr.mxu0 0.0
    %1620 = vmatpush1.msra.mxu0 0.0
    %1621 = vmatprep.subr.mxu0 0.0
    %1622 = vmatpush1.msra.mxu0 0.0
    %1623 = vmatprep.subr.mxu0 0.0
    %1624 = vmatpush1.msra.mxu0 0.0
    %1625 = vmatprep.subr.mxu0 0.0
    %1626 = vmatpush1.msra.mxu0 0.0
    %1627 = vmatprep.subr.mxu0 0.0
    %1628 = vmatpush1.msra.mxu0 0.0
    %1629 = vmatprep.subr.mxu0 0.0
    %1630 = vmatpush1.msra.mxu0 0.0
    %1631 = vmatprep.subr.mxu0 0.0
    %1632 = vmatpush1.msra.mxu0 0.0
    %1633 = vmatprep.subr.mxu0 0.0
    %1634 = vmatpush1.msra.mxu0 0.0
    %1635 = vmatprep.subr.mxu0 0.0
    %1636 = vmatpush1.msra.mxu0 0.0
    %1637 = vmatprep.subr.mxu0 0.0
    %1638 = vmatpush1.msra.mxu0 0.0
    %1639 = vmatprep.subr.mxu0 0.0
    %1640 = vmatpush1.msra.mxu0 0.0
    %1641 = vmatprep.subr.mxu0 0.0
    %1642 = vmatpush1.msra.mxu0 0.0
    %1643 = vmatprep.subr.mxu0 0.0
    %1644 = vmatpush1.msra.mxu0 0.0
    %1645 = vmatprep.subr.mxu0 0.0
    %1646 = vmatpush1.msra.mxu0 0.0
    %1647 = vmatprep.subr.mxu0 0.0
    %1648 = vmatpush1.msra.mxu0 0.0
    %1649 = vmatprep.subr.mxu0 0.0
    %1650 = vmatpush1.msra.mxu0 0.0
    %1651 = vmatprep.subr.mxu0 0.0
    %1652 = vmatpush1.msra.mxu0 0.0
    %1653 = vmatprep.subr.mxu0 0.0
    %1654 = vmatpush1.msra.mxu0 0.0
    %1655 = vmatprep.mubr.f32.mxu0 0.0
    %1656 = vmatmul.mubr.f32.gmra.mrb[0].mxu0 %v1589
    %v1657 = vpop.f32.mrb[0].mxu0
    %v1658 = vadd.f32 0.0, %v1657
    %v1659 = vpop.f32.mrb[0].mxu0
    %1660 = vdwg.mxu0
    %1661 = vmatprep.subr.mxu0 0.0
    %1662 = vmatpush1.msra.mxu0 %v1579
    %1663 = vmatprep.subr.mxu0 0.0
    %1664 = vmatpush1.msra.mxu0 %v1580
    %1665 = vmatprep.subr.mxu0 0.0
    %1666 = vmatpush1.msra.mxu0 %v1581
    %1667 = vmatprep.subr.mxu0 0.0
    %1668 = vmatpush1.msra.mxu0 %v1582
    %1669 = vmatprep.subr.mxu0 0.0
    %1670 = vmatpush1.msra.mxu0 0.0
    %1671 = vmatprep.subr.mxu0 0.0
    %1672 = vmatpush1.msra.mxu0 0.0
    %1673 = vmatprep.subr.mxu0 0.0
    %1674 = vmatpush1.msra.mxu0 0.0
    %1675 = vmatprep.subr.mxu0 0.0
    %1676 = vmatpush1.msra.mxu0 0.0
    %1677 = vmatprep.subr.mxu0 0.0
    %1678 = vmatpush1.msra.mxu0 0.0
    %1679 = vmatprep.subr.mxu0 0.0
    %1680 = vmatpush1.msra.mxu0 0.0
    %1681 = vmatprep.subr.mxu0 0.0
    %1682 = vmatpush1.msra.mxu0 0.0
    %1683 = vmatprep.subr.mxu0 0.0
    %1684 = vmatpush1.msra.mxu0 0.0
    %1685 = vmatprep.subr.mxu0 0.0
    %1686 = vmatpush1.msra.mxu0 0.0
    %1687 = vmatprep.subr.mxu0 0.0
    %1688 = vmatpush1.msra.mxu0 0.0
    %1689 = vmatprep.subr.mxu0 0.0
    %1690 = vmatpush1.msra.mxu0 0.0
    %1691 = vmatprep.subr.mxu0 0.0
    %1692 = vmatpush1.msra.mxu0 0.0
    %1693 = vmatprep.subr.mxu0 0.0
    %1694 = vmatpush1.msra.mxu0 0.0
    %1695 = vmatprep.subr.mxu0 0.0
    %1696 = vmatpush1.msra.mxu0 0.0
    %1697 = vmatprep.subr.mxu0 0.0
    %1698 = vmatpush1.msra.mxu0 0.0
    %1699 = vmatprep.subr.mxu0 0.0
    %1700 = vmatpush1.msra.mxu0 0.0
    %1701 = vmatprep.subr.mxu0 0.0
    %1702 = vmatpush1.msra.mxu0 0.0
    %1703 = vmatprep.subr.mxu0 0.0
    %1704 = vmatpush1.msra.mxu0 0.0
    %1705 = vmatprep.subr.mxu0 0.0
    %1706 = vmatpush1.msra.mxu0 0.0
    %1707 = vmatprep.subr.mxu0 0.0
    %1708 = vmatpush1.msra.mxu0 0.0
    %1709 = vmatprep.subr.mxu0 0.0
    %1710 = vmatpush1.msra.mxu0 0.0
    %1711 = vmatprep.subr.mxu0 0.0
    %1712 = vmatpush1.msra.mxu0 0.0
    %1713 = vmatprep.subr.mxu0 0.0
    %1714 = vmatpush1.msra.mxu0 0.0
    %1715 = vmatprep.subr.mxu0 0.0
    %1716 = vmatpush1.msra.mxu0 0.0
    %1717 = vmatprep.subr.mxu0 0.0
    %1718 = vmatpush1.msra.mxu0 0.0
    %1719 = vmatprep.subr.mxu0 0.0
    %1720 = vmatpush1.msra.mxu0 0.0
    %1721 = vmatprep.subr.mxu0 0.0
    %1722 = vmatpush1.msra.mxu0 0.0
    %1723 = vmatprep.subr.mxu0 0.0
    %1724 = vmatpush1.msra.mxu0 0.0
    %1725 = vmatprep.mubr.f32.mxu0 0.0
    %1726 = vmatmul.mubr.f32.gmra.mrb[0].mxu0 %v1411
    %v1727 = vpop.f32.mrb[0].mxu0
    %v1728 = vadd.f32 %v1658, %v1727
    %v1729 = vpop.f32.mrb[0].mxu0
    %1730 = vdwg.mxu0
    %s1731 = scalar_lea.vmem [#allocation9], 3
    %v1732 = vld [vmem:[%s1731] sm:$0x1]
    %v1734 = vlaneseq
    %v1735 = vshrl.u32 %v1734, 7
    %v1736 = vsub.s32 0, %v1735
    %v1737 = vrot.slane %v1732, %v1736
    %v1739 = vadd.f32 %v1728, %v1737
    %v1740 = vxor.u32 %v1739, 2147483648
    %v1741 = vmul.f32 %v1740, 1.442695
    %v1742 = vpow.pop %v1741
    %v1743 = vadd.f32 %v1742, 1.0
    %v1744 = vrcp.pop %v1743
    %v1745 = vmul.f32 1.0, %v1744
    %v1746 = vtanh.pop %v1739
    %1748 = vrot.lane.b32.xlu0 %v277, 32
    %v1749 = vpop.permute.xlu0 %1748
    %v1751 = vmul.f32 %v1745, %v1749
    %1753 = vrot.lane.b32.xlu0 %v1746, 64
    %v1754 = vpop.permute.xlu0 %1753
    %v1756 = vmul.f32 %v1745, %v1754
    %1758 = vrot.lane.b32.xlu0 %v1756, 32
    %v1759 = vpop.permute.xlu0 %1758
    %v1761 = vadd.f32 %v1751, %v1759
    %v1762 = vtanh.pop %v1761
    %1764 = vrot.lane.b32.xlu0 %v1762, 64
    %v1765 = vpop.permute.xlu0 %1764
    %v1767 = vmul.f32 %v1745, %v1765
    %1769 = vrot.lane.b32.xlu0 %v1767, 32
    %v1770 = vpop.permute.xlu0 %1769
    %1772 = vst.msk [vmem:[#allocation3] sm:$0xff] %vm283, %v1770
    %v1773 = vld [vmem:[#allocation2 + $0x20] sm:$0xff]
    %v1774 = vld [vmem:[#allocation7] sm:$0xff]
    %v1775 = vld [vmem:[#allocation7 + $0x8] sm:$0xff]
    %v1776 = vld [vmem:[#allocation7 + $0x10] sm:$0xff]
    %v1777 = vld [vmem:[#allocation7 + $0x18] sm:$0xff]
    %1779 = vrot.lane.b32.xlu0 %v1237, 32
    %v1780 = vpop.permute.xlu0 %1779
    %v1781 = vsel %vm283, %v1780, 0
    %1783 = vmatprep.subr.mxu0 0.0
    %1784 = vmatpush1.msra.mxu0 %v1774
    %1785 = vmatprep.subr.mxu0 0.0
    %1786 = vmatpush1.msra.mxu0 %v1775
    %1787 = vmatprep.subr.mxu0 0.0
    %1788 = vmatpush1.msra.mxu0 %v1776
    %1789 = vmatprep.subr.mxu0 0.0
    %1790 = vmatpush1.msra.mxu0 %v1777
    %1791 = vmatprep.subr.mxu0 0.0
    %1792 = vmatpush1.msra.mxu0 0.0
    %1793 = vmatprep.subr.mxu0 0.0
    %1794 = vmatpush1.msra.mxu0 0.0
    %1795 = vmatprep.subr.mxu0 0.0
    %1796 = vmatpush1.msra.mxu0 0.0
    %1797 = vmatprep.subr.mxu0 0.0
    %1798 = vmatpush1.msra.mxu0 0.0
    %1799 = vmatprep.subr.mxu0 0.0
    %1800 = vmatpush1.msra.mxu0 0.0
    %1801 = vmatprep.subr.mxu0 0.0
    %1802 = vmatpush1.msra.mxu0 0.0
    %1803 = vmatprep.subr.mxu0 0.0
    %1804 = vmatpush1.msra.mxu0 0.0
    %1805 = vmatprep.subr.mxu0 0.0
    %1806 = vmatpush1.msra.mxu0 0.0
    %1807 = vmatprep.subr.mxu0 0.0
    %1808 = vmatpush1.msra.mxu0 0.0
    %1809 = vmatprep.subr.mxu0 0.0
    %1810 = vmatpush1.msra.mxu0 0.0
    %1811 = vmatprep.subr.mxu0 0.0
    %1812 = vmatpush1.msra.mxu0 0.0
    %1813 = vmatprep.subr.mxu0 0.0
    %1814 = vmatpush1.msra.mxu0 0.0
    %1815 = vmatprep.subr.mxu0 0.0
    %1816 = vmatpush1.msra.mxu0 0.0
    %1817 = vmatprep.subr.mxu0 0.0
    %1818 = vmatpush1.msra.mxu0 0.0
    %1819 = vmatprep.subr.mxu0 0.0
    %1820 = vmatpush1.msra.mxu0 0.0
    %1821 = vmatprep.subr.mxu0 0.0
    %1822 = vmatpush1.msra.mxu0 0.0
    %1823 = vmatprep.subr.mxu0 0.0
    %1824 = vmatpush1.msra.mxu0 0.0
    %1825 = vmatprep.subr.mxu0 0.0
    %1826 = vmatpush1.msra.mxu0 0.0
    %1827 = vmatprep.subr.mxu0 0.0
    %1828 = vmatpush1.msra.mxu0 0.0
    %1829 = vmatprep.subr.mxu0 0.0
    %1830 = vmatpush1.msra.mxu0 0.0
    %1831 = vmatprep.subr.mxu0 0.0
    %1832 = vmatpush1.msra.mxu0 0.0
    %1833 = vmatprep.subr.mxu0 0.0
    %1834 = vmatpush1.msra.mxu0 0.0
    %1835 = vmatprep.subr.mxu0 0.0
    %1836 = vmatpush1.msra.mxu0 0.0
    %1837 = vmatprep.subr.mxu0 0.0
    %1838 = vmatpush1.msra.mxu0 0.0
    %1839 = vmatprep.subr.mxu0 0.0
    %1840 = vmatpush1.msra.mxu0 0.0
    %1841 = vmatprep.subr.mxu0 0.0
    %1842 = vmatpush1.msra.mxu0 0.0
    %1843 = vmatprep.subr.mxu0 0.0
    %1844 = vmatpush1.msra.mxu0 0.0
    %1845 = vmatprep.subr.mxu0 0.0
    %1846 = vmatpush1.msra.mxu0 0.0
    %1847 = vmatprep.mubr.f32.mxu0 0.0
    %1848 = vmatmul.mubr.f32.gmra.mrb[0].mxu0 %v1781
    %v1849 = vpop.f32.mrb[0].mxu0
    %v1850 = vadd.f32 0.0, %v1849
    %v1851 = vpop.f32.mrb[0].mxu0
    %1852 = vdwg.mxu0
    %v1853 = vadd.f32 %v1773, %v1850
    %v1854 = vxor.u32 %v1853, 2147483648
    %v1855 = vmul.f32 %v1854, 1.442695
    %v1856 = vpow.pop %v1855
    %v1857 = vadd.f32 %v1856, 1.0
    %v1858 = vrcp.pop %v1857
    %v1859 = vmul.f32 1.0, %v1858
    %v1860 = vtanh.pop %v1853
    %v1861 = vmul.f32 %v1859, %v1231
    %1863 = vrot.lane.b32.xlu0 %v1860, 64
    %v1864 = vpop.permute.xlu0 %1863
    %v1866 = vmul.f32 %v1859, %v1864
    %1868 = vrot.lane.b32.xlu0 %v1866, 32
    %v1869 = vpop.permute.xlu0 %1868
    %v1871 = vadd.f32 %v1861, %v1869
    %v1872 = vtanh.pop %v1871
    %1874 = vrot.lane.b32.xlu0 %v1872, 64
    %v1875 = vpop.permute.xlu0 %1874
    %v1877 = vmul.f32 %v1859, %v1875
    %v1878 = vld [vmem:[%s2] sm:$0xff]
    %v1879 = vld [vmem:[%s2 + $0x8] sm:$0xff]
    %v1880 = vld [vmem:[%s2 + $0x10] sm:$0xff]
    %v1881 = vld [vmem:[%s2 + $0x18] sm:$0xff]
    %v1882 = vld [vmem:[%s491] sm:$0xff]
    %v1883 = vld [vmem:[%s491 + $0x8] sm:$0xff]
    %v1884 = vld [vmem:[%s491 + $0x10] sm:$0xff]
    %v1885 = vld [vmem:[%s491 + $0x18] sm:$0xff]
    %1887 = vrot.lane.b32.xlu0 %v1407, 32
    %v1888 = vpop.permute.xlu0 %1887
    %v1889 = vsel %vm283, %v1888, 0
    %1891 = vmatprep.subr.mxu0 0.0
    %1892 = vmatpush1.msra.mxu0 %v1882
    %1893 = vmatprep.subr.mxu0 0.0
    %1894 = vmatpush1.msra.mxu0 %v1883
    %1895 = vmatprep.subr.mxu0 0.0
    %1896 = vmatpush1.msra.mxu0 %v1884
    %1897 = vmatprep.subr.mxu0 0.0
    %1898 = vmatpush1.msra.mxu0 %v1885
    %1899 = vmatprep.subr.mxu0 0.0
    %1900 = vmatpush1.msra.mxu0 0.0
    %1901 = vmatprep.subr.mxu0 0.0
    %1902 = vmatpush1.msra.mxu0 0.0
    %1903 = vmatprep.subr.mxu0 0.0
    %1904 = vmatpush1.msra.mxu0 0.0
    %1905 = vmatprep.subr.mxu0 0.0
    %1906 = vmatpush1.msra.mxu0 0.0
    %1907 = vmatprep.subr.mxu0 0.0
    %1908 = vmatpush1.msra.mxu0 0.0
    %1909 = vmatprep.subr.mxu0 0.0
    %1910 = vmatpush1.msra.mxu0 0.0
    %1911 = vmatprep.subr.mxu0 0.0
    %1912 = vmatpush1.msra.mxu0 0.0
    %1913 = vmatprep.subr.mxu0 0.0
    %1914 = vmatpush1.msra.mxu0 0.0
    %1915 = vmatprep.subr.mxu0 0.0
    %1916 = vmatpush1.msra.mxu0 0.0
    %1917 = vmatprep.subr.mxu0 0.0
    %1918 = vmatpush1.msra.mxu0 0.0
    %1919 = vmatprep.subr.mxu0 0.0
    %1920 = vmatpush1.msra.mxu0 0.0
    %1921 = vmatprep.subr.mxu0 0.0
    %1922 = vmatpush1.msra.mxu0 0.0
    %1923 = vmatprep.subr.mxu0 0.0
    %1924 = vmatpush1.msra.mxu0 0.0
    %1925 = vmatprep.subr.mxu0 0.0
    %1926 = vmatpush1.msra.mxu0 0.0
    %1927 = vmatprep.subr.mxu0 0.0
    %1928 = vmatpush1.msra.mxu0 0.0
    %1929 = vmatprep.subr.mxu0 0.0
    %1930 = vmatpush1.msra.mxu0 0.0
    %1931 = vmatprep.subr.mxu0 0.0
    %1932 = vmatpush1.msra.mxu0 0.0
    %1933 = vmatprep.subr.mxu0 0.0
    %1934 = vmatpush1.msra.mxu0 0.0
    %1935 = vmatprep.subr.mxu0 0.0
    %1936 = vmatpush1.msra.mxu0 0.0
    %1937 = vmatprep.subr.mxu0 0.0
    %1938 = vmatpush1.msra.mxu0 0.0
    %1939 = vmatprep.subr.mxu0 0.0
    %1940 = vmatpush1.msra.mxu0 0.0
    %1941 = vmatprep.subr.mxu0 0.0
    %1942 = vmatpush1.msra.mxu0 0.0
    %1943 = vmatprep.subr.mxu0 0.0
    %1944 = vmatpush1.msra.mxu0 0.0
    %1945 = vmatprep.subr.mxu0 0.0
    %1946 = vmatpush1.msra.mxu0 0.0
    %1947 = vmatprep.subr.mxu0 0.0
    %1948 = vmatpush1.msra.mxu0 0.0
    %1949 = vmatprep.subr.mxu0 0.0
    %1950 = vmatpush1.msra.mxu0 0.0
    %1951 = vmatprep.subr.mxu0 0.0
    %1952 = vmatpush1.msra.mxu0 0.0
    %1953 = vmatprep.subr.mxu0 0.0
    %1954 = vmatpush1.msra.mxu0 0.0
    %1955 = vmatprep.mubr.f32.mxu0 0.0
    %1956 = vmatmul.mubr.f32.gmra.mrb[0].mxu0 %v1889
    %v1957 = vpop.f32.mrb[0].mxu0
    %v1958 = vadd.f32 0.0, %v1957
    %v1959 = vpop.f32.mrb[0].mxu0
    %1960 = vdwg.mxu0
    %1961 = vmatprep.subr.mxu0 0.0
    %1962 = vmatpush1.msra.mxu0 %v1878
    %1963 = vmatprep.subr.mxu0 0.0
    %1964 = vmatpush1.msra.mxu0 %v1879
    %1965 = vmatprep.subr.mxu0 0.0
    %1966 = vmatpush1.msra.mxu0 %v1880
    %1967 = vmatprep.subr.mxu0 0.0
    %1968 = vmatpush1.msra.mxu0 %v1881
    %1969 = vmatprep.subr.mxu0 0.0
    %1970 = vmatpush1.msra.mxu0 0.0
    %1971 = vmatprep.subr.mxu0 0.0
    %1972 = vmatpush1.msra.mxu0 0.0
    %1973 = vmatprep.subr.mxu0 0.0
    %1974 = vmatpush1.msra.mxu0 0.0
    %1975 = vmatprep.subr.mxu0 0.0
    %1976 = vmatpush1.msra.mxu0 0.0
    %1977 = vmatprep.subr.mxu0 0.0
    %1978 = vmatpush1.msra.mxu0 0.0
    %1979 = vmatprep.subr.mxu0 0.0
    %1980 = vmatpush1.msra.mxu0 0.0
    %1981 = vmatprep.subr.mxu0 0.0
    %1982 = vmatpush1.msra.mxu0 0.0
    %1983 = vmatprep.subr.mxu0 0.0
    %1984 = vmatpush1.msra.mxu0 0.0
    %1985 = vmatprep.subr.mxu0 0.0
    %1986 = vmatpush1.msra.mxu0 0.0
    %1987 = vmatprep.subr.mxu0 0.0
    %1988 = vmatpush1.msra.mxu0 0.0
    %1989 = vmatprep.subr.mxu0 0.0
    %1990 = vmatpush1.msra.mxu0 0.0
    %1991 = vmatprep.subr.mxu0 0.0
    %1992 = vmatpush1.msra.mxu0 0.0
    %1993 = vmatprep.subr.mxu0 0.0
    %1994 = vmatpush1.msra.mxu0 0.0
    %1995 = vmatprep.subr.mxu0 0.0
    %1996 = vmatpush1.msra.mxu0 0.0
    %1997 = vmatprep.subr.mxu0 0.0
    %1998 = vmatpush1.msra.mxu0 0.0
    %1999 = vmatprep.subr.mxu0 0.0
    %2000 = vmatpush1.msra.mxu0 0.0
    %2001 = vmatprep.subr.mxu0 0.0
    %2002 = vmatpush1.msra.mxu0 0.0
    %2003 = vmatprep.subr.mxu0 0.0
    %2004 = vmatpush1.msra.mxu0 0.0
    %2005 = vmatprep.subr.mxu0 0.0
    %2006 = vmatpush1.msra.mxu0 0.0
    %2007 = vmatprep.subr.mxu0 0.0
    %2008 = vmatpush1.msra.mxu0 0.0
    %2009 = vmatprep.subr.mxu0 0.0
    %2010 = vmatpush1.msra.mxu0 0.0
    %2011 = vmatprep.subr.mxu0 0.0
    %2012 = vmatpush1.msra.mxu0 0.0
    %2013 = vmatprep.subr.mxu0 0.0
    %2014 = vmatpush1.msra.mxu0 0.0
    %2015 = vmatprep.subr.mxu0 0.0
    %2016 = vmatpush1.msra.mxu0 0.0
    %2017 = vmatprep.subr.mxu0 0.0
    %2018 = vmatpush1.msra.mxu0 0.0
    %2019 = vmatprep.subr.mxu0 0.0
    %2020 = vmatpush1.msra.mxu0 0.0
    %2021 = vmatprep.subr.mxu0 0.0
    %2022 = vmatpush1.msra.mxu0 0.0
    %2023 = vmatprep.subr.mxu0 0.0
    %2024 = vmatpush1.msra.mxu0 0.0
    %2025 = vmatprep.mubr.f32.mxu0 0.0
    %2026 = vmatmul.mubr.f32.gmra.mrb[0].mxu0 %v1781
    %v2027 = vpop.f32.mrb[0].mxu0
    %v2028 = vadd.f32 %v1958, %v2027
    %v2029 = vpop.f32.mrb[0].mxu0
    %2030 = vdwg.mxu0
    %v2031 = vld [vmem:[%s639] sm:$0x1]
    %v2033 = vlaneseq
    %v2034 = vshrl.u32 %v2033, 7
    %v2035 = vsub.s32 0, %v2034
    %v2036 = vrot.slane %v2031, %v2035
    %v2038 = vadd.f32 %v2028, %v2036
    %v2039 = vxor.u32 %v2038, 2147483648
    %v2040 = vmul.f32 %v2039, 1.442695
    %v2041 = vpow.pop %v2040
    %v2042 = vadd.f32 %v2041, 1.0
    %v2043 = vrcp.pop %v2042
    %v2044 = vmul.f32 1.0, %v2043
    %v2045 = vtanh.pop %v2038
    %v2046 = vmul.f32 %v2044, %v1401
    %2048 = vrot.lane.b32.xlu0 %v2045, 64
    %v2049 = vpop.permute.xlu0 %2048
    %v2051 = vmul.f32 %v2044, %v2049
    %2053 = vrot.lane.b32.xlu0 %v2051, 32
    %v2054 = vpop.permute.xlu0 %2053
    %v2056 = vadd.f32 %v2046, %v2054
    %v2057 = vtanh.pop %v2056
    %2059 = vrot.lane.b32.xlu0 %v2057, 64
    %v2060 = vpop.permute.xlu0 %2059
    %v2062 = vmul.f32 %v2044, %v2060
    %v2063 = vld [vmem:[%s947] sm:$0xff]
    %v2064 = vld [vmem:[%s947 + $0x8] sm:$0xff]
    %v2065 = vld [vmem:[%s947 + $0x10] sm:$0xff]
    %v2066 = vld [vmem:[%s947 + $0x18] sm:$0xff]
    %v2067 = vld [vmem:[%s952] sm:$0xff]
    %v2068 = vld [vmem:[%s952 + $0x8] sm:$0xff]
    %v2069 = vld [vmem:[%s952 + $0x10] sm:$0xff]
    %v2070 = vld [vmem:[%s952 + $0x18] sm:$0xff]
    %2072 = vrot.lane.b32.xlu0 %v1577, 32
    %v2073 = vpop.permute.xlu0 %2072
    %v2074 = vsel %vm283, %v2073, 0
    %2076 = vmatprep.subr.mxu0 0.0
    %2077 = vmatpush1.msra.mxu0 %v2067
    %2078 = vmatprep.subr.mxu0 0.0
    %2079 = vmatpush1.msra.mxu0 %v2068
    %2080 = vmatprep.subr.mxu0 0.0
    %2081 = vmatpush1.msra.mxu0 %v2069
    %2082 = vmatprep.subr.mxu0 0.0
    %2083 = vmatpush1.msra.mxu0 %v2070
    %2084 = vmatprep.subr.mxu0 0.0
    %2085 = vmatpush1.msra.mxu0 0.0
    %2086 = vmatprep.subr.mxu0 0.0
    %2087 = vmatpush1.msra.mxu0 0.0
    %2088 = vmatprep.subr.mxu0 0.0
    %2089 = vmatpush1.msra.mxu0 0.0
    %2090 = vmatprep.subr.mxu0 0.0
    %2091 = vmatpush1.msra.mxu0 0.0
    %2092 = vmatprep.subr.mxu0 0.0
    %2093 = vmatpush1.msra.mxu0 0.0
    %2094 = vmatprep.subr.mxu0 0.0
    %2095 = vmatpush1.msra.mxu0 0.0
    %2096 = vmatprep.subr.mxu0 0.0
    %2097 = vmatpush1.msra.mxu0 0.0
    %2098 = vmatprep.subr.mxu0 0.0
    %2099 = vmatpush1.msra.mxu0 0.0
    %2100 = vmatprep.subr.mxu0 0.0
    %2101 = vmatpush1.msra.mxu0 0.0
    %2102 = vmatprep.subr.mxu0 0.0
    %2103 = vmatpush1.msra.mxu0 0.0
    %2104 = vmatprep.subr.mxu0 0.0
    %2105 = vmatpush1.msra.mxu0 0.0
    %2106 = vmatprep.subr.mxu0 0.0
    %2107 = vmatpush1.msra.mxu0 0.0
    %2108 = vmatprep.subr.mxu0 0.0
    %2109 = vmatpush1.msra.mxu0 0.0
    %2110 = vmatprep.subr.mxu0 0.0
    %2111 = vmatpush1.msra.mxu0 0.0
    %2112 = vmatprep.subr.mxu0 0.0
    %2113 = vmatpush1.msra.mxu0 0.0
    %2114 = vmatprep.subr.mxu0 0.0
    %2115 = vmatpush1.msra.mxu0 0.0
    %2116 = vmatprep.subr.mxu0 0.0
    %2117 = vmatpush1.msra.mxu0 0.0
    %2118 = vmatprep.subr.mxu0 0.0
    %2119 = vmatpush1.msra.mxu0 0.0
    %2120 = vmatprep.subr.mxu0 0.0
    %2121 = vmatpush1.msra.mxu0 0.0
    %2122 = vmatprep.subr.mxu0 0.0
    %2123 = vmatpush1.msra.mxu0 0.0
    %2124 = vmatprep.subr.mxu0 0.0
    %2125 = vmatpush1.msra.mxu0 0.0
    %2126 = vmatprep.subr.mxu0 0.0
    %2127 = vmatpush1.msra.mxu0 0.0
    %2128 = vmatprep.subr.mxu0 0.0
    %2129 = vmatpush1.msra.mxu0 0.0
    %2130 = vmatprep.subr.mxu0 0.0
    %2131 = vmatpush1.msra.mxu0 0.0
    %2132 = vmatprep.subr.mxu0 0.0
    %2133 = vmatpush1.msra.mxu0 0.0
    %2134 = vmatprep.subr.mxu0 0.0
    %2135 = vmatpush1.msra.mxu0 0.0
    %2136 = vmatprep.subr.mxu0 0.0
    %2137 = vmatpush1.msra.mxu0 0.0
    %2138 = vmatprep.subr.mxu0 0.0
    %2139 = vmatpush1.msra.mxu0 0.0
    %2140 = vmatprep.mubr.f32.mxu0 0.0
    %2141 = vmatmul.mubr.f32.gmra.mrb[0].mxu0 %v2074
    %v2142 = vpop.f32.mrb[0].mxu0
    %v2143 = vadd.f32 0.0, %v2142
    %v2144 = vpop.f32.mrb[0].mxu0
    %2145 = vdwg.mxu0
    %2146 = vmatprep.subr.mxu0 0.0
    %2147 = vmatpush1.msra.mxu0 %v2063
    %2148 = vmatprep.subr.mxu0 0.0
    %2149 = vmatpush1.msra.mxu0 %v2064
    %2150 = vmatprep.subr.mxu0 0.0
    %2151 = vmatpush1.msra.mxu0 %v2065
    %2152 = vmatprep.subr.mxu0 0.0
    %2153 = vmatpush1.msra.mxu0 %v2066
    %2154 = vmatprep.subr.mxu0 0.0
    %2155 = vmatpush1.msra.mxu0 0.0
    %2156 = vmatprep.subr.mxu0 0.0
    %2157 = vmatpush1.msra.mxu0 0.0
    %2158 = vmatprep.subr.mxu0 0.0
    %2159 = vmatpush1.msra.mxu0 0.0
    %2160 = vmatprep.subr.mxu0 0.0
    %2161 = vmatpush1.msra.mxu0 0.0
    %2162 = vmatprep.subr.mxu0 0.0
    %2163 = vmatpush1.msra.mxu0 0.0
    %2164 = vmatprep.subr.mxu0 0.0
    %2165 = vmatpush1.msra.mxu0 0.0
    %2166 = vmatprep.subr.mxu0 0.0
    %2167 = vmatpush1.msra.mxu0 0.0
    %2168 = vmatprep.subr.mxu0 0.0
    %2169 = vmatpush1.msra.mxu0 0.0
    %2170 = vmatprep.subr.mxu0 0.0
    %2171 = vmatpush1.msra.mxu0 0.0
    %2172 = vmatprep.subr.mxu0 0.0
    %2173 = vmatpush1.msra.mxu0 0.0
    %2174 = vmatprep.subr.mxu0 0.0
    %2175 = vmatpush1.msra.mxu0 0.0
    %2176 = vmatprep.subr.mxu0 0.0
    %2177 = vmatpush1.msra.mxu0 0.0
    %2178 = vmatprep.subr.mxu0 0.0
    %2179 = vmatpush1.msra.mxu0 0.0
    %2180 = vmatprep.subr.mxu0 0.0
    %2181 = vmatpush1.msra.mxu0 0.0
    %2182 = vmatprep.subr.mxu0 0.0
    %2183 = vmatpush1.msra.mxu0 0.0
    %2184 = vmatprep.subr.mxu0 0.0
    %2185 = vmatpush1.msra.mxu0 0.0
    %2186 = vmatprep.subr.mxu0 0.0
    %2187 = vmatpush1.msra.mxu0 0.0
    %2188 = vmatprep.subr.mxu0 0.0
    %2189 = vmatpush1.msra.mxu0 0.0
    %2190 = vmatprep.subr.mxu0 0.0
    %2191 = vmatpush1.msra.mxu0 0.0
    %2192 = vmatprep.subr.mxu0 0.0
    %2193 = vmatpush1.msra.mxu0 0.0
    %2194 = vmatprep.subr.mxu0 0.0
    %2195 = vmatpush1.msra.mxu0 0.0
    %2196 = vmatprep.subr.mxu0 0.0
    %2197 = vmatpush1.msra.mxu0 0.0
    %2198 = vmatprep.subr.mxu0 0.0
    %2199 = vmatpush1.msra.mxu0 0.0
    %2200 = vmatprep.subr.mxu0 0.0
    %2201 = vmatpush1.msra.mxu0 0.0
    %2202 = vmatprep.subr.mxu0 0.0
    %2203 = vmatpush1.msra.mxu0 0.0
    %2204 = vmatprep.subr.mxu0 0.0
    %2205 = vmatpush1.msra.mxu0 0.0
    %2206 = vmatprep.subr.mxu0 0.0
    %2207 = vmatpush1.msra.mxu0 0.0
    %2208 = vmatprep.subr.mxu0 0.0
    %2209 = vmatpush1.msra.mxu0 0.0
    %2210 = vmatprep.mubr.f32.mxu0 0.0
    %2211 = vmatmul.mubr.f32.gmra.mrb[0].mxu0 %v1889
    %v2212 = vpop.f32.mrb[0].mxu0
    %v2213 = vadd.f32 %v2143, %v2212
    %v2214 = vpop.f32.mrb[0].mxu0
    %2215 = vdwg.mxu0
    %v2216 = vld [vmem:[%s1100] sm:$0x1]
    %v2218 = vlaneseq
    %v2219 = vshrl.u32 %v2218, 7
    %v2220 = vsub.s32 0, %v2219
    %v2221 = vrot.slane %v2216, %v2220
    %v2223 = vadd.f32 %v2213, %v2221
    %v2224 = vxor.u32 %v2223, 2147483648
    %v2225 = vmul.f32 %v2224, 1.442695
    %v2226 = vpow.pop %v2225
    %v2227 = vadd.f32 %v2226, 1.0
    %v2228 = vrcp.pop %v2227
    %v2229 = vmul.f32 1.0, %v2228
    %v2230 = vtanh.pop %v2223
    %v2231 = vmul.f32 %v2229, %v1571
    %2233 = vrot.lane.b32.xlu0 %v2230, 64
    %v2234 = vpop.permute.xlu0 %2233
    %v2236 = vmul.f32 %v2229, %v2234
    %2238 = vrot.lane.b32.xlu0 %v2236, 32
    %v2239 = vpop.permute.xlu0 %2238
    %v2241 = vadd.f32 %v2231, %v2239
    %v2242 = vtanh.pop %v2241
    %2244 = vrot.lane.b32.xlu0 %v2242, 64
    %v2245 = vpop.permute.xlu0 %2244
    %v2247 = vmul.f32 %v2229, %v2245
    %v2248 = vld [vmem:[%s1578] sm:$0xff]
    %v2249 = vld [vmem:[%s1578 + $0x8] sm:$0xff]
    %v2250 = vld [vmem:[%s1578 + $0x10] sm:$0xff]
    %v2251 = vld [vmem:[%s1578 + $0x18] sm:$0xff]
    %v2252 = vld [vmem:[%s1583] sm:$0xff]
    %v2253 = vld [vmem:[%s1583 + $0x8] sm:$0xff]
    %v2254 = vld [vmem:[%s1583 + $0x10] sm:$0xff]
    %v2255 = vld [vmem:[%s1583 + $0x18] sm:$0xff]
    %v2256 = vsel %vm283, %v1770, 0
    %2258 = vmatprep.subr.mxu0 0.0
    %2259 = vmatpush1.msra.mxu0 %v2252
    %2260 = vmatprep.subr.mxu0 0.0
    %2261 = vmatpush1.msra.mxu0 %v2253
    %2262 = vmatprep.subr.mxu0 0.0
    %2263 = vmatpush1.msra.mxu0 %v2254
    %2264 = vmatprep.subr.mxu0 0.0
    %2265 = vmatpush1.msra.mxu0 %v2255
    %2266 = vmatprep.subr.mxu0 0.0
    %2267 = vmatpush1.msra.mxu0 0.0
    %2268 = vmatprep.subr.mxu0 0.0
    %2269 = vmatpush1.msra.mxu0 0.0
    %2270 = vmatprep.subr.mxu0 0.0
    %2271 = vmatpush1.msra.mxu0 0.0
    %2272 = vmatprep.subr.mxu0 0.0
    %2273 = vmatpush1.msra.mxu0 0.0
    %2274 = vmatprep.subr.mxu0 0.0
    %2275 = vmatpush1.msra.mxu0 0.0
    %2276 = vmatprep.subr.mxu0 0.0
    %2277 = vmatpush1.msra.mxu0 0.0
    %2278 = vmatprep.subr.mxu0 0.0
    %2279 = vmatpush1.msra.mxu0 0.0
    %2280 = vmatprep.subr.mxu0 0.0
    %2281 = vmatpush1.msra.mxu0 0.0
    %2282 = vmatprep.subr.mxu0 0.0
    %2283 = vmatpush1.msra.mxu0 0.0
    %2284 = vmatprep.subr.mxu0 0.0
    %2285 = vmatpush1.msra.mxu0 0.0
    %2286 = vmatprep.subr.mxu0 0.0
    %2287 = vmatpush1.msra.mxu0 0.0
    %2288 = vmatprep.subr.mxu0 0.0
    %2289 = vmatpush1.msra.mxu0 0.0
    %2290 = vmatprep.subr.mxu0 0.0
    %2291 = vmatpush1.msra.mxu0 0.0
    %2292 = vmatprep.subr.mxu0 0.0
    %2293 = vmatpush1.msra.mxu0 0.0
    %2294 = vmatprep.subr.mxu0 0.0
    %2295 = vmatpush1.msra.mxu0 0.0
    %2296 = vmatprep.subr.mxu0 0.0
    %2297 = vmatpush1.msra.mxu0 0.0
    %2298 = vmatprep.subr.mxu0 0.0
    %2299 = vmatpush1.msra.mxu0 0.0
    %2300 = vmatprep.subr.mxu0 0.0
    %2301 = vmatpush1.msra.mxu0 0.0
    %2302 = vmatprep.subr.mxu0 0.0
    %2303 = vmatpush1.msra.mxu0 0.0
    %2304 = vmatprep.subr.mxu0 0.0
    %2305 = vmatpush1.msra.mxu0 0.0
    %2306 = vmatprep.subr.mxu0 0.0
    %2307 = vmatpush1.msra.mxu0 0.0
    %2308 = vmatprep.subr.mxu0 0.0
    %2309 = vmatpush1.msra.mxu0 0.0
    %2310 = vmatprep.subr.mxu0 0.0
    %2311 = vmatpush1.msra.mxu0 0.0
    %2312 = vmatprep.subr.mxu0 0.0
    %2313 = vmatpush1.msra.mxu0 0.0
    %2314 = vmatprep.subr.mxu0 0.0
    %2315 = vmatpush1.msra.mxu0 0.0
    %2316 = vmatprep.subr.mxu0 0.0
    %2317 = vmatpush1.msra.mxu0 0.0
    %2318 = vmatprep.subr.mxu0 0.0
    %2319 = vmatpush1.msra.mxu0 0.0
    %2320 = vmatprep.subr.mxu0 0.0
    %2321 = vmatpush1.msra.mxu0 0.0
    %2322 = vmatprep.mubr.f32.mxu0 0.0
    %2323 = vmatmul.mubr.f32.gmra.mrb[0].mxu0 %v2256
    %v2324 = vpop.f32.mrb[0].mxu0
    %v2325 = vadd.f32 0.0, %v2324
    %v2326 = vpop.f32.mrb[0].mxu0
    %2327 = vdwg.mxu0
    %2328 = vmatprep.subr.mxu0 0.0
    %2329 = vmatpush1.msra.mxu0 %v2248
    %2330 = vmatprep.subr.mxu0 0.0
    %2331 = vmatpush1.msra.mxu0 %v2249
    %2332 = vmatprep.subr.mxu0 0.0
    %2333 = vmatpush1.msra.mxu0 %v2250
    %2334 = vmatprep.subr.mxu0 0.0
    %2335 = vmatpush1.msra.mxu0 %v2251
    %2336 = vmatprep.subr.mxu0 0.0
    %2337 = vmatpush1.msra.mxu0 0.0
    %2338 = vmatprep.subr.mxu0 0.0
    %2339 = vmatpush1.msra.mxu0 0.0
    %2340 = vmatprep.subr.mxu0 0.0
    %2341 = vmatpush1.msra.mxu0 0.0
    %2342 = vmatprep.subr.mxu0 0.0
    %2343 = vmatpush1.msra.mxu0 0.0
    %2344 = vmatprep.subr.mxu0 0.0
    %2345 = vmatpush1.msra.mxu0 0.0
    %2346 = vmatprep.subr.mxu0 0.0
    %2347 = vmatpush1.msra.mxu0 0.0
    %2348 = vmatprep.subr.mxu0 0.0
    %2349 = vmatpush1.msra.mxu0 0.0
    %2350 = vmatprep.subr.mxu0 0.0
    %2351 = vmatpush1.msra.mxu0 0.0
    %2352 = vmatprep.subr.mxu0 0.0
    %2353 = vmatpush1.msra.mxu0 0.0
    %2354 = vmatprep.subr.mxu0 0.0
    %2355 = vmatpush1.msra.mxu0 0.0
    %2356 = vmatprep.subr.mxu0 0.0
    %2357 = vmatpush1.msra.mxu0 0.0
    %2358 = vmatprep.subr.mxu0 0.0
    %2359 = vmatpush1.msra.mxu0 0.0
    %2360 = vmatprep.subr.mxu0 0.0
    %2361 = vmatpush1.msra.mxu0 0.0
    %2362 = vmatprep.subr.mxu0 0.0
    %2363 = vmatpush1.msra.mxu0 0.0
    %2364 = vmatprep.subr.mxu0 0.0
    %2365 = vmatpush1.msra.mxu0 0.0
    %2366 = vmatprep.subr.mxu0 0.0
    %2367 = vmatpush1.msra.mxu0 0.0
    %2368 = vmatprep.subr.mxu0 0.0
    %2369 = vmatpush1.msra.mxu0 0.0
    %2370 = vmatprep.subr.mxu0 0.0
    %2371 = vmatpush1.msra.mxu0 0.0
    %2372 = vmatprep.subr.mxu0 0.0
    %2373 = vmatpush1.msra.mxu0 0.0
    %2374 = vmatprep.subr.mxu0 0.0
    %2375 = vmatpush1.msra.mxu0 0.0
    %2376 = vmatprep.subr.mxu0 0.0
    %2377 = vmatpush1.msra.mxu0 0.0
    %2378 = vmatprep.subr.mxu0 0.0
    %2379 = vmatpush1.msra.mxu0 0.0
    %2380 = vmatprep.subr.mxu0 0.0
    %2381 = vmatpush1.msra.mxu0 0.0
    %2382 = vmatprep.subr.mxu0 0.0
    %2383 = vmatpush1.msra.mxu0 0.0
    %2384 = vmatprep.subr.mxu0 0.0
    %2385 = vmatpush1.msra.mxu0 0.0
    %2386 = vmatprep.subr.mxu0 0.0
    %2387 = vmatpush1.msra.mxu0 0.0
    %2388 = vmatprep.subr.mxu0 0.0
    %2389 = vmatpush1.msra.mxu0 0.0
    %2390 = vmatprep.subr.mxu0 0.0
    %2391 = vmatpush1.msra.mxu0 0.0
    %2392 = vmatprep.mubr.f32.mxu0 0.0
    %2393 = vmatmul.mubr.f32.gmra.mrb[0].mxu0 %v2074
    %v2394 = vpop.f32.mrb[0].mxu0
    %v2395 = vadd.f32 %v2325, %v2394
    %v2396 = vpop.f32.mrb[0].mxu0
    %2397 = vdwg.mxu0
    %v2398 = vld [vmem:[%s1731] sm:$0x1]
    %v2400 = vlaneseq
    %v2401 = vshrl.u32 %v2400, 7
    %v2402 = vsub.s32 0, %v2401
    %v2403 = vrot.slane %v2398, %v2402
    %v2405 = vadd.f32 %v2395, %v2403
    %v2406 = vxor.u32 %v2405, 2147483648
    %v2407 = vmul.f32 %v2406, 1.442695
    %v2408 = vpow.pop %v2407
    %v2409 = vadd.f32 %v2408, 1.0
    %v2410 = vrcp.pop %v2409
    %v2411 = vmul.f32 1.0, %v2410
    %v2412 = vtanh.pop %v2405
    %v2413 = vmul.f32 %v2411, %v1761
    %2415 = vrot.lane.b32.xlu0 %v2412, 64
    %v2416 = vpop.permute.xlu0 %2415
    %v2418 = vmul.f32 %v2411, %v2416
    %2420 = vrot.lane.b32.xlu0 %v2418, 32
    %v2421 = vpop.permute.xlu0 %2420
    %v2423 = vadd.f32 %v2413, %v2421
    %v2424 = vtanh.pop %v2423
    %2426 = vrot.lane.b32.xlu0 %v2424, 64
    %v2427 = vpop.permute.xlu0 %2426
    %v2429 = vmul.f32 %v2411, %v2427
    %2431 = vrot.lane.b32.xlu0 %v2429, 32
    %v2432 = vpop.permute.xlu0 %2431
    %2434 = vst.msk [vmem:[#allocation3 + $0x8] sm:$0xff] %vm283, %v2432
    %v2435 = vld [vmem:[#allocation2 + $0x28] sm:$0xff]
    %v2436 = vld [vmem:[#allocation7] sm:$0xff]
    %v2437 = vld [vmem:[#allocation7 + $0x8] sm:$0xff]
    %v2438 = vld [vmem:[#allocation7 + $0x10] sm:$0xff]
    %v2439 = vld [vmem:[#allocation7 + $0x18] sm:$0xff]
    %2441 = vrot.lane.b32.xlu0 %v1877, 32
    %v2442 = vpop.permute.xlu0 %2441
    %v2443 = vsel %vm283, %v2442, 0
    %2445 = vmatprep.subr.mxu0 0.0
    %2446 = vmatpush1.msra.mxu0 %v2436
    %2447 = vmatprep.subr.mxu0 0.0
    %2448 = vmatpush1.msra.mxu0 %v2437
    %2449 = vmatprep.subr.mxu0 0.0
    %2450 = vmatpush1.msra.mxu0 %v2438
    %2451 = vmatprep.subr.mxu0 0.0
    %2452 = vmatpush1.msra.mxu0 %v2439
    %2453 = vmatprep.subr.mxu0 0.0
    %2454 = vmatpush1.msra.mxu0 0.0
    %2455 = vmatprep.subr.mxu0 0.0
    %2456 = vmatpush1.msra.mxu0 0.0
    %2457 = vmatprep.subr.mxu0 0.0
    %2458 = vmatpush1.msra.mxu0 0.0
    %2459 = vmatprep.subr.mxu0 0.0
    %2460 = vmatpush1.msra.mxu0 0.0
    %2461 = vmatprep.subr.mxu0 0.0
    %2462 = vmatpush1.msra.mxu0 0.0
    %2463 = vmatprep.subr.mxu0 0.0
    %2464 = vmatpush1.msra.mxu0 0.0
    %2465 = vmatprep.subr.mxu0 0.0
    %2466 = vmatpush1.msra.mxu0 0.0
    %2467 = vmatprep.subr.mxu0 0.0
    %2468 = vmatpush1.msra.mxu0 0.0
    %2469 = vmatprep.subr.mxu0 0.0
    %2470 = vmatpush1.msra.mxu0 0.0
    %2471 = vmatprep.subr.mxu0 0.0
    %2472 = vmatpush1.msra.mxu0 0.0
    %2473 = vmatprep.subr.mxu0 0.0
    %2474 = vmatpush1.msra.mxu0 0.0
    %2475 = vmatprep.subr.mxu0 0.0
    %2476 = vmatpush1.msra.mxu0 0.0
    %2477 = vmatprep.subr.mxu0 0.0
    %2478 = vmatpush1.msra.mxu0 0.0
    %2479 = vmatprep.subr.mxu0 0.0
    %2480 = vmatpush1.msra.mxu0 0.0
    %2481 = vmatprep.subr.mxu0 0.0
    %2482 = vmatpush1.msra.mxu0 0.0
    %2483 = vmatprep.subr.mxu0 0.0
    %2484 = vmatpush1.msra.mxu0 0.0
    %2485 = vmatprep.subr.mxu0 0.0
    %2486 = vmatpush1.msra.mxu0 0.0
    %2487 = vmatprep.subr.mxu0 0.0
    %2488 = vmatpush1.msra.mxu0 0.0
    %2489 = vmatprep.subr.mxu0 0.0
    %2490 = vmatpush1.msra.mxu0 0.0
    %2491 = vmatprep.subr.mxu0 0.0
    %2492 = vmatpush1.msra.mxu0 0.0
    %2493 = vmatprep.subr.mxu0 0.0
    %2494 = vmatpush1.msra.mxu0 0.0
    %2495 = vmatprep.subr.mxu0 0.0
    %2496 = vmatpush1.msra.mxu0 0.0
    %2497 = vmatprep.subr.mxu0 0.0
    %2498 = vmatpush1.msra.mxu0 0.0
    %2499 = vmatprep.subr.mxu0 0.0
    %2500 = vmatpush1.msra.mxu0 0.0
    %2501 = vmatprep.subr.mxu0 0.0
    %2502 = vmatpush1.msra.mxu0 0.0
    %2503 = vmatprep.subr.mxu0 0.0
    %2504 = vmatpush1.msra.mxu0 0.0
    %2505 = vmatprep.subr.mxu0 0.0
    %2506 = vmatpush1.msra.mxu0 0.0
    %2507 = vmatprep.subr.mxu0 0.0
    %2508 = vmatpush1.msra.mxu0 0.0
    %2509 = vmatprep.mubr.f32.mxu0 0.0
    %2510 = vmatmul.mubr.f32.gmra.mrb[0].mxu0 %v2443
    %v2511 = vpop.f32.mrb[0].mxu0
    %v2512 = vadd.f32 0.0, %v2511
    %v2513 = vpop.f32.mrb[0].mxu0
    %2514 = vdwg.mxu0
    %v2515 = vadd.f32 %v2435, %v2512
    %v2516 = vxor.u32 %v2515, 2147483648
    %v2517 = vmul.f32 %v2516, 1.442695
    %v2518 = vpow.pop %v2517
    %v2519 = vadd.f32 %v2518, 1.0
    %v2520 = vrcp.pop %v2519
    %v2521 = vmul.f32 1.0, %v2520
    %v2522 = vtanh.pop %v2515
    %v2523 = vmul.f32 %v2521, %v1871
    %2525 = vrot.lane.b32.xlu0 %v2522, 64
    %v2526 = vpop.permute.xlu0 %2525
    %v2528 = vmul.f32 %v2521, %v2526
    %2530 = vrot.lane.b32.xlu0 %v2528, 32
    %v2531 = vpop.permute.xlu0 %2530
    %v2533 = vadd.f32 %v2523, %v2531
    %v2534 = vtanh.pop %v2533
    %2536 = vrot.lane.b32.xlu0 %v2534, 64
    %v2537 = vpop.permute.xlu0 %2536
    %v2539 = vmul.f32 %v2521, %v2537
    %v2540 = vld [vmem:[%s2] sm:$0xff]
    %v2541 = vld [vmem:[%s2 + $0x8] sm:$0xff]
    %v2542 = vld [vmem:[%s2 + $0x10] sm:$0xff]
    %v2543 = vld [vmem:[%s2 + $0x18] sm:$0xff]
    %v2544 = vld [vmem:[%s491] sm:$0xff]
    %v2545 = vld [vmem:[%s491 + $0x8] sm:$0xff]
    %v2546 = vld [vmem:[%s491 + $0x10] sm:$0xff]
    %v2547 = vld [vmem:[%s491 + $0x18] sm:$0xff]
    %2549 = vrot.lane.b32.xlu0 %v2062, 32
    %v2550 = vpop.permute.xlu0 %2549
    %v2551 = vsel %vm283, %v2550, 0
    %2553 = vmatprep.subr.mxu0 0.0
    %2554 = vmatpush1.msra.mxu0 %v2544
    %2555 = vmatprep.subr.mxu0 0.0
    %2556 = vmatpush1.msra.mxu0 %v2545
    %2557 = vmatprep.subr.mxu0 0.0
    %2558 = vmatpush1.msra.mxu0 %v2546
    %2559 = vmatprep.subr.mxu0 0.0
    %2560 = vmatpush1.msra.mxu0 %v2547
    %2561 = vmatprep.subr.mxu0 0.0
    %2562 = vmatpush1.msra.mxu0 0.0
    %2563 = vmatprep.subr.mxu0 0.0
    %2564 = vmatpush1.msra.mxu0 0.0
    %2565 = vmatprep.subr.mxu0 0.0
    %2566 = vmatpush1.msra.mxu0 0.0
    %2567 = vmatprep.subr.mxu0 0.0
    %2568 = vmatpush1.msra.mxu0 0.0
    %2569 = vmatprep.subr.mxu0 0.0
    %2570 = vmatpush1.msra.mxu0 0.0
    %2571 = vmatprep.subr.mxu0 0.0
    %2572 = vmatpush1.msra.mxu0 0.0
    %2573 = vmatprep.subr.mxu0 0.0
    %2574 = vmatpush1.msra.mxu0 0.0
    %2575 = vmatprep.subr.mxu0 0.0
    %2576 = vmatpush1.msra.mxu0 0.0
    %2577 = vmatprep.subr.mxu0 0.0
    %2578 = vmatpush1.msra.mxu0 0.0
    %2579 = vmatprep.subr.mxu0 0.0
    %2580 = vmatpush1.msra.mxu0 0.0
    %2581 = vmatprep.subr.mxu0 0.0
    %2582 = vmatpush1.msra.mxu0 0.0
    %2583 = vmatprep.subr.mxu0 0.0
    %2584 = vmatpush1.msra.mxu0 0.0
    %2585 = vmatprep.subr.mxu0 0.0
    %2586 = vmatpush1.msra.mxu0 0.0
    %2587 = vmatprep.subr.mxu0 0.0
    %2588 = vmatpush1.msra.mxu0 0.0
    %2589 = vmatprep.subr.mxu0 0.0
    %2590 = vmatpush1.msra.mxu0 0.0
    %2591 = vmatprep.subr.mxu0 0.0
    %2592 = vmatpush1.msra.mxu0 0.0
    %2593 = vmatprep.subr.mxu0 0.0
    %2594 = vmatpush1.msra.mxu0 0.0
    %2595 = vmatprep.subr.mxu0 0.0
    %2596 = vmatpush1.msra.mxu0 0.0
    %2597 = vmatprep.subr.mxu0 0.0
    %2598 = vmatpush1.msra.mxu0 0.0
    %2599 = vmatprep.subr.mxu0 0.0
    %2600 = vmatpush1.msra.mxu0 0.0
    %2601 = vmatprep.subr.mxu0 0.0
    %2602 = vmatpush1.msra.mxu0 0.0
    %2603 = vmatprep.subr.mxu0 0.0
    %2604 = vmatpush1.msra.mxu0 0.0
    %2605 = vmatprep.subr.mxu0 0.0
    %2606 = vmatpush1.msra.mxu0 0.0
    %2607 = vmatprep.subr.mxu0 0.0
    %2608 = vmatpush1.msra.mxu0 0.0
    %2609 = vmatprep.subr.mxu0 0.0
    %2610 = vmatpush1.msra.mxu0 0.0
    %2611 = vmatprep.subr.mxu0 0.0
    %2612 = vmatpush1.msra.mxu0 0.0
    %2613 = vmatprep.subr.mxu0 0.0
    %2614 = vmatpush1.msra.mxu0 0.0
    %2615 = vmatprep.subr.mxu0 0.0
    %2616 = vmatpush1.msra.mxu0 0.0
    %2617 = vmatprep.mubr.f32.mxu0 0.0
    %2618 = vmatmul.mubr.f32.gmra.mrb[0].mxu0 %v2551
    %v2619 = vpop.f32.mrb[0].mxu0
    %v2620 = vadd.f32 0.0, %v2619
    %v2621 = vpop.f32.mrb[0].mxu0
    %2622 = vdwg.mxu0
    %2623 = vmatprep.subr.mxu0 0.0
    %2624 = vmatpush1.msra.mxu0 %v2540
    %2625 = vmatprep.subr.mxu0 0.0
    %2626 = vmatpush1.msra.mxu0 %v2541
    %2627 = vmatprep.subr.mxu0 0.0
    %2628 = vmatpush1.msra.mxu0 %v2542
    %2629 = vmatprep.subr.mxu0 0.0
    %2630 = vmatpush1.msra.mxu0 %v2543
    %2631 = vmatprep.subr.mxu0 0.0
    %2632 = vmatpush1.msra.mxu0 0.0
    %2633 = vmatprep.subr.mxu0 0.0
    %2634 = vmatpush1.msra.mxu0 0.0
    %2635 = vmatprep.subr.mxu0 0.0
    %2636 = vmatpush1.msra.mxu0 0.0
    %2637 = vmatprep.subr.mxu0 0.0
    %2638 = vmatpush1.msra.mxu0 0.0
    %2639 = vmatprep.subr.mxu0 0.0
    %2640 = vmatpush1.msra.mxu0 0.0
    %2641 = vmatprep.subr.mxu0 0.0
    %2642 = vmatpush1.msra.mxu0 0.0
    %2643 = vmatprep.subr.mxu0 0.0
    %2644 = vmatpush1.msra.mxu0 0.0
    %2645 = vmatprep.subr.mxu0 0.0
    %2646 = vmatpush1.msra.mxu0 0.0
    %2647 = vmatprep.subr.mxu0 0.0
    %2648 = vmatpush1.msra.mxu0 0.0
    %2649 = vmatprep.subr.mxu0 0.0
    %2650 = vmatpush1.msra.mxu0 0.0
    %2651 = vmatprep.subr.mxu0 0.0
    %2652 = vmatpush1.msra.mxu0 0.0
    %2653 = vmatprep.subr.mxu0 0.0
    %2654 = vmatpush1.msra.mxu0 0.0
    %2655 = vmatprep.subr.mxu0 0.0
    %2656 = vmatpush1.msra.mxu0 0.0
    %2657 = vmatprep.subr.mxu0 0.0
    %2658 = vmatpush1.msra.mxu0 0.0
    %2659 = vmatprep.subr.mxu0 0.0
    %2660 = vmatpush1.msra.mxu0 0.0
    %2661 = vmatprep.subr.mxu0 0.0
    %2662 = vmatpush1.msra.mxu0 0.0
    %2663 = vmatprep.subr.mxu0 0.0
    %2664 = vmatpush1.msra.mxu0 0.0
    %2665 = vmatprep.subr.mxu0 0.0
    %2666 = vmatpush1.msra.mxu0 0.0
    %2667 = vmatprep.subr.mxu0 0.0
    %2668 = vmatpush1.msra.mxu0 0.0
    %2669 = vmatprep.subr.mxu0 0.0
    %2670 = vmatpush1.msra.mxu0 0.0
    %2671 = vmatprep.subr.mxu0 0.0
    %2672 = vmatpush1.msra.mxu0 0.0
    %2673 = vmatprep.subr.mxu0 0.0
    %2674 = vmatpush1.msra.mxu0 0.0
    %2675 = vmatprep.subr.mxu0 0.0
    %2676 = vmatpush1.msra.mxu0 0.0
    %2677 = vmatprep.subr.mxu0 0.0
    %2678 = vmatpush1.msra.mxu0 0.0
    %2679 = vmatprep.subr.mxu0 0.0
    %2680 = vmatpush1.msra.mxu0 0.0
    %2681 = vmatprep.subr.mxu0 0.0
    %2682 = vmatpush1.msra.mxu0 0.0
    %2683 = vmatprep.subr.mxu0 0.0
    %2684 = vmatpush1.msra.mxu0 0.0
    %2685 = vmatprep.subr.mxu0 0.0
    %2686 = vmatpush1.msra.mxu0 0.0
    %2687 = vmatprep.mubr.f32.mxu0 0.0
    %2688 = vmatmul.mubr.f32.gmra.mrb[0].mxu0 %v2443
    %v2689 = vpop.f32.mrb[0].mxu0
    %v2690 = vadd.f32 %v2620, %v2689
    %v2691 = vpop.f32.mrb[0].mxu0
    %2692 = vdwg.mxu0
    %v2693 = vld [vmem:[%s639] sm:$0x1]
    %v2695 = vlaneseq
    %v2696 = vshrl.u32 %v2695, 7
    %v2697 = vsub.s32 0, %v2696
    %v2698 = vrot.slane %v2693, %v2697
    %v2700 = vadd.f32 %v2690, %v2698
    %v2701 = vxor.u32 %v2700, 2147483648
    %v2702 = vmul.f32 %v2701, 1.442695
    %v2703 = vpow.pop %v2702
    %v2704 = vadd.f32 %v2703, 1.0
    %v2705 = vrcp.pop %v2704
    %v2706 = vmul.f32 1.0, %v2705
    %v2707 = vtanh.pop %v2700
    %v2708 = vmul.f32 %v2706, %v2056
    %2710 = vrot.lane.b32.xlu0 %v2707, 64
    %v2711 = vpop.permute.xlu0 %2710
    %v2713 = vmul.f32 %v2706, %v2711
    %2715 = vrot.lane.b32.xlu0 %v2713, 32
    %v2716 = vpop.permute.xlu0 %2715
    %v2718 = vadd.f32 %v2708, %v2716
    %v2719 = vtanh.pop %v2718
    %2721 = vrot.lane.b32.xlu0 %v2719, 64
    %v2722 = vpop.permute.xlu0 %2721
    %v2724 = vmul.f32 %v2706, %v2722
    %v2725 = vld [vmem:[%s947] sm:$0xff]
    %v2726 = vld [vmem:[%s947 + $0x8] sm:$0xff]
    %v2727 = vld [vmem:[%s947 + $0x10] sm:$0xff]
    %v2728 = vld [vmem:[%s947 + $0x18] sm:$0xff]
    %v2729 = vld [vmem:[%s952] sm:$0xff]
    %v2730 = vld [vmem:[%s952 + $0x8] sm:$0xff]
    %v2731 = vld [vmem:[%s952 + $0x10] sm:$0xff]
    %v2732 = vld [vmem:[%s952 + $0x18] sm:$0xff]
    %2734 = vrot.lane.b32.xlu0 %v2247, 32
    %v2735 = vpop.permute.xlu0 %2734
    %v2736 = vsel %vm283, %v2735, 0
    %2738 = vmatprep.subr.mxu0 0.0
    %2739 = vmatpush1.msra.mxu0 %v2729
    %2740 = vmatprep.subr.mxu0 0.0
    %2741 = vmatpush1.msra.mxu0 %v2730
    %2742 = vmatprep.subr.mxu0 0.0
    %2743 = vmatpush1.msra.mxu0 %v2731
    %2744 = vmatprep.subr.mxu0 0.0
    %2745 = vmatpush1.msra.mxu0 %v2732
    %2746 = vmatprep.subr.mxu0 0.0
    %2747 = vmatpush1.msra.mxu0 0.0
    %2748 = vmatprep.subr.mxu0 0.0
    %2749 = vmatpush1.msra.mxu0 0.0
    %2750 = vmatprep.subr.mxu0 0.0
    %2751 = vmatpush1.msra.mxu0 0.0
    %2752 = vmatprep.subr.mxu0 0.0
    %2753 = vmatpush1.msra.mxu0 0.0
    %2754 = vmatprep.subr.mxu0 0.0
    %2755 = vmatpush1.msra.mxu0 0.0
    %2756 = vmatprep.subr.mxu0 0.0
    %2757 = vmatpush1.msra.mxu0 0.0
    %2758 = vmatprep.subr.mxu0 0.0
    %2759 = vmatpush1.msra.mxu0 0.0
    %2760 = vmatprep.subr.mxu0 0.0
    %2761 = vmatpush1.msra.mxu0 0.0
    %2762 = vmatprep.subr.mxu0 0.0
    %2763 = vmatpush1.msra.mxu0 0.0
    %2764 = vmatprep.subr.mxu0 0.0
    %2765 = vmatpush1.msra.mxu0 0.0
    %2766 = vmatprep.subr.mxu0 0.0
    %2767 = vmatpush1.msra.mxu0 0.0
    %2768 = vmatprep.subr.mxu0 0.0
    %2769 = vmatpush1.msra.mxu0 0.0
    %2770 = vmatprep.subr.mxu0 0.0
    %2771 = vmatpush1.msra.mxu0 0.0
    %2772 = vmatprep.subr.mxu0 0.0
    %2773 = vmatpush1.msra.mxu0 0.0
    %2774 = vmatprep.subr.mxu0 0.0
    %2775 = vmatpush1.msra.mxu0 0.0
    %2776 = vmatprep.subr.mxu0 0.0
    %2777 = vmatpush1.msra.mxu0 0.0
    %2778 = vmatprep.subr.mxu0 0.0
    %2779 = vmatpush1.msra.mxu0 0.0
    %2780 = vmatprep.subr.mxu0 0.0
    %2781 = vmatpush1.msra.mxu0 0.0
    %2782 = vmatprep.subr.mxu0 0.0
    %2783 = vmatpush1.msra.mxu0 0.0
    %2784 = vmatprep.subr.mxu0 0.0
    %2785 = vmatpush1.msra.mxu0 0.0
    %2786 = vmatprep.subr.mxu0 0.0
    %2787 = vmatpush1.msra.mxu0 0.0
    %2788 = vmatprep.subr.mxu0 0.0
    %2789 = vmatpush1.msra.mxu0 0.0
    %2790 = vmatprep.subr.mxu0 0.0
    %2791 = vmatpush1.msra.mxu0 0.0
    %2792 = vmatprep.subr.mxu0 0.0
    %2793 = vmatpush1.msra.mxu0 0.0
    %2794 = vmatprep.subr.mxu0 0.0
    %2795 = vmatpush1.msra.mxu0 0.0
    %2796 = vmatprep.subr.mxu0 0.0
    %2797 = vmatpush1.msra.mxu0 0.0
    %2798 = vmatprep.subr.mxu0 0.0
    %2799 = vmatpush1.msra.mxu0 0.0
    %2800 = vmatprep.subr.mxu0 0.0
    %2801 = vmatpush1.msra.mxu0 0.0
    %2802 = vmatprep.mubr.f32.mxu0 0.0
    %2803 = vmatmul.mubr.f32.gmra.mrb[0].mxu0 %v2736
    %v2804 = vpop.f32.mrb[0].mxu0
    %v2805 = vadd.f32 0.0, %v2804
    %v2806 = vpop.f32.mrb[0].mxu0
    %2807 = vdwg.mxu0
    %2808 = vmatprep.subr.mxu0 0.0
    %2809 = vmatpush1.msra.mxu0 %v2725
    %2810 = vmatprep.subr.mxu0 0.0
    %2811 = vmatpush1.msra.mxu0 %v2726
    %2812 = vmatprep.subr.mxu0 0.0
    %2813 = vmatpush1.msra.mxu0 %v2727
    %2814 = vmatprep.subr.mxu0 0.0
    %2815 = vmatpush1.msra.mxu0 %v2728
    %2816 = vmatprep.subr.mxu0 0.0
    %2817 = vmatpush1.msra.mxu0 0.0
    %2818 = vmatprep.subr.mxu0 0.0
    %2819 = vmatpush1.msra.mxu0 0.0
    %2820 = vmatprep.subr.mxu0 0.0
    %2821 = vmatpush1.msra.mxu0 0.0
    %2822 = vmatprep.subr.mxu0 0.0
    %2823 = vmatpush1.msra.mxu0 0.0
    %2824 = vmatprep.subr.mxu0 0.0
    %2825 = vmatpush1.msra.mxu0 0.0
    %2826 = vmatprep.subr.mxu0 0.0
    %2827 = vmatpush1.msra.mxu0 0.0
    %2828 = vmatprep.subr.mxu0 0.0
    %2829 = vmatpush1.msra.mxu0 0.0
    %2830 = vmatprep.subr.mxu0 0.0
    %2831 = vmatpush1.msra.mxu0 0.0
    %2832 = vmatprep.subr.mxu0 0.0
    %2833 = vmatpush1.msra.mxu0 0.0
    %2834 = vmatprep.subr.mxu0 0.0
    %2835 = vmatpush1.msra.mxu0 0.0
    %2836 = vmatprep.subr.mxu0 0.0
    %2837 = vmatpush1.msra.mxu0 0.0
    %2838 = vmatprep.subr.mxu0 0.0
    %2839 = vmatpush1.msra.mxu0 0.0
    %2840 = vmatprep.subr.mxu0 0.0
    %2841 = vmatpush1.msra.mxu0 0.0
    %2842 = vmatprep.subr.mxu0 0.0
    %2843 = vmatpush1.msra.mxu0 0.0
    %2844 = vmatprep.subr.mxu0 0.0
    %2845 = vmatpush1.msra.mxu0 0.0
    %2846 = vmatprep.subr.mxu0 0.0
    %2847 = vmatpush1.msra.mxu0 0.0
    %2848 = vmatprep.subr.mxu0 0.0
    %2849 = vmatpush1.msra.mxu0 0.0
    %2850 = vmatprep.subr.mxu0 0.0
    %2851 = vmatpush1.msra.mxu0 0.0
    %2852 = vmatprep.subr.mxu0 0.0
    %2853 = vmatpush1.msra.mxu0 0.0
    %2854 = vmatprep.subr.mxu0 0.0
    %2855 = vmatpush1.msra.mxu0 0.0
    %2856 = vmatprep.subr.mxu0 0.0
    %2857 = vmatpush1.msra.mxu0 0.0
    %2858 = vmatprep.subr.mxu0 0.0
    %2859 = vmatpush1.msra.mxu0 0.0
    %2860 = vmatprep.subr.mxu0 0.0
    %2861 = vmatpush1.msra.mxu0 0.0
    %2862 = vmatprep.subr.mxu0 0.0
    %2863 = vmatpush1.msra.mxu0 0.0
    %2864 = vmatprep.subr.mxu0 0.0
    %2865 = vmatpush1.msra.mxu0 0.0
    %2866 = vmatprep.subr.mxu0 0.0
    %2867 = vmatpush1.msra.mxu0 0.0
    %2868 = vmatprep.subr.mxu0 0.0
    %2869 = vmatpush1.msra.mxu0 0.0
    %2870 = vmatprep.subr.mxu0 0.0
    %2871 = vmatpush1.msra.mxu0 0.0
    %2872 = vmatprep.mubr.f32.mxu0 0.0
    %2873 = vmatmul.mubr.f32.gmra.mrb[0].mxu0 %v2551
    %v2874 = vpop.f32.mrb[0].mxu0
    %v2875 = vadd.f32 %v2805, %v2874
    %v2876 = vpop.f32.mrb[0].mxu0
    %2877 = vdwg.mxu0
    %v2878 = vld [vmem:[%s1100] sm:$0x1]
    %v2880 = vlaneseq
    %v2881 = vshrl.u32 %v2880, 7
    %v2882 = vsub.s32 0, %v2881
    %v2883 = vrot.slane %v2878, %v2882
    %v2885 = vadd.f32 %v2875, %v2883
    %v2886 = vxor.u32 %v2885, 2147483648
    %v2887 = vmul.f32 %v2886, 1.442695
    %v2888 = vpow.pop %v2887
    %v2889 = vadd.f32 %v2888, 1.0
    %v2890 = vrcp.pop %v2889
    %v2891 = vmul.f32 1.0, %v2890
    %v2892 = vtanh.pop %v2885
    %v2893 = vmul.f32 %v2891, %v2241
    %2895 = vrot.lane.b32.xlu0 %v2892, 64
    %v2896 = vpop.permute.xlu0 %2895
    %v2898 = vmul.f32 %v2891, %v2896
    %2900 = vrot.lane.b32.xlu0 %v2898, 32
    %v2901 = vpop.permute.xlu0 %2900
    %v2903 = vadd.f32 %v2893, %v2901
    %v2904 = vtanh.pop %v2903
    %2906 = vrot.lane.b32.xlu0 %v2904, 64
    %v2907 = vpop.permute.xlu0 %2906
    %v2909 = vmul.f32 %v2891, %v2907
    %v2910 = vld [vmem:[%s1578] sm:$0xff]
    %v2911 = vld [vmem:[%s1578 + $0x8] sm:$0xff]
    %v2912 = vld [vmem:[%s1578 + $0x10] sm:$0xff]
    %v2913 = vld [vmem:[%s1578 + $0x18] sm:$0xff]
    %v2914 = vld [vmem:[%s1583] sm:$0xff]
    %v2915 = vld [vmem:[%s1583 + $0x8] sm:$0xff]
    %v2916 = vld [vmem:[%s1583 + $0x10] sm:$0xff]
    %v2917 = vld [vmem:[%s1583 + $0x18] sm:$0xff]
    %v2918 = vsel %vm283, %v2432, 0
    %2920 = vmatprep.subr.mxu0 0.0
    %2921 = vmatpush1.msra.mxu0 %v2914
    %2922 = vmatprep.subr.mxu0 0.0
    %2923 = vmatpush1.msra.mxu0 %v2915
    %2924 = vmatprep.subr.mxu0 0.0
    %2925 = vmatpush1.msra.mxu0 %v2916
    %2926 = vmatprep.subr.mxu0 0.0
    %2927 = vmatpush1.msra.mxu0 %v2917
    %2928 = vmatprep.subr.mxu0 0.0
    %2929 = vmatpush1.msra.mxu0 0.0
    %2930 = vmatprep.subr.mxu0 0.0
    %2931 = vmatpush1.msra.mxu0 0.0
    %2932 = vmatprep.subr.mxu0 0.0
    %2933 = vmatpush1.msra.mxu0 0.0
    %2934 = vmatprep.subr.mxu0 0.0
    %2935 = vmatpush1.msra.mxu0 0.0
    %2936 = vmatprep.subr.mxu0 0.0
    %2937 = vmatpush1.msra.mxu0 0.0
    %2938 = vmatprep.subr.mxu0 0.0
    %2939 = vmatpush1.msra.mxu0 0.0
    %2940 = vmatprep.subr.mxu0 0.0
    %2941 = vmatpush1.msra.mxu0 0.0
    %2942 = vmatprep.subr.mxu0 0.0
    %2943 = vmatpush1.msra.mxu0 0.0
    %2944 = vmatprep.subr.mxu0 0.0
    %2945 = vmatpush1.msra.mxu0 0.0
    %2946 = vmatprep.subr.mxu0 0.0
    %2947 = vmatpush1.msra.mxu0 0.0
    %2948 = vmatprep.subr.mxu0 0.0
    %2949 = vmatpush1.msra.mxu0 0.0
    %2950 = vmatprep.subr.mxu0 0.0
    %2951 = vmatpush1.msra.mxu0 0.0
    %2952 = vmatprep.subr.mxu0 0.0
    %2953 = vmatpush1.msra.mxu0 0.0
    %2954 = vmatprep.subr.mxu0 0.0
    %2955 = vmatpush1.msra.mxu0 0.0
    %2956 = vmatprep.subr.mxu0 0.0
    %2957 = vmatpush1.msra.mxu0 0.0
    %2958 = vmatprep.subr.mxu0 0.0
    %2959 = vmatpush1.msra.mxu0 0.0
    %2960 = vmatprep.subr.mxu0 0.0
    %2961 = vmatpush1.msra.mxu0 0.0
    %2962 = vmatprep.subr.mxu0 0.0
    %2963 = vmatpush1.msra.mxu0 0.0
    %2964 = vmatprep.subr.mxu0 0.0
    %2965 = vmatpush1.msra.mxu0 0.0
    %2966 = vmatprep.subr.mxu0 0.0
    %2967 = vmatpush1.msra.mxu0 0.0
    %2968 = vmatprep.subr.mxu0 0.0
    %2969 = vmatpush1.msra.mxu0 0.0
    %2970 = vmatprep.subr.mxu0 0.0
    %2971 = vmatpush1.msra.mxu0 0.0
    %2972 = vmatprep.subr.mxu0 0.0
    %2973 = vmatpush1.msra.mxu0 0.0
    %2974 = vmatprep.subr.mxu0 0.0
    %2975 = vmatpush1.msra.mxu0 0.0
    %2976 = vmatprep.subr.mxu0 0.0
    %2977 = vmatpush1.msra.mxu0 0.0
    %2978 = vmatprep.subr.mxu0 0.0
    %2979 = vmatpush1.msra.mxu0 0.0
    %2980 = vmatprep.subr.mxu0 0.0
    %2981 = vmatpush1.msra.mxu0 0.0
    %2982 = vmatprep.subr.mxu0 0.0
    %2983 = vmatpush1.msra.mxu0 0.0
    %2984 = vmatprep.mubr.f32.mxu0 0.0
    %2985 = vmatmul.mubr.f32.gmra.mrb[0].mxu0 %v2918
    %v2986 = vpop.f32.mrb[0].mxu0
    %v2987 = vadd.f32 0.0, %v2986
    %v2988 = vpop.f32.mrb[0].mxu0
    %2989 = vdwg.mxu0
    %2990 = vmatprep.subr.mxu0 0.0
    %2991 = vmatpush1.msra.mxu0 %v2910
    %2992 = vmatprep.subr.mxu0 0.0
    %2993 = vmatpush1.msra.mxu0 %v2911
    %2994 = vmatprep.subr.mxu0 0.0
    %2995 = vmatpush1.msra.mxu0 %v2912
    %2996 = vmatprep.subr.mxu0 0.0
    %2997 = vmatpush1.msra.mxu0 %v2913
    %2998 = vmatprep.subr.mxu0 0.0
    %2999 = vmatpush1.msra.mxu0 0.0
    %3000 = vmatprep.subr.mxu0 0.0
    %3001 = vmatpush1.msra.mxu0 0.0
    %3002 = vmatprep.subr.mxu0 0.0
    %3003 = vmatpush1.msra.mxu0 0.0
    %3004 = vmatprep.subr.mxu0 0.0
    %3005 = vmatpush1.msra.mxu0 0.0
    %3006 = vmatprep.subr.mxu0 0.0
    %3007 = vmatpush1.msra.mxu0 0.0
    %3008 = vmatprep.subr.mxu0 0.0
    %3009 = vmatpush1.msra.mxu0 0.0
    %3010 = vmatprep.subr.mxu0 0.0
    %3011 = vmatpush1.msra.mxu0 0.0
    %3012 = vmatprep.subr.mxu0 0.0
    %3013 = vmatpush1.msra.mxu0 0.0
    %3014 = vmatprep.subr.mxu0 0.0
    %3015 = vmatpush1.msra.mxu0 0.0
    %3016 = vmatprep.subr.mxu0 0.0
    %3017 = vmatpush1.msra.mxu0 0.0
    %3018 = vmatprep.subr.mxu0 0.0
    %3019 = vmatpush1.msra.mxu0 0.0
    %3020 = vmatprep.subr.mxu0 0.0
    %3021 = vmatpush1.msra.mxu0 0.0
    %3022 = vmatprep.subr.mxu0 0.0
    %3023 = vmatpush1.msra.mxu0 0.0
    %3024 = vmatprep.subr.mxu0 0.0
    %3025 = vmatpush1.msra.mxu0 0.0
    %3026 = vmatprep.subr.mxu0 0.0
    %3027 = vmatpush1.msra.mxu0 0.0
    %3028 = vmatprep.subr.mxu0 0.0
    %3029 = vmatpush1.msra.mxu0 0.0
    %3030 = vmatprep.subr.mxu0 0.0
    %3031 = vmatpush1.msra.mxu0 0.0
    %3032 = vmatprep.subr.mxu0 0.0
    %3033 = vmatpush1.msra.mxu0 0.0
    %3034 = vmatprep.subr.mxu0 0.0
    %3035 = vmatpush1.msra.mxu0 0.0
    %3036 = vmatprep.subr.mxu0 0.0
    %3037 = vmatpush1.msra.mxu0 0.0
    %3038 = vmatprep.subr.mxu0 0.0
    %3039 = vmatpush1.msra.mxu0 0.0
    %3040 = vmatprep.subr.mxu0 0.0
    %3041 = vmatpush1.msra.mxu0 0.0
    %3042 = vmatprep.subr.mxu0 0.0
    %3043 = vmatpush1.msra.mxu0 0.0
    %3044 = vmatprep.subr.mxu0 0.0
    %3045 = vmatpush1.msra.mxu0 0.0
    %3046 = vmatprep.subr.mxu0 0.0
    %3047 = vmatpush1.msra.mxu0 0.0
    %3048 = vmatprep.subr.mxu0 0.0
    %3049 = vmatpush1.msra.mxu0 0.0
    %3050 = vmatprep.subr.mxu0 0.0
    %3051 = vmatpush1.msra.mxu0 0.0
    %3052 = vmatprep.subr.mxu0 0.0
    %3053 = vmatpush1.msra.mxu0 0.0
    %3054 = vmatprep.mubr.f32.mxu0 0.0
    %3055 = vmatmul.mubr.f32.gmra.mrb[0].mxu0 %v2736
    %v3056 = vpop.f32.mrb[0].mxu0
    %v3057 = vadd.f32 %v2987, %v3056
    %v3058 = vpop.f32.mrb[0].mxu0
    %3059 = vdwg.mxu0
    %v3060 = vld [vmem:[%s1731] sm:$0x1]
    %v3062 = vlaneseq
    %v3063 = vshrl.u32 %v3062, 7
    %v3064 = vsub.s32 0, %v3063
    %v3065 = vrot.slane %v3060, %v3064
    %v3067 = vadd.f32 %v3057, %v3065
    %v3068 = vxor.u32 %v3067, 2147483648
    %v3069 = vmul.f32 %v3068, 1.442695
    %v3070 = vpow.pop %v3069
    %v3071 = vadd.f32 %v3070, 1.0
    %v3072 = vrcp.pop %v3071
    %v3073 = vmul.f32 1.0, %v3072
    %v3074 = vtanh.pop %v3067
    %v3075 = vmul.f32 %v3073, %v2423
    %3077 = vrot.lane.b32.xlu0 %v3074, 64
    %v3078 = vpop.permute.xlu0 %3077
    %v3080 = vmul.f32 %v3073, %v3078
    %3082 = vrot.lane.b32.xlu0 %v3080, 32
    %v3083 = vpop.permute.xlu0 %3082
    %v3085 = vadd.f32 %v3075, %v3083
    %v3086 = vtanh.pop %v3085
    %3088 = vrot.lane.b32.xlu0 %v3086, 64
    %v3089 = vpop.permute.xlu0 %3088
    %v3091 = vmul.f32 %v3073, %v3089
    %3093 = vrot.lane.b32.xlu0 %v3091, 32
    %v3094 = vpop.permute.xlu0 %3093
    %3096 = vst.msk [vmem:[#allocation3 + $0x10] sm:$0xff] %vm283, %v3094
    %v3097 = vld [vmem:[#allocation2 + $0x30] sm:$0xff]
    %v3098 = vld [vmem:[#allocation7] sm:$0xff]
    %v3099 = vld [vmem:[#allocation7 + $0x8] sm:$0xff]
    %v3100 = vld [vmem:[#allocation7 + $0x10] sm:$0xff]
    %v3101 = vld [vmem:[#allocation7 + $0x18] sm:$0xff]
    %3103 = vrot.lane.b32.xlu0 %v2539, 32
    %v3104 = vpop.permute.xlu0 %3103
    %v3105 = vsel %vm283, %v3104, 0
    %3107 = vmatprep.subr.mxu0 0.0
    %3108 = vmatpush1.msra.mxu0 %v3098
    %3109 = vmatprep.subr.mxu0 0.0
    %3110 = vmatpush1.msra.mxu0 %v3099
    %3111 = vmatprep.subr.mxu0 0.0
    %3112 = vmatpush1.msra.mxu0 %v3100
    %3113 = vmatprep.subr.mxu0 0.0
    %3114 = vmatpush1.msra.mxu0 %v3101
    %3115 = vmatprep.subr.mxu0 0.0
    %3116 = vmatpush1.msra.mxu0 0.0
    %3117 = vmatprep.subr.mxu0 0.0
    %3118 = vmatpush1.msra.mxu0 0.0
    %3119 = vmatprep.subr.mxu0 0.0
    %3120 = vmatpush1.msra.mxu0 0.0
    %3121 = vmatprep.subr.mxu0 0.0
    %3122 = vmatpush1.msra.mxu0 0.0
    %3123 = vmatprep.subr.mxu0 0.0
    %3124 = vmatpush1.msra.mxu0 0.0
    %3125 = vmatprep.subr.mxu0 0.0
    %3126 = vmatpush1.msra.mxu0 0.0
    %3127 = vmatprep.subr.mxu0 0.0
    %3128 = vmatpush1.msra.mxu0 0.0
    %3129 = vmatprep.subr.mxu0 0.0
    %3130 = vmatpush1.msra.mxu0 0.0
    %3131 = vmatprep.subr.mxu0 0.0
    %3132 = vmatpush1.msra.mxu0 0.0
    %3133 = vmatprep.subr.mxu0 0.0
    %3134 = vmatpush1.msra.mxu0 0.0
    %3135 = vmatprep.subr.mxu0 0.0
    %3136 = vmatpush1.msra.mxu0 0.0
    %3137 = vmatprep.subr.mxu0 0.0
    %3138 = vmatpush1.msra.mxu0 0.0
    %3139 = vmatprep.subr.mxu0 0.0
    %3140 = vmatpush1.msra.mxu0 0.0
    %3141 = vmatprep.subr.mxu0 0.0
    %3142 = vmatpush1.msra.mxu0 0.0
    %3143 = vmatprep.subr.mxu0 0.0
    %3144 = vmatpush1.msra.mxu0 0.0
    %3145 = vmatprep.subr.mxu0 0.0
    %3146 = vmatpush1.msra.mxu0 0.0
    %3147 = vmatprep.subr.mxu0 0.0
    %3148 = vmatpush1.msra.mxu0 0.0
    %3149 = vmatprep.subr.mxu0 0.0
    %3150 = vmatpush1.msra.mxu0 0.0
    %3151 = vmatprep.subr.mxu0 0.0
    %3152 = vmatpush1.msra.mxu0 0.0
    %3153 = vmatprep.subr.mxu0 0.0
    %3154 = vmatpush1.msra.mxu0 0.0
    %3155 = vmatprep.subr.mxu0 0.0
    %3156 = vmatpush1.msra.mxu0 0.0
    %3157 = vmatprep.subr.mxu0 0.0
    %3158 = vmatpush1.msra.mxu0 0.0
    %3159 = vmatprep.subr.mxu0 0.0
    %3160 = vmatpush1.msra.mxu0 0.0
    %3161 = vmatprep.subr.mxu0 0.0
    %3162 = vmatpush1.msra.mxu0 0.0
    %3163 = vmatprep.subr.mxu0 0.0
    %3164 = vmatpush1.msra.mxu0 0.0
    %3165 = vmatprep.subr.mxu0 0.0
    %3166 = vmatpush1.msra.mxu0 0.0
    %3167 = vmatprep.subr.mxu0 0.0
    %3168 = vmatpush1.msra.mxu0 0.0
    %3169 = vmatprep.subr.mxu0 0.0
    %3170 = vmatpush1.msra.mxu0 0.0
    %3171 = vmatprep.mubr.f32.mxu0 0.0
    %3172 = vmatmul.mubr.f32.gmra.mrb[0].mxu0 %v3105
    %v3173 = vpop.f32.mrb[0].mxu0
    %v3174 = vadd.f32 0.0, %v3173
    %v3175 = vpop.f32.mrb[0].mxu0
    %3176 = vdwg.mxu0
    %v3177 = vadd.f32 %v3097, %v3174
    %v3178 = vxor.u32 %v3177, 2147483648
    %v3179 = vmul.f32 %v3178, 1.442695
    %v3180 = vpow.pop %v3179
    %v3181 = vadd.f32 %v3180, 1.0
    %v3182 = vrcp.pop %v3181
    %v3183 = vmul.f32 1.0, %v3182
    %v3184 = vtanh.pop %v3177
    %v3185 = vmul.f32 %v3183, %v2533
    %3187 = vrot.lane.b32.xlu0 %v3184, 64
    %v3188 = vpop.permute.xlu0 %3187
    %v3190 = vmul.f32 %v3183, %v3188
    %3192 = vrot.lane.b32.xlu0 %v3190, 32
    %v3193 = vpop.permute.xlu0 %3192
    %v3195 = vadd.f32 %v3185, %v3193
    %v3196 = vtanh.pop %v3195
    %3198 = vrot.lane.b32.xlu0 %v3196, 64
    %v3199 = vpop.permute.xlu0 %3198
    %v3201 = vmul.f32 %v3183, %v3199
    %v3202 = vld [vmem:[%s2] sm:$0xff]
    %v3203 = vld [vmem:[%s2 + $0x8] sm:$0xff]
    %v3204 = vld [vmem:[%s2 + $0x10] sm:$0xff]
    %v3205 = vld [vmem:[%s2 + $0x18] sm:$0xff]
    %v3206 = vld [vmem:[%s491] sm:$0xff]
    %v3207 = vld [vmem:[%s491 + $0x8] sm:$0xff]
    %v3208 = vld [vmem:[%s491 + $0x10] sm:$0xff]
    %v3209 = vld [vmem:[%s491 + $0x18] sm:$0xff]
    %3211 = vrot.lane.b32.xlu0 %v2724, 32
    %v3212 = vpop.permute.xlu0 %3211
    %v3213 = vsel %vm283, %v3212, 0
    %3215 = vmatprep.subr.mxu0 0.0
    %3216 = vmatpush1.msra.mxu0 %v3206
    %3217 = vmatprep.subr.mxu0 0.0
    %3218 = vmatpush1.msra.mxu0 %v3207
    %3219 = vmatprep.subr.mxu0 0.0
    %3220 = vmatpush1.msra.mxu0 %v3208
    %3221 = vmatprep.subr.mxu0 0.0
    %3222 = vmatpush1.msra.mxu0 %v3209
    %3223 = vmatprep.subr.mxu0 0.0
    %3224 = vmatpush1.msra.mxu0 0.0
    %3225 = vmatprep.subr.mxu0 0.0
    %3226 = vmatpush1.msra.mxu0 0.0
    %3227 = vmatprep.subr.mxu0 0.0
    %3228 = vmatpush1.msra.mxu0 0.0
    %3229 = vmatprep.subr.mxu0 0.0
    %3230 = vmatpush1.msra.mxu0 0.0
    %3231 = vmatprep.subr.mxu0 0.0
    %3232 = vmatpush1.msra.mxu0 0.0
    %3233 = vmatprep.subr.mxu0 0.0
    %3234 = vmatpush1.msra.mxu0 0.0
    %3235 = vmatprep.subr.mxu0 0.0
    %3236 = vmatpush1.msra.mxu0 0.0
    %3237 = vmatprep.subr.mxu0 0.0
    %3238 = vmatpush1.msra.mxu0 0.0
    %3239 = vmatprep.subr.mxu0 0.0
    %3240 = vmatpush1.msra.mxu0 0.0
    %3241 = vmatprep.subr.mxu0 0.0
    %3242 = vmatpush1.msra.mxu0 0.0
    %3243 = vmatprep.subr.mxu0 0.0
    %3244 = vmatpush1.msra.mxu0 0.0
    %3245 = vmatprep.subr.mxu0 0.0
    %3246 = vmatpush1.msra.mxu0 0.0
    %3247 = vmatprep.subr.mxu0 0.0
    %3248 = vmatpush1.msra.mxu0 0.0
    %3249 = vmatprep.subr.mxu0 0.0
    %3250 = vmatpush1.msra.mxu0 0.0
    %3251 = vmatprep.subr.mxu0 0.0
    %3252 = vmatpush1.msra.mxu0 0.0
    %3253 = vmatprep.subr.mxu0 0.0
    %3254 = vmatpush1.msra.mxu0 0.0
    %3255 = vmatprep.subr.mxu0 0.0
    %3256 = vmatpush1.msra.mxu0 0.0
    %3257 = vmatprep.subr.mxu0 0.0
    %3258 = vmatpush1.msra.mxu0 0.0
    %3259 = vmatprep.subr.mxu0 0.0
    %3260 = vmatpush1.msra.mxu0 0.0
    %3261 = vmatprep.subr.mxu0 0.0
    %3262 = vmatpush1.msra.mxu0 0.0
    %3263 = vmatprep.subr.mxu0 0.0
    %3264 = vmatpush1.msra.mxu0 0.0
    %3265 = vmatprep.subr.mxu0 0.0
    %3266 = vmatpush1.msra.mxu0 0.0
    %3267 = vmatprep.subr.mxu0 0.0
    %3268 = vmatpush1.msra.mxu0 0.0
    %3269 = vmatprep.subr.mxu0 0.0
    %3270 = vmatpush1.msra.mxu0 0.0
    %3271 = vmatprep.subr.mxu0 0.0
    %3272 = vmatpush1.msra.mxu0 0.0
    %3273 = vmatprep.subr.mxu0 0.0
    %3274 = vmatpush1.msra.mxu0 0.0
    %3275 = vmatprep.subr.mxu0 0.0
    %3276 = vmatpush1.msra.mxu0 0.0
    %3277 = vmatprep.subr.mxu0 0.0
    %3278 = vmatpush1.msra.mxu0 0.0
    %3279 = vmatprep.mubr.f32.mxu0 0.0
    %3280 = vmatmul.mubr.f32.gmra.mrb[0].mxu0 %v3213
    %v3281 = vpop.f32.mrb[0].mxu0
    %v3282 = vadd.f32 0.0, %v3281
    %v3283 = vpop.f32.mrb[0].mxu0
    %3284 = vdwg.mxu0
    %3285 = vmatprep.subr.mxu0 0.0
    %3286 = vmatpush1.msra.mxu0 %v3202
    %3287 = vmatprep.subr.mxu0 0.0
    %3288 = vmatpush1.msra.mxu0 %v3203
    %3289 = vmatprep.subr.mxu0 0.0
    %3290 = vmatpush1.msra.mxu0 %v3204
    %3291 = vmatprep.subr.mxu0 0.0
    %3292 = vmatpush1.msra.mxu0 %v3205
    %3293 = vmatprep.subr.mxu0 0.0
    %3294 = vmatpush1.msra.mxu0 0.0
    %3295 = vmatprep.subr.mxu0 0.0
    %3296 = vmatpush1.msra.mxu0 0.0
    %3297 = vmatprep.subr.mxu0 0.0
    %3298 = vmatpush1.msra.mxu0 0.0
    %3299 = vmatprep.subr.mxu0 0.0
    %3300 = vmatpush1.msra.mxu0 0.0
    %3301 = vmatprep.subr.mxu0 0.0
    %3302 = vmatpush1.msra.mxu0 0.0
    %3303 = vmatprep.subr.mxu0 0.0
    %3304 = vmatpush1.msra.mxu0 0.0
    %3305 = vmatprep.subr.mxu0 0.0
    %3306 = vmatpush1.msra.mxu0 0.0
    %3307 = vmatprep.subr.mxu0 0.0
    %3308 = vmatpush1.msra.mxu0 0.0
    %3309 = vmatprep.subr.mxu0 0.0
    %3310 = vmatpush1.msra.mxu0 0.0
    %3311 = vmatprep.subr.mxu0 0.0
    %3312 = vmatpush1.msra.mxu0 0.0
    %3313 = vmatprep.subr.mxu0 0.0
    %3314 = vmatpush1.msra.mxu0 0.0
    %3315 = vmatprep.subr.mxu0 0.0
    %3316 = vmatpush1.msra.mxu0 0.0
    %3317 = vmatprep.subr.mxu0 0.0
    %3318 = vmatpush1.msra.mxu0 0.0
    %3319 = vmatprep.subr.mxu0 0.0
    %3320 = vmatpush1.msra.mxu0 0.0
    %3321 = vmatprep.subr.mxu0 0.0
    %3322 = vmatpush1.msra.mxu0 0.0
    %3323 = vmatprep.subr.mxu0 0.0
    %3324 = vmatpush1.msra.mxu0 0.0
    %3325 = vmatprep.subr.mxu0 0.0
    %3326 = vmatpush1.msra.mxu0 0.0
    %3327 = vmatprep.subr.mxu0 0.0
    %3328 = vmatpush1.msra.mxu0 0.0
    %3329 = vmatprep.subr.mxu0 0.0
    %3330 = vmatpush1.msra.mxu0 0.0
    %3331 = vmatprep.subr.mxu0 0.0
    %3332 = vmatpush1.msra.mxu0 0.0
    %3333 = vmatprep.subr.mxu0 0.0
    %3334 = vmatpush1.msra.mxu0 0.0
    %3335 = vmatprep.subr.mxu0 0.0
    %3336 = vmatpush1.msra.mxu0 0.0
    %3337 = vmatprep.subr.mxu0 0.0
    %3338 = vmatpush1.msra.mxu0 0.0
    %3339 = vmatprep.subr.mxu0 0.0
    %3340 = vmatpush1.msra.mxu0 0.0
    %3341 = vmatprep.subr.mxu0 0.0
    %3342 = vmatpush1.msra.mxu0 0.0
    %3343 = vmatprep.subr.mxu0 0.0
    %3344 = vmatpush1.msra.mxu0 0.0
    %3345 = vmatprep.subr.mxu0 0.0
    %3346 = vmatpush1.msra.mxu0 0.0
    %3347 = vmatprep.subr.mxu0 0.0
    %3348 = vmatpush1.msra.mxu0 0.0
    %3349 = vmatprep.mubr.f32.mxu0 0.0
    %3350 = vmatmul.mubr.f32.gmra.mrb[0].mxu0 %v3105
    %v3351 = vpop.f32.mrb[0].mxu0
    %v3352 = vadd.f32 %v3282, %v3351
    %v3353 = vpop.f32.mrb[0].mxu0
    %3354 = vdwg.mxu0
    %v3355 = vld [vmem:[%s639] sm:$0x1]
    %v3357 = vlaneseq
    %v3358 = vshrl.u32 %v3357, 7
    %v3359 = vsub.s32 0, %v3358
    %v3360 = vrot.slane %v3355, %v3359
    %v3362 = vadd.f32 %v3352, %v3360
    %v3363 = vxor.u32 %v3362, 2147483648
    %v3364 = vmul.f32 %v3363, 1.442695
    %v3365 = vpow.pop %v3364
    %v3366 = vadd.f32 %v3365, 1.0
    %v3367 = vrcp.pop %v3366
    %v3368 = vmul.f32 1.0, %v3367
    %v3369 = vtanh.pop %v3362
    %v3370 = vmul.f32 %v3368, %v2718
    %3372 = vrot.lane.b32.xlu0 %v3369, 64
    %v3373 = vpop.permute.xlu0 %3372
    %v3375 = vmul.f32 %v3368, %v3373
    %3377 = vrot.lane.b32.xlu0 %v3375, 32
    %v3378 = vpop.permute.xlu0 %3377
    %v3380 = vadd.f32 %v3370, %v3378
    %v3381 = vtanh.pop %v3380
    %3383 = vrot.lane.b32.xlu0 %v3381, 64
    %v3384 = vpop.permute.xlu0 %3383
    %v3386 = vmul.f32 %v3368, %v3384
    %v3387 = vld [vmem:[%s947] sm:$0xff]
    %v3388 = vld [vmem:[%s947 + $0x8] sm:$0xff]
    %v3389 = vld [vmem:[%s947 + $0x10] sm:$0xff]
    %v3390 = vld [vmem:[%s947 + $0x18] sm:$0xff]
    %v3391 = vld [vmem:[%s952] sm:$0xff]
    %v3392 = vld [vmem:[%s952 + $0x8] sm:$0xff]
    %v3393 = vld [vmem:[%s952 + $0x10] sm:$0xff]
    %v3394 = vld [vmem:[%s952 + $0x18] sm:$0xff]
    %3396 = vrot.lane.b32.xlu0 %v2909, 32
    %v3397 = vpop.permute.xlu0 %3396
    %v3398 = vsel %vm283, %v3397, 0
    %3400 = vmatprep.subr.mxu0 0.0
    %3401 = vmatpush1.msra.mxu0 %v3391
    %3402 = vmatprep.subr.mxu0 0.0
    %3403 = vmatpush1.msra.mxu0 %v3392
    %3404 = vmatprep.subr.mxu0 0.0
    %3405 = vmatpush1.msra.mxu0 %v3393
    %3406 = vmatprep.subr.mxu0 0.0
    %3407 = vmatpush1.msra.mxu0 %v3394
    %3408 = vmatprep.subr.mxu0 0.0
    %3409 = vmatpush1.msra.mxu0 0.0
    %3410 = vmatprep.subr.mxu0 0.0
    %3411 = vmatpush1.msra.mxu0 0.0
    %3412 = vmatprep.subr.mxu0 0.0
    %3413 = vmatpush1.msra.mxu0 0.0
    %3414 = vmatprep.subr.mxu0 0.0
    %3415 = vmatpush1.msra.mxu0 0.0
    %3416 = vmatprep.subr.mxu0 0.0
    %3417 = vmatpush1.msra.mxu0 0.0
    %3418 = vmatprep.subr.mxu0 0.0
    %3419 = vmatpush1.msra.mxu0 0.0
    %3420 = vmatprep.subr.mxu0 0.0
    %3421 = vmatpush1.msra.mxu0 0.0
    %3422 = vmatprep.subr.mxu0 0.0
    %3423 = vmatpush1.msra.mxu0 0.0
    %3424 = vmatprep.subr.mxu0 0.0
    %3425 = vmatpush1.msra.mxu0 0.0
    %3426 = vmatprep.subr.mxu0 0.0
    %3427 = vmatpush1.msra.mxu0 0.0
    %3428 = vmatprep.subr.mxu0 0.0
    %3429 = vmatpush1.msra.mxu0 0.0
    %3430 = vmatprep.subr.mxu0 0.0
    %3431 = vmatpush1.msra.mxu0 0.0
    %3432 = vmatprep.subr.mxu0 0.0
    %3433 = vmatpush1.msra.mxu0 0.0
    %3434 = vmatprep.subr.mxu0 0.0
    %3435 = vmatpush1.msra.mxu0 0.0
    %3436 = vmatprep.subr.mxu0 0.0
    %3437 = vmatpush1.msra.mxu0 0.0
    %3438 = vmatprep.subr.mxu0 0.0
    %3439 = vmatpush1.msra.mxu0 0.0
    %3440 = vmatprep.subr.mxu0 0.0
    %3441 = vmatpush1.msra.mxu0 0.0
    %3442 = vmatprep.subr.mxu0 0.0
    %3443 = vmatpush1.msra.mxu0 0.0
    %3444 = vmatprep.subr.mxu0 0.0
    %3445 = vmatpush1.msra.mxu0 0.0
    %3446 = vmatprep.subr.mxu0 0.0
    %3447 = vmatpush1.msra.mxu0 0.0
    %3448 = vmatprep.subr.mxu0 0.0
    %3449 = vmatpush1.msra.mxu0 0.0
    %3450 = vmatprep.subr.mxu0 0.0
    %3451 = vmatpush1.msra.mxu0 0.0
    %3452 = vmatprep.subr.mxu0 0.0
    %3453 = vmatpush1.msra.mxu0 0.0
    %3454 = vmatprep.subr.mxu0 0.0
    %3455 = vmatpush1.msra.mxu0 0.0
    %3456 = vmatprep.subr.mxu0 0.0
    %3457 = vmatpush1.msra.mxu0 0.0
    %3458 = vmatprep.subr.mxu0 0.0
    %3459 = vmatpush1.msra.mxu0 0.0
    %3460 = vmatprep.subr.mxu0 0.0
    %3461 = vmatpush1.msra.mxu0 0.0
    %3462 = vmatprep.subr.mxu0 0.0
    %3463 = vmatpush1.msra.mxu0 0.0
    %3464 = vmatprep.mubr.f32.mxu0 0.0
    %3465 = vmatmul.mubr.f32.gmra.mrb[0].mxu0 %v3398
    %v3466 = vpop.f32.mrb[0].mxu0
    %v3467 = vadd.f32 0.0, %v3466
    %v3468 = vpop.f32.mrb[0].mxu0
    %3469 = vdwg.mxu0
    %3470 = vmatprep.subr.mxu0 0.0
    %3471 = vmatpush1.msra.mxu0 %v3387
    %3472 = vmatprep.subr.mxu0 0.0
    %3473 = vmatpush1.msra.mxu0 %v3388
    %3474 = vmatprep.subr.mxu0 0.0
    %3475 = vmatpush1.msra.mxu0 %v3389
    %3476 = vmatprep.subr.mxu0 0.0
    %3477 = vmatpush1.msra.mxu0 %v3390
    %3478 = vmatprep.subr.mxu0 0.0
    %3479 = vmatpush1.msra.mxu0 0.0
    %3480 = vmatprep.subr.mxu0 0.0
    %3481 = vmatpush1.msra.mxu0 0.0
    %3482 = vmatprep.subr.mxu0 0.0
    %3483 = vmatpush1.msra.mxu0 0.0
    %3484 = vmatprep.subr.mxu0 0.0
    %3485 = vmatpush1.msra.mxu0 0.0
    %3486 = vmatprep.subr.mxu0 0.0
    %3487 = vmatpush1.msra.mxu0 0.0
    %3488 = vmatprep.subr.mxu0 0.0
    %3489 = vmatpush1.msra.mxu0 0.0
    %3490 = vmatprep.subr.mxu0 0.0
    %3491 = vmatpush1.msra.mxu0 0.0
    %3492 = vmatprep.subr.mxu0 0.0
    %3493 = vmatpush1.msra.mxu0 0.0
    %3494 = vmatprep.subr.mxu0 0.0
    %3495 = vmatpush1.msra.mxu0 0.0
    %3496 = vmatprep.subr.mxu0 0.0
    %3497 = vmatpush1.msra.mxu0 0.0
    %3498 = vmatprep.subr.mxu0 0.0
    %3499 = vmatpush1.msra.mxu0 0.0
    %3500 = vmatprep.subr.mxu0 0.0
    %3501 = vmatpush1.msra.mxu0 0.0
    %3502 = vmatprep.subr.mxu0 0.0
    %3503 = vmatpush1.msra.mxu0 0.0
    %3504 = vmatprep.subr.mxu0 0.0
    %3505 = vmatpush1.msra.mxu0 0.0
    %3506 = vmatprep.subr.mxu0 0.0
    %3507 = vmatpush1.msra.mxu0 0.0
    %3508 = vmatprep.subr.mxu0 0.0
    %3509 = vmatpush1.msra.mxu0 0.0
    %3510 = vmatprep.subr.mxu0 0.0
    %3511 = vmatpush1.msra.mxu0 0.0
    %3512 = vmatprep.subr.mxu0 0.0
    %3513 = vmatpush1.msra.mxu0 0.0
    %3514 = vmatprep.subr.mxu0 0.0
    %3515 = vmatpush1.msra.mxu0 0.0
    %3516 = vmatprep.subr.mxu0 0.0
    %3517 = vmatpush1.msra.mxu0 0.0
    %3518 = vmatprep.subr.mxu0 0.0
    %3519 = vmatpush1.msra.mxu0 0.0
    %3520 = vmatprep.subr.mxu0 0.0
    %3521 = vmatpush1.msra.mxu0 0.0
    %3522 = vmatprep.subr.mxu0 0.0
    %3523 = vmatpush1.msra.mxu0 0.0
    %3524 = vmatprep.subr.mxu0 0.0
    %3525 = vmatpush1.msra.mxu0 0.0
    %3526 = vmatprep.subr.mxu0 0.0
    %3527 = vmatpush1.msra.mxu0 0.0
    %3528 = vmatprep.subr.mxu0 0.0
    %3529 = vmatpush1.msra.mxu0 0.0
    %3530 = vmatprep.subr.mxu0 0.0
    %3531 = vmatpush1.msra.mxu0 0.0
    %3532 = vmatprep.subr.mxu0 0.0
    %3533 = vmatpush1.msra.mxu0 0.0
    %3534 = vmatprep.mubr.f32.mxu0 0.0
    %3535 = vmatmul.mubr.f32.gmra.mrb[0].mxu0 %v3213
    %v3536 = vpop.f32.mrb[0].mxu0
    %v3537 = vadd.f32 %v3467, %v3536
    %v3538 = vpop.f32.mrb[0].mxu0
    %3539 = vdwg.mxu0
    %v3540 = vld [vmem:[%s1100] sm:$0x1]
    %v3542 = vlaneseq
    %v3543 = vshrl.u32 %v3542, 7
    %v3544 = vsub.s32 0, %v3543
    %v3545 = vrot.slane %v3540, %v3544
    %v3547 = vadd.f32 %v3537, %v3545
    %v3548 = vxor.u32 %v3547, 2147483648
    %v3549 = vmul.f32 %v3548, 1.442695
    %v3550 = vpow.pop %v3549
    %v3551 = vadd.f32 %v3550, 1.0
    %v3552 = vrcp.pop %v3551
    %v3553 = vmul.f32 1.0, %v3552
    %v3554 = vtanh.pop %v3547
    %v3555 = vmul.f32 %v3553, %v2903
    %3557 = vrot.lane.b32.xlu0 %v3554, 64
    %v3558 = vpop.permute.xlu0 %3557
    %v3560 = vmul.f32 %v3553, %v3558
    %3562 = vrot.lane.b32.xlu0 %v3560, 32
    %v3563 = vpop.permute.xlu0 %3562
    %v3565 = vadd.f32 %v3555, %v3563
    %v3566 = vtanh.pop %v3565
    %3568 = vrot.lane.b32.xlu0 %v3566, 64
    %v3569 = vpop.permute.xlu0 %3568
    %v3571 = vmul.f32 %v3553, %v3569
    %v3572 = vld [vmem:[%s1578] sm:$0xff]
    %v3573 = vld [vmem:[%s1578 + $0x8] sm:$0xff]
    %v3574 = vld [vmem:[%s1578 + $0x10] sm:$0xff]
    %v3575 = vld [vmem:[%s1578 + $0x18] sm:$0xff]
    %v3576 = vld [vmem:[%s1583] sm:$0xff]
    %v3577 = vld [vmem:[%s1583 + $0x8] sm:$0xff]
    %v3578 = vld [vmem:[%s1583 + $0x10] sm:$0xff]
    %v3579 = vld [vmem:[%s1583 + $0x18] sm:$0xff]
    %v3580 = vsel %vm283, %v3094, 0
    %3582 = vmatprep.subr.mxu0 0.0
    %3583 = vmatpush1.msra.mxu0 %v3576
    %3584 = vmatprep.subr.mxu0 0.0
    %3585 = vmatpush1.msra.mxu0 %v3577
    %3586 = vmatprep.subr.mxu0 0.0
    %3587 = vmatpush1.msra.mxu0 %v3578
    %3588 = vmatprep.subr.mxu0 0.0
    %3589 = vmatpush1.msra.mxu0 %v3579
    %3590 = vmatprep.subr.mxu0 0.0
    %3591 = vmatpush1.msra.mxu0 0.0
    %3592 = vmatprep.subr.mxu0 0.0
    %3593 = vmatpush1.msra.mxu0 0.0
    %3594 = vmatprep.subr.mxu0 0.0
    %3595 = vmatpush1.msra.mxu0 0.0
    %3596 = vmatprep.subr.mxu0 0.0
    %3597 = vmatpush1.msra.mxu0 0.0
    %3598 = vmatprep.subr.mxu0 0.0
    %3599 = vmatpush1.msra.mxu0 0.0
    %3600 = vmatprep.subr.mxu0 0.0
    %3601 = vmatpush1.msra.mxu0 0.0
    %3602 = vmatprep.subr.mxu0 0.0
    %3603 = vmatpush1.msra.mxu0 0.0
    %3604 = vmatprep.subr.mxu0 0.0
    %3605 = vmatpush1.msra.mxu0 0.0
    %3606 = vmatprep.subr.mxu0 0.0
    %3607 = vmatpush1.msra.mxu0 0.0
    %3608 = vmatprep.subr.mxu0 0.0
    %3609 = vmatpush1.msra.mxu0 0.0
    %3610 = vmatprep.subr.mxu0 0.0
    %3611 = vmatpush1.msra.mxu0 0.0
    %3612 = vmatprep.subr.mxu0 0.0
    %3613 = vmatpush1.msra.mxu0 0.0
    %3614 = vmatprep.subr.mxu0 0.0
    %3615 = vmatpush1.msra.mxu0 0.0
    %3616 = vmatprep.subr.mxu0 0.0
    %3617 = vmatpush1.msra.mxu0 0.0
    %3618 = vmatprep.subr.mxu0 0.0
    %3619 = vmatpush1.msra.mxu0 0.0
    %3620 = vmatprep.subr.mxu0 0.0
    %3621 = vmatpush1.msra.mxu0 0.0
    %3622 = vmatprep.subr.mxu0 0.0
    %3623 = vmatpush1.msra.mxu0 0.0
    %3624 = vmatprep.subr.mxu0 0.0
    %3625 = vmatpush1.msra.mxu0 0.0
    %3626 = vmatprep.subr.mxu0 0.0
    %3627 = vmatpush1.msra.mxu0 0.0
    %3628 = vmatprep.subr.mxu0 0.0
    %3629 = vmatpush1.msra.mxu0 0.0
    %3630 = vmatprep.subr.mxu0 0.0
    %3631 = vmatpush1.msra.mxu0 0.0
    %3632 = vmatprep.subr.mxu0 0.0
    %3633 = vmatpush1.msra.mxu0 0.0
    %3634 = vmatprep.subr.mxu0 0.0
    %3635 = vmatpush1.msra.mxu0 0.0
    %3636 = vmatprep.subr.mxu0 0.0
    %3637 = vmatpush1.msra.mxu0 0.0
    %3638 = vmatprep.subr.mxu0 0.0
    %3639 = vmatpush1.msra.mxu0 0.0
    %3640 = vmatprep.subr.mxu0 0.0
    %3641 = vmatpush1.msra.mxu0 0.0
    %3642 = vmatprep.subr.mxu0 0.0
    %3643 = vmatpush1.msra.mxu0 0.0
    %3644 = vmatprep.subr.mxu0 0.0
    %3645 = vmatpush1.msra.mxu0 0.0
    %3646 = vmatprep.mubr.f32.mxu0 0.0
    %3647 = vmatmul.mubr.f32.gmra.mrb[0].mxu0 %v3580
    %v3648 = vpop.f32.mrb[0].mxu0
    %v3649 = vadd.f32 0.0, %v3648
    %v3650 = vpop.f32.mrb[0].mxu0
    %3651 = vdwg.mxu0
    %3652 = vmatprep.subr.mxu0 0.0
    %3653 = vmatpush1.msra.mxu0 %v3572
    %3654 = vmatprep.subr.mxu0 0.0
    %3655 = vmatpush1.msra.mxu0 %v3573
    %3656 = vmatprep.subr.mxu0 0.0
    %3657 = vmatpush1.msra.mxu0 %v3574
    %3658 = vmatprep.subr.mxu0 0.0
    %3659 = vmatpush1.msra.mxu0 %v3575
    %3660 = vmatprep.subr.mxu0 0.0
    %3661 = vmatpush1.msra.mxu0 0.0
    %3662 = vmatprep.subr.mxu0 0.0
    %3663 = vmatpush1.msra.mxu0 0.0
    %3664 = vmatprep.subr.mxu0 0.0
    %3665 = vmatpush1.msra.mxu0 0.0
    %3666 = vmatprep.subr.mxu0 0.0
    %3667 = vmatpush1.msra.mxu0 0.0
    %3668 = vmatprep.subr.mxu0 0.0
    %3669 = vmatpush1.msra.mxu0 0.0
    %3670 = vmatprep.subr.mxu0 0.0
    %3671 = vmatpush1.msra.mxu0 0.0
    %3672 = vmatprep.subr.mxu0 0.0
    %3673 = vmatpush1.msra.mxu0 0.0
    %3674 = vmatprep.subr.mxu0 0.0
    %3675 = vmatpush1.msra.mxu0 0.0
    %3676 = vmatprep.subr.mxu0 0.0
    %3677 = vmatpush1.msra.mxu0 0.0
    %3678 = vmatprep.subr.mxu0 0.0
    %3679 = vmatpush1.msra.mxu0 0.0
    %3680 = vmatprep.subr.mxu0 0.0
    %3681 = vmatpush1.msra.mxu0 0.0
    %3682 = vmatprep.subr.mxu0 0.0
    %3683 = vmatpush1.msra.mxu0 0.0
    %3684 = vmatprep.subr.mxu0 0.0
    %3685 = vmatpush1.msra.mxu0 0.0
    %3686 = vmatprep.subr.mxu0 0.0
    %3687 = vmatpush1.msra.mxu0 0.0
    %3688 = vmatprep.subr.mxu0 0.0
    %3689 = vmatpush1.msra.mxu0 0.0
    %3690 = vmatprep.subr.mxu0 0.0
    %3691 = vmatpush1.msra.mxu0 0.0
    %3692 = vmatprep.subr.mxu0 0.0
    %3693 = vmatpush1.msra.mxu0 0.0
    %3694 = vmatprep.subr.mxu0 0.0
    %3695 = vmatpush1.msra.mxu0 0.0
    %3696 = vmatprep.subr.mxu0 0.0
    %3697 = vmatpush1.msra.mxu0 0.0
    %3698 = vmatprep.subr.mxu0 0.0
    %3699 = vmatpush1.msra.mxu0 0.0
    %3700 = vmatprep.subr.mxu0 0.0
    %3701 = vmatpush1.msra.mxu0 0.0
    %3702 = vmatprep.subr.mxu0 0.0
    %3703 = vmatpush1.msra.mxu0 0.0
    %3704 = vmatprep.subr.mxu0 0.0
    %3705 = vmatpush1.msra.mxu0 0.0
    %3706 = vmatprep.subr.mxu0 0.0
    %3707 = vmatpush1.msra.mxu0 0.0
    %3708 = vmatprep.subr.mxu0 0.0
    %3709 = vmatpush1.msra.mxu0 0.0
    %3710 = vmatprep.subr.mxu0 0.0
    %3711 = vmatpush1.msra.mxu0 0.0
    %3712 = vmatprep.subr.mxu0 0.0
    %3713 = vmatpush1.msra.mxu0 0.0
    %3714 = vmatprep.subr.mxu0 0.0
    %3715 = vmatpush1.msra.mxu0 0.0
    %3716 = vmatprep.mubr.f32.mxu0 0.0
    %3717 = vmatmul.mubr.f32.gmra.mrb[0].mxu0 %v3398
    %v3718 = vpop.f32.mrb[0].mxu0
    %v3719 = vadd.f32 %v3649, %v3718
    %v3720 = vpop.f32.mrb[0].mxu0
    %3721 = vdwg.mxu0
    %v3722 = vld [vmem:[%s1731] sm:$0x1]
    %v3724 = vlaneseq
    %v3725 = vshrl.u32 %v3724, 7
    %v3726 = vsub.s32 0, %v3725
    %v3727 = vrot.slane %v3722, %v3726
    %v3729 = vadd.f32 %v3719, %v3727
    %v3730 = vxor.u32 %v3729, 2147483648
    %v3731 = vmul.f32 %v3730, 1.442695
    %v3732 = vpow.pop %v3731
    %v3733 = vadd.f32 %v3732, 1.0
    %v3734 = vrcp.pop %v3733
    %v3735 = vmul.f32 1.0, %v3734
    %v3736 = vtanh.pop %v3729
    %v3737 = vmul.f32 %v3735, %v3085
    %3739 = vrot.lane.b32.xlu0 %v3736, 64
    %v3740 = vpop.permute.xlu0 %3739
    %v3742 = vmul.f32 %v3735, %v3740
    %3744 = vrot.lane.b32.xlu0 %v3742, 32
    %v3745 = vpop.permute.xlu0 %3744
    %v3747 = vadd.f32 %v3737, %v3745
    %v3748 = vtanh.pop %v3747
    %3750 = vrot.lane.b32.xlu0 %v3748, 64
    %v3751 = vpop.permute.xlu0 %3750
    %v3753 = vmul.f32 %v3735, %v3751
    %3755 = vrot.lane.b32.xlu0 %v3753, 32
    %v3756 = vpop.permute.xlu0 %3755
    %3758 = vst.msk [vmem:[#allocation3 + $0x18] sm:$0xff] %vm283, %v3756
    %v3759 = vld [vmem:[#allocation2 + $0x38] sm:$0xff]
    %v3760 = vld [vmem:[#allocation7] sm:$0xff]
    %v3761 = vld [vmem:[#allocation7 + $0x8] sm:$0xff]
    %v3762 = vld [vmem:[#allocation7 + $0x10] sm:$0xff]
    %v3763 = vld [vmem:[#allocation7 + $0x18] sm:$0xff]
    %3765 = vrot.lane.b32.xlu0 %v3201, 32
    %v3766 = vpop.permute.xlu0 %3765
    %v3767 = vsel %vm283, %v3766, 0
    %3769 = vmatprep.subr.mxu0 0.0
    %3770 = vmatpush1.msra.mxu0 %v3760
    %3771 = vmatprep.subr.mxu0 0.0
    %3772 = vmatpush1.msra.mxu0 %v3761
    %3773 = vmatprep.subr.mxu0 0.0
    %3774 = vmatpush1.msra.mxu0 %v3762
    %3775 = vmatprep.subr.mxu0 0.0
    %3776 = vmatpush1.msra.mxu0 %v3763
    %3777 = vmatprep.subr.mxu0 0.0
    %3778 = vmatpush1.msra.mxu0 0.0
    %3779 = vmatprep.subr.mxu0 0.0
    %3780 = vmatpush1.msra.mxu0 0.0
    %3781 = vmatprep.subr.mxu0 0.0
    %3782 = vmatpush1.msra.mxu0 0.0
    %3783 = vmatprep.subr.mxu0 0.0
    %3784 = vmatpush1.msra.mxu0 0.0
    %3785 = vmatprep.subr.mxu0 0.0
    %3786 = vmatpush1.msra.mxu0 0.0
    %3787 = vmatprep.subr.mxu0 0.0
    %3788 = vmatpush1.msra.mxu0 0.0
    %3789 = vmatprep.subr.mxu0 0.0
    %3790 = vmatpush1.msra.mxu0 0.0
    %3791 = vmatprep.subr.mxu0 0.0
    %3792 = vmatpush1.msra.mxu0 0.0
    %3793 = vmatprep.subr.mxu0 0.0
    %3794 = vmatpush1.msra.mxu0 0.0
    %3795 = vmatprep.subr.mxu0 0.0
    %3796 = vmatpush1.msra.mxu0 0.0
    %3797 = vmatprep.subr.mxu0 0.0
    %3798 = vmatpush1.msra.mxu0 0.0
    %3799 = vmatprep.subr.mxu0 0.0
    %3800 = vmatpush1.msra.mxu0 0.0
    %3801 = vmatprep.subr.mxu0 0.0
    %3802 = vmatpush1.msra.mxu0 0.0
    %3803 = vmatprep.subr.mxu0 0.0
    %3804 = vmatpush1.msra.mxu0 0.0
    %3805 = vmatprep.subr.mxu0 0.0
    %3806 = vmatpush1.msra.mxu0 0.0
    %3807 = vmatprep.subr.mxu0 0.0
    %3808 = vmatpush1.msra.mxu0 0.0
    %3809 = vmatprep.subr.mxu0 0.0
    %3810 = vmatpush1.msra.mxu0 0.0
    %3811 = vmatprep.subr.mxu0 0.0
    %3812 = vmatpush1.msra.mxu0 0.0
    %3813 = vmatprep.subr.mxu0 0.0
    %3814 = vmatpush1.msra.mxu0 0.0
    %3815 = vmatprep.subr.mxu0 0.0
    %3816 = vmatpush1.msra.mxu0 0.0
    %3817 = vmatprep.subr.mxu0 0.0
    %3818 = vmatpush1.msra.mxu0 0.0
    %3819 = vmatprep.subr.mxu0 0.0
    %3820 = vmatpush1.msra.mxu0 0.0
    %3821 = vmatprep.subr.mxu0 0.0
    %3822 = vmatpush1.msra.mxu0 0.0
    %3823 = vmatprep.subr.mxu0 0.0
    %3824 = vmatpush1.msra.mxu0 0.0
    %3825 = vmatprep.subr.mxu0 0.0
    %3826 = vmatpush1.msra.mxu0 0.0
    %3827 = vmatprep.subr.mxu0 0.0
    %3828 = vmatpush1.msra.mxu0 0.0
    %3829 = vmatprep.subr.mxu0 0.0
    %3830 = vmatpush1.msra.mxu0 0.0
    %3831 = vmatprep.subr.mxu0 0.0
    %3832 = vmatpush1.msra.mxu0 0.0
    %3833 = vmatprep.mubr.f32.mxu0 0.0
    %3834 = vmatmul.mubr.f32.gmra.mrb[0].mxu0 %v3767
    %v3835 = vpop.f32.mrb[0].mxu0
    %v3836 = vadd.f32 0.0, %v3835
    %v3837 = vpop.f32.mrb[0].mxu0
    %3838 = vdwg.mxu0
    %v3839 = vadd.f32 %v3759, %v3836
    %v3840 = vxor.u32 %v3839, 2147483648
    %v3841 = vmul.f32 %v3840, 1.442695
    %v3842 = vpow.pop %v3841
    %v3843 = vadd.f32 %v3842, 1.0
    %v3844 = vrcp.pop %v3843
    %v3845 = vmul.f32 1.0, %v3844
    %v3846 = vtanh.pop %v3839
    %v3847 = vmul.f32 %v3845, %v3195
    %3849 = vrot.lane.b32.xlu0 %v3846, 64
    %v3850 = vpop.permute.xlu0 %3849
    %v3852 = vmul.f32 %v3845, %v3850
    %3854 = vrot.lane.b32.xlu0 %v3852, 32
    %v3855 = vpop.permute.xlu0 %3854
    %v3857 = vadd.f32 %v3847, %v3855
    %v3858 = vtanh.pop %v3857
    %3860 = vrot.lane.b32.xlu0 %v3858, 64
    %v3861 = vpop.permute.xlu0 %3860
    %v3863 = vmul.f32 %v3845, %v3861
    %v3864 = vld [vmem:[%s2] sm:$0xff]
    %v3865 = vld [vmem:[%s2 + $0x8] sm:$0xff]
    %v3866 = vld [vmem:[%s2 + $0x10] sm:$0xff]
    %v3867 = vld [vmem:[%s2 + $0x18] sm:$0xff]
    %v3868 = vld [vmem:[%s491] sm:$0xff]
    %v3869 = vld [vmem:[%s491 + $0x8] sm:$0xff]
    %v3870 = vld [vmem:[%s491 + $0x10] sm:$0xff]
    %v3871 = vld [vmem:[%s491 + $0x18] sm:$0xff]
    %3873 = vrot.lane.b32.xlu0 %v3386, 32
    %v3874 = vpop.permute.xlu0 %3873
    %v3875 = vsel %vm283, %v3874, 0
    %3877 = vmatprep.subr.mxu0 0.0
    %3878 = vmatpush1.msra.mxu0 %v3868
    %3879 = vmatprep.subr.mxu0 0.0
    %3880 = vmatpush1.msra.mxu0 %v3869
    %3881 = vmatprep.subr.mxu0 0.0
    %3882 = vmatpush1.msra.mxu0 %v3870
    %3883 = vmatprep.subr.mxu0 0.0
    %3884 = vmatpush1.msra.mxu0 %v3871
    %3885 = vmatprep.subr.mxu0 0.0
    %3886 = vmatpush1.msra.mxu0 0.0
    %3887 = vmatprep.subr.mxu0 0.0
    %3888 = vmatpush1.msra.mxu0 0.0
    %3889 = vmatprep.subr.mxu0 0.0
    %3890 = vmatpush1.msra.mxu0 0.0
    %3891 = vmatprep.subr.mxu0 0.0
    %3892 = vmatpush1.msra.mxu0 0.0
    %3893 = vmatprep.subr.mxu0 0.0
    %3894 = vmatpush1.msra.mxu0 0.0
    %3895 = vmatprep.subr.mxu0 0.0
    %3896 = vmatpush1.msra.mxu0 0.0
    %3897 = vmatprep.subr.mxu0 0.0
    %3898 = vmatpush1.msra.mxu0 0.0
    %3899 = vmatprep.subr.mxu0 0.0
    %3900 = vmatpush1.msra.mxu0 0.0
    %3901 = vmatprep.subr.mxu0 0.0
    %3902 = vmatpush1.msra.mxu0 0.0
    %3903 = vmatprep.subr.mxu0 0.0
    %3904 = vmatpush1.msra.mxu0 0.0
    %3905 = vmatprep.subr.mxu0 0.0
    %3906 = vmatpush1.msra.mxu0 0.0
    %3907 = vmatprep.subr.mxu0 0.0
    %3908 = vmatpush1.msra.mxu0 0.0
    %3909 = vmatprep.subr.mxu0 0.0
    %3910 = vmatpush1.msra.mxu0 0.0
    %3911 = vmatprep.subr.mxu0 0.0
    %3912 = vmatpush1.msra.mxu0 0.0
    %3913 = vmatprep.subr.mxu0 0.0
    %3914 = vmatpush1.msra.mxu0 0.0
    %3915 = vmatprep.subr.mxu0 0.0
    %3916 = vmatpush1.msra.mxu0 0.0
    %3917 = vmatprep.subr.mxu0 0.0
    %3918 = vmatpush1.msra.mxu0 0.0
    %3919 = vmatprep.subr.mxu0 0.0
    %3920 = vmatpush1.msra.mxu0 0.0
    %3921 = vmatprep.subr.mxu0 0.0
    %3922 = vmatpush1.msra.mxu0 0.0
    %3923 = vmatprep.subr.mxu0 0.0
    %3924 = vmatpush1.msra.mxu0 0.0
    %3925 = vmatprep.subr.mxu0 0.0
    %3926 = vmatpush1.msra.mxu0 0.0
    %3927 = vmatprep.subr.mxu0 0.0
    %3928 = vmatpush1.msra.mxu0 0.0
    %3929 = vmatprep.subr.mxu0 0.0
    %3930 = vmatpush1.msra.mxu0 0.0
    %3931 = vmatprep.subr.mxu0 0.0
    %3932 = vmatpush1.msra.mxu0 0.0
    %3933 = vmatprep.subr.mxu0 0.0
    %3934 = vmatpush1.msra.mxu0 0.0
    %3935 = vmatprep.subr.mxu0 0.0
    %3936 = vmatpush1.msra.mxu0 0.0
    %3937 = vmatprep.subr.mxu0 0.0
    %3938 = vmatpush1.msra.mxu0 0.0
    %3939 = vmatprep.subr.mxu0 0.0
    %3940 = vmatpush1.msra.mxu0 0.0
    %3941 = vmatprep.mubr.f32.mxu0 0.0
    %3942 = vmatmul.mubr.f32.gmra.mrb[0].mxu0 %v3875
    %v3943 = vpop.f32.mrb[0].mxu0
    %v3944 = vadd.f32 0.0, %v3943
    %v3945 = vpop.f32.mrb[0].mxu0
    %3946 = vdwg.mxu0
    %3947 = vmatprep.subr.mxu0 0.0
    %3948 = vmatpush1.msra.mxu0 %v3864
    %3949 = vmatprep.subr.mxu0 0.0
    %3950 = vmatpush1.msra.mxu0 %v3865
    %3951 = vmatprep.subr.mxu0 0.0
    %3952 = vmatpush1.msra.mxu0 %v3866
    %3953 = vmatprep.subr.mxu0 0.0
    %3954 = vmatpush1.msra.mxu0 %v3867
    %3955 = vmatprep.subr.mxu0 0.0
    %3956 = vmatpush1.msra.mxu0 0.0
    %3957 = vmatprep.subr.mxu0 0.0
    %3958 = vmatpush1.msra.mxu0 0.0
    %3959 = vmatprep.subr.mxu0 0.0
    %3960 = vmatpush1.msra.mxu0 0.0
    %3961 = vmatprep.subr.mxu0 0.0
    %3962 = vmatpush1.msra.mxu0 0.0
    %3963 = vmatprep.subr.mxu0 0.0
    %3964 = vmatpush1.msra.mxu0 0.0
    %3965 = vmatprep.subr.mxu0 0.0
    %3966 = vmatpush1.msra.mxu0 0.0
    %3967 = vmatprep.subr.mxu0 0.0
    %3968 = vmatpush1.msra.mxu0 0.0
    %3969 = vmatprep.subr.mxu0 0.0
    %3970 = vmatpush1.msra.mxu0 0.0
    %3971 = vmatprep.subr.mxu0 0.0
    %3972 = vmatpush1.msra.mxu0 0.0
    %3973 = vmatprep.subr.mxu0 0.0
    %3974 = vmatpush1.msra.mxu0 0.0
    %3975 = vmatprep.subr.mxu0 0.0
    %3976 = vmatpush1.msra.mxu0 0.0
    %3977 = vmatprep.subr.mxu0 0.0
    %3978 = vmatpush1.msra.mxu0 0.0
    %3979 = vmatprep.subr.mxu0 0.0
    %3980 = vmatpush1.msra.mxu0 0.0
    %3981 = vmatprep.subr.mxu0 0.0
    %3982 = vmatpush1.msra.mxu0 0.0
    %3983 = vmatprep.subr.mxu0 0.0
    %3984 = vmatpush1.msra.mxu0 0.0
    %3985 = vmatprep.subr.mxu0 0.0
    %3986 = vmatpush1.msra.mxu0 0.0
    %3987 = vmatprep.subr.mxu0 0.0
    %3988 = vmatpush1.msra.mxu0 0.0
    %3989 = vmatprep.subr.mxu0 0.0
    %3990 = vmatpush1.msra.mxu0 0.0
    %3991 = vmatprep.subr.mxu0 0.0
    %3992 = vmatpush1.msra.mxu0 0.0
    %3993 = vmatprep.subr.mxu0 0.0
    %3994 = vmatpush1.msra.mxu0 0.0
    %3995 = vmatprep.subr.mxu0 0.0
    %3996 = vmatpush1.msra.mxu0 0.0
    %3997 = vmatprep.subr.mxu0 0.0
    %3998 = vmatpush1.msra.mxu0 0.0
    %3999 = vmatprep.subr.mxu0 0.0
    %4000 = vmatpush1.msra.mxu0 0.0
    %4001 = vmatprep.subr.mxu0 0.0
    %4002 = vmatpush1.msra.mxu0 0.0
    %4003 = vmatprep.subr.mxu0 0.0
    %4004 = vmatpush1.msra.mxu0 0.0
    %4005 = vmatprep.subr.mxu0 0.0
    %4006 = vmatpush1.msra.mxu0 0.0
    %4007 = vmatprep.subr.mxu0 0.0
    %4008 = vmatpush1.msra.mxu0 0.0
    %4009 = vmatprep.subr.mxu0 0.0
    %4010 = vmatpush1.msra.mxu0 0.0
    %4011 = vmatprep.mubr.f32.mxu0 0.0
    %4012 = vmatmul.mubr.f32.gmra.mrb[0].mxu0 %v3767
    %v4013 = vpop.f32.mrb[0].mxu0
    %v4014 = vadd.f32 %v3944, %v4013
    %v4015 = vpop.f32.mrb[0].mxu0
    %4016 = vdwg.mxu0
    %v4017 = vld [vmem:[%s639] sm:$0x1]
    %v4019 = vlaneseq
    %v4020 = vshrl.u32 %v4019, 7
    %v4021 = vsub.s32 0, %v4020
    %v4022 = vrot.slane %v4017, %v4021
    %v4024 = vadd.f32 %v4014, %v4022
    %v4025 = vxor.u32 %v4024, 2147483648
    %v4026 = vmul.f32 %v4025, 1.442695
    %v4027 = vpow.pop %v4026
    %v4028 = vadd.f32 %v4027, 1.0
    %v4029 = vrcp.pop %v4028
    %v4030 = vmul.f32 1.0, %v4029
    %v4031 = vtanh.pop %v4024
    %v4032 = vmul.f32 %v4030, %v3380
    %4034 = vrot.lane.b32.xlu0 %v4031, 64
    %v4035 = vpop.permute.xlu0 %4034
    %v4037 = vmul.f32 %v4030, %v4035
    %4039 = vrot.lane.b32.xlu0 %v4037, 32
    %v4040 = vpop.permute.xlu0 %4039
    %v4042 = vadd.f32 %v4032, %v4040
    %v4043 = vtanh.pop %v4042
    %4045 = vrot.lane.b32.xlu0 %v4043, 64
    %v4046 = vpop.permute.xlu0 %4045
    %v4048 = vmul.f32 %v4030, %v4046
    %v4049 = vld [vmem:[%s947] sm:$0xff]
    %v4050 = vld [vmem:[%s947 + $0x8] sm:$0xff]
    %v4051 = vld [vmem:[%s947 + $0x10] sm:$0xff]
    %v4052 = vld [vmem:[%s947 + $0x18] sm:$0xff]
    %v4053 = vld [vmem:[%s952] sm:$0xff]
    %v4054 = vld [vmem:[%s952 + $0x8] sm:$0xff]
    %v4055 = vld [vmem:[%s952 + $0x10] sm:$0xff]
    %v4056 = vld [vmem:[%s952 + $0x18] sm:$0xff]
    %4058 = vrot.lane.b32.xlu0 %v3571, 32
    %v4059 = vpop.permute.xlu0 %4058
    %v4060 = vsel %vm283, %v4059, 0
    %4062 = vmatprep.subr.mxu0 0.0
    %4063 = vmatpush1.msra.mxu0 %v4053
    %4064 = vmatprep.subr.mxu0 0.0
    %4065 = vmatpush1.msra.mxu0 %v4054
    %4066 = vmatprep.subr.mxu0 0.0
    %4067 = vmatpush1.msra.mxu0 %v4055
    %4068 = vmatprep.subr.mxu0 0.0
    %4069 = vmatpush1.msra.mxu0 %v4056
    %4070 = vmatprep.subr.mxu0 0.0
    %4071 = vmatpush1.msra.mxu0 0.0
    %4072 = vmatprep.subr.mxu0 0.0
    %4073 = vmatpush1.msra.mxu0 0.0
    %4074 = vmatprep.subr.mxu0 0.0
    %4075 = vmatpush1.msra.mxu0 0.0
    %4076 = vmatprep.subr.mxu0 0.0
    %4077 = vmatpush1.msra.mxu0 0.0
    %4078 = vmatprep.subr.mxu0 0.0
    %4079 = vmatpush1.msra.mxu0 0.0
    %4080 = vmatprep.subr.mxu0 0.0
    %4081 = vmatpush1.msra.mxu0 0.0
    %4082 = vmatprep.subr.mxu0 0.0
    %4083 = vmatpush1.msra.mxu0 0.0
    %4084 = vmatprep.subr.mxu0 0.0
    %4085 = vmatpush1.msra.mxu0 0.0
    %4086 = vmatprep.subr.mxu0 0.0
    %4087 = vmatpush1.msra.mxu0 0.0
    %4088 = vmatprep.subr.mxu0 0.0
    %4089 = vmatpush1.msra.mxu0 0.0
    %4090 = vmatprep.subr.mxu0 0.0
    %4091 = vmatpush1.msra.mxu0 0.0
    %4092 = vmatprep.subr.mxu0 0.0
    %4093 = vmatpush1.msra.mxu0 0.0
    %4094 = vmatprep.subr.mxu0 0.0
    %4095 = vmatpush1.msra.mxu0 0.0
    %4096 = vmatprep.subr.mxu0 0.0
    %4097 = vmatpush1.msra.mxu0 0.0
    %4098 = vmatprep.subr.mxu0 0.0
    %4099 = vmatpush1.msra.mxu0 0.0
    %4100 = vmatprep.subr.mxu0 0.0
    %4101 = vmatpush1.msra.mxu0 0.0
    %4102 = vmatprep.subr.mxu0 0.0
    %4103 = vmatpush1.msra.mxu0 0.0
    %4104 = vmatprep.subr.mxu0 0.0
    %4105 = vmatpush1.msra.mxu0 0.0
    %4106 = vmatprep.subr.mxu0 0.0
    %4107 = vmatpush1.msra.mxu0 0.0
    %4108 = vmatprep.subr.mxu0 0.0
    %4109 = vmatpush1.msra.mxu0 0.0
    %4110 = vmatprep.subr.mxu0 0.0
    %4111 = vmatpush1.msra.mxu0 0.0
    %4112 = vmatprep.subr.mxu0 0.0
    %4113 = vmatpush1.msra.mxu0 0.0
    %4114 = vmatprep.subr.mxu0 0.0
    %4115 = vmatpush1.msra.mxu0 0.0
    %4116 = vmatprep.subr.mxu0 0.0
    %4117 = vmatpush1.msra.mxu0 0.0
    %4118 = vmatprep.subr.mxu0 0.0
    %4119 = vmatpush1.msra.mxu0 0.0
    %4120 = vmatprep.subr.mxu0 0.0
    %4121 = vmatpush1.msra.mxu0 0.0
    %4122 = vmatprep.subr.mxu0 0.0
    %4123 = vmatpush1.msra.mxu0 0.0
    %4124 = vmatprep.subr.mxu0 0.0
    %4125 = vmatpush1.msra.mxu0 0.0
    %4126 = vmatprep.mubr.f32.mxu0 0.0
    %4127 = vmatmul.mubr.f32.gmra.mrb[0].mxu0 %v4060
    %v4128 = vpop.f32.mrb[0].mxu0
    %v4129 = vadd.f32 0.0, %v4128
    %v4130 = vpop.f32.mrb[0].mxu0
    %4131 = vdwg.mxu0
    %4132 = vmatprep.subr.mxu0 0.0
    %4133 = vmatpush1.msra.mxu0 %v4049
    %4134 = vmatprep.subr.mxu0 0.0
    %4135 = vmatpush1.msra.mxu0 %v4050
    %4136 = vmatprep.subr.mxu0 0.0
    %4137 = vmatpush1.msra.mxu0 %v4051
    %4138 = vmatprep.subr.mxu0 0.0
    %4139 = vmatpush1.msra.mxu0 %v4052
    %4140 = vmatprep.subr.mxu0 0.0
    %4141 = vmatpush1.msra.mxu0 0.0
    %4142 = vmatprep.subr.mxu0 0.0
    %4143 = vmatpush1.msra.mxu0 0.0
    %4144 = vmatprep.subr.mxu0 0.0
    %4145 = vmatpush1.msra.mxu0 0.0
    %4146 = vmatprep.subr.mxu0 0.0
    %4147 = vmatpush1.msra.mxu0 0.0
    %4148 = vmatprep.subr.mxu0 0.0
    %4149 = vmatpush1.msra.mxu0 0.0
    %4150 = vmatprep.subr.mxu0 0.0
    %4151 = vmatpush1.msra.mxu0 0.0
    %4152 = vmatprep.subr.mxu0 0.0
    %4153 = vmatpush1.msra.mxu0 0.0
    %4154 = vmatprep.subr.mxu0 0.0
    %4155 = vmatpush1.msra.mxu0 0.0
    %4156 = vmatprep.subr.mxu0 0.0
    %4157 = vmatpush1.msra.mxu0 0.0
    %4158 = vmatprep.subr.mxu0 0.0
    %4159 = vmatpush1.msra.mxu0 0.0
    %4160 = vmatprep.subr.mxu0 0.0
    %4161 = vmatpush1.msra.mxu0 0.0
    %4162 = vmatprep.subr.mxu0 0.0
    %4163 = vmatpush1.msra.mxu0 0.0
    %4164 = vmatprep.subr.mxu0 0.0
    %4165 = vmatpush1.msra.mxu0 0.0
    %4166 = vmatprep.subr.mxu0 0.0
    %4167 = vmatpush1.msra.mxu0 0.0
    %4168 = vmatprep.subr.mxu0 0.0
    %4169 = vmatpush1.msra.mxu0 0.0
    %4170 = vmatprep.subr.mxu0 0.0
    %4171 = vmatpush1.msra.mxu0 0.0
    %4172 = vmatprep.subr.mxu0 0.0
    %4173 = vmatpush1.msra.mxu0 0.0
    %4174 = vmatprep.subr.mxu0 0.0
    %4175 = vmatpush1.msra.mxu0 0.0
    %4176 = vmatprep.subr.mxu0 0.0
    %4177 = vmatpush1.msra.mxu0 0.0
    %4178 = vmatprep.subr.mxu0 0.0
    %4179 = vmatpush1.msra.mxu0 0.0
    %4180 = vmatprep.subr.mxu0 0.0
    %4181 = vmatpush1.msra.mxu0 0.0
    %4182 = vmatprep.subr.mxu0 0.0
    %4183 = vmatpush1.msra.mxu0 0.0
    %4184 = vmatprep.subr.mxu0 0.0
    %4185 = vmatpush1.msra.mxu0 0.0
    %4186 = vmatprep.subr.mxu0 0.0
    %4187 = vmatpush1.msra.mxu0 0.0
    %4188 = vmatprep.subr.mxu0 0.0
    %4189 = vmatpush1.msra.mxu0 0.0
    %4190 = vmatprep.subr.mxu0 0.0
    %4191 = vmatpush1.msra.mxu0 0.0
    %4192 = vmatprep.subr.mxu0 0.0
    %4193 = vmatpush1.msra.mxu0 0.0
    %4194 = vmatprep.subr.mxu0 0.0
    %4195 = vmatpush1.msra.mxu0 0.0
    %4196 = vmatprep.mubr.f32.mxu0 0.0
    %4197 = vmatmul.mubr.f32.gmra.mrb[0].mxu0 %v3875
    %v4198 = vpop.f32.mrb[0].mxu0
    %v4199 = vadd.f32 %v4129, %v4198
    %v4200 = vpop.f32.mrb[0].mxu0
    %4201 = vdwg.mxu0
    %v4202 = vld [vmem:[%s1100] sm:$0x1]
    %v4204 = vlaneseq
    %v4205 = vshrl.u32 %v4204, 7
    %v4206 = vsub.s32 0, %v4205
    %v4207 = vrot.slane %v4202, %v4206
    %v4209 = vadd.f32 %v4199, %v4207
    %v4210 = vxor.u32 %v4209, 2147483648
    %v4211 = vmul.f32 %v4210, 1.442695
    %v4212 = vpow.pop %v4211
    %v4213 = vadd.f32 %v4212, 1.0
    %v4214 = vrcp.pop %v4213
    %v4215 = vmul.f32 1.0, %v4214
    %v4216 = vtanh.pop %v4209
    %v4217 = vmul.f32 %v4215, %v3565
    %4219 = vrot.lane.b32.xlu0 %v4216, 64
    %v4220 = vpop.permute.xlu0 %4219
    %v4222 = vmul.f32 %v4215, %v4220
    %4224 = vrot.lane.b32.xlu0 %v4222, 32
    %v4225 = vpop.permute.xlu0 %4224
    %v4227 = vadd.f32 %v4217, %v4225
    %v4228 = vtanh.pop %v4227
    %4230 = vrot.lane.b32.xlu0 %v4228, 64
    %v4231 = vpop.permute.xlu0 %4230
    %v4233 = vmul.f32 %v4215, %v4231
    %v4234 = vld [vmem:[%s1578] sm:$0xff]
    %v4235 = vld [vmem:[%s1578 + $0x8] sm:$0xff]
    %v4236 = vld [vmem:[%s1578 + $0x10] sm:$0xff]
    %v4237 = vld [vmem:[%s1578 + $0x18] sm:$0xff]
    %v4238 = vld [vmem:[%s1583] sm:$0xff]
    %v4239 = vld [vmem:[%s1583 + $0x8] sm:$0xff]
    %v4240 = vld [vmem:[%s1583 + $0x10] sm:$0xff]
    %v4241 = vld [vmem:[%s1583 + $0x18] sm:$0xff]
    %v4242 = vsel %vm283, %v3756, 0
    %4244 = vmatprep.subr.mxu0 0.0
    %4245 = vmatpush1.msra.mxu0 %v4238
    %4246 = vmatprep.subr.mxu0 0.0
    %4247 = vmatpush1.msra.mxu0 %v4239
    %4248 = vmatprep.subr.mxu0 0.0
    %4249 = vmatpush1.msra.mxu0 %v4240
    %4250 = vmatprep.subr.mxu0 0.0
    %4251 = vmatpush1.msra.mxu0 %v4241
    %4252 = vmatprep.subr.mxu0 0.0
    %4253 = vmatpush1.msra.mxu0 0.0
    %4254 = vmatprep.subr.mxu0 0.0
    %4255 = vmatpush1.msra.mxu0 0.0
    %4256 = vmatprep.subr.mxu0 0.0
    %4257 = vmatpush1.msra.mxu0 0.0
    %4258 = vmatprep.subr.mxu0 0.0
    %4259 = vmatpush1.msra.mxu0 0.0
    %4260 = vmatprep.subr.mxu0 0.0
    %4261 = vmatpush1.msra.mxu0 0.0
    %4262 = vmatprep.subr.mxu0 0.0
    %4263 = vmatpush1.msra.mxu0 0.0
    %4264 = vmatprep.subr.mxu0 0.0
    %4265 = vmatpush1.msra.mxu0 0.0
    %4266 = vmatprep.subr.mxu0 0.0
    %4267 = vmatpush1.msra.mxu0 0.0
    %4268 = vmatprep.subr.mxu0 0.0
    %4269 = vmatpush1.msra.mxu0 0.0
    %4270 = vmatprep.subr.mxu0 0.0
    %4271 = vmatpush1.msra.mxu0 0.0
    %4272 = vmatprep.subr.mxu0 0.0
    %4273 = vmatpush1.msra.mxu0 0.0
    %4274 = vmatprep.subr.mxu0 0.0
    %4275 = vmatpush1.msra.mxu0 0.0
    %4276 = vmatprep.subr.mxu0 0.0
    %4277 = vmatpush1.msra.mxu0 0.0
    %4278 = vmatprep.subr.mxu0 0.0
    %4279 = vmatpush1.msra.mxu0 0.0
    %4280 = vmatprep.subr.mxu0 0.0
    %4281 = vmatpush1.msra.mxu0 0.0
    %4282 = vmatprep.subr.mxu0 0.0
    %4283 = vmatpush1.msra.mxu0 0.0
    %4284 = vmatprep.subr.mxu0 0.0
    %4285 = vmatpush1.msra.mxu0 0.0
    %4286 = vmatprep.subr.mxu0 0.0
    %4287 = vmatpush1.msra.mxu0 0.0
    %4288 = vmatprep.subr.mxu0 0.0
    %4289 = vmatpush1.msra.mxu0 0.0
    %4290 = vmatprep.subr.mxu0 0.0
    %4291 = vmatpush1.msra.mxu0 0.0
    %4292 = vmatprep.subr.mxu0 0.0
    %4293 = vmatpush1.msra.mxu0 0.0
    %4294 = vmatprep.subr.mxu0 0.0
    %4295 = vmatpush1.msra.mxu0 0.0
    %4296 = vmatprep.subr.mxu0 0.0
    %4297 = vmatpush1.msra.mxu0 0.0
    %4298 = vmatprep.subr.mxu0 0.0
    %4299 = vmatpush1.msra.mxu0 0.0
    %4300 = vmatprep.subr.mxu0 0.0
    %4301 = vmatpush1.msra.mxu0 0.0
    %4302 = vmatprep.subr.mxu0 0.0
    %4303 = vmatpush1.msra.mxu0 0.0
    %4304 = vmatprep.subr.mxu0 0.0
    %4305 = vmatpush1.msra.mxu0 0.0
    %4306 = vmatprep.subr.mxu0 0.0
    %4307 = vmatpush1.msra.mxu0 0.0
    %4308 = vmatprep.mubr.f32.mxu0 0.0
    %4309 = vmatmul.mubr.f32.gmra.mrb[0].mxu0 %v4242
    %v4310 = vpop.f32.mrb[0].mxu0
    %v4311 = vadd.f32 0.0, %v4310
    %v4312 = vpop.f32.mrb[0].mxu0
    %4313 = vdwg.mxu0
    %4314 = vmatprep.subr.mxu0 0.0
    %4315 = vmatpush1.msra.mxu0 %v4234
    %4316 = vmatprep.subr.mxu0 0.0
    %4317 = vmatpush1.msra.mxu0 %v4235
    %4318 = vmatprep.subr.mxu0 0.0
    %4319 = vmatpush1.msra.mxu0 %v4236
    %4320 = vmatprep.subr.mxu0 0.0
    %4321 = vmatpush1.msra.mxu0 %v4237
    %4322 = vmatprep.subr.mxu0 0.0
    %4323 = vmatpush1.msra.mxu0 0.0
    %4324 = vmatprep.subr.mxu0 0.0
    %4325 = vmatpush1.msra.mxu0 0.0
    %4326 = vmatprep.subr.mxu0 0.0
    %4327 = vmatpush1.msra.mxu0 0.0
    %4328 = vmatprep.subr.mxu0 0.0
    %4329 = vmatpush1.msra.mxu0 0.0
    %4330 = vmatprep.subr.mxu0 0.0
    %4331 = vmatpush1.msra.mxu0 0.0
    %4332 = vmatprep.subr.mxu0 0.0
    %4333 = vmatpush1.msra.mxu0 0.0
    %4334 = vmatprep.subr.mxu0 0.0
    %4335 = vmatpush1.msra.mxu0 0.0
    %4336 = vmatprep.subr.mxu0 0.0
    %4337 = vmatpush1.msra.mxu0 0.0
    %4338 = vmatprep.subr.mxu0 0.0
    %4339 = vmatpush1.msra.mxu0 0.0
    %4340 = vmatprep.subr.mxu0 0.0
    %4341 = vmatpush1.msra.mxu0 0.0
    %4342 = vmatprep.subr.mxu0 0.0
    %4343 = vmatpush1.msra.mxu0 0.0
    %4344 = vmatprep.subr.mxu0 0.0
    %4345 = vmatpush1.msra.mxu0 0.0
    %4346 = vmatprep.subr.mxu0 0.0
    %4347 = vmatpush1.msra.mxu0 0.0
    %4348 = vmatprep.subr.mxu0 0.0
    %4349 = vmatpush1.msra.mxu0 0.0
    %4350 = vmatprep.subr.mxu0 0.0
    %4351 = vmatpush1.msra.mxu0 0.0
    %4352 = vmatprep.subr.mxu0 0.0
    %4353 = vmatpush1.msra.mxu0 0.0
    %4354 = vmatprep.subr.mxu0 0.0
    %4355 = vmatpush1.msra.mxu0 0.0
    %4356 = vmatprep.subr.mxu0 0.0
    %4357 = vmatpush1.msra.mxu0 0.0
    %4358 = vmatprep.subr.mxu0 0.0
    %4359 = vmatpush1.msra.mxu0 0.0
    %4360 = vmatprep.subr.mxu0 0.0
    %4361 = vmatpush1.msra.mxu0 0.0
    %4362 = vmatprep.subr.mxu0 0.0
    %4363 = vmatpush1.msra.mxu0 0.0
    %4364 = vmatprep.subr.mxu0 0.0
    %4365 = vmatpush1.msra.mxu0 0.0
    %4366 = vmatprep.subr.mxu0 0.0
    %4367 = vmatpush1.msra.mxu0 0.0
    %4368 = vmatprep.subr.mxu0 0.0
    %4369 = vmatpush1.msra.mxu0 0.0
    %4370 = vmatprep.subr.mxu0 0.0
    %4371 = vmatpush1.msra.mxu0 0.0
    %4372 = vmatprep.subr.mxu0 0.0
    %4373 = vmatpush1.msra.mxu0 0.0
    %4374 = vmatprep.subr.mxu0 0.0
    %4375 = vmatpush1.msra.mxu0 0.0
    %4376 = vmatprep.subr.mxu0 0.0
    %4377 = vmatpush1.msra.mxu0 0.0
    %4378 = vmatprep.mubr.f32.mxu0 0.0
    %4379 = vmatmul.mubr.f32.gmra.mrb[0].mxu0 %v4060
    %v4380 = vpop.f32.mrb[0].mxu0
    %v4381 = vadd.f32 %v4311, %v4380
    %v4382 = vpop.f32.mrb[0].mxu0
    %4383 = vdwg.mxu0
    %v4384 = vld [vmem:[%s1731] sm:$0x1]
    %v4386 = vlaneseq
    %v4387 = vshrl.u32 %v4386, 7
    %v4388 = vsub.s32 0, %v4387
    %v4389 = vrot.slane %v4384, %v4388
    %v4391 = vadd.f32 %v4381, %v4389
    %v4392 = vxor.u32 %v4391, 2147483648
    %v4393 = vmul.f32 %v4392, 1.442695
    %v4394 = vpow.pop %v4393
    %v4395 = vadd.f32 %v4394, 1.0
    %v4396 = vrcp.pop %v4395
    %v4397 = vmul.f32 1.0, %v4396
    %v4398 = vtanh.pop %v4391
    %v4399 = vmul.f32 %v4397, %v3747
    %4401 = vrot.lane.b32.xlu0 %v4398, 64
    %v4402 = vpop.permute.xlu0 %4401
    %v4404 = vmul.f32 %v4397, %v4402
    %4406 = vrot.lane.b32.xlu0 %v4404, 32
    %v4407 = vpop.permute.xlu0 %4406
    %v4409 = vadd.f32 %v4399, %v4407
    %v4410 = vtanh.pop %v4409
    %4412 = vrot.lane.b32.xlu0 %v4410, 64
    %v4413 = vpop.permute.xlu0 %4412
    %v4415 = vmul.f32 %v4397, %v4413
    %4417 = vrot.lane.b32.xlu0 %v4415, 32
    %v4418 = vpop.permute.xlu0 %4417
    %4420 = vst.msk [vmem:[#allocation3 + $0x20] sm:$0xff] %vm283, %v4418
    %v4421 = vld [vmem:[%s2] sm:$0xff]
    %v4422 = vld [vmem:[%s2 + $0x8] sm:$0xff]
    %v4423 = vld [vmem:[%s2 + $0x10] sm:$0xff]
    %v4424 = vld [vmem:[%s2 + $0x18] sm:$0xff]
    %v4425 = vld [vmem:[%s491] sm:$0xff]
    %v4426 = vld [vmem:[%s491 + $0x8] sm:$0xff]
    %v4427 = vld [vmem:[%s491 + $0x10] sm:$0xff]
    %v4428 = vld [vmem:[%s491 + $0x18] sm:$0xff]
    %4430 = vrot.lane.b32.xlu0 %v4048, 32
    %v4431 = vpop.permute.xlu0 %4430
    %v4432 = vsel %vm283, %v4431, 0
    %4434 = vmatprep.subr.mxu0 0.0
    %4435 = vmatpush1.msra.mxu0 %v4425
    %4436 = vmatprep.subr.mxu0 0.0
    %4437 = vmatpush1.msra.mxu0 %v4426
    %4438 = vmatprep.subr.mxu0 0.0
    %4439 = vmatpush1.msra.mxu0 %v4427
    %4440 = vmatprep.subr.mxu0 0.0
    %4441 = vmatpush1.msra.mxu0 %v4428
    %4442 = vmatprep.subr.mxu0 0.0
    %4443 = vmatpush1.msra.mxu0 0.0
    %4444 = vmatprep.subr.mxu0 0.0
    %4445 = vmatpush1.msra.mxu0 0.0
    %4446 = vmatprep.subr.mxu0 0.0
    %4447 = vmatpush1.msra.mxu0 0.0
    %4448 = vmatprep.subr.mxu0 0.0
    %4449 = vmatpush1.msra.mxu0 0.0
    %4450 = vmatprep.subr.mxu0 0.0
    %4451 = vmatpush1.msra.mxu0 0.0
    %4452 = vmatprep.subr.mxu0 0.0
    %4453 = vmatpush1.msra.mxu0 0.0
    %4454 = vmatprep.subr.mxu0 0.0
    %4455 = vmatpush1.msra.mxu0 0.0
    %4456 = vmatprep.subr.mxu0 0.0
    %4457 = vmatpush1.msra.mxu0 0.0
    %4458 = vmatprep.subr.mxu0 0.0
    %4459 = vmatpush1.msra.mxu0 0.0
    %4460 = vmatprep.subr.mxu0 0.0
    %4461 = vmatpush1.msra.mxu0 0.0
    %4462 = vmatprep.subr.mxu0 0.0
    %4463 = vmatpush1.msra.mxu0 0.0
    %4464 = vmatprep.subr.mxu0 0.0
    %4465 = vmatpush1.msra.mxu0 0.0
    %4466 = vmatprep.subr.mxu0 0.0
    %4467 = vmatpush1.msra.mxu0 0.0
    %4468 = vmatprep.subr.mxu0 0.0
    %4469 = vmatpush1.msra.mxu0 0.0
    %4470 = vmatprep.subr.mxu0 0.0
    %4471 = vmatpush1.msra.mxu0 0.0
    %4472 = vmatprep.subr.mxu0 0.0
    %4473 = vmatpush1.msra.mxu0 0.0
    %4474 = vmatprep.subr.mxu0 0.0
    %4475 = vmatpush1.msra.mxu0 0.0
    %4476 = vmatprep.subr.mxu0 0.0
    %4477 = vmatpush1.msra.mxu0 0.0
    %4478 = vmatprep.subr.mxu0 0.0
    %4479 = vmatpush1.msra.mxu0 0.0
    %4480 = vmatprep.subr.mxu0 0.0
    %4481 = vmatpush1.msra.mxu0 0.0
    %4482 = vmatprep.subr.mxu0 0.0
    %4483 = vmatpush1.msra.mxu0 0.0
    %4484 = vmatprep.subr.mxu0 0.0
    %4485 = vmatpush1.msra.mxu0 0.0
    %4486 = vmatprep.subr.mxu0 0.0
    %4487 = vmatpush1.msra.mxu0 0.0
    %4488 = vmatprep.subr.mxu0 0.0
    %4489 = vmatpush1.msra.mxu0 0.0
    %4490 = vmatprep.subr.mxu0 0.0
    %4491 = vmatpush1.msra.mxu0 0.0
    %4492 = vmatprep.subr.mxu0 0.0
    %4493 = vmatpush1.msra.mxu0 0.0
    %4494 = vmatprep.subr.mxu0 0.0
    %4495 = vmatpush1.msra.mxu0 0.0
    %4496 = vmatprep.subr.mxu0 0.0
    %4497 = vmatpush1.msra.mxu0 0.0
    %4498 = vmatprep.mubr.f32.mxu0 0.0
    %4499 = vmatmul.mubr.f32.gmra.mrb[0].mxu0 %v4432
    %v4500 = vpop.f32.mrb[0].mxu0
    %v4501 = vadd.f32 0.0, %v4500
    %v4502 = vpop.f32.mrb[0].mxu0
    %4503 = vdwg.mxu0
    %4505 = vrot.lane.b32.xlu0 %v3863, 32
    %v4506 = vpop.permute.xlu0 %4505
    %v4507 = vsel %vm283, %v4506, 0
    %4509 = vmatprep.subr.mxu0 0.0
    %4510 = vmatpush1.msra.mxu0 %v4421
    %4511 = vmatprep.subr.mxu0 0.0
    %4512 = vmatpush1.msra.mxu0 %v4422
    %4513 = vmatprep.subr.mxu0 0.0
    %4514 = vmatpush1.msra.mxu0 %v4423
    %4515 = vmatprep.subr.mxu0 0.0
    %4516 = vmatpush1.msra.mxu0 %v4424
    %4517 = vmatprep.subr.mxu0 0.0
    %4518 = vmatpush1.msra.mxu0 0.0
    %4519 = vmatprep.subr.mxu0 0.0
    %4520 = vmatpush1.msra.mxu0 0.0
    %4521 = vmatprep.subr.mxu0 0.0
    %4522 = vmatpush1.msra.mxu0 0.0
    %4523 = vmatprep.subr.mxu0 0.0
    %4524 = vmatpush1.msra.mxu0 0.0
    %4525 = vmatprep.subr.mxu0 0.0
    %4526 = vmatpush1.msra.mxu0 0.0
    %4527 = vmatprep.subr.mxu0 0.0
    %4528 = vmatpush1.msra.mxu0 0.0
    %4529 = vmatprep.subr.mxu0 0.0
    %4530 = vmatpush1.msra.mxu0 0.0
    %4531 = vmatprep.subr.mxu0 0.0
    %4532 = vmatpush1.msra.mxu0 0.0
    %4533 = vmatprep.subr.mxu0 0.0
    %4534 = vmatpush1.msra.mxu0 0.0
    %4535 = vmatprep.subr.mxu0 0.0
    %4536 = vmatpush1.msra.mxu0 0.0
    %4537 = vmatprep.subr.mxu0 0.0
    %4538 = vmatpush1.msra.mxu0 0.0
    %4539 = vmatprep.subr.mxu0 0.0
    %4540 = vmatpush1.msra.mxu0 0.0
    %4541 = vmatprep.subr.mxu0 0.0
    %4542 = vmatpush1.msra.mxu0 0.0
    %4543 = vmatprep.subr.mxu0 0.0
    %4544 = vmatpush1.msra.mxu0 0.0
    %4545 = vmatprep.subr.mxu0 0.0
    %4546 = vmatpush1.msra.mxu0 0.0
    %4547 = vmatprep.subr.mxu0 0.0
    %4548 = vmatpush1.msra.mxu0 0.0
    %4549 = vmatprep.subr.mxu0 0.0
    %4550 = vmatpush1.msra.mxu0 0.0
    %4551 = vmatprep.subr.mxu0 0.0
    %4552 = vmatpush1.msra.mxu0 0.0
    %4553 = vmatprep.subr.mxu0 0.0
    %4554 = vmatpush1.msra.mxu0 0.0
    %4555 = vmatprep.subr.mxu0 0.0
    %4556 = vmatpush1.msra.mxu0 0.0
    %4557 = vmatprep.subr.mxu0 0.0
    %4558 = vmatpush1.msra.mxu0 0.0
    %4559 = vmatprep.subr.mxu0 0.0
    %4560 = vmatpush1.msra.mxu0 0.0
    %4561 = vmatprep.subr.mxu0 0.0
    %4562 = vmatpush1.msra.mxu0 0.0
    %4563 = vmatprep.subr.mxu0 0.0
    %4564 = vmatpush1.msra.mxu0 0.0
    %4565 = vmatprep.subr.mxu0 0.0
    %4566 = vmatpush1.msra.mxu0 0.0
    %4567 = vmatprep.subr.mxu0 0.0
    %4568 = vmatpush1.msra.mxu0 0.0
    %4569 = vmatprep.subr.mxu0 0.0
    %4570 = vmatpush1.msra.mxu0 0.0
    %4571 = vmatprep.subr.mxu0 0.0
    %4572 = vmatpush1.msra.mxu0 0.0
    %4573 = vmatprep.mubr.f32.mxu0 0.0
    %4574 = vmatmul.mubr.f32.gmra.mrb[0].mxu0 %v4507
    %v4575 = vpop.f32.mrb[0].mxu0
    %v4576 = vadd.f32 %v4501, %v4575
    %v4577 = vpop.f32.mrb[0].mxu0
    %4578 = vdwg.mxu0
    %v4579 = vld [vmem:[%s639] sm:$0x1]
    %v4581 = vlaneseq
    %v4582 = vshrl.u32 %v4581, 7
    %v4583 = vsub.s32 0, %v4582
    %v4584 = vrot.slane %v4579, %v4583
    %v4586 = vadd.f32 %v4576, %v4584
    %v4587 = vxor.u32 %v4586, 2147483648
    %v4588 = vmul.f32 %v4587, 1.442695
    %v4589 = vpow.pop %v4588
    %v4590 = vadd.f32 %v4589, 1.0
    %v4591 = vrcp.pop %v4590
    %v4592 = vmul.f32 1.0, %v4591
    %v4593 = vtanh.pop %v4586
    %v4594 = vmul.f32 %v4592, %v4042
    %4596 = vrot.lane.b32.xlu0 %v4593, 64
    %v4597 = vpop.permute.xlu0 %4596
    %v4599 = vmul.f32 %v4592, %v4597
    %4601 = vrot.lane.b32.xlu0 %v4599, 32
    %v4602 = vpop.permute.xlu0 %4601
    %v4604 = vadd.f32 %v4594, %v4602
    %v4605 = vtanh.pop %v4604
    %4607 = vrot.lane.b32.xlu0 %v4605, 64
    %v4608 = vpop.permute.xlu0 %4607
    %v4610 = vmul.f32 %v4592, %v4608
    %v4611 = vld [vmem:[%s947] sm:$0xff]
    %v4612 = vld [vmem:[%s947 + $0x8] sm:$0xff]
    %v4613 = vld [vmem:[%s947 + $0x10] sm:$0xff]
    %v4614 = vld [vmem:[%s947 + $0x18] sm:$0xff]
    %v4615 = vld [vmem:[%s952] sm:$0xff]
    %v4616 = vld [vmem:[%s952 + $0x8] sm:$0xff]
    %v4617 = vld [vmem:[%s952 + $0x10] sm:$0xff]
    %v4618 = vld [vmem:[%s952 + $0x18] sm:$0xff]
    %4620 = vrot.lane.b32.xlu0 %v4233, 32
    %v4621 = vpop.permute.xlu0 %4620
    %v4622 = vsel %vm283, %v4621, 0
    %4624 = vmatprep.subr.mxu0 0.0
    %4625 = vmatpush1.msra.mxu0 %v4615
    %4626 = vmatprep.subr.mxu0 0.0
    %4627 = vmatpush1.msra.mxu0 %v4616
    %4628 = vmatprep.subr.mxu0 0.0
    %4629 = vmatpush1.msra.mxu0 %v4617
    %4630 = vmatprep.subr.mxu0 0.0
    %4631 = vmatpush1.msra.mxu0 %v4618
    %4632 = vmatprep.subr.mxu0 0.0
    %4633 = vmatpush1.msra.mxu0 0.0
    %4634 = vmatprep.subr.mxu0 0.0
    %4635 = vmatpush1.msra.mxu0 0.0
    %4636 = vmatprep.subr.mxu0 0.0
    %4637 = vmatpush1.msra.mxu0 0.0
    %4638 = vmatprep.subr.mxu0 0.0
    %4639 = vmatpush1.msra.mxu0 0.0
    %4640 = vmatprep.subr.mxu0 0.0
    %4641 = vmatpush1.msra.mxu0 0.0
    %4642 = vmatprep.subr.mxu0 0.0
    %4643 = vmatpush1.msra.mxu0 0.0
    %4644 = vmatprep.subr.mxu0 0.0
    %4645 = vmatpush1.msra.mxu0 0.0
    %4646 = vmatprep.subr.mxu0 0.0
    %4647 = vmatpush1.msra.mxu0 0.0
    %4648 = vmatprep.subr.mxu0 0.0
    %4649 = vmatpush1.msra.mxu0 0.0
    %4650 = vmatprep.subr.mxu0 0.0
    %4651 = vmatpush1.msra.mxu0 0.0
    %4652 = vmatprep.subr.mxu0 0.0
    %4653 = vmatpush1.msra.mxu0 0.0
    %4654 = vmatprep.subr.mxu0 0.0
    %4655 = vmatpush1.msra.mxu0 0.0
    %4656 = vmatprep.subr.mxu0 0.0
    %4657 = vmatpush1.msra.mxu0 0.0
    %4658 = vmatprep.subr.mxu0 0.0
    %4659 = vmatpush1.msra.mxu0 0.0
    %4660 = vmatprep.subr.mxu0 0.0
    %4661 = vmatpush1.msra.mxu0 0.0
    %4662 = vmatprep.subr.mxu0 0.0
    %4663 = vmatpush1.msra.mxu0 0.0
    %4664 = vmatprep.subr.mxu0 0.0
    %4665 = vmatpush1.msra.mxu0 0.0
    %4666 = vmatprep.subr.mxu0 0.0
    %4667 = vmatpush1.msra.mxu0 0.0
    %4668 = vmatprep.subr.mxu0 0.0
    %4669 = vmatpush1.msra.mxu0 0.0
    %4670 = vmatprep.subr.mxu0 0.0
    %4671 = vmatpush1.msra.mxu0 0.0
    %4672 = vmatprep.subr.mxu0 0.0
    %4673 = vmatpush1.msra.mxu0 0.0
    %4674 = vmatprep.subr.mxu0 0.0
    %4675 = vmatpush1.msra.mxu0 0.0
    %4676 = vmatprep.subr.mxu0 0.0
    %4677 = vmatpush1.msra.mxu0 0.0
    %4678 = vmatprep.subr.mxu0 0.0
    %4679 = vmatpush1.msra.mxu0 0.0
    %4680 = vmatprep.subr.mxu0 0.0
    %4681 = vmatpush1.msra.mxu0 0.0
    %4682 = vmatprep.subr.mxu0 0.0
    %4683 = vmatpush1.msra.mxu0 0.0
    %4684 = vmatprep.subr.mxu0 0.0
    %4685 = vmatpush1.msra.mxu0 0.0
    %4686 = vmatprep.subr.mxu0 0.0
    %4687 = vmatpush1.msra.mxu0 0.0
    %4688 = vmatprep.mubr.f32.mxu0 0.0
    %4689 = vmatmul.mubr.f32.gmra.mrb[0].mxu0 %v4622
    %v4690 = vpop.f32.mrb[0].mxu0
    %v4691 = vadd.f32 0.0, %v4690
    %v4692 = vpop.f32.mrb[0].mxu0
    %4693 = vdwg.mxu0
    %4694 = vmatprep.subr.mxu0 0.0
    %4695 = vmatpush1.msra.mxu0 %v4611
    %4696 = vmatprep.subr.mxu0 0.0
    %4697 = vmatpush1.msra.mxu0 %v4612
    %4698 = vmatprep.subr.mxu0 0.0
    %4699 = vmatpush1.msra.mxu0 %v4613
    %4700 = vmatprep.subr.mxu0 0.0
    %4701 = vmatpush1.msra.mxu0 %v4614
    %4702 = vmatprep.subr.mxu0 0.0
    %4703 = vmatpush1.msra.mxu0 0.0
    %4704 = vmatprep.subr.mxu0 0.0
    %4705 = vmatpush1.msra.mxu0 0.0
    %4706 = vmatprep.subr.mxu0 0.0
    %4707 = vmatpush1.msra.mxu0 0.0
    %4708 = vmatprep.subr.mxu0 0.0
    %4709 = vmatpush1.msra.mxu0 0.0
    %4710 = vmatprep.subr.mxu0 0.0
    %4711 = vmatpush1.msra.mxu0 0.0
    %4712 = vmatprep.subr.mxu0 0.0
    %4713 = vmatpush1.msra.mxu0 0.0
    %4714 = vmatprep.subr.mxu0 0.0
    %4715 = vmatpush1.msra.mxu0 0.0
    %4716 = vmatprep.subr.mxu0 0.0
    %4717 = vmatpush1.msra.mxu0 0.0
    %4718 = vmatprep.subr.mxu0 0.0
    %4719 = vmatpush1.msra.mxu0 0.0
    %4720 = vmatprep.subr.mxu0 0.0
    %4721 = vmatpush1.msra.mxu0 0.0
    %4722 = vmatprep.subr.mxu0 0.0
    %4723 = vmatpush1.msra.mxu0 0.0
    %4724 = vmatprep.subr.mxu0 0.0
    %4725 = vmatpush1.msra.mxu0 0.0
    %4726 = vmatprep.subr.mxu0 0.0
    %4727 = vmatpush1.msra.mxu0 0.0
    %4728 = vmatprep.subr.mxu0 0.0
    %4729 = vmatpush1.msra.mxu0 0.0
    %4730 = vmatprep.subr.mxu0 0.0
    %4731 = vmatpush1.msra.mxu0 0.0
    %4732 = vmatprep.subr.mxu0 0.0
    %4733 = vmatpush1.msra.mxu0 0.0
    %4734 = vmatprep.subr.mxu0 0.0
    %4735 = vmatpush1.msra.mxu0 0.0
    %4736 = vmatprep.subr.mxu0 0.0
    %4737 = vmatpush1.msra.mxu0 0.0
    %4738 = vmatprep.subr.mxu0 0.0
    %4739 = vmatpush1.msra.mxu0 0.0
    %4740 = vmatprep.subr.mxu0 0.0
    %4741 = vmatpush1.msra.mxu0 0.0
    %4742 = vmatprep.subr.mxu0 0.0
    %4743 = vmatpush1.msra.mxu0 0.0
    %4744 = vmatprep.subr.mxu0 0.0
    %4745 = vmatpush1.msra.mxu0 0.0
    %4746 = vmatprep.subr.mxu0 0.0
    %4747 = vmatpush1.msra.mxu0 0.0
    %4748 = vmatprep.subr.mxu0 0.0
    %4749 = vmatpush1.msra.mxu0 0.0
    %4750 = vmatprep.subr.mxu0 0.0
    %4751 = vmatpush1.msra.mxu0 0.0
    %4752 = vmatprep.subr.mxu0 0.0
    %4753 = vmatpush1.msra.mxu0 0.0
    %4754 = vmatprep.subr.mxu0 0.0
    %4755 = vmatpush1.msra.mxu0 0.0
    %4756 = vmatprep.subr.mxu0 0.0
    %4757 = vmatpush1.msra.mxu0 0.0
    %4758 = vmatprep.mubr.f32.mxu0 0.0
    %4759 = vmatmul.mubr.f32.gmra.mrb[0].mxu0 %v4432
    %v4760 = vpop.f32.mrb[0].mxu0
    %v4761 = vadd.f32 %v4691, %v4760
    %v4762 = vpop.f32.mrb[0].mxu0
    %4763 = vdwg.mxu0
    %v4764 = vld [vmem:[%s1100] sm:$0x1]
    %v4766 = vlaneseq
    %v4767 = vshrl.u32 %v4766, 7
    %v4768 = vsub.s32 0, %v4767
    %v4769 = vrot.slane %v4764, %v4768
    %v4771 = vadd.f32 %v4761, %v4769
    %v4772 = vxor.u32 %v4771, 2147483648
    %v4773 = vmul.f32 %v4772, 1.442695
    %v4774 = vpow.pop %v4773
    %v4775 = vadd.f32 %v4774, 1.0
    %v4776 = vrcp.pop %v4775
    %v4777 = vmul.f32 1.0, %v4776
    %v4778 = vtanh.pop %v4771
    %v4779 = vmul.f32 %v4777, %v4227
    %4781 = vrot.lane.b32.xlu0 %v4778, 64
    %v4782 = vpop.permute.xlu0 %4781
    %v4784 = vmul.f32 %v4777, %v4782
    %4786 = vrot.lane.b32.xlu0 %v4784, 32
    %v4787 = vpop.permute.xlu0 %4786
    %v4789 = vadd.f32 %v4779, %v4787
    %v4790 = vtanh.pop %v4789
    %4792 = vrot.lane.b32.xlu0 %v4790, 64
    %v4793 = vpop.permute.xlu0 %4792
    %v4795 = vmul.f32 %v4777, %v4793
    %v4796 = vld [vmem:[%s1578] sm:$0xff]
    %v4797 = vld [vmem:[%s1578 + $0x8] sm:$0xff]
    %v4798 = vld [vmem:[%s1578 + $0x10] sm:$0xff]
    %v4799 = vld [vmem:[%s1578 + $0x18] sm:$0xff]
    %v4800 = vld [vmem:[%s1583] sm:$0xff]
    %v4801 = vld [vmem:[%s1583 + $0x8] sm:$0xff]
    %v4802 = vld [vmem:[%s1583 + $0x10] sm:$0xff]
    %v4803 = vld [vmem:[%s1583 + $0x18] sm:$0xff]
    %v4804 = vsel %vm283, %v4418, 0
    %4806 = vmatprep.subr.mxu0 0.0
    %4807 = vmatpush1.msra.mxu0 %v4800
    %4808 = vmatprep.subr.mxu0 0.0
    %4809 = vmatpush1.msra.mxu0 %v4801
    %4810 = vmatprep.subr.mxu0 0.0
    %4811 = vmatpush1.msra.mxu0 %v4802
    %4812 = vmatprep.subr.mxu0 0.0
    %4813 = vmatpush1.msra.mxu0 %v4803
    %4814 = vmatprep.subr.mxu0 0.0
    %4815 = vmatpush1.msra.mxu0 0.0
    %4816 = vmatprep.subr.mxu0 0.0
    %4817 = vmatpush1.msra.mxu0 0.0
    %4818 = vmatprep.subr.mxu0 0.0
    %4819 = vmatpush1.msra.mxu0 0.0
    %4820 = vmatprep.subr.mxu0 0.0
    %4821 = vmatpush1.msra.mxu0 0.0
    %4822 = vmatprep.subr.mxu0 0.0
    %4823 = vmatpush1.msra.mxu0 0.0
    %4824 = vmatprep.subr.mxu0 0.0
    %4825 = vmatpush1.msra.mxu0 0.0
    %4826 = vmatprep.subr.mxu0 0.0
    %4827 = vmatpush1.msra.mxu0 0.0
    %4828 = vmatprep.subr.mxu0 0.0
    %4829 = vmatpush1.msra.mxu0 0.0
    %4830 = vmatprep.subr.mxu0 0.0
    %4831 = vmatpush1.msra.mxu0 0.0
    %4832 = vmatprep.subr.mxu0 0.0
    %4833 = vmatpush1.msra.mxu0 0.0
    %4834 = vmatprep.subr.mxu0 0.0
    %4835 = vmatpush1.msra.mxu0 0.0
    %4836 = vmatprep.subr.mxu0 0.0
    %4837 = vmatpush1.msra.mxu0 0.0
    %4838 = vmatprep.subr.mxu0 0.0
    %4839 = vmatpush1.msra.mxu0 0.0
    %4840 = vmatprep.subr.mxu0 0.0
    %4841 = vmatpush1.msra.mxu0 0.0
    %4842 = vmatprep.subr.mxu0 0.0
    %4843 = vmatpush1.msra.mxu0 0.0
    %4844 = vmatprep.subr.mxu0 0.0
    %4845 = vmatpush1.msra.mxu0 0.0
    %4846 = vmatprep.subr.mxu0 0.0
    %4847 = vmatpush1.msra.mxu0 0.0
    %4848 = vmatprep.subr.mxu0 0.0
    %4849 = vmatpush1.msra.mxu0 0.0
    %4850 = vmatprep.subr.mxu0 0.0
    %4851 = vmatpush1.msra.mxu0 0.0
    %4852 = vmatprep.subr.mxu0 0.0
    %4853 = vmatpush1.msra.mxu0 0.0
    %4854 = vmatprep.subr.mxu0 0.0
    %4855 = vmatpush1.msra.mxu0 0.0
    %4856 = vmatprep.subr.mxu0 0.0
    %4857 = vmatpush1.msra.mxu0 0.0
    %4858 = vmatprep.subr.mxu0 0.0
    %4859 = vmatpush1.msra.mxu0 0.0
    %4860 = vmatprep.subr.mxu0 0.0
    %4861 = vmatpush1.msra.mxu0 0.0
    %4862 = vmatprep.subr.mxu0 0.0
    %4863 = vmatpush1.msra.mxu0 0.0
    %4864 = vmatprep.subr.mxu0 0.0
    %4865 = vmatpush1.msra.mxu0 0.0
    %4866 = vmatprep.subr.mxu0 0.0
    %4867 = vmatpush1.msra.mxu0 0.0
    %4868 = vmatprep.subr.mxu0 0.0
    %4869 = vmatpush1.msra.mxu0 0.0
    %4870 = vmatprep.mubr.f32.mxu0 0.0
    %4871 = vmatmul.mubr.f32.gmra.mrb[0].mxu0 %v4804
    %v4872 = vpop.f32.mrb[0].mxu0
    %v4873 = vadd.f32 0.0, %v4872
    %v4874 = vpop.f32.mrb[0].mxu0
    %4875 = vdwg.mxu0
    %4876 = vmatprep.subr.mxu0 0.0
    %4877 = vmatpush1.msra.mxu0 %v4796
    %4878 = vmatprep.subr.mxu0 0.0
    %4879 = vmatpush1.msra.mxu0 %v4797
    %4880 = vmatprep.subr.mxu0 0.0
    %4881 = vmatpush1.msra.mxu0 %v4798
    %4882 = vmatprep.subr.mxu0 0.0
    %4883 = vmatpush1.msra.mxu0 %v4799
    %4884 = vmatprep.subr.mxu0 0.0
    %4885 = vmatpush1.msra.mxu0 0.0
    %4886 = vmatprep.subr.mxu0 0.0
    %4887 = vmatpush1.msra.mxu0 0.0
    %4888 = vmatprep.subr.mxu0 0.0
    %4889 = vmatpush1.msra.mxu0 0.0
    %4890 = vmatprep.subr.mxu0 0.0
    %4891 = vmatpush1.msra.mxu0 0.0
    %4892 = vmatprep.subr.mxu0 0.0
    %4893 = vmatpush1.msra.mxu0 0.0
    %4894 = vmatprep.subr.mxu0 0.0
    %4895 = vmatpush1.msra.mxu0 0.0
    %4896 = vmatprep.subr.mxu0 0.0
    %4897 = vmatpush1.msra.mxu0 0.0
    %4898 = vmatprep.subr.mxu0 0.0
    %4899 = vmatpush1.msra.mxu0 0.0
    %4900 = vmatprep.subr.mxu0 0.0
    %4901 = vmatpush1.msra.mxu0 0.0
    %4902 = vmatprep.subr.mxu0 0.0
    %4903 = vmatpush1.msra.mxu0 0.0
    %4904 = vmatprep.subr.mxu0 0.0
    %4905 = vmatpush1.msra.mxu0 0.0
    %4906 = vmatprep.subr.mxu0 0.0
    %4907 = vmatpush1.msra.mxu0 0.0
    %4908 = vmatprep.subr.mxu0 0.0
    %4909 = vmatpush1.msra.mxu0 0.0
    %4910 = vmatprep.subr.mxu0 0.0
    %4911 = vmatpush1.msra.mxu0 0.0
    %4912 = vmatprep.subr.mxu0 0.0
    %4913 = vmatpush1.msra.mxu0 0.0
    %4914 = vmatprep.subr.mxu0 0.0
    %4915 = vmatpush1.msra.mxu0 0.0
    %4916 = vmatprep.subr.mxu0 0.0
    %4917 = vmatpush1.msra.mxu0 0.0
    %4918 = vmatprep.subr.mxu0 0.0
    %4919 = vmatpush1.msra.mxu0 0.0
    %4920 = vmatprep.subr.mxu0 0.0
    %4921 = vmatpush1.msra.mxu0 0.0
    %4922 = vmatprep.subr.mxu0 0.0
    %4923 = vmatpush1.msra.mxu0 0.0
    %4924 = vmatprep.subr.mxu0 0.0
    %4925 = vmatpush1.msra.mxu0 0.0
    %4926 = vmatprep.subr.mxu0 0.0
    %4927 = vmatpush1.msra.mxu0 0.0
    %4928 = vmatprep.subr.mxu0 0.0
    %4929 = vmatpush1.msra.mxu0 0.0
    %4930 = vmatprep.subr.mxu0 0.0
    %4931 = vmatpush1.msra.mxu0 0.0
    %4932 = vmatprep.subr.mxu0 0.0
    %4933 = vmatpush1.msra.mxu0 0.0
    %4934 = vmatprep.subr.mxu0 0.0
    %4935 = vmatpush1.msra.mxu0 0.0
    %4936 = vmatprep.subr.mxu0 0.0
    %4937 = vmatpush1.msra.mxu0 0.0
    %4938 = vmatprep.subr.mxu0 0.0
    %4939 = vmatpush1.msra.mxu0 0.0
    %4940 = vmatprep.mubr.f32.mxu0 0.0
    %4941 = vmatmul.mubr.f32.gmra.mrb[0].mxu0 %v4622
    %v4942 = vpop.f32.mrb[0].mxu0
    %v4943 = vadd.f32 %v4873, %v4942
    %v4944 = vpop.f32.mrb[0].mxu0
    %4945 = vdwg.mxu0
    %v4946 = vld [vmem:[%s1731] sm:$0x1]
    %v4948 = vlaneseq
    %v4949 = vshrl.u32 %v4948, 7
    %v4950 = vsub.s32 0, %v4949
    %v4951 = vrot.slane %v4946, %v4950
    %v4953 = vadd.f32 %v4943, %v4951
    %v4954 = vxor.u32 %v4953, 2147483648
    %v4955 = vmul.f32 %v4954, 1.442695
    %v4956 = vpow.pop %v4955
    %v4957 = vadd.f32 %v4956, 1.0
    %v4958 = vrcp.pop %v4957
    %v4959 = vmul.f32 1.0, %v4958
    %v4960 = vtanh.pop %v4953
    %v4961 = vmul.f32 %v4959, %v4409
    %4963 = vrot.lane.b32.xlu0 %v4960, 64
    %v4964 = vpop.permute.xlu0 %4963
    %v4966 = vmul.f32 %v4959, %v4964
    %4968 = vrot.lane.b32.xlu0 %v4966, 32
    %v4969 = vpop.permute.xlu0 %4968
    %v4971 = vadd.f32 %v4961, %v4969
    %v4972 = vtanh.pop %v4971
    %4974 = vrot.lane.b32.xlu0 %v4972, 64
    %v4975 = vpop.permute.xlu0 %4974
    %v4977 = vmul.f32 %v4959, %v4975
    %4979 = vrot.lane.b32.xlu0 %v4977, 32
    %v4980 = vpop.permute.xlu0 %4979
    %4982 = vst.msk [vmem:[#allocation3 + $0x28] sm:$0xff] %vm283, %v4980
    %v4983 = vld [vmem:[%s947] sm:$0xff]
    %v4984 = vld [vmem:[%s947 + $0x8] sm:$0xff]
    %v4985 = vld [vmem:[%s947 + $0x10] sm:$0xff]
    %v4986 = vld [vmem:[%s947 + $0x18] sm:$0xff]
    %v4987 = vld [vmem:[%s952] sm:$0xff]
    %v4988 = vld [vmem:[%s952 + $0x8] sm:$0xff]
    %v4989 = vld [vmem:[%s952 + $0x10] sm:$0xff]
    %v4990 = vld [vmem:[%s952 + $0x18] sm:$0xff]
    %4992 = vrot.lane.b32.xlu0 %v4795, 32
    %v4993 = vpop.permute.xlu0 %4992
    %v4994 = vsel %vm283, %v4993, 0
    %4996 = vmatprep.subr.mxu0 0.0
    %4997 = vmatpush1.msra.mxu0 %v4987
    %4998 = vmatprep.subr.mxu0 0.0
    %4999 = vmatpush1.msra.mxu0 %v4988
    %5000 = vmatprep.subr.mxu0 0.0
    %5001 = vmatpush1.msra.mxu0 %v4989
    %5002 = vmatprep.subr.mxu0 0.0
    %5003 = vmatpush1.msra.mxu0 %v4990
    %5004 = vmatprep.subr.mxu0 0.0
    %5005 = vmatpush1.msra.mxu0 0.0
    %5006 = vmatprep.subr.mxu0 0.0
    %5007 = vmatpush1.msra.mxu0 0.0
    %5008 = vmatprep.subr.mxu0 0.0
    %5009 = vmatpush1.msra.mxu0 0.0
    %5010 = vmatprep.subr.mxu0 0.0
    %5011 = vmatpush1.msra.mxu0 0.0
    %5012 = vmatprep.subr.mxu0 0.0
    %5013 = vmatpush1.msra.mxu0 0.0
    %5014 = vmatprep.subr.mxu0 0.0
    %5015 = vmatpush1.msra.mxu0 0.0
    %5016 = vmatprep.subr.mxu0 0.0
    %5017 = vmatpush1.msra.mxu0 0.0
    %5018 = vmatprep.subr.mxu0 0.0
    %5019 = vmatpush1.msra.mxu0 0.0
    %5020 = vmatprep.subr.mxu0 0.0
    %5021 = vmatpush1.msra.mxu0 0.0
    %5022 = vmatprep.subr.mxu0 0.0
    %5023 = vmatpush1.msra.mxu0 0.0
    %5024 = vmatprep.subr.mxu0 0.0
    %5025 = vmatpush1.msra.mxu0 0.0
    %5026 = vmatprep.subr.mxu0 0.0
    %5027 = vmatpush1.msra.mxu0 0.0
    %5028 = vmatprep.subr.mxu0 0.0
    %5029 = vmatpush1.msra.mxu0 0.0
    %5030 = vmatprep.subr.mxu0 0.0
    %5031 = vmatpush1.msra.mxu0 0.0
    %5032 = vmatprep.subr.mxu0 0.0
    %5033 = vmatpush1.msra.mxu0 0.0
    %5034 = vmatprep.subr.mxu0 0.0
    %5035 = vmatpush1.msra.mxu0 0.0
    %5036 = vmatprep.subr.mxu0 0.0
    %5037 = vmatpush1.msra.mxu0 0.0
    %5038 = vmatprep.subr.mxu0 0.0
    %5039 = vmatpush1.msra.mxu0 0.0
    %5040 = vmatprep.subr.mxu0 0.0
    %5041 = vmatpush1.msra.mxu0 0.0
    %5042 = vmatprep.subr.mxu0 0.0
    %5043 = vmatpush1.msra.mxu0 0.0
    %5044 = vmatprep.subr.mxu0 0.0
    %5045 = vmatpush1.msra.mxu0 0.0
    %5046 = vmatprep.subr.mxu0 0.0
    %5047 = vmatpush1.msra.mxu0 0.0
    %5048 = vmatprep.subr.mxu0 0.0
    %5049 = vmatpush1.msra.mxu0 0.0
    %5050 = vmatprep.subr.mxu0 0.0
    %5051 = vmatpush1.msra.mxu0 0.0
    %5052 = vmatprep.subr.mxu0 0.0
    %5053 = vmatpush1.msra.mxu0 0.0
    %5054 = vmatprep.subr.mxu0 0.0
    %5055 = vmatpush1.msra.mxu0 0.0
    %5056 = vmatprep.subr.mxu0 0.0
    %5057 = vmatpush1.msra.mxu0 0.0
    %5058 = vmatprep.subr.mxu0 0.0
    %5059 = vmatpush1.msra.mxu0 0.0
    %5060 = vmatprep.mubr.f32.mxu0 0.0
    %5061 = vmatmul.mubr.f32.gmra.mrb[0].mxu0 %v4994
    %v5062 = vpop.f32.mrb[0].mxu0
    %v5063 = vadd.f32 0.0, %v5062
    %v5064 = vpop.f32.mrb[0].mxu0
    %5065 = vdwg.mxu0
    %5067 = vrot.lane.b32.xlu0 %v4610, 32
    %v5068 = vpop.permute.xlu0 %5067
    %v5069 = vsel %vm283, %v5068, 0
    %5071 = vmatprep.subr.mxu0 0.0
    %5072 = vmatpush1.msra.mxu0 %v4983
    %5073 = vmatprep.subr.mxu0 0.0
    %5074 = vmatpush1.msra.mxu0 %v4984
    %5075 = vmatprep.subr.mxu0 0.0
    %5076 = vmatpush1.msra.mxu0 %v4985
    %5077 = vmatprep.subr.mxu0 0.0
    %5078 = vmatpush1.msra.mxu0 %v4986
    %5079 = vmatprep.subr.mxu0 0.0
    %5080 = vmatpush1.msra.mxu0 0.0
    %5081 = vmatprep.subr.mxu0 0.0
    %5082 = vmatpush1.msra.mxu0 0.0
    %5083 = vmatprep.subr.mxu0 0.0
    %5084 = vmatpush1.msra.mxu0 0.0
    %5085 = vmatprep.subr.mxu0 0.0
    %5086 = vmatpush1.msra.mxu0 0.0
    %5087 = vmatprep.subr.mxu0 0.0
    %5088 = vmatpush1.msra.mxu0 0.0
    %5089 = vmatprep.subr.mxu0 0.0
    %5090 = vmatpush1.msra.mxu0 0.0
    %5091 = vmatprep.subr.mxu0 0.0
    %5092 = vmatpush1.msra.mxu0 0.0
    %5093 = vmatprep.subr.mxu0 0.0
    %5094 = vmatpush1.msra.mxu0 0.0
    %5095 = vmatprep.subr.mxu0 0.0
    %5096 = vmatpush1.msra.mxu0 0.0
    %5097 = vmatprep.subr.mxu0 0.0
    %5098 = vmatpush1.msra.mxu0 0.0
    %5099 = vmatprep.subr.mxu0 0.0
    %5100 = vmatpush1.msra.mxu0 0.0
    %5101 = vmatprep.subr.mxu0 0.0
    %5102 = vmatpush1.msra.mxu0 0.0
    %5103 = vmatprep.subr.mxu0 0.0
    %5104 = vmatpush1.msra.mxu0 0.0
    %5105 = vmatprep.subr.mxu0 0.0
    %5106 = vmatpush1.msra.mxu0 0.0
    %5107 = vmatprep.subr.mxu0 0.0
    %5108 = vmatpush1.msra.mxu0 0.0
    %5109 = vmatprep.subr.mxu0 0.0
    %5110 = vmatpush1.msra.mxu0 0.0
    %5111 = vmatprep.subr.mxu0 0.0
    %5112 = vmatpush1.msra.mxu0 0.0
    %5113 = vmatprep.subr.mxu0 0.0
    %5114 = vmatpush1.msra.mxu0 0.0
    %5115 = vmatprep.subr.mxu0 0.0
    %5116 = vmatpush1.msra.mxu0 0.0
    %5117 = vmatprep.subr.mxu0 0.0
    %5118 = vmatpush1.msra.mxu0 0.0
    %5119 = vmatprep.subr.mxu0 0.0
    %5120 = vmatpush1.msra.mxu0 0.0
    %5121 = vmatprep.subr.mxu0 0.0
    %5122 = vmatpush1.msra.mxu0 0.0
    %5123 = vmatprep.subr.mxu0 0.0
    %5124 = vmatpush1.msra.mxu0 0.0
    %5125 = vmatprep.subr.mxu0 0.0
    %5126 = vmatpush1.msra.mxu0 0.0
    %5127 = vmatprep.subr.mxu0 0.0
    %5128 = vmatpush1.msra.mxu0 0.0
    %5129 = vmatprep.subr.mxu0 0.0
    %5130 = vmatpush1.msra.mxu0 0.0
    %5131 = vmatprep.subr.mxu0 0.0
    %5132 = vmatpush1.msra.mxu0 0.0
    %5133 = vmatprep.subr.mxu0 0.0
    %5134 = vmatpush1.msra.mxu0 0.0
    %5135 = vmatprep.mubr.f32.mxu0 0.0
    %5136 = vmatmul.mubr.f32.gmra.mrb[0].mxu0 %v5069
    %v5137 = vpop.f32.mrb[0].mxu0
    %v5138 = vadd.f32 %v5063, %v5137
    %v5139 = vpop.f32.mrb[0].mxu0
    %5140 = vdwg.mxu0
    %v5141 = vld [vmem:[%s1100] sm:$0x1]
    %v5143 = vlaneseq
    %v5144 = vshrl.u32 %v5143, 7
    %v5145 = vsub.s32 0, %v5144
    %v5146 = vrot.slane %v5141, %v5145
    %v5148 = vadd.f32 %v5138, %v5146
    %v5149 = vxor.u32 %v5148, 2147483648
    %v5150 = vmul.f32 %v5149, 1.442695
    %v5151 = vpow.pop %v5150
    %v5152 = vadd.f32 %v5151, 1.0
    %v5153 = vrcp.pop %v5152
    %v5154 = vmul.f32 1.0, %v5153
    %v5155 = vtanh.pop %v5148
    %v5156 = vmul.f32 %v5154, %v4789
    %5158 = vrot.lane.b32.xlu0 %v5155, 64
    %v5159 = vpop.permute.xlu0 %5158
    %v5161 = vmul.f32 %v5154, %v5159
    %5163 = vrot.lane.b32.xlu0 %v5161, 32
    %v5164 = vpop.permute.xlu0 %5163
    %v5166 = vadd.f32 %v5156, %v5164
    %v5167 = vtanh.pop %v5166
    %5169 = vrot.lane.b32.xlu0 %v5167, 64
    %v5170 = vpop.permute.xlu0 %5169
    %v5172 = vmul.f32 %v5154, %v5170
    %v5173 = vld [vmem:[%s1578] sm:$0xff]
    %v5174 = vld [vmem:[%s1578 + $0x8] sm:$0xff]
    %v5175 = vld [vmem:[%s1578 + $0x10] sm:$0xff]
    %v5176 = vld [vmem:[%s1578 + $0x18] sm:$0xff]
    %v5177 = vld [vmem:[%s1583] sm:$0xff]
    %v5178 = vld [vmem:[%s1583 + $0x8] sm:$0xff]
    %v5179 = vld [vmem:[%s1583 + $0x10] sm:$0xff]
    %v5180 = vld [vmem:[%s1583 + $0x18] sm:$0xff]
    %v5181 = vsel %vm283, %v4980, 0
    %5183 = vmatprep.subr.mxu0 0.0
    %5184 = vmatpush1.msra.mxu0 %v5177
    %5185 = vmatprep.subr.mxu0 0.0
    %5186 = vmatpush1.msra.mxu0 %v5178
    %5187 = vmatprep.subr.mxu0 0.0
    %5188 = vmatpush1.msra.mxu0 %v5179
    %5189 = vmatprep.subr.mxu0 0.0
    %5190 = vmatpush1.msra.mxu0 %v5180
    %5191 = vmatprep.subr.mxu0 0.0
    %5192 = vmatpush1.msra.mxu0 0.0
    %5193 = vmatprep.subr.mxu0 0.0
    %5194 = vmatpush1.msra.mxu0 0.0
    %5195 = vmatprep.subr.mxu0 0.0
    %5196 = vmatpush1.msra.mxu0 0.0
    %5197 = vmatprep.subr.mxu0 0.0
    %5198 = vmatpush1.msra.mxu0 0.0
    %5199 = vmatprep.subr.mxu0 0.0
    %5200 = vmatpush1.msra.mxu0 0.0
    %5201 = vmatprep.subr.mxu0 0.0
    %5202 = vmatpush1.msra.mxu0 0.0
    %5203 = vmatprep.subr.mxu0 0.0
    %5204 = vmatpush1.msra.mxu0 0.0
    %5205 = vmatprep.subr.mxu0 0.0
    %5206 = vmatpush1.msra.mxu0 0.0
    %5207 = vmatprep.subr.mxu0 0.0
    %5208 = vmatpush1.msra.mxu0 0.0
    %5209 = vmatprep.subr.mxu0 0.0
    %5210 = vmatpush1.msra.mxu0 0.0
    %5211 = vmatprep.subr.mxu0 0.0
    %5212 = vmatpush1.msra.mxu0 0.0
    %5213 = vmatprep.subr.mxu0 0.0
    %5214 = vmatpush1.msra.mxu0 0.0
    %5215 = vmatprep.subr.mxu0 0.0
    %5216 = vmatpush1.msra.mxu0 0.0
    %5217 = vmatprep.subr.mxu0 0.0
    %5218 = vmatpush1.msra.mxu0 0.0
    %5219 = vmatprep.subr.mxu0 0.0
    %5220 = vmatpush1.msra.mxu0 0.0
    %5221 = vmatprep.subr.mxu0 0.0
    %5222 = vmatpush1.msra.mxu0 0.0
    %5223 = vmatprep.subr.mxu0 0.0
    %5224 = vmatpush1.msra.mxu0 0.0
    %5225 = vmatprep.subr.mxu0 0.0
    %5226 = vmatpush1.msra.mxu0 0.0
    %5227 = vmatprep.subr.mxu0 0.0
    %5228 = vmatpush1.msra.mxu0 0.0
    %5229 = vmatprep.subr.mxu0 0.0
    %5230 = vmatpush1.msra.mxu0 0.0
    %5231 = vmatprep.subr.mxu0 0.0
    %5232 = vmatpush1.msra.mxu0 0.0
    %5233 = vmatprep.subr.mxu0 0.0
    %5234 = vmatpush1.msra.mxu0 0.0
    %5235 = vmatprep.subr.mxu0 0.0
    %5236 = vmatpush1.msra.mxu0 0.0
    %5237 = vmatprep.subr.mxu0 0.0
    %5238 = vmatpush1.msra.mxu0 0.0
    %5239 = vmatprep.subr.mxu0 0.0
    %5240 = vmatpush1.msra.mxu0 0.0
    %5241 = vmatprep.subr.mxu0 0.0
    %5242 = vmatpush1.msra.mxu0 0.0
    %5243 = vmatprep.subr.mxu0 0.0
    %5244 = vmatpush1.msra.mxu0 0.0
    %5245 = vmatprep.subr.mxu0 0.0
    %5246 = vmatpush1.msra.mxu0 0.0
    %5247 = vmatprep.mubr.f32.mxu0 0.0
    %5248 = vmatmul.mubr.f32.gmra.mrb[0].mxu0 %v5181
    %v5249 = vpop.f32.mrb[0].mxu0
    %v5250 = vadd.f32 0.0, %v5249
    %v5251 = vpop.f32.mrb[0].mxu0
    %5252 = vdwg.mxu0
    %5253 = vmatprep.subr.mxu0 0.0
    %5254 = vmatpush1.msra.mxu0 %v5173
    %5255 = vmatprep.subr.mxu0 0.0
    %5256 = vmatpush1.msra.mxu0 %v5174
    %5257 = vmatprep.subr.mxu0 0.0
    %5258 = vmatpush1.msra.mxu0 %v5175
    %5259 = vmatprep.subr.mxu0 0.0
    %5260 = vmatpush1.msra.mxu0 %v5176
    %5261 = vmatprep.subr.mxu0 0.0
    %5262 = vmatpush1.msra.mxu0 0.0
    %5263 = vmatprep.subr.mxu0 0.0
    %5264 = vmatpush1.msra.mxu0 0.0
    %5265 = vmatprep.subr.mxu0 0.0
    %5266 = vmatpush1.msra.mxu0 0.0
    %5267 = vmatprep.subr.mxu0 0.0
    %5268 = vmatpush1.msra.mxu0 0.0
    %5269 = vmatprep.subr.mxu0 0.0
    %5270 = vmatpush1.msra.mxu0 0.0
    %5271 = vmatprep.subr.mxu0 0.0
    %5272 = vmatpush1.msra.mxu0 0.0
    %5273 = vmatprep.subr.mxu0 0.0
    %5274 = vmatpush1.msra.mxu0 0.0
    %5275 = vmatprep.subr.mxu0 0.0
    %5276 = vmatpush1.msra.mxu0 0.0
    %5277 = vmatprep.subr.mxu0 0.0
    %5278 = vmatpush1.msra.mxu0 0.0
    %5279 = vmatprep.subr.mxu0 0.0
    %5280 = vmatpush1.msra.mxu0 0.0
    %5281 = vmatprep.subr.mxu0 0.0
    %5282 = vmatpush1.msra.mxu0 0.0
    %5283 = vmatprep.subr.mxu0 0.0
    %5284 = vmatpush1.msra.mxu0 0.0
    %5285 = vmatprep.subr.mxu0 0.0
    %5286 = vmatpush1.msra.mxu0 0.0
    %5287 = vmatprep.subr.mxu0 0.0
    %5288 = vmatpush1.msra.mxu0 0.0
    %5289 = vmatprep.subr.mxu0 0.0
    %5290 = vmatpush1.msra.mxu0 0.0
    %5291 = vmatprep.subr.mxu0 0.0
    %5292 = vmatpush1.msra.mxu0 0.0
    %5293 = vmatprep.subr.mxu0 0.0
    %5294 = vmatpush1.msra.mxu0 0.0
    %5295 = vmatprep.subr.mxu0 0.0
    %5296 = vmatpush1.msra.mxu0 0.0
    %5297 = vmatprep.subr.mxu0 0.0
    %5298 = vmatpush1.msra.mxu0 0.0
    %5299 = vmatprep.subr.mxu0 0.0
    %5300 = vmatpush1.msra.mxu0 0.0
    %5301 = vmatprep.subr.mxu0 0.0
    %5302 = vmatpush1.msra.mxu0 0.0
    %5303 = vmatprep.subr.mxu0 0.0
    %5304 = vmatpush1.msra.mxu0 0.0
    %5305 = vmatprep.subr.mxu0 0.0
    %5306 = vmatpush1.msra.mxu0 0.0
    %5307 = vmatprep.subr.mxu0 0.0
    %5308 = vmatpush1.msra.mxu0 0.0
    %5309 = vmatprep.subr.mxu0 0.0
    %5310 = vmatpush1.msra.mxu0 0.0
    %5311 = vmatprep.subr.mxu0 0.0
    %5312 = vmatpush1.msra.mxu0 0.0
    %5313 = vmatprep.subr.mxu0 0.0
    %5314 = vmatpush1.msra.mxu0 0.0
    %5315 = vmatprep.subr.mxu0 0.0
    %5316 = vmatpush1.msra.mxu0 0.0
    %5317 = vmatprep.mubr.f32.mxu0 0.0
    %5318 = vmatmul.mubr.f32.gmra.mrb[0].mxu0 %v4994
    %v5319 = vpop.f32.mrb[0].mxu0
    %v5320 = vadd.f32 %v5250, %v5319
    %v5321 = vpop.f32.mrb[0].mxu0
    %5322 = vdwg.mxu0
    %v5323 = vld [vmem:[%s1731] sm:$0x1]
    %v5325 = vlaneseq
    %v5326 = vshrl.u32 %v5325, 7
    %v5327 = vsub.s32 0, %v5326
    %v5328 = vrot.slane %v5323, %v5327
    %v5330 = vadd.f32 %v5320, %v5328
    %v5331 = vxor.u32 %v5330, 2147483648
    %v5332 = vmul.f32 %v5331, 1.442695
    %v5333 = vpow.pop %v5332
    %v5334 = vadd.f32 %v5333, 1.0
    %v5335 = vrcp.pop %v5334
    %v5336 = vmul.f32 1.0, %v5335
    %v5337 = vtanh.pop %v5330
    %v5338 = vmul.f32 %v5336, %v4971
    %5340 = vrot.lane.b32.xlu0 %v5337, 64
    %v5341 = vpop.permute.xlu0 %5340
    %v5343 = vmul.f32 %v5336, %v5341
    %5345 = vrot.lane.b32.xlu0 %v5343, 32
    %v5346 = vpop.permute.xlu0 %5345
    %v5348 = vadd.f32 %v5338, %v5346
    %v5349 = vtanh.pop %v5348
    %5351 = vrot.lane.b32.xlu0 %v5349, 64
    %v5352 = vpop.permute.xlu0 %5351
    %v5354 = vmul.f32 %v5336, %v5352
    %5356 = vrot.lane.b32.xlu0 %v5354, 32
    %v5357 = vpop.permute.xlu0 %5356
    %5359 = vst.msk [vmem:[#allocation3 + $0x30] sm:$0xff] %vm283, %v5357
    %v5360 = vld [vmem:[%s1578] sm:$0xff]
    %v5361 = vld [vmem:[%s1578 + $0x8] sm:$0xff]
    %v5362 = vld [vmem:[%s1578 + $0x10] sm:$0xff]
    %v5363 = vld [vmem:[%s1578 + $0x18] sm:$0xff]
    %v5364 = vld [vmem:[%s1583] sm:$0xff]
    %v5365 = vld [vmem:[%s1583 + $0x8] sm:$0xff]
    %v5366 = vld [vmem:[%s1583 + $0x10] sm:$0xff]
    %v5367 = vld [vmem:[%s1583 + $0x18] sm:$0xff]
    %v5368 = vsel %vm283, %v5357, 0
    %5370 = vmatprep.subr.mxu0 0.0
    %5371 = vmatpush1.msra.mxu0 %v5364
    %5372 = vmatprep.subr.mxu0 0.0
    %5373 = vmatpush1.msra.mxu0 %v5365
    %5374 = vmatprep.subr.mxu0 0.0
    %5375 = vmatpush1.msra.mxu0 %v5366
    %5376 = vmatprep.subr.mxu0 0.0
    %5377 = vmatpush1.msra.mxu0 %v5367
    %5378 = vmatprep.subr.mxu0 0.0
    %5379 = vmatpush1.msra.mxu0 0.0
    %5380 = vmatprep.subr.mxu0 0.0
    %5381 = vmatpush1.msra.mxu0 0.0
    %5382 = vmatprep.subr.mxu0 0.0
    %5383 = vmatpush1.msra.mxu0 0.0
    %5384 = vmatprep.subr.mxu0 0.0
    %5385 = vmatpush1.msra.mxu0 0.0
    %5386 = vmatprep.subr.mxu0 0.0
    %5387 = vmatpush1.msra.mxu0 0.0
    %5388 = vmatprep.subr.mxu0 0.0
    %5389 = vmatpush1.msra.mxu0 0.0
    %5390 = vmatprep.subr.mxu0 0.0
    %5391 = vmatpush1.msra.mxu0 0.0
    %5392 = vmatprep.subr.mxu0 0.0
    %5393 = vmatpush1.msra.mxu0 0.0
    %5394 = vmatprep.subr.mxu0 0.0
    %5395 = vmatpush1.msra.mxu0 0.0
    %5396 = vmatprep.subr.mxu0 0.0
    %5397 = vmatpush1.msra.mxu0 0.0
    %5398 = vmatprep.subr.mxu0 0.0
    %5399 = vmatpush1.msra.mxu0 0.0
    %5400 = vmatprep.subr.mxu0 0.0
    %5401 = vmatpush1.msra.mxu0 0.0
    %5402 = vmatprep.subr.mxu0 0.0
    %5403 = vmatpush1.msra.mxu0 0.0
    %5404 = vmatprep.subr.mxu0 0.0
    %5405 = vmatpush1.msra.mxu0 0.0
    %5406 = vmatprep.subr.mxu0 0.0
    %5407 = vmatpush1.msra.mxu0 0.0
    %5408 = vmatprep.subr.mxu0 0.0
    %5409 = vmatpush1.msra.mxu0 0.0
    %5410 = vmatprep.subr.mxu0 0.0
    %5411 = vmatpush1.msra.mxu0 0.0
    %5412 = vmatprep.subr.mxu0 0.0
    %5413 = vmatpush1.msra.mxu0 0.0
    %5414 = vmatprep.subr.mxu0 0.0
    %5415 = vmatpush1.msra.mxu0 0.0
    %5416 = vmatprep.subr.mxu0 0.0
    %5417 = vmatpush1.msra.mxu0 0.0
    %5418 = vmatprep.subr.mxu0 0.0
    %5419 = vmatpush1.msra.mxu0 0.0
    %5420 = vmatprep.subr.mxu0 0.0
    %5421 = vmatpush1.msra.mxu0 0.0
    %5422 = vmatprep.subr.mxu0 0.0
    %5423 = vmatpush1.msra.mxu0 0.0
    %5424 = vmatprep.subr.mxu0 0.0
    %5425 = vmatpush1.msra.mxu0 0.0
    %5426 = vmatprep.subr.mxu0 0.0
    %5427 = vmatpush1.msra.mxu0 0.0
    %5428 = vmatprep.subr.mxu0 0.0
    %5429 = vmatpush1.msra.mxu0 0.0
    %5430 = vmatprep.subr.mxu0 0.0
    %5431 = vmatpush1.msra.mxu0 0.0
    %5432 = vmatprep.subr.mxu0 0.0
    %5433 = vmatpush1.msra.mxu0 0.0
    %5434 = vmatprep.mubr.f32.mxu0 0.0
    %5435 = vmatmul.mubr.f32.gmra.mrb[0].mxu0 %v5368
    %v5436 = vpop.f32.mrb[0].mxu0
    %v5437 = vadd.f32 0.0, %v5436
    %v5438 = vpop.f32.mrb[0].mxu0
    %5439 = vdwg.mxu0
    %5441 = vrot.lane.b32.xlu0 %v5172, 32
    %v5442 = vpop.permute.xlu0 %5441
    %v5443 = vsel %vm283, %v5442, 0
    %5445 = vmatprep.subr.mxu0 0.0
    %5446 = vmatpush1.msra.mxu0 %v5360
    %5447 = vmatprep.subr.mxu0 0.0
    %5448 = vmatpush1.msra.mxu0 %v5361
    %5449 = vmatprep.subr.mxu0 0.0
    %5450 = vmatpush1.msra.mxu0 %v5362
    %5451 = vmatprep.subr.mxu0 0.0
    %5452 = vmatpush1.msra.mxu0 %v5363
    %5453 = vmatprep.subr.mxu0 0.0
    %5454 = vmatpush1.msra.mxu0 0.0
    %5455 = vmatprep.subr.mxu0 0.0
    %5456 = vmatpush1.msra.mxu0 0.0
    %5457 = vmatprep.subr.mxu0 0.0
    %5458 = vmatpush1.msra.mxu0 0.0
    %5459 = vmatprep.subr.mxu0 0.0
    %5460 = vmatpush1.msra.mxu0 0.0
    %5461 = vmatprep.subr.mxu0 0.0
    %5462 = vmatpush1.msra.mxu0 0.0
    %5463 = vmatprep.subr.mxu0 0.0
    %5464 = vmatpush1.msra.mxu0 0.0
    %5465 = vmatprep.subr.mxu0 0.0
    %5466 = vmatpush1.msra.mxu0 0.0
    %5467 = vmatprep.subr.mxu0 0.0
    %5468 = vmatpush1.msra.mxu0 0.0
    %5469 = vmatprep.subr.mxu0 0.0
    %5470 = vmatpush1.msra.mxu0 0.0
    %5471 = vmatprep.subr.mxu0 0.0
    %5472 = vmatpush1.msra.mxu0 0.0
    %5473 = vmatprep.subr.mxu0 0.0
    %5474 = vmatpush1.msra.mxu0 0.0
    %5475 = vmatprep.subr.mxu0 0.0
    %5476 = vmatpush1.msra.mxu0 0.0
    %5477 = vmatprep.subr.mxu0 0.0
    %5478 = vmatpush1.msra.mxu0 0.0
    %5479 = vmatprep.subr.mxu0 0.0
    %5480 = vmatpush1.msra.mxu0 0.0
    %5481 = vmatprep.subr.mxu0 0.0
    %5482 = vmatpush1.msra.mxu0 0.0
    %5483 = vmatprep.subr.mxu0 0.0
    %5484 = vmatpush1.msra.mxu0 0.0
    %5485 = vmatprep.subr.mxu0 0.0
    %5486 = vmatpush1.msra.mxu0 0.0
    %5487 = vmatprep.subr.mxu0 0.0
    %5488 = vmatpush1.msra.mxu0 0.0
    %5489 = vmatprep.subr.mxu0 0.0
    %5490 = vmatpush1.msra.mxu0 0.0
    %5491 = vmatprep.subr.mxu0 0.0
    %5492 = vmatpush1.msra.mxu0 0.0
    %5493 = vmatprep.subr.mxu0 0.0
    %5494 = vmatpush1.msra.mxu0 0.0
    %5495 = vmatprep.subr.mxu0 0.0
    %5496 = vmatpush1.msra.mxu0 0.0
    %5497 = vmatprep.subr.mxu0 0.0
    %5498 = vmatpush1.msra.mxu0 0.0
    %5499 = vmatprep.subr.mxu0 0.0
    %5500 = vmatpush1.msra.mxu0 0.0
    %5501 = vmatprep.subr.mxu0 0.0
    %5502 = vmatpush1.msra.mxu0 0.0
    %5503 = vmatprep.subr.mxu0 0.0
    %5504 = vmatpush1.msra.mxu0 0.0
    %5505 = vmatprep.subr.mxu0 0.0
    %5506 = vmatpush1.msra.mxu0 0.0
    %5507 = vmatprep.subr.mxu0 0.0
    %5508 = vmatpush1.msra.mxu0 0.0
    %5509 = vmatprep.mubr.f32.mxu0 0.0
    %5510 = vmatmul.mubr.f32.gmra.mrb[0].mxu0 %v5443
    %v5511 = vpop.f32.mrb[0].mxu0
    %v5512 = vadd.f32 %v5437, %v5511
    %v5513 = vpop.f32.mrb[0].mxu0
    %5514 = vdwg.mxu0
    %v5515 = vld [vmem:[%s1731] sm:$0x1]
    %v5517 = vlaneseq
    %v5518 = vshrl.u32 %v5517, 7
    %v5519 = vsub.s32 0, %v5518
    %v5520 = vrot.slane %v5515, %v5519
    %v5522 = vadd.f32 %v5512, %v5520
    %v5523 = vxor.u32 %v5522, 2147483648
    %v5524 = vmul.f32 %v5523, 1.442695
    %v5525 = vpow.pop %v5524
    %v5526 = vadd.f32 %v5525, 1.0
    %v5527 = vrcp.pop %v5526
    %v5528 = vmul.f32 1.0, %v5527
    %v5529 = vtanh.pop %v5522
    %v5530 = vmul.f32 %v5528, %v5348
    %5532 = vrot.lane.b32.xlu0 %v5529, 64
    %v5533 = vpop.permute.xlu0 %5532
    %v5535 = vmul.f32 %v5528, %v5533
    %5537 = vrot.lane.b32.xlu0 %v5535, 32
    %v5538 = vpop.permute.xlu0 %5537
    %v5540 = vadd.f32 %v5530, %v5538
    %v5541 = vtanh.pop %v5540
    %5543 = vrot.lane.b32.xlu0 %v5541, 64
    %v5544 = vpop.permute.xlu0 %5543
    %v5546 = vmul.f32 %v5528, %v5544
    %5548 = vrot.lane.b32.xlu0 %v5546, 32
    %v5549 = vpop.permute.xlu0 %5548
    %5551 = vst.msk [vmem:[#allocation3 + $0x38] sm:$0xff] %vm283, %v5549
    %5553 = vst.msk [vmem:[#allocation14] sm:$0xff] %vm283, %v4506
    %5555 = vrot.lane.b32.xlu0 %v3857, 96
    %v5556 = vpop.permute.xlu0 %5555
    %5558 = vst.msk [vmem:[#allocation16] sm:$0xff] %vm283, %v5556
    %s5560 = scalar_lea.vmem [#allocation14], 8
    %5561 = vst.msk [vmem:[%s5560] sm:$0xff] %vm283, %v5068
    %5563 = vrot.lane.b32.xlu0 %v4604, 96
    %v5564 = vpop.permute.xlu0 %5563
    %s5566 = scalar_lea.vmem [#allocation16], 8
    %5567 = vst.msk [vmem:[%s5566] sm:$0xff] %vm283, %v5564
    %s5569 = scalar_lea.vmem [#allocation14], 16
    %5570 = vst.msk [vmem:[%s5569] sm:$0xff] %vm283, %v5442
    %5572 = vrot.lane.b32.xlu0 %v5166, 96
    %v5573 = vpop.permute.xlu0 %5572
    %s5575 = scalar_lea.vmem [#allocation16], 16
    %5576 = vst.msk [vmem:[%s5575] sm:$0xff] %vm283, %v5573
    %s5577 = scalar_lea.vmem [#allocation14], 24
    %5578 = vst.msk [vmem:[%s5577] sm:$0xff] %vm283, %v5549
    %5580 = vrot.lane.b32.xlu0 %v5540, 96
    %v5581 = vpop.permute.xlu0 %5580
    %s5583 = scalar_lea.vmem [#allocation16], 24
    %5584 = vst.msk [vmem:[%s5583] sm:$0xff] %vm283, %v5581
    %v5585 = vld [vmem:[#allocation3] sm:$0xff]
    %v5586 = vld [vmem:[#allocation3 + $0x8] sm:$0xff]
    %v5587 = vld [vmem:[#allocation3 + $0x10] sm:$0xff]
    %v5588 = vld [vmem:[#allocation3 + $0x18] sm:$0xff]
    %v5589 = vld [vmem:[#allocation3 + $0x20] sm:$0xff]
    %v5590 = vld [vmem:[#allocation3 + $0x28] sm:$0xff]
    %v5591 = vld [vmem:[#allocation3 + $0x30] sm:$0xff]
    %v5592 = vld [vmem:[#allocation3 + $0x38] sm:$0xff]
    %v5593 = vld [vmem:[#allocation12] sm:$0xff]
    %v5594 = vld [vmem:[#allocation12 + $0x8] sm:$0xff]
    %v5595 = vld [vmem:[#allocation12 + $0x10] sm:$0xff]
    %v5596 = vld [vmem:[#allocation12 + $0x18] sm:$0xff]
    %v5597 = vld [vmem:[%s8] sm:$0x1]
    %v5599 = vlaneseq
    %v5600 = vshrl.u32 %v5599, 7
    %v5601 = vsub.s32 0, %v5600
    %v5602 = vrot.slane %v5597, %v5601
    %v5605 = vsel %vm283, %v5585, 0
    %v5608 = vsel %vm283, %v5586, 0
    %v5611 = vsel %vm283, %v5587, 0
    %v5614 = vsel %vm283, %v5588, 0
    %v5617 = vsel %vm283, %v5589, 0
    %v5620 = vsel %vm283, %v5590, 0
    %v5623 = vsel %vm283, %v5591, 0
    %v5626 = vsel %vm283, %v5592, 0
    %5628 = vmatprep.subr.mxu0 0.0
    %5629 = vmatpush1.msra.mxu0 %v5593
    %5630 = vmatprep.subr.mxu0 0.0
    %5631 = vmatpush1.msra.mxu0 %v5594
    %5632 = vmatprep.subr.mxu0 0.0
    %5633 = vmatpush1.msra.mxu0 %v5595
    %5634 = vmatprep.subr.mxu0 0.0
    %5635 = vmatpush1.msra.mxu0 %v5596
    %5636 = vmatprep.subr.mxu0 0.0
    %5637 = vmatpush1.msra.mxu0 0.0
    %5638 = vmatprep.subr.mxu0 0.0
    %5639 = vmatpush1.msra.mxu0 0.0
    %5640 = vmatprep.subr.mxu0 0.0
    %5641 = vmatpush1.msra.mxu0 0.0
    %5642 = vmatprep.subr.mxu0 0.0
    %5643 = vmatpush1.msra.mxu0 0.0
    %5644 = vmatprep.subr.mxu0 0.0
    %5645 = vmatpush1.msra.mxu0 0.0
    %5646 = vmatprep.subr.mxu0 0.0
    %5647 = vmatpush1.msra.mxu0 0.0
    %5648 = vmatprep.subr.mxu0 0.0
    %5649 = vmatpush1.msra.mxu0 0.0
    %5650 = vmatprep.subr.mxu0 0.0
    %5651 = vmatpush1.msra.mxu0 0.0
    %5652 = vmatprep.subr.mxu0 0.0
    %5653 = vmatpush1.msra.mxu0 0.0
    %5654 = vmatprep.subr.mxu0 0.0
    %5655 = vmatpush1.msra.mxu0 0.0
    %5656 = vmatprep.subr.mxu0 0.0
    %5657 = vmatpush1.msra.mxu0 0.0
    %5658 = vmatprep.subr.mxu0 0.0
    %5659 = vmatpush1.msra.mxu0 0.0
    %5660 = vmatprep.subr.mxu0 0.0
    %5661 = vmatpush1.msra.mxu0 0.0
    %5662 = vmatprep.subr.mxu0 0.0
    %5663 = vmatpush1.msra.mxu0 0.0
    %5664 = vmatprep.subr.mxu0 0.0
    %5665 = vmatpush1.msra.mxu0 0.0
    %5666 = vmatprep.subr.mxu0 0.0
    %5667 = vmatpush1.msra.mxu0 0.0
    %5668 = vmatprep.subr.mxu0 0.0
    %5669 = vmatpush1.msra.mxu0 0.0
    %5670 = vmatprep.subr.mxu0 0.0
    %5671 = vmatpush1.msra.mxu0 0.0
    %5672 = vmatprep.subr.mxu0 0.0
    %5673 = vmatpush1.msra.mxu0 0.0
    %5674 = vmatprep.subr.mxu0 0.0
    %5675 = vmatpush1.msra.mxu0 0.0
    %5676 = vmatprep.subr.mxu0 0.0
    %5677 = vmatpush1.msra.mxu0 0.0
    %5678 = vmatprep.subr.mxu0 0.0
    %5679 = vmatpush1.msra.mxu0 0.0
    %5680 = vmatprep.subr.mxu0 0.0
    %5681 = vmatpush1.msra.mxu0 0.0
    %5682 = vmatprep.subr.mxu0 0.0
    %5683 = vmatpush1.msra.mxu0 0.0
    %5684 = vmatprep.subr.mxu0 0.0
    %5685 = vmatpush1.msra.mxu0 0.0
    %5686 = vmatprep.subr.mxu0 0.0
    %5687 = vmatpush1.msra.mxu0 0.0
    %5688 = vmatprep.subr.mxu0 0.0
    %5689 = vmatpush1.msra.mxu0 0.0
    %5690 = vmatprep.subr.mxu0 0.0
    %5691 = vmatpush1.msra.mxu0 0.0
    %5692 = vmatprep.mubr.f32.mxu0 0.0
    %5693 = vmatmul.mubr.f32.gmra.mrb[0].mxu0 %v5605
    %v5694 = vpop.f32.mrb[0].mxu0
    %v5695 = vadd.f32 %v5602, %v5694
    %v5696 = vpop.f32.mrb[0].mxu0
    %5697 = vmatprep.mubr.f32.mxu0 0.0
    %5698 = vmatmul.mubr.f32.gmra.mrb[0].mxu0 %v5608
    %v5699 = vpop.f32.mrb[0].mxu0
    %v5700 = vadd.f32 %v5602, %v5699
    %v5701 = vpop.f32.mrb[0].mxu0
    %5702 = vmatprep.mubr.f32.mxu0 0.0
    %5703 = vmatmul.mubr.f32.gmra.mrb[0].mxu0 %v5611
    %v5704 = vpop.f32.mrb[0].mxu0
    %v5705 = vadd.f32 %v5602, %v5704
    %v5706 = vpop.f32.mrb[0].mxu0
    %5707 = vmatprep.mubr.f32.mxu0 0.0
    %5708 = vmatmul.mubr.f32.gmra.mrb[0].mxu0 %v5614
    %v5709 = vpop.f32.mrb[0].mxu0
    %v5710 = vadd.f32 %v5602, %v5709
    %v5711 = vpop.f32.mrb[0].mxu0
    %5712 = vmatprep.mubr.f32.mxu0 0.0
    %5713 = vmatmul.mubr.f32.gmra.mrb[0].mxu0 %v5617
    %v5714 = vpop.f32.mrb[0].mxu0
    %v5715 = vadd.f32 %v5602, %v5714
    %v5716 = vpop.f32.mrb[0].mxu0
    %5717 = vmatprep.mubr.f32.mxu0 0.0
    %5718 = vmatmul.mubr.f32.gmra.mrb[0].mxu0 %v5620
    %v5719 = vpop.f32.mrb[0].mxu0
    %v5720 = vadd.f32 %v5602, %v5719
    %v5721 = vpop.f32.mrb[0].mxu0
    %5722 = vmatprep.mubr.f32.mxu0 0.0
    %5723 = vmatmul.mubr.f32.gmra.mrb[0].mxu0 %v5623
    %v5724 = vpop.f32.mrb[0].mxu0
    %v5725 = vadd.f32 %v5602, %v5724
    %v5726 = vpop.f32.mrb[0].mxu0
    %5727 = vmatprep.mubr.f32.mxu0 0.0
    %5728 = vmatmul.mubr.f32.gmra.mrb[0].mxu0 %v5626
    %v5729 = vpop.f32.mrb[0].mxu0
    %v5730 = vadd.f32 %v5602, %v5729
    %v5731 = vpop.f32.mrb[0].mxu0
    %5732 = vdwg.mxu0
    %5733 = vst [vmem:[#allocation13] sm:$0xff] %v5695
    %5734 = vst [vmem:[#allocation13 + $0x8] sm:$0xff] %v5700
    %5735 = vst [vmem:[#allocation13 + $0x10] sm:$0xff] %v5705
    %5736 = vst [vmem:[#allocation13 + $0x18] sm:$0xff] %v5710
    %5737 = vst [vmem:[#allocation13 + $0x20] sm:$0xff] %v5715
    %5738 = vst [vmem:[#allocation13 + $0x28] sm:$0xff] %v5720
    %5739 = vst [vmem:[#allocation13 + $0x30] sm:$0xff] %v5725
    %5740 = vst [vmem:[#allocation13 + $0x38] sm:$0xff] %v5730
    // Predicated region
    $region58: #{tpu_custom_call.1} parent=1 // pred_check
      _
    $region59: #{tpu_custom_call.1} parent=1 // pred_check_branch
      %5742 = sbr.rel (0) target = $region61
    $region60: #{tpu_custom_call.1} parent=1 // pred_region
      %s5744 = ssub.s32 1024, 1024
      %5745 = vsyncadd [#allocation6], %s5744
      %s5746 = sshll.u32 [#allocation13], 4
      %s5747 = int_to_ptr.vmem [resolvable:$true] %s5746
      %5752 = dma.vmem_to_hbm [thread:$0]  %s5747, 1024, %s9, [#allocation6], 128, 128, 8
    $region61: #{tpu_custom_call.1} parent=1 // pred_fallthru
      _
    // Predicated region
    $region62: #{tpu_custom_call.1} parent=1 // pred_check
      _
    $region63: #{tpu_custom_call.1} parent=1 // pred_check_branch
      %5754 = sbr.rel (0) target = $region65
    $region64: #{tpu_custom_call.1} parent=1 // pred_region
      %s5756 = ssub.s32 512, 512
      %5757 = vsyncadd [#allocation15], %s5756
      %s5758 = sshll.u32 [#allocation14], 4
      %s5759 = int_to_ptr.vmem [resolvable:$true] %s5758
      %5764 = dma.vmem_to_hbm [thread:$0]  %s5759, 512, %s10, [#allocation15], 128, 128, 8
    $region65: #{tpu_custom_call.1} parent=1 // pred_fallthru
      _
    // Predicated region
    $region66: #{tpu_custom_call.1} parent=1 // pred_check
      _
    $region67: #{tpu_custom_call.1} parent=1 // pred_check_branch
      %5766 = sbr.rel (0) target = $region69
    $region68: #{tpu_custom_call.1} parent=1 // pred_region
      %s5768 = ssub.s32 512, 512
      %5769 = vsyncadd [#allocation15], %s5768
      %s5770 = sshll.u32 [#allocation16], 4
      %s5771 = int_to_ptr.vmem [resolvable:$true] %s5770
      %5776 = dma.vmem_to_hbm [thread:$0]  %s5771, 512, %s11, [#allocation15], 128, 128, 8
    $region69: #{tpu_custom_call.1} parent=1 // pred_fallthru
      _
    // Predicated region
    $region70: #{tpu_custom_call.1} parent=1 // pred_check
      _
    $region71: #{tpu_custom_call.1} parent=1 // pred_check_branch
      %5778 = sbr.rel (0) target = $region73
    $region72: #{tpu_custom_call.1} parent=1 // pred_region
      %5779 = dma.done [#allocation6], 1024
    $region73: #{tpu_custom_call.1} parent=1 // pred_fallthru
      _
    // Predicated region
    $region74: #{tpu_custom_call.1} parent=1 // pred_check
      _
    $region75: #{tpu_custom_call.1} parent=1 // pred_check_branch
      %5781 = sbr.rel (0) target = $region77
    $region76: #{tpu_custom_call.1} parent=1 // pred_region
      %5782 = dma.done [#allocation15], 512
    $region77: #{tpu_custom_call.1} parent=1 // pred_fallthru
      _
    // Predicated region
    $region78: #{tpu_custom_call.1} parent=1 // pred_check
      _
    $region79: #{tpu_custom_call.1} parent=1 // pred_check_branch
      %5784 = sbr.rel (0) target = $region81
    $region80: #{tpu_custom_call.1} parent=1 // pred_region
      %5785 = dma.done [#allocation15], 512
    $region81: #{tpu_custom_call.1} parent=1 // pred_fallthru
      _
    %5786 = vsyncpa [#allocation5], 1
    %5787 = vsyncpa [#allocation8], 1
    %5788 = vsyncpa [#allocation11], 1
    %5789 = vsyncpa [#allocation6], 1
    %5790 = vsyncpa [#allocation15], 1

</llo_original>
